<compile_context>
chip_gen: v5e
topology: v5e:2x2
jax: 0.10.0
libtpu: 0.0.40
codegen_flags: <defaults>
</compile_context>

<pallas_src>
import functools

import jax
import jax.numpy as jnp
import numpy as np
from jax import lax
from jax.experimental import pallas as pl
from jax.experimental.pallas import tpu as pltpu


def _unet_up_block_kernel(x_ref, br_ref, sp_ref, wup_ref, bup_ref,
                          w1_ref, b1_ref, w2_ref, b2_ref, wid_ref, bid_ref,
                          o_ref, *, relu_slope):
    f32 = jnp.float32
    H, W, Cin = x_ref.shape
    H2, W2, C = br_ref.shape          # H2 = 2H, W2 = 2W
    N = H2 * W2

    x = x_ref[...].astype(f32)        # (H, W, Cin)
    br = br_ref[...].astype(f32)      # (H2, W2, C)

    # ---- ConvTranspose2d(k=2, s=2, bias=True): one MXU matmul over all 4 taps
    # wup columns are ordered (dy, dx, co).
    q = jnp.dot(x.reshape(H * W, Cin), wup_ref[...].astype(f32),
                preferred_element_type=f32)                      # (H*W, 4*C)
    quad = [q[:, i * C:(i + 1) * C].reshape(H, W, C) for i in range(4)]

    # W-interleave via constant 0/1 spread matrices: sp[dx][2w+dx, w] = 1.
    sp0 = jnp.broadcast_to(sp_ref[0].astype(f32), (H, W2, W))
    sp1 = jnp.broadcast_to(sp_ref[1].astype(f32), (H, W2, W))
    row0 = (jnp.einsum('hxw,hwc->hxc', sp0, quad[0], preferred_element_type=f32)
            + jnp.einsum('hxw,hwc->hxc', sp1, quad[1], preferred_element_type=f32))
    row1 = (jnp.einsum('hxw,hwc->hxc', sp0, quad[2], preferred_element_type=f32)
            + jnp.einsum('hxw,hwc->hxc', sp1, quad[3], preferred_element_type=f32))
    # H-interleave: free leading-dim stack + merge.
    up = jnp.concatenate([row0[:, None], row1[:, None]], axis=1).reshape(H2, W2, C)
    up = up + bup_ref[...].reshape(1, 1, C)                       # (H2, W2, C)

    # zero-pad H/W by 1 for the two 3x3 "same" convolutions
    def pad_hw(a):
        Hh, Ww, Ci = a.shape
        zr = jnp.zeros((1, Ww, Ci), f32)
        a = jnp.concatenate([zr, a, zr], axis=0)
        zc = jnp.zeros((Hh + 2, 1, Ci), f32)
        return jnp.concatenate([zc, a, zc], axis=1)

    def conv3x3_acc(a_pad, taps, acc):
        # a_pad: (H2+2, W2+2, Ci); taps(t) -> (Ci, Co); 9-tap MXU accumulation
        Ci = a_pad.shape[-1]
        for ky in range(3):
            for kx in range(3):
                patch = a_pad[ky:ky + H2, kx:kx + W2, :].reshape(N, Ci)
                acc = acc + jnp.dot(patch, taps(ky * 3 + kx),
                                    preferred_element_type=f32)
        return acc

    def lrelu(a):
        return jnp.where(a >= 0, a, relu_slope * a)

    # cat([up, bridge]) is never materialized: weights are split per source.
    w1 = w1_ref[...].astype(f32)      # (9, 2C, C) rows [:C] -> up, [C:] -> bridge
    w2 = w2_ref[...].astype(f32)      # (9, C, C)
    wid = wid_ref[...].astype(f32)    # (2C, C)

    up_p = pad_hw(up)
    br_p = pad_hw(br)

    # conv_1 + LeakyReLU
    acc1 = jnp.zeros((N, C), f32) + b1_ref[...].astype(f32)
    acc1 = conv3x3_acc(up_p, lambda t: w1[t, :C, :], acc1)
    acc1 = conv3x3_acc(br_p, lambda t: w1[t, C:, :], acc1)
    t1 = lrelu(acc1)                                              # (N, C)

    # conv_2 + LeakyReLU
    t1_p = pad_hw(t1.reshape(H2, W2, C))
    acc2 = jnp.zeros((N, C), f32) + b2_ref[...].astype(f32)
    acc2 = conv3x3_acc(t1_p, lambda t: w2[t], acc2)
    t2 = lrelu(acc2)                                              # (N, C)

    # identity 1x1 conv on cat([up, bridge]) (split weights) + residual add
    ident = (jnp.dot(up.reshape(N, C), wid[:C, :], preferred_element_type=f32)
             + jnp.dot(br.reshape(N, C), wid[C:, :], preferred_element_type=f32)
             + bid_ref[...].astype(f32))

    out = t2 + ident                                              # (N, C)
    # Store NCHW-flat (C, H2*W2): lane-dense stores, no wrapper transpose.
    o_ref[...] = out.T.astype(o_ref.dtype)


def unet_up_block_pallas(x, bridge, params, relu_slope=0.2):
    """x: (B, in_size, H, W) NCHW; bridge: (B, out_size, 2H, 2W) NCHW."""
    B, Cin, H, W = x.shape
    C = params["up_w"].shape[1]
    H2, W2 = 2 * H, 2 * W
    assert bridge.shape == (B, C, H2, W2), bridge.shape

    # NCHW -> NHWC for the activations (channel-last MXU matmuls). The output
    # comes back from the kernel already NCHW-flat, so there is no output-side
    # layout pass.
    x_nhwc = jnp.transpose(x, (0, 2, 3, 1))
    br_nhwc = jnp.transpose(bridge, (0, 2, 3, 1))

    # Constant 0/1 spread matrices used for the in-kernel W-interleave.
    eye = jnp.eye(W, dtype=jnp.float32)
    sp = jnp.zeros((2, W2, W), jnp.float32)
    sp = sp.at[0, 0::2, :].set(eye).at[1, 1::2, :].set(eye)

    # Weight layout plumbing (tiny tensors, done once by XLA).
    wup = jnp.transpose(params["up_w"], (0, 2, 3, 1)).reshape(Cin, 4 * C)  # (ci,(dy,dx,co))
    bup = params["up_b"].reshape(1, C)
    w1 = jnp.transpose(params["conv1_w"], (2, 3, 1, 0)).reshape(9, 2 * C, C)
    b1 = params["conv1_b"].reshape(1, C)
    w2 = jnp.transpose(params["conv2_w"], (2, 3, 1, 0)).reshape(9, C, C)
    b2 = params["conv2_b"].reshape(1, C)
    wid = params["id_w"].reshape(C, 2 * C).T                               # (2C, C)
    bid = params["id_b"].reshape(1, C)

    kernel = functools.partial(_unet_up_block_kernel, relu_slope=relu_slope)

    out = pl.pallas_call(
        kernel,
        out_shape=jax.ShapeDtypeStruct((B, C, H2 * W2), x.dtype),
        grid_spec=pltpu.PrefetchScalarGridSpec(
            num_scalar_prefetch=0,
            grid=(B,),
            in_specs=[
                pl.BlockSpec((None, H, W, Cin), lambda b: (b, 0, 0, 0)),
                pl.BlockSpec((None, H2, W2, C), lambda b: (b, 0, 0, 0)),
                pl.BlockSpec((2, W2, W), lambda b: (0, 0, 0)),
                pl.BlockSpec((Cin, 4 * C), lambda b: (0, 0)),
                pl.BlockSpec((1, C), lambda b: (0, 0)),
                pl.BlockSpec((9, 2 * C, C), lambda b: (0, 0, 0)),
                pl.BlockSpec((1, C), lambda b: (0, 0)),
                pl.BlockSpec((9, C, C), lambda b: (0, 0, 0)),
                pl.BlockSpec((1, C), lambda b: (0, 0)),
                pl.BlockSpec((2 * C, C), lambda b: (0, 0)),
                pl.BlockSpec((1, C), lambda b: (0, 0)),
            ],
            out_specs=pl.BlockSpec((None, C, H2 * W2), lambda b: (b, 0, 0)),
        ),
        compiler_params=pltpu.CompilerParams(
            dimension_semantics=("parallel",),
            vmem_limit_bytes=48 * 1024 * 1024,
        ),
    )(x_nhwc, br_nhwc, sp, wup, bup, w1, b1, w2, b2, wid, bid)

    # Free row-major reshape: (B, C, H2*W2) -> (B, C, H2, W2), already NCHW.
    return out.reshape(B, C, H2, W2)


def unet_up_block_ref(x, bridge, params, relu_slope=0.2):
    """Pure-JAX reference matching the PyTorch UNetUpBlock forward."""
    f32 = jnp.float32
    x = x.astype(f32)
    bridge = bridge.astype(f32)
    B, Cin, H, W = x.shape
    C = params["up_w"].shape[1]

    # ConvTranspose2d(k=2, s=2, bias=True)
    q = jnp.einsum('bihw,ioyx->bohywx', x, params["up_w"].astype(f32),
                   precision=lax.Precision.HIGHEST)
    up = q.reshape(B, C, 2 * H, 2 * W) + params["up_b"].astype(f32)[None, :, None, None]
    cat = jnp.concatenate([up, bridge], axis=1)

    def conv(a, w, b, pad):
        out = lax.conv_general_dilated(
            a, w.astype(f32), window_strides=(1, 1), padding=pad,
            dimension_numbers=("NCHW", "OIHW", "NCHW"),
            precision=lax.Precision.HIGHEST)
        return out + b.astype(f32)[None, :, None, None]

    def lrelu(a):
        return jnp.where(a >= 0, a, relu_slope * a)

    t = lrelu(conv(cat, params["conv1_w"], params["conv1_b"], ((1, 1), (1, 1))))
    t = lrelu(conv(t, params["conv2_w"], params["conv2_b"], ((1, 1), (1, 1))))
    ident = conv(cat, params["id_w"], params["id_b"], ((0, 0), (0, 0)))
    return t + ident


if __name__ == "__main__":
    key = jax.random.PRNGKey(0)
    ks = jax.random.split(key, 10)

    B, in_size, out_size, H, W = 2, 8, 4, 8, 8
    relu_slope = 0.2

    x = jax.random.normal(ks[0], (B, in_size, H, W), dtype=jnp.float32)
    bridge = jax.random.normal(ks[1], (B, out_size, 2 * H, 2 * W), dtype=jnp.float32)

    params = {
        # ConvTranspose2d(in_size, out_size, 2, stride=2, bias=True): (in, out, kh, kw)
        "up_w": 0.2 * jax.random.normal(ks[2], (in_size, out_size, 2, 2), jnp.float32),
        "up_b": 0.1 * jax.random.normal(ks[3], (out_size,), jnp.float32),
        # conv_1: Conv2d(2*out, out, 3, padding=1, bias=True): (out, in, kh, kw)
        "conv1_w": 0.2 * jax.random.normal(ks[4], (out_size, 2 * out_size, 3, 3), jnp.float32),
        "conv1_b": 0.1 * jax.random.normal(ks[5], (out_size,), jnp.float32),
        # conv_2: Conv2d(out, out, 3, padding=1, bias=True)
        "conv2_w": 0.2 * jax.random.normal(ks[6], (out_size, out_size, 3, 3), jnp.float32),
        "conv2_b": 0.1 * jax.random.normal(ks[7], (out_size,), jnp.float32),
        # identity: Conv2d(2*out, out, 1, bias=True)
        "id_w": 0.2 * jax.random.normal(ks[8], (out_size, 2 * out_size, 1, 1), jnp.float32),
        "id_b": 0.1 * jax.random.normal(ks[9], (out_size,), jnp.float32),
    }

    out = jax.block_until_ready(unet_up_block_pallas(x, bridge, params, relu_slope))
    ref = jax.block_until_ready(unet_up_block_ref(x, bridge, params, relu_slope))

    assert out.shape == (B, out_size, 2 * H, 2 * W), out.shape
    np.testing.assert_allclose(np.asarray(out), np.asarray(ref), rtol=5e-3, atol=5e-3)

    print("KERNEL_OK")
</pallas_src>

<mosaic_0001>
module attributes {stable_mosaic.version = 11 : i64} {
  func.func @_unet_up_block_kernel(%arg0: i32, %arg1: memref<1x8x8x8xf32, #tpu.memory_space<vmem>>, %arg2: memref<1x16x16x4xf32, #tpu.memory_space<vmem>>, %arg3: memref<2x16x8xf32, #tpu.memory_space<vmem>>, %arg4: memref<8x16xf32, #tpu.memory_space<vmem>>, %arg5: memref<1x4xf32, #tpu.memory_space<vmem>>, %arg6: memref<9x8x4xf32, #tpu.memory_space<vmem>>, %arg7: memref<1x4xf32, #tpu.memory_space<vmem>>, %arg8: memref<9x4x4xf32, #tpu.memory_space<vmem>>, %arg9: memref<1x4xf32, #tpu.memory_space<vmem>>, %arg10: memref<8x4xf32, #tpu.memory_space<vmem>>, %arg11: memref<1x4xf32, #tpu.memory_space<vmem>>, %arg12: memref<1x4x256xf32, #tpu.memory_space<vmem>>) attributes {dimension_semantics = [#tpu.dimension_semantics<parallel>], iteration_bounds = array<i64: 2>, scalar_prefetch = 0 : i64, scratch_operands = 0 : i64, tpu.core_type = #tpu.core_type<tc>, window_params = [{transform_indices = @transform_0, window_bounds = array<i64: 1, 8, 8, 8>}, {transform_indices = @transform_1, window_bounds = array<i64: 1, 16, 16, 4>}, {pipeline_mode = #tpu.pipeline_mode<synchronous>, transform_indices = @transform_2, window_bounds = array<i64: 2, 16, 8>}, {pipeline_mode = #tpu.pipeline_mode<synchronous>, transform_indices = @transform_3, window_bounds = array<i64: 8, 16>}, {pipeline_mode = #tpu.pipeline_mode<synchronous>, transform_indices = @transform_4, window_bounds = array<i64: 1, 4>}, {pipeline_mode = #tpu.pipeline_mode<synchronous>, transform_indices = @transform_5, window_bounds = array<i64: 9, 8, 4>}, {pipeline_mode = #tpu.pipeline_mode<synchronous>, transform_indices = @transform_6, window_bounds = array<i64: 1, 4>}, {pipeline_mode = #tpu.pipeline_mode<synchronous>, transform_indices = @transform_7, window_bounds = array<i64: 9, 4, 4>}, {pipeline_mode = #tpu.pipeline_mode<synchronous>, transform_indices = @transform_8, window_bounds = array<i64: 1, 4>}, {pipeline_mode = #tpu.pipeline_mode<synchronous>, transform_indices = @transform_9, window_bounds = array<i64: 8, 4>}, {pipeline_mode = #tpu.pipeline_mode<synchronous>, transform_indices = @transform_10, window_bounds = array<i64: 1, 4>}, {transform_indices = @transform_11, window_bounds = array<i64: 1, 4, 256>}]} {
    %c0 = arith.constant 0 : index
    %c0_0 = arith.constant 0 : index
    %c0_1 = arith.constant 0 : index
    %c0_2 = arith.constant 0 : index
    %0 = vector.load %arg1[%c0, %c0_0, %c0_1, %c0_2] : memref<1x8x8x8xf32, #tpu.memory_space<vmem>>, vector<1x8x8x8xf32>
    %1 = vector.shape_cast %0 : vector<1x8x8x8xf32> to vector<8x8x8xf32>
    %c0_3 = arith.constant 0 : index
    %c0_4 = arith.constant 0 : index
    %c0_5 = arith.constant 0 : index
    %c0_6 = arith.constant 0 : index
    %2 = vector.load %arg2[%c0_3, %c0_4, %c0_5, %c0_6] : memref<1x16x16x4xf32, #tpu.memory_space<vmem>>, vector<1x16x16x4xf32>
    %3 = vector.shape_cast %2 : vector<1x16x16x4xf32> to vector<16x16x4xf32>
    %4 = vector.shape_cast %1 : vector<8x8x8xf32> to vector<64x8xf32>
    %c0_7 = arith.constant 0 : index
    %c0_8 = arith.constant 0 : index
    %5 = vector.load %arg4[%c0_7, %c0_8] : memref<8x16xf32, #tpu.memory_space<vmem>>, vector<8x16xf32>
    %cst = arith.constant dense<0.000000e+00> : vector<64x16xf32>
    %6 = tpu.matmul %4, %5, %cst {dimension_numbers = #tpu.dot_dimension_numbers<[1], [0], [0], [1], [0, 0, 1, 1], [], []>} : vector<64x8xf32>, vector<8x16xf32>, vector<64x16xf32> -> vector<64x16xf32>
    %7 = vector.extract_strided_slice %6 {offsets = [0, 0], sizes = [64, 4], strides = [1, 1]} : vector<64x16xf32> to vector<64x4xf32>
    %8 = vector.shape_cast %7 : vector<64x4xf32> to vector<8x8x4xf32>
    %9 = vector.extract_strided_slice %6 {offsets = [0, 4], sizes = [64, 4], strides = [1, 1]} : vector<64x16xf32> to vector<64x4xf32>
    %10 = vector.shape_cast %9 : vector<64x4xf32> to vector<8x8x4xf32>
    %11 = vector.extract_strided_slice %6 {offsets = [0, 8], sizes = [64, 4], strides = [1, 1]} : vector<64x16xf32> to vector<64x4xf32>
    %12 = vector.shape_cast %11 : vector<64x4xf32> to vector<8x8x4xf32>
    %13 = vector.extract_strided_slice %6 {offsets = [0, 12], sizes = [64, 4], strides = [1, 1]} : vector<64x16xf32> to vector<64x4xf32>
    %14 = vector.shape_cast %13 : vector<64x4xf32> to vector<8x8x4xf32>
    %c0_9 = arith.constant 0 : index
    %c0_10 = arith.constant 0 : index
    %c0_11 = arith.constant 0 : index
    %15 = vector.load %arg3[%c0_9, %c0_10, %c0_11] : memref<2x16x8xf32, #tpu.memory_space<vmem>>, vector<1x16x8xf32>
    %16 = vector.shape_cast %15 : vector<1x16x8xf32> to vector<16x8xf32>
    %17 = vector.shape_cast %16 : vector<16x8xf32> to vector<1x16x8xf32>
    %18 = vector.broadcast %17 : vector<1x16x8xf32> to vector<8x16x8xf32>
    %c1 = arith.constant 1 : index
    %c0_12 = arith.constant 0 : index
    %c0_13 = arith.constant 0 : index
    %19 = vector.load %arg3[%c1, %c0_12, %c0_13] : memref<2x16x8xf32, #tpu.memory_space<vmem>>, vector<1x16x8xf32>
    %20 = vector.shape_cast %19 : vector<1x16x8xf32> to vector<16x8xf32>
    %21 = vector.shape_cast %20 : vector<16x8xf32> to vector<1x16x8xf32>
    %22 = vector.broadcast %21 : vector<1x16x8xf32> to vector<8x16x8xf32>
    "tpu.trace_start"() <{level = 10 : i32, message = "hxw,hwc->hxc"}> : () -> ()
    %cst_14 = arith.constant dense<0.000000e+00> : vector<8x16x4xf32>
    %23 = tpu.matmul %18, %8, %cst_14 {dimension_numbers = #tpu.dot_dimension_numbers<[2], [1], [1], [2], [0, 0, 0, 1, 1, 2], [0], [0]>} : vector<8x16x8xf32>, vector<8x8x4xf32>, vector<8x16x4xf32> -> vector<8x16x4xf32>
    %cst_15 = arith.constant dense<0.000000e+00> : vector<8x16x4xf32>
    %24 = tpu.matmul %22, %10, %cst_15 {dimension_numbers = #tpu.dot_dimension_numbers<[2], [1], [1], [2], [0, 0, 0, 1, 1, 2], [0], [0]>} : vector<8x16x8xf32>, vector<8x8x4xf32>, vector<8x16x4xf32> -> vector<8x16x4xf32>
    "tpu.trace_stop"() : () -> ()
    %25 = arith.addf %23, %24 : vector<8x16x4xf32>
    "tpu.trace_start"() <{level = 10 : i32, message = "hxw,hwc->hxc"}> : () -> ()
    %cst_16 = arith.constant dense<0.000000e+00> : vector<8x16x4xf32>
    %26 = tpu.matmul %18, %12, %cst_16 {dimension_numbers = #tpu.dot_dimension_numbers<[2], [1], [1], [2], [0, 0, 0, 1, 1, 2], [0], [0]>} : vector<8x16x8xf32>, vector<8x8x4xf32>, vector<8x16x4xf32> -> vector<8x16x4xf32>
    %cst_17 = arith.constant dense<0.000000e+00> : vector<8x16x4xf32>
    %27 = tpu.matmul %22, %14, %cst_17 {dimension_numbers = #tpu.dot_dimension_numbers<[2], [1], [1], [2], [0, 0, 0, 1, 1, 2], [0], [0]>} : vector<8x16x8xf32>, vector<8x8x4xf32>, vector<8x16x4xf32> -> vector<8x16x4xf32>
    "tpu.trace_stop"() : () -> ()
    %28 = arith.addf %26, %27 : vector<8x16x4xf32>
    %29 = vector.shape_cast %25 : vector<8x16x4xf32> to vector<8x1x16x4xf32>
    %30 = vector.shape_cast %28 : vector<8x16x4xf32> to vector<8x1x16x4xf32>
    %31 = tpu.concatenate %29, %30 in 1 : vector<8x1x16x4xf32>, vector<8x1x16x4xf32> -> vector<8x2x16x4xf32>
    %32 = vector.shape_cast %31 : vector<8x2x16x4xf32> to vector<16x16x4xf32>
    %c0_18 = arith.constant 0 : index
    %c0_19 = arith.constant 0 : index
    %33 = vector.load %arg5[%c0_18, %c0_19] : memref<1x4xf32, #tpu.memory_space<vmem>>, vector<1x4xf32>
    %34 = vector.shape_cast %33 : vector<1x4xf32> to vector<1x1x4xf32>
    %35 = vector.broadcast %34 : vector<1x1x4xf32> to vector<16x16x4xf32>
    %36 = arith.addf %32, %35 : vector<16x16x4xf32>
    %c0_20 = arith.constant 0 : index
    %c0_21 = arith.constant 0 : index
    %c0_22 = arith.constant 0 : index
    %37 = vector.load %arg6[%c0_20, %c0_21, %c0_22] : memref<9x8x4xf32, #tpu.memory_space<vmem>>, vector<9x8x4xf32>
    %c0_23 = arith.constant 0 : index
    %c0_24 = arith.constant 0 : index
    %c0_25 = arith.constant 0 : index
    %38 = vector.load %arg8[%c0_23, %c0_24, %c0_25] : memref<9x4x4xf32, #tpu.memory_space<vmem>>, vector<9x4x4xf32>
    %c0_26 = arith.constant 0 : index
    %c0_27 = arith.constant 0 : index
    %39 = vector.load %arg10[%c0_26, %c0_27] : memref<8x4xf32, #tpu.memory_space<vmem>>, vector<8x4xf32>
    %cst_28 = arith.constant 0.000000e+00 : f32
    %40 = vector.broadcast %cst_28 : f32 to vector<1x16x4xf32>
    %41 = tpu.concatenate %40, %36, %40 in 0 : vector<1x16x4xf32>, vector<16x16x4xf32>, vector<1x16x4xf32> -> vector<18x16x4xf32>
    %cst_29 = arith.constant 0.000000e+00 : f32
    %42 = vector.broadcast %cst_29 : f32 to vector<18x1x4xf32>
    %43 = tpu.concatenate %42, %41, %42 in 1 : vector<18x1x4xf32>, vector<18x16x4xf32>, vector<18x1x4xf32> -> vector<18x18x4xf32>
    %cst_30 = arith.constant 0.000000e+00 : f32
    %44 = vector.broadcast %cst_30 : f32 to vector<1x16x4xf32>
    %45 = tpu.concatenate %44, %3, %44 in 0 : vector<1x16x4xf32>, vector<16x16x4xf32>, vector<1x16x4xf32> -> vector<18x16x4xf32>
    %cst_31 = arith.constant 0.000000e+00 : f32
    %46 = vector.broadcast %cst_31 : f32 to vector<18x1x4xf32>
    %47 = tpu.concatenate %46, %45, %46 in 1 : vector<18x1x4xf32>, vector<18x16x4xf32>, vector<18x1x4xf32> -> vector<18x18x4xf32>
    %cst_32 = arith.constant 0.000000e+00 : f32
    %48 = vector.broadcast %cst_32 : f32 to vector<256x4xf32>
    %c0_33 = arith.constant 0 : index
    %c0_34 = arith.constant 0 : index
    %49 = vector.load %arg7[%c0_33, %c0_34] : memref<1x4xf32, #tpu.memory_space<vmem>>, vector<1x4xf32>
    %50 = vector.broadcast %49 : vector<1x4xf32> to vector<256x4xf32>
    %51 = arith.addf %48, %50 : vector<256x4xf32>
    %52 = vector.extract_strided_slice %43 {offsets = [0, 0, 0], sizes = [16, 16, 4], strides = [1, 1, 1]} : vector<18x18x4xf32> to vector<16x16x4xf32>
    %53 = vector.shape_cast %52 : vector<16x16x4xf32> to vector<256x4xf32>
    %54 = vector.extract_strided_slice %37 {offsets = [0, 0, 0], sizes = [1, 4, 4], strides = [1, 1, 1]} : vector<9x8x4xf32> to vector<1x4x4xf32>
    %55 = vector.shape_cast %54 : vector<1x4x4xf32> to vector<4x4xf32>
    %cst_35 = arith.constant dense<0.000000e+00> : vector<256x4xf32>
    %56 = tpu.matmul %53, %55, %cst_35 {dimension_numbers = #tpu.dot_dimension_numbers<[1], [0], [0], [1], [0, 0, 1, 1], [], []>} : vector<256x4xf32>, vector<4x4xf32>, vector<256x4xf32> -> vector<256x4xf32>
    %57 = arith.addf %51, %56 : vector<256x4xf32>
    %58 = vector.extract_strided_slice %43 {offsets = [0, 1, 0], sizes = [16, 16, 4], strides = [1, 1, 1]} : vector<18x18x4xf32> to vector<16x16x4xf32>
    %59 = vector.shape_cast %58 : vector<16x16x4xf32> to vector<256x4xf32>
    %60 = vector.extract_strided_slice %37 {offsets = [1, 0, 0], sizes = [1, 4, 4], strides = [1, 1, 1]} : vector<9x8x4xf32> to vector<1x4x4xf32>
    %61 = vector.shape_cast %60 : vector<1x4x4xf32> to vector<4x4xf32>
    %cst_36 = arith.constant dense<0.000000e+00> : vector<256x4xf32>
    %62 = tpu.matmul %59, %61, %cst_36 {dimension_numbers = #tpu.dot_dimension_numbers<[1], [0], [0], [1], [0, 0, 1, 1], [], []>} : vector<256x4xf32>, vector<4x4xf32>, vector<256x4xf32> -> vector<256x4xf32>
    %63 = arith.addf %57, %62 : vector<256x4xf32>
    %64 = vector.extract_strided_slice %43 {offsets = [0, 2, 0], sizes = [16, 16, 4], strides = [1, 1, 1]} : vector<18x18x4xf32> to vector<16x16x4xf32>
    %65 = vector.shape_cast %64 : vector<16x16x4xf32> to vector<256x4xf32>
    %66 = vector.extract_strided_slice %37 {offsets = [2, 0, 0], sizes = [1, 4, 4], strides = [1, 1, 1]} : vector<9x8x4xf32> to vector<1x4x4xf32>
    %67 = vector.shape_cast %66 : vector<1x4x4xf32> to vector<4x4xf32>
    %cst_37 = arith.constant dense<0.000000e+00> : vector<256x4xf32>
    %68 = tpu.matmul %65, %67, %cst_37 {dimension_numbers = #tpu.dot_dimension_numbers<[1], [0], [0], [1], [0, 0, 1, 1], [], []>} : vector<256x4xf32>, vector<4x4xf32>, vector<256x4xf32> -> vector<256x4xf32>
    %69 = arith.addf %63, %68 : vector<256x4xf32>
    %70 = vector.extract_strided_slice %43 {offsets = [1, 0, 0], sizes = [16, 16, 4], strides = [1, 1, 1]} : vector<18x18x4xf32> to vector<16x16x4xf32>
    %71 = vector.shape_cast %70 : vector<16x16x4xf32> to vector<256x4xf32>
    %72 = vector.extract_strided_slice %37 {offsets = [3, 0, 0], sizes = [1, 4, 4], strides = [1, 1, 1]} : vector<9x8x4xf32> to vector<1x4x4xf32>
    %73 = vector.shape_cast %72 : vector<1x4x4xf32> to vector<4x4xf32>
    %cst_38 = arith.constant dense<0.000000e+00> : vector<256x4xf32>
    %74 = tpu.matmul %71, %73, %cst_38 {dimension_numbers = #tpu.dot_dimension_numbers<[1], [0], [0], [1], [0, 0, 1, 1], [], []>} : vector<256x4xf32>, vector<4x4xf32>, vector<256x4xf32> -> vector<256x4xf32>
    %75 = arith.addf %69, %74 : vector<256x4xf32>
    %76 = vector.extract_strided_slice %43 {offsets = [1, 1, 0], sizes = [16, 16, 4], strides = [1, 1, 1]} : vector<18x18x4xf32> to vector<16x16x4xf32>
    %77 = vector.shape_cast %76 : vector<16x16x4xf32> to vector<256x4xf32>
    %78 = vector.extract_strided_slice %37 {offsets = [4, 0, 0], sizes = [1, 4, 4], strides = [1, 1, 1]} : vector<9x8x4xf32> to vector<1x4x4xf32>
    %79 = vector.shape_cast %78 : vector<1x4x4xf32> to vector<4x4xf32>
    %cst_39 = arith.constant dense<0.000000e+00> : vector<256x4xf32>
    %80 = tpu.matmul %77, %79, %cst_39 {dimension_numbers = #tpu.dot_dimension_numbers<[1], [0], [0], [1], [0, 0, 1, 1], [], []>} : vector<256x4xf32>, vector<4x4xf32>, vector<256x4xf32> -> vector<256x4xf32>
    %81 = arith.addf %75, %80 : vector<256x4xf32>
    %82 = vector.extract_strided_slice %43 {offsets = [1, 2, 0], sizes = [16, 16, 4], strides = [1, 1, 1]} : vector<18x18x4xf32> to vector<16x16x4xf32>
    %83 = vector.shape_cast %82 : vector<16x16x4xf32> to vector<256x4xf32>
    %84 = vector.extract_strided_slice %37 {offsets = [5, 0, 0], sizes = [1, 4, 4], strides = [1, 1, 1]} : vector<9x8x4xf32> to vector<1x4x4xf32>
    %85 = vector.shape_cast %84 : vector<1x4x4xf32> to vector<4x4xf32>
    %cst_40 = arith.constant dense<0.000000e+00> : vector<256x4xf32>
    %86 = tpu.matmul %83, %85, %cst_40 {dimension_numbers = #tpu.dot_dimension_numbers<[1], [0], [0], [1], [0, 0, 1, 1], [], []>} : vector<256x4xf32>, vector<4x4xf32>, vector<256x4xf32> -> vector<256x4xf32>
    %87 = arith.addf %81, %86 : vector<256x4xf32>
    %88 = vector.extract_strided_slice %43 {offsets = [2, 0, 0], sizes = [16, 16, 4], strides = [1, 1, 1]} : vector<18x18x4xf32> to vector<16x16x4xf32>
    %89 = vector.shape_cast %88 : vector<16x16x4xf32> to vector<256x4xf32>
    %90 = vector.extract_strided_slice %37 {offsets = [6, 0, 0], sizes = [1, 4, 4], strides = [1, 1, 1]} : vector<9x8x4xf32> to vector<1x4x4xf32>
    %91 = vector.shape_cast %90 : vector<1x4x4xf32> to vector<4x4xf32>
    %cst_41 = arith.constant dense<0.000000e+00> : vector<256x4xf32>
    %92 = tpu.matmul %89, %91, %cst_41 {dimension_numbers = #tpu.dot_dimension_numbers<[1], [0], [0], [1], [0, 0, 1, 1], [], []>} : vector<256x4xf32>, vector<4x4xf32>, vector<256x4xf32> -> vector<256x4xf32>
    %93 = arith.addf %87, %92 : vector<256x4xf32>
    %94 = vector.extract_strided_slice %43 {offsets = [2, 1, 0], sizes = [16, 16, 4], strides = [1, 1, 1]} : vector<18x18x4xf32> to vector<16x16x4xf32>
    %95 = vector.shape_cast %94 : vector<16x16x4xf32> to vector<256x4xf32>
    %96 = vector.extract_strided_slice %37 {offsets = [7, 0, 0], sizes = [1, 4, 4], strides = [1, 1, 1]} : vector<9x8x4xf32> to vector<1x4x4xf32>
    %97 = vector.shape_cast %96 : vector<1x4x4xf32> to vector<4x4xf32>
    %cst_42 = arith.constant dense<0.000000e+00> : vector<256x4xf32>
    %98 = tpu.matmul %95, %97, %cst_42 {dimension_numbers = #tpu.dot_dimension_numbers<[1], [0], [0], [1], [0, 0, 1, 1], [], []>} : vector<256x4xf32>, vector<4x4xf32>, vector<256x4xf32> -> vector<256x4xf32>
    %99 = arith.addf %93, %98 : vector<256x4xf32>
    %100 = vector.extract_strided_slice %43 {offsets = [2, 2, 0], sizes = [16, 16, 4], strides = [1, 1, 1]} : vector<18x18x4xf32> to vector<16x16x4xf32>
    %101 = vector.shape_cast %100 : vector<16x16x4xf32> to vector<256x4xf32>
    %102 = vector.extract_strided_slice %37 {offsets = [8, 0, 0], sizes = [1, 4, 4], strides = [1, 1, 1]} : vector<9x8x4xf32> to vector<1x4x4xf32>
    %103 = vector.shape_cast %102 : vector<1x4x4xf32> to vector<4x4xf32>
    %cst_43 = arith.constant dense<0.000000e+00> : vector<256x4xf32>
    %104 = tpu.matmul %101, %103, %cst_43 {dimension_numbers = #tpu.dot_dimension_numbers<[1], [0], [0], [1], [0, 0, 1, 1], [], []>} : vector<256x4xf32>, vector<4x4xf32>, vector<256x4xf32> -> vector<256x4xf32>
    %105 = arith.addf %99, %104 : vector<256x4xf32>
    %106 = vector.extract_strided_slice %47 {offsets = [0, 0, 0], sizes = [16, 16, 4], strides = [1, 1, 1]} : vector<18x18x4xf32> to vector<16x16x4xf32>
    %107 = vector.shape_cast %106 : vector<16x16x4xf32> to vector<256x4xf32>
    %108 = vector.extract_strided_slice %37 {offsets = [0, 4, 0], sizes = [1, 4, 4], strides = [1, 1, 1]} : vector<9x8x4xf32> to vector<1x4x4xf32>
    %109 = vector.shape_cast %108 : vector<1x4x4xf32> to vector<4x4xf32>
    %cst_44 = arith.constant dense<0.000000e+00> : vector<256x4xf32>
    %110 = tpu.matmul %107, %109, %cst_44 {dimension_numbers = #tpu.dot_dimension_numbers<[1], [0], [0], [1], [0, 0, 1, 1], [], []>} : vector<256x4xf32>, vector<4x4xf32>, vector<256x4xf32> -> vector<256x4xf32>
    %111 = arith.addf %105, %110 : vector<256x4xf32>
    %112 = vector.extract_strided_slice %47 {offsets = [0, 1, 0], sizes = [16, 16, 4], strides = [1, 1, 1]} : vector<18x18x4xf32> to vector<16x16x4xf32>
    %113 = vector.shape_cast %112 : vector<16x16x4xf32> to vector<256x4xf32>
    %114 = vector.extract_strided_slice %37 {offsets = [1, 4, 0], sizes = [1, 4, 4], strides = [1, 1, 1]} : vector<9x8x4xf32> to vector<1x4x4xf32>
    %115 = vector.shape_cast %114 : vector<1x4x4xf32> to vector<4x4xf32>
    %cst_45 = arith.constant dense<0.000000e+00> : vector<256x4xf32>
    %116 = tpu.matmul %113, %115, %cst_45 {dimension_numbers = #tpu.dot_dimension_numbers<[1], [0], [0], [1], [0, 0, 1, 1], [], []>} : vector<256x4xf32>, vector<4x4xf32>, vector<256x4xf32> -> vector<256x4xf32>
    %117 = arith.addf %111, %116 : vector<256x4xf32>
    %118 = vector.extract_strided_slice %47 {offsets = [0, 2, 0], sizes = [16, 16, 4], strides = [1, 1, 1]} : vector<18x18x4xf32> to vector<16x16x4xf32>
    %119 = vector.shape_cast %118 : vector<16x16x4xf32> to vector<256x4xf32>
    %120 = vector.extract_strided_slice %37 {offsets = [2, 4, 0], sizes = [1, 4, 4], strides = [1, 1, 1]} : vector<9x8x4xf32> to vector<1x4x4xf32>
    %121 = vector.shape_cast %120 : vector<1x4x4xf32> to vector<4x4xf32>
    %cst_46 = arith.constant dense<0.000000e+00> : vector<256x4xf32>
    %122 = tpu.matmul %119, %121, %cst_46 {dimension_numbers = #tpu.dot_dimension_numbers<[1], [0], [0], [1], [0, 0, 1, 1], [], []>} : vector<256x4xf32>, vector<4x4xf32>, vector<256x4xf32> -> vector<256x4xf32>
    %123 = arith.addf %117, %122 : vector<256x4xf32>
    %124 = vector.extract_strided_slice %47 {offsets = [1, 0, 0], sizes = [16, 16, 4], strides = [1, 1, 1]} : vector<18x18x4xf32> to vector<16x16x4xf32>
    %125 = vector.shape_cast %124 : vector<16x16x4xf32> to vector<256x4xf32>
    %126 = vector.extract_strided_slice %37 {offsets = [3, 4, 0], sizes = [1, 4, 4], strides = [1, 1, 1]} : vector<9x8x4xf32> to vector<1x4x4xf32>
    %127 = vector.shape_cast %126 : vector<1x4x4xf32> to vector<4x4xf32>
    %cst_47 = arith.constant dense<0.000000e+00> : vector<256x4xf32>
    %128 = tpu.matmul %125, %127, %cst_47 {dimension_numbers = #tpu.dot_dimension_numbers<[1], [0], [0], [1], [0, 0, 1, 1], [], []>} : vector<256x4xf32>, vector<4x4xf32>, vector<256x4xf32> -> vector<256x4xf32>
    %129 = arith.addf %123, %128 : vector<256x4xf32>
    %130 = vector.extract_strided_slice %47 {offsets = [1, 1, 0], sizes = [16, 16, 4], strides = [1, 1, 1]} : vector<18x18x4xf32> to vector<16x16x4xf32>
    %131 = vector.shape_cast %130 : vector<16x16x4xf32> to vector<256x4xf32>
    %132 = vector.extract_strided_slice %37 {offsets = [4, 4, 0], sizes = [1, 4, 4], strides = [1, 1, 1]} : vector<9x8x4xf32> to vector<1x4x4xf32>
    %133 = vector.shape_cast %132 : vector<1x4x4xf32> to vector<4x4xf32>
    %cst_48 = arith.constant dense<0.000000e+00> : vector<256x4xf32>
    %134 = tpu.matmul %131, %133, %cst_48 {dimension_numbers = #tpu.dot_dimension_numbers<[1], [0], [0], [1], [0, 0, 1, 1], [], []>} : vector<256x4xf32>, vector<4x4xf32>, vector<256x4xf32> -> vector<256x4xf32>
    %135 = arith.addf %129, %134 : vector<256x4xf32>
    %136 = vector.extract_strided_slice %47 {offsets = [1, 2, 0], sizes = [16, 16, 4], strides = [1, 1, 1]} : vector<18x18x4xf32> to vector<16x16x4xf32>
    %137 = vector.shape_cast %136 : vector<16x16x4xf32> to vector<256x4xf32>
    %138 = vector.extract_strided_slice %37 {offsets = [5, 4, 0], sizes = [1, 4, 4], strides = [1, 1, 1]} : vector<9x8x4xf32> to vector<1x4x4xf32>
    %139 = vector.shape_cast %138 : vector<1x4x4xf32> to vector<4x4xf32>
    %cst_49 = arith.constant dense<0.000000e+00> : vector<256x4xf32>
    %140 = tpu.matmul %137, %139, %cst_49 {dimension_numbers = #tpu.dot_dimension_numbers<[1], [0], [0], [1], [0, 0, 1, 1], [], []>} : vector<256x4xf32>, vector<4x4xf32>, vector<256x4xf32> -> vector<256x4xf32>
    %141 = arith.addf %135, %140 : vector<256x4xf32>
    %142 = vector.extract_strided_slice %47 {offsets = [2, 0, 0], sizes = [16, 16, 4], strides = [1, 1, 1]} : vector<18x18x4xf32> to vector<16x16x4xf32>
    %143 = vector.shape_cast %142 : vector<16x16x4xf32> to vector<256x4xf32>
    %144 = vector.extract_strided_slice %37 {offsets = [6, 4, 0], sizes = [1, 4, 4], strides = [1, 1, 1]} : vector<9x8x4xf32> to vector<1x4x4xf32>
    %145 = vector.shape_cast %144 : vector<1x4x4xf32> to vector<4x4xf32>
    %cst_50 = arith.constant dense<0.000000e+00> : vector<256x4xf32>
    %146 = tpu.matmul %143, %145, %cst_50 {dimension_numbers = #tpu.dot_dimension_numbers<[1], [0], [0], [1], [0, 0, 1, 1], [], []>} : vector<256x4xf32>, vector<4x4xf32>, vector<256x4xf32> -> vector<256x4xf32>
    %147 = arith.addf %141, %146 : vector<256x4xf32>
    %148 = vector.extract_strided_slice %47 {offsets = [2, 1, 0], sizes = [16, 16, 4], strides = [1, 1, 1]} : vector<18x18x4xf32> to vector<16x16x4xf32>
    %149 = vector.shape_cast %148 : vector<16x16x4xf32> to vector<256x4xf32>
    %150 = vector.extract_strided_slice %37 {offsets = [7, 4, 0], sizes = [1, 4, 4], strides = [1, 1, 1]} : vector<9x8x4xf32> to vector<1x4x4xf32>
    %151 = vector.shape_cast %150 : vector<1x4x4xf32> to vector<4x4xf32>
    %cst_51 = arith.constant dense<0.000000e+00> : vector<256x4xf32>
    %152 = tpu.matmul %149, %151, %cst_51 {dimension_numbers = #tpu.dot_dimension_numbers<[1], [0], [0], [1], [0, 0, 1, 1], [], []>} : vector<256x4xf32>, vector<4x4xf32>, vector<256x4xf32> -> vector<256x4xf32>
    %153 = arith.addf %147, %152 : vector<256x4xf32>
    %154 = vector.extract_strided_slice %47 {offsets = [2, 2, 0], sizes = [16, 16, 4], strides = [1, 1, 1]} : vector<18x18x4xf32> to vector<16x16x4xf32>
    %155 = vector.shape_cast %154 : vector<16x16x4xf32> to vector<256x4xf32>
    %156 = vector.extract_strided_slice %37 {offsets = [8, 4, 0], sizes = [1, 4, 4], strides = [1, 1, 1]} : vector<9x8x4xf32> to vector<1x4x4xf32>
    %157 = vector.shape_cast %156 : vector<1x4x4xf32> to vector<4x4xf32>
    %cst_52 = arith.constant dense<0.000000e+00> : vector<256x4xf32>
    %158 = tpu.matmul %155, %157, %cst_52 {dimension_numbers = #tpu.dot_dimension_numbers<[1], [0], [0], [1], [0, 0, 1, 1], [], []>} : vector<256x4xf32>, vector<4x4xf32>, vector<256x4xf32> -> vector<256x4xf32>
    %159 = arith.addf %153, %158 : vector<256x4xf32>
    %cst_53 = arith.constant 0.000000e+00 : f32
    %160 = vector.broadcast %cst_53 : f32 to vector<256x4xf32>
    %161 = arith.cmpf oge, %159, %160 : vector<256x4xf32>
    %cst_54 = arith.constant 2.000000e-01 : f32
    %162 = vector.broadcast %cst_54 : f32 to vector<256x4xf32>
    %163 = arith.mulf %162, %159 : vector<256x4xf32>
    %164 = arith.select %161, %159, %163 : vector<256x4xi1>, vector<256x4xf32>
    %165 = vector.shape_cast %164 : vector<256x4xf32> to vector<16x16x4xf32>
    %cst_55 = arith.constant 0.000000e+00 : f32
    %166 = vector.broadcast %cst_55 : f32 to vector<1x16x4xf32>
    %167 = tpu.concatenate %166, %165, %166 in 0 : vector<1x16x4xf32>, vector<16x16x4xf32>, vector<1x16x4xf32> -> vector<18x16x4xf32>
    %cst_56 = arith.constant 0.000000e+00 : f32
    %168 = vector.broadcast %cst_56 : f32 to vector<18x1x4xf32>
    %169 = tpu.concatenate %168, %167, %168 in 1 : vector<18x1x4xf32>, vector<18x16x4xf32>, vector<18x1x4xf32> -> vector<18x18x4xf32>
    %cst_57 = arith.constant 0.000000e+00 : f32
    %170 = vector.broadcast %cst_57 : f32 to vector<256x4xf32>
    %c0_58 = arith.constant 0 : index
    %c0_59 = arith.constant 0 : index
    %171 = vector.load %arg9[%c0_58, %c0_59] : memref<1x4xf32, #tpu.memory_space<vmem>>, vector<1x4xf32>
    %172 = vector.broadcast %171 : vector<1x4xf32> to vector<256x4xf32>
    %173 = arith.addf %170, %172 : vector<256x4xf32>
    %174 = vector.extract_strided_slice %169 {offsets = [0, 0, 0], sizes = [16, 16, 4], strides = [1, 1, 1]} : vector<18x18x4xf32> to vector<16x16x4xf32>
    %175 = vector.shape_cast %174 : vector<16x16x4xf32> to vector<256x4xf32>
    %176 = vector.extract_strided_slice %38 {offsets = [0, 0, 0], sizes = [1, 4, 4], strides = [1, 1, 1]} : vector<9x4x4xf32> to vector<1x4x4xf32>
    %177 = vector.shape_cast %176 : vector<1x4x4xf32> to vector<4x4xf32>
    %cst_60 = arith.constant dense<0.000000e+00> : vector<256x4xf32>
    %178 = tpu.matmul %175, %177, %cst_60 {dimension_numbers = #tpu.dot_dimension_numbers<[1], [0], [0], [1], [0, 0, 1, 1], [], []>} : vector<256x4xf32>, vector<4x4xf32>, vector<256x4xf32> -> vector<256x4xf32>
    %179 = arith.addf %173, %178 : vector<256x4xf32>
    %180 = vector.extract_strided_slice %169 {offsets = [0, 1, 0], sizes = [16, 16, 4], strides = [1, 1, 1]} : vector<18x18x4xf32> to vector<16x16x4xf32>
    %181 = vector.shape_cast %180 : vector<16x16x4xf32> to vector<256x4xf32>
    %182 = vector.extract_strided_slice %38 {offsets = [1, 0, 0], sizes = [1, 4, 4], strides = [1, 1, 1]} : vector<9x4x4xf32> to vector<1x4x4xf32>
    %183 = vector.shape_cast %182 : vector<1x4x4xf32> to vector<4x4xf32>
    %cst_61 = arith.constant dense<0.000000e+00> : vector<256x4xf32>
    %184 = tpu.matmul %181, %183, %cst_61 {dimension_numbers = #tpu.dot_dimension_numbers<[1], [0], [0], [1], [0, 0, 1, 1], [], []>} : vector<256x4xf32>, vector<4x4xf32>, vector<256x4xf32> -> vector<256x4xf32>
    %185 = arith.addf %179, %184 : vector<256x4xf32>
    %186 = vector.extract_strided_slice %169 {offsets = [0, 2, 0], sizes = [16, 16, 4], strides = [1, 1, 1]} : vector<18x18x4xf32> to vector<16x16x4xf32>
    %187 = vector.shape_cast %186 : vector<16x16x4xf32> to vector<256x4xf32>
    %188 = vector.extract_strided_slice %38 {offsets = [2, 0, 0], sizes = [1, 4, 4], strides = [1, 1, 1]} : vector<9x4x4xf32> to vector<1x4x4xf32>
    %189 = vector.shape_cast %188 : vector<1x4x4xf32> to vector<4x4xf32>
    %cst_62 = arith.constant dense<0.000000e+00> : vector<256x4xf32>
    %190 = tpu.matmul %187, %189, %cst_62 {dimension_numbers = #tpu.dot_dimension_numbers<[1], [0], [0], [1], [0, 0, 1, 1], [], []>} : vector<256x4xf32>, vector<4x4xf32>, vector<256x4xf32> -> vector<256x4xf32>
    %191 = arith.addf %185, %190 : vector<256x4xf32>
    %192 = vector.extract_strided_slice %169 {offsets = [1, 0, 0], sizes = [16, 16, 4], strides = [1, 1, 1]} : vector<18x18x4xf32> to vector<16x16x4xf32>
    %193 = vector.shape_cast %192 : vector<16x16x4xf32> to vector<256x4xf32>
    %194 = vector.extract_strided_slice %38 {offsets = [3, 0, 0], sizes = [1, 4, 4], strides = [1, 1, 1]} : vector<9x4x4xf32> to vector<1x4x4xf32>
    %195 = vector.shape_cast %194 : vector<1x4x4xf32> to vector<4x4xf32>
    %cst_63 = arith.constant dense<0.000000e+00> : vector<256x4xf32>
    %196 = tpu.matmul %193, %195, %cst_63 {dimension_numbers = #tpu.dot_dimension_numbers<[1], [0], [0], [1], [0, 0, 1, 1], [], []>} : vector<256x4xf32>, vector<4x4xf32>, vector<256x4xf32> -> vector<256x4xf32>
    %197 = arith.addf %191, %196 : vector<256x4xf32>
    %198 = vector.extract_strided_slice %169 {offsets = [1, 1, 0], sizes = [16, 16, 4], strides = [1, 1, 1]} : vector<18x18x4xf32> to vector<16x16x4xf32>
    %199 = vector.shape_cast %198 : vector<16x16x4xf32> to vector<256x4xf32>
    %200 = vector.extract_strided_slice %38 {offsets = [4, 0, 0], sizes = [1, 4, 4], strides = [1, 1, 1]} : vector<9x4x4xf32> to vector<1x4x4xf32>
    %201 = vector.shape_cast %200 : vector<1x4x4xf32> to vector<4x4xf32>
    %cst_64 = arith.constant dense<0.000000e+00> : vector<256x4xf32>
    %202 = tpu.matmul %199, %201, %cst_64 {dimension_numbers = #tpu.dot_dimension_numbers<[1], [0], [0], [1], [0, 0, 1, 1], [], []>} : vector<256x4xf32>, vector<4x4xf32>, vector<256x4xf32> -> vector<256x4xf32>
    %203 = arith.addf %197, %202 : vector<256x4xf32>
    %204 = vector.extract_strided_slice %169 {offsets = [1, 2, 0], sizes = [16, 16, 4], strides = [1, 1, 1]} : vector<18x18x4xf32> to vector<16x16x4xf32>
    %205 = vector.shape_cast %204 : vector<16x16x4xf32> to vector<256x4xf32>
    %206 = vector.extract_strided_slice %38 {offsets = [5, 0, 0], sizes = [1, 4, 4], strides = [1, 1, 1]} : vector<9x4x4xf32> to vector<1x4x4xf32>
    %207 = vector.shape_cast %206 : vector<1x4x4xf32> to vector<4x4xf32>
    %cst_65 = arith.constant dense<0.000000e+00> : vector<256x4xf32>
    %208 = tpu.matmul %205, %207, %cst_65 {dimension_numbers = #tpu.dot_dimension_numbers<[1], [0], [0], [1], [0, 0, 1, 1], [], []>} : vector<256x4xf32>, vector<4x4xf32>, vector<256x4xf32> -> vector<256x4xf32>
    %209 = arith.addf %203, %208 : vector<256x4xf32>
    %210 = vector.extract_strided_slice %169 {offsets = [2, 0, 0], sizes = [16, 16, 4], strides = [1, 1, 1]} : vector<18x18x4xf32> to vector<16x16x4xf32>
    %211 = vector.shape_cast %210 : vector<16x16x4xf32> to vector<256x4xf32>
    %212 = vector.extract_strided_slice %38 {offsets = [6, 0, 0], sizes = [1, 4, 4], strides = [1, 1, 1]} : vector<9x4x4xf32> to vector<1x4x4xf32>
    %213 = vector.shape_cast %212 : vector<1x4x4xf32> to vector<4x4xf32>
    %cst_66 = arith.constant dense<0.000000e+00> : vector<256x4xf32>
    %214 = tpu.matmul %211, %213, %cst_66 {dimension_numbers = #tpu.dot_dimension_numbers<[1], [0], [0], [1], [0, 0, 1, 1], [], []>} : vector<256x4xf32>, vector<4x4xf32>, vector<256x4xf32> -> vector<256x4xf32>
    %215 = arith.addf %209, %214 : vector<256x4xf32>
    %216 = vector.extract_strided_slice %169 {offsets = [2, 1, 0], sizes = [16, 16, 4], strides = [1, 1, 1]} : vector<18x18x4xf32> to vector<16x16x4xf32>
    %217 = vector.shape_cast %216 : vector<16x16x4xf32> to vector<256x4xf32>
    %218 = vector.extract_strided_slice %38 {offsets = [7, 0, 0], sizes = [1, 4, 4], strides = [1, 1, 1]} : vector<9x4x4xf32> to vector<1x4x4xf32>
    %219 = vector.shape_cast %218 : vector<1x4x4xf32> to vector<4x4xf32>
    %cst_67 = arith.constant dense<0.000000e+00> : vector<256x4xf32>
    %220 = tpu.matmul %217, %219, %cst_67 {dimension_numbers = #tpu.dot_dimension_numbers<[1], [0], [0], [1], [0, 0, 1, 1], [], []>} : vector<256x4xf32>, vector<4x4xf32>, vector<256x4xf32> -> vector<256x4xf32>
    %221 = arith.addf %215, %220 : vector<256x4xf32>
    %222 = vector.extract_strided_slice %169 {offsets = [2, 2, 0], sizes = [16, 16, 4], strides = [1, 1, 1]} : vector<18x18x4xf32> to vector<16x16x4xf32>
    %223 = vector.shape_cast %222 : vector<16x16x4xf32> to vector<256x4xf32>
    %224 = vector.extract_strided_slice %38 {offsets = [8, 0, 0], sizes = [1, 4, 4], strides = [1, 1, 1]} : vector<9x4x4xf32> to vector<1x4x4xf32>
    %225 = vector.shape_cast %224 : vector<1x4x4xf32> to vector<4x4xf32>
    %cst_68 = arith.constant dense<0.000000e+00> : vector<256x4xf32>
    %226 = tpu.matmul %223, %225, %cst_68 {dimension_numbers = #tpu.dot_dimension_numbers<[1], [0], [0], [1], [0, 0, 1, 1], [], []>} : vector<256x4xf32>, vector<4x4xf32>, vector<256x4xf32> -> vector<256x4xf32>
    %227 = arith.addf %221, %226 : vector<256x4xf32>
    %cst_69 = arith.constant 0.000000e+00 : f32
    %228 = vector.broadcast %cst_69 : f32 to vector<256x4xf32>
    %229 = arith.cmpf oge, %227, %228 : vector<256x4xf32>
    %cst_70 = arith.constant 2.000000e-01 : f32
    %230 = vector.broadcast %cst_70 : f32 to vector<256x4xf32>
    %231 = arith.mulf %230, %227 : vector<256x4xf32>
    %232 = arith.select %229, %227, %231 : vector<256x4xi1>, vector<256x4xf32>
    %233 = vector.shape_cast %36 : vector<16x16x4xf32> to vector<256x4xf32>
    %234 = vector.extract_strided_slice %39 {offsets = [0, 0], sizes = [4, 4], strides = [1, 1]} : vector<8x4xf32> to vector<4x4xf32>
    %cst_71 = arith.constant dense<0.000000e+00> : vector<256x4xf32>
    %235 = tpu.matmul %233, %234, %cst_71 {dimension_numbers = #tpu.dot_dimension_numbers<[1], [0], [0], [1], [0, 0, 1, 1], [], []>} : vector<256x4xf32>, vector<4x4xf32>, vector<256x4xf32> -> vector<256x4xf32>
    %236 = vector.shape_cast %3 : vector<16x16x4xf32> to vector<256x4xf32>
    %237 = vector.extract_strided_slice %39 {offsets = [4, 0], sizes = [4, 4], strides = [1, 1]} : vector<8x4xf32> to vector<4x4xf32>
    %cst_72 = arith.constant dense<0.000000e+00> : vector<256x4xf32>
    %238 = tpu.matmul %236, %237, %cst_72 {dimension_numbers = #tpu.dot_dimension_numbers<[1], [0], [0], [1], [0, 0, 1, 1], [], []>} : vector<256x4xf32>, vector<4x4xf32>, vector<256x4xf32> -> vector<256x4xf32>
    %239 = arith.addf %235, %238 : vector<256x4xf32>
    %c0_73 = arith.constant 0 : index
    %c0_74 = arith.constant 0 : index
    %240 = vector.load %arg11[%c0_73, %c0_74] : memref<1x4xf32, #tpu.memory_space<vmem>>, vector<1x4xf32>
    %241 = vector.broadcast %240 : vector<1x4xf32> to vector<256x4xf32>
    %242 = arith.addf %239, %241 : vector<256x4xf32>
    %243 = arith.addf %232, %242 : vector<256x4xf32>
    %244 = tpu.transpose %243, [1, 0] : vector<256x4xf32> -> vector<4x256xf32>
    %c0_75 = arith.constant 0 : index
    %c0_76 = arith.constant 0 : index
    %c0_77 = arith.constant 0 : index
    %245 = vector.load %arg12[%c0_75, %c0_76, %c0_77] : memref<1x4x256xf32, #tpu.memory_space<vmem>>, vector<1x4x256xf32>
    %246 = vector.shape_cast %245 : vector<1x4x256xf32> to vector<4x256xf32>
    %247 = vector.shape_cast %244 : vector<4x256xf32> to vector<1x4x256xf32>
    tpu.vector_store %arg12[%c0_75, %c0_76, %c0_77], %247 {strides = array<i32>} : memref<1x4x256xf32, #tpu.memory_space<vmem>>, vector<1x4x256xf32>,
    return
  }
  func.func @transform_0(%arg0: i32) -> (i32, i32, i32, i32) {
    %c0_i32 = arith.constant 0 : i32
    %c0_i32_0 = arith.constant 0 : i32
    %c0_i32_1 = arith.constant 0 : i32
    %c0_i32_2 = arith.constant 0 : i32
    return %arg0, %c0_i32, %c0_i32_0, %c0_i32_1 : i32, i32, i32, i32
  }
  func.func @transform_1(%arg0: i32) -> (i32, i32, i32, i32) {
    %c0_i32 = arith.constant 0 : i32
    %c0_i32_0 = arith.constant 0 : i32
    %c0_i32_1 = arith.constant 0 : i32
    %c0_i32_2 = arith.constant 0 : i32
    return %arg0, %c0_i32, %c0_i32_0, %c0_i32_1 : i32, i32, i32, i32
  }
  func.func @transform_2(%arg0: i32) -> (i32, i32, i32) {
    %c0_i32 = arith.constant 0 : i32
    %c0_i32_0 = arith.constant 0 : i32
    %c0_i32_1 = arith.constant 0 : i32
    %c0_i32_2 = arith.constant 0 : i32
    return %c0_i32, %c0_i32_0, %c0_i32_1 : i32, i32, i32
  }
  func.func @transform_3(%arg0: i32) -> (i32, i32) {
    %c0_i32 = arith.constant 0 : i32
    %c0_i32_0 = arith.constant 0 : i32
    %c0_i32_1 = arith.constant 0 : i32
    return %c0_i32, %c0_i32_0 : i32, i32
  }
  func.func @transform_4(%arg0: i32) -> (i32, i32) {
    %c0_i32 = arith.constant 0 : i32
    %c0_i32_0 = arith.constant 0 : i32
    %c0_i32_1 = arith.constant 0 : i32
    return %c0_i32, %c0_i32_0 : i32, i32
  }
  func.func @transform_5(%arg0: i32) -> (i32, i32, i32) {
    %c0_i32 = arith.constant 0 : i32
    %c0_i32_0 = arith.constant 0 : i32
    %c0_i32_1 = arith.constant 0 : i32
    %c0_i32_2 = arith.constant 0 : i32
    return %c0_i32, %c0_i32_0, %c0_i32_1 : i32, i32, i32
  }
  func.func @transform_6(%arg0: i32) -> (i32, i32) {
    %c0_i32 = arith.constant 0 : i32
    %c0_i32_0 = arith.constant 0 : i32
    %c0_i32_1 = arith.constant 0 : i32
    return %c0_i32, %c0_i32_0 : i32, i32
  }
  func.func @transform_7(%arg0: i32) -> (i32, i32, i32) {
    %c0_i32 = arith.constant 0 : i32
    %c0_i32_0 = arith.constant 0 : i32
    %c0_i32_1 = arith.constant 0 : i32
    %c0_i32_2 = arith.constant 0 : i32
    return %c0_i32, %c0_i32_0, %c0_i32_1 : i32, i32, i32
  }
  func.func @transform_8(%arg0: i32) -> (i32, i32) {
    %c0_i32 = arith.constant 0 : i32
    %c0_i32_0 = arith.constant 0 : i32
    %c0_i32_1 = arith.constant 0 : i32
    return %c0_i32, %c0_i32_0 : i32, i32
  }
  func.func @transform_9(%arg0: i32) -> (i32, i32) {
    %c0_i32 = arith.constant 0 : i32
    %c0_i32_0 = arith.constant 0 : i32
    %c0_i32_1 = arith.constant 0 : i32
    return %c0_i32, %c0_i32_0 : i32, i32
  }
  func.func @transform_10(%arg0: i32) -> (i32, i32) {
    %c0_i32 = arith.constant 0 : i32
    %c0_i32_0 = arith.constant 0 : i32
    %c0_i32_1 = arith.constant 0 : i32
    return %c0_i32, %c0_i32_0 : i32, i32
  }
  func.func @transform_11(%arg0: i32) -> (i32, i32, i32) {
    %c0_i32 = arith.constant 0 : i32
    %c0_i32_0 = arith.constant 0 : i32
    %c0_i32_1 = arith.constant 0 : i32
    return %arg0, %c0_i32, %c0_i32_0 : i32, i32, i32
  }
}

</mosaic_0001>

<llo_original>
// kernel: tpu_custom_call.1
$region0: #{tpu_custom_call.1}
  #allocation0 [shape = 'u32[]', space=smem, size = 0x4, offset = 0x4, fixed_abs, tag = 'smem constant byte address 0x4 - core index']
  #allocation1 [shape = 'u32[72,128]{1,0:T(1,128)}', space=vmem, size = 0x9000, scoped, tag = 'internal scratch']
  %s0 = inlined_call_operand.vmem [shape: f32[2,8,8,8], index: 0, kind: input, shape index: {}]
  %s1 = inlined_call_operand.vmem [shape: f32[2,16,16,4], index: 1, kind: input, shape index: {}]
  %s2 = inlined_call_operand.vmem [shape: f32[2,16,8], index: 2, kind: input, shape index: {}]
  %s3 = inlined_call_operand.vmem [shape: f32[8,16], index: 3, kind: input, shape index: {}]
  %s4 = inlined_call_operand.vmem [shape: f32[1,4], index: 4, kind: input, shape index: {}]
  %s5 = inlined_call_operand.vmem [shape: f32[9,8,4], index: 5, kind: input, shape index: {}]
  %s6 = inlined_call_operand.vmem [shape: f32[1,4], index: 6, kind: input, shape index: {}]
  %s7 = inlined_call_operand.vmem [shape: f32[9,4,4], index: 7, kind: input, shape index: {}]
  %s8 = inlined_call_operand.vmem [shape: f32[1,4], index: 8, kind: input, shape index: {}]
  %s9 = inlined_call_operand.vmem [shape: f32[8,4], index: 9, kind: input, shape index: {}]
  %s10 = inlined_call_operand.vmem [shape: f32[1,4], index: 10, kind: input, shape index: {}]
  %s11 = inlined_call_operand.hbm [shape: f32[2,4,256], index: 11, kind: output, shape index: {}]
  %s12 = sld [smem:[#allocation0]]
  $region77: #{tpu_custom_call.1} parent=0
    _
  %s14 = ssub.s32 1, %s12
  %s15 = scalar_select 0, %s14, %s12
  $region1: #{tpu_custom_call.1} parent=0
    #allocation2 [shape = 'u8[8192]{0}', space=vmem, size = 0x2000, scoped, tag = 'output window, operand 0']
    #allocation3 [shape = 's32[2]{0}', space=sflag, size = 0x8, scoped, tag = 'scoped memory for tpu_custom_call.1']
    %16 = vsyncpa [#allocation3], 0
    %s17 = scalar_lea.sflag [#allocation3], 1
    %18 = vsyncpa %s17, 0
    loop: start=0, step=1, limit=4
    $region2: #{tpu_custom_call.1} parent=1 // loop_pre_header
      _
    $region3: #{tpu_custom_call.1} parent=1 // loop_header
      %s20 = sphi 0, %s24
      %p21 = scmp.ge.s32.totalorder %s20, 4
      %s30 = sphi 0, %s32
      %s33 = sphi 0, %s30
      %s34 = sphi 0, %s33
      %s50 = sphi 0, %s34
      %s56 = sphi 0, %s58
      %s59 = sphi 0, %s56
      %s60 = sphi 0, %s59
      %s76 = sphi 0, %s60
      %s80 = sphi 0, %s80
      %s82 = sphi 0, %s80
      %s83 = sphi 0, %s82
      %s97 = sphi 0, %s83
      %s101 = sphi 0, %s101
      %s103 = sphi 0, %s101
      %s104 = sphi 0, %s103
      %s118 = sphi 0, %s104
      %s122 = sphi 0, %s122
      %s124 = sphi 0, %s122
      %s125 = sphi 0, %s124
      %s139 = sphi 0, %s125
      %s143 = sphi 0, %s143
      %s145 = sphi 0, %s143
      %s146 = sphi 0, %s145
      %s160 = sphi 0, %s146
      %s164 = sphi 0, %s164
      %s166 = sphi 0, %s164
      %s167 = sphi 0, %s166
      %s181 = sphi 0, %s167
      %s185 = sphi 0, %s185
      %s187 = sphi 0, %s185
      %s188 = sphi 0, %s187
      %s202 = sphi 0, %s188
      %s206 = sphi 0, %s206
      %s208 = sphi 0, %s206
      %s209 = sphi 0, %s208
      %s223 = sphi 0, %s209
      %s227 = sphi 0, %s227
      %s229 = sphi 0, %s227
      %s230 = sphi 0, %s229
      %s244 = sphi 0, %s230
      %s248 = sphi 0, %s248
      %s250 = sphi 0, %s248
      %s251 = sphi 0, %s250
      %s265 = sphi 0, %s251
      %s271 = sphi 0, %s273
      %s274 = sphi 0, %s271
      %s275 = sphi 0, %s274
      %s291 = sphi 0, %s275
    $region4: #{tpu_custom_call.1} parent=1 // loop_header_branch
      %23 = sbr.rel (%p21) target = $region8
    $region5: #{tpu_custom_call.1} parent=1 // loop_body
      %s25 = ssub.s32 %s20, 1
      %s26 = ssub.s32 %s20, 2
      %s27 = sadd.s32 %s20, 1
      %s28 = ssub.s32 %s20, %s27
      %p29 = scmp.eq.s32.totalorder %s28, 0
      %s31 = sadd.s32 %s30, 1
      %s32 = scalar_select %p29, %s30, %s31
      %p35 = pneg %p29
      %p36 = scmp.eq.s32.totalorder %s20, 1
      %p37 = por %p35, %p36
      %p38 = scmp.ne.s32.totalorder %s30, %s33
      %p39 = scmp.eq.s32.totalorder %s20, 0
      %p40 = por %p38, %p39
      %p41 = scmp.ne.s32.totalorder %s30, %s33
      %p42 = scmp.eq.s32.totalorder %s25, 1
      %p43 = por %p41, %p42
      %p44 = scmp.ne.s32.totalorder %s33, %s34
      %p45 = scmp.eq.s32.totalorder %s25, 0
      %p46 = por %p44, %p45
      %p47 = scmp.ne.s32.totalorder %s33, %s34
      %p48 = scmp.eq.s32.totalorder %s26, 1
      %p49 = por %p47, %p48
      %p51 = scmp.ne.s32.totalorder %s34, %s50
      %p52 = scmp.eq.s32.totalorder %s26, 0
      %p53 = por %p51, %p52
      %s54 = ssub.s32 %s20, %s27
      %p55 = scmp.eq.s32.totalorder %s54, 0
      %s57 = sadd.s32 %s56, 1
      %s58 = scalar_select %p55, %s56, %s57
      %p61 = pneg %p55
      %p62 = scmp.eq.s32.totalorder %s20, 1
      %p63 = por %p61, %p62
      %p64 = scmp.ne.s32.totalorder %s56, %s59
      %p65 = scmp.eq.s32.totalorder %s20, 0
      %p66 = por %p64, %p65
      %p67 = scmp.ne.s32.totalorder %s56, %s59
      %p68 = scmp.eq.s32.totalorder %s25, 1
      %p69 = por %p67, %p68
      %p70 = scmp.ne.s32.totalorder %s59, %s60
      %p71 = scmp.eq.s32.totalorder %s25, 0
      %p72 = por %p70, %p71
      %p73 = scmp.ne.s32.totalorder %s59, %s60
      %p74 = scmp.eq.s32.totalorder %s26, 1
      %p75 = por %p73, %p74
      %p77 = scmp.ne.s32.totalorder %s60, %s76
      %p78 = scmp.eq.s32.totalorder %s26, 0
      %p79 = por %p77, %p78
      %s81 = sadd.s32 %s80, 1
      %p84 = scmp.eq.s32.totalorder %s20, 1
      %p85 = scmp.ne.s32.totalorder %s80, %s82
      %p86 = scmp.eq.s32.totalorder %s20, 0
      %p87 = por %p85, %p86
      %p88 = scmp.ne.s32.totalorder %s80, %s82
      %p89 = scmp.eq.s32.totalorder %s25, 1
      %p90 = por %p88, %p89
      %p91 = scmp.ne.s32.totalorder %s82, %s83
      %p92 = scmp.eq.s32.totalorder %s25, 0
      %p93 = por %p91, %p92
      %p94 = scmp.ne.s32.totalorder %s82, %s83
      %p95 = scmp.eq.s32.totalorder %s26, 1
      %p96 = por %p94, %p95
      %p98 = scmp.ne.s32.totalorder %s83, %s97
      %p99 = scmp.eq.s32.totalorder %s26, 0
      %p100 = por %p98, %p99
      %s102 = sadd.s32 %s101, 1
      %p105 = scmp.eq.s32.totalorder %s20, 1
      %p106 = scmp.ne.s32.totalorder %s101, %s103
      %p107 = scmp.eq.s32.totalorder %s20, 0
      %p108 = por %p106, %p107
      %p109 = scmp.ne.s32.totalorder %s101, %s103
      %p110 = scmp.eq.s32.totalorder %s25, 1
      %p111 = por %p109, %p110
      %p112 = scmp.ne.s32.totalorder %s103, %s104
      %p113 = scmp.eq.s32.totalorder %s25, 0
      %p114 = por %p112, %p113
      %p115 = scmp.ne.s32.totalorder %s103, %s104
      %p116 = scmp.eq.s32.totalorder %s26, 1
      %p117 = por %p115, %p116
      %p119 = scmp.ne.s32.totalorder %s104, %s118
      %p120 = scmp.eq.s32.totalorder %s26, 0
      %p121 = por %p119, %p120
      %s123 = sadd.s32 %s122, 1
      %p126 = scmp.eq.s32.totalorder %s20, 1
      %p127 = scmp.ne.s32.totalorder %s122, %s124
      %p128 = scmp.eq.s32.totalorder %s20, 0
      %p129 = por %p127, %p128
      %p130 = scmp.ne.s32.totalorder %s122, %s124
      %p131 = scmp.eq.s32.totalorder %s25, 1
      %p132 = por %p130, %p131
      %p133 = scmp.ne.s32.totalorder %s124, %s125
      %p134 = scmp.eq.s32.totalorder %s25, 0
      %p135 = por %p133, %p134
      %p136 = scmp.ne.s32.totalorder %s124, %s125
      %p137 = scmp.eq.s32.totalorder %s26, 1
      %p138 = por %p136, %p137
      %p140 = scmp.ne.s32.totalorder %s125, %s139
      %p141 = scmp.eq.s32.totalorder %s26, 0
      %p142 = por %p140, %p141
      %s144 = sadd.s32 %s143, 1
      %p147 = scmp.eq.s32.totalorder %s20, 1
      %p148 = scmp.ne.s32.totalorder %s143, %s145
      %p149 = scmp.eq.s32.totalorder %s20, 0
      %p150 = por %p148, %p149
      %p151 = scmp.ne.s32.totalorder %s143, %s145
      %p152 = scmp.eq.s32.totalorder %s25, 1
      %p153 = por %p151, %p152
      %p154 = scmp.ne.s32.totalorder %s145, %s146
      %p155 = scmp.eq.s32.totalorder %s25, 0
      %p156 = por %p154, %p155
      %p157 = scmp.ne.s32.totalorder %s145, %s146
      %p158 = scmp.eq.s32.totalorder %s26, 1
      %p159 = por %p157, %p158
      %p161 = scmp.ne.s32.totalorder %s146, %s160
      %p162 = scmp.eq.s32.totalorder %s26, 0
      %p163 = por %p161, %p162
      %s165 = sadd.s32 %s164, 1
      %p168 = scmp.eq.s32.totalorder %s20, 1
      %p169 = scmp.ne.s32.totalorder %s164, %s166
      %p170 = scmp.eq.s32.totalorder %s20, 0
      %p171 = por %p169, %p170
      %p172 = scmp.ne.s32.totalorder %s164, %s166
      %p173 = scmp.eq.s32.totalorder %s25, 1
      %p174 = por %p172, %p173
      %p175 = scmp.ne.s32.totalorder %s166, %s167
      %p176 = scmp.eq.s32.totalorder %s25, 0
      %p177 = por %p175, %p176
      %p178 = scmp.ne.s32.totalorder %s166, %s167
      %p179 = scmp.eq.s32.totalorder %s26, 1
      %p180 = por %p178, %p179
      %p182 = scmp.ne.s32.totalorder %s167, %s181
      %p183 = scmp.eq.s32.totalorder %s26, 0
      %p184 = por %p182, %p183
      %s186 = sadd.s32 %s185, 1
      %p189 = scmp.eq.s32.totalorder %s20, 1
      %p190 = scmp.ne.s32.totalorder %s185, %s187
      %p191 = scmp.eq.s32.totalorder %s20, 0
      %p192 = por %p190, %p191
      %p193 = scmp.ne.s32.totalorder %s185, %s187
      %p194 = scmp.eq.s32.totalorder %s25, 1
      %p195 = por %p193, %p194
      %p196 = scmp.ne.s32.totalorder %s187, %s188
      %p197 = scmp.eq.s32.totalorder %s25, 0
      %p198 = por %p196, %p197
      %p199 = scmp.ne.s32.totalorder %s187, %s188
      %p200 = scmp.eq.s32.totalorder %s26, 1
      %p201 = por %p199, %p200
      %p203 = scmp.ne.s32.totalorder %s188, %s202
      %p204 = scmp.eq.s32.totalorder %s26, 0
      %p205 = por %p203, %p204
      %s207 = sadd.s32 %s206, 1
      %p210 = scmp.eq.s32.totalorder %s20, 1
      %p211 = scmp.ne.s32.totalorder %s206, %s208
      %p212 = scmp.eq.s32.totalorder %s20, 0
      %p213 = por %p211, %p212
      %p214 = scmp.ne.s32.totalorder %s206, %s208
      %p215 = scmp.eq.s32.totalorder %s25, 1
      %p216 = por %p214, %p215
      %p217 = scmp.ne.s32.totalorder %s208, %s209
      %p218 = scmp.eq.s32.totalorder %s25, 0
      %p219 = por %p217, %p218
      %p220 = scmp.ne.s32.totalorder %s208, %s209
      %p221 = scmp.eq.s32.totalorder %s26, 1
      %p222 = por %p220, %p221
      %p224 = scmp.ne.s32.totalorder %s209, %s223
      %p225 = scmp.eq.s32.totalorder %s26, 0
      %p226 = por %p224, %p225
      %s228 = sadd.s32 %s227, 1
      %p231 = scmp.eq.s32.totalorder %s20, 1
      %p232 = scmp.ne.s32.totalorder %s227, %s229
      %p233 = scmp.eq.s32.totalorder %s20, 0
      %p234 = por %p232, %p233
      %p235 = scmp.ne.s32.totalorder %s227, %s229
      %p236 = scmp.eq.s32.totalorder %s25, 1
      %p237 = por %p235, %p236
      %p238 = scmp.ne.s32.totalorder %s229, %s230
      %p239 = scmp.eq.s32.totalorder %s25, 0
      %p240 = por %p238, %p239
      %p241 = scmp.ne.s32.totalorder %s229, %s230
      %p242 = scmp.eq.s32.totalorder %s26, 1
      %p243 = por %p241, %p242
      %p245 = scmp.ne.s32.totalorder %s230, %s244
      %p246 = scmp.eq.s32.totalorder %s26, 0
      %p247 = por %p245, %p246
      %s249 = sadd.s32 %s248, 1
      %p252 = scmp.eq.s32.totalorder %s20, 1
      %p253 = scmp.ne.s32.totalorder %s248, %s250
      %p254 = scmp.eq.s32.totalorder %s20, 0
      %p255 = por %p253, %p254
      %p256 = scmp.ne.s32.totalorder %s248, %s250
      %p257 = scmp.eq.s32.totalorder %s25, 1
      %p258 = por %p256, %p257
      %p259 = scmp.ne.s32.totalorder %s250, %s251
      %p260 = scmp.eq.s32.totalorder %s25, 0
      %p261 = por %p259, %p260
      %p262 = scmp.ne.s32.totalorder %s250, %s251
      %p263 = scmp.eq.s32.totalorder %s26, 1
      %p264 = por %p262, %p263
      %p266 = scmp.ne.s32.totalorder %s251, %s265
      %p267 = scmp.eq.s32.totalorder %s26, 0
      %p268 = por %p266, %p267
      %s269 = ssub.s32 %s20, %s27
      %p270 = scmp.eq.s32.totalorder %s269, 0
      %s272 = sadd.s32 %s271, 1
      %s273 = scalar_select %p270, %s271, %s272
      %p276 = pneg %p270
      %p277 = scmp.eq.s32.totalorder %s20, 1
      %p278 = por %p276, %p277
      %p279 = scmp.ne.s32.totalorder %s271, %s274
      %p280 = scmp.eq.s32.totalorder %s20, 0
      %p281 = por %p279, %p280
      %p282 = scmp.ne.s32.totalorder %s271, %s274
      %p283 = scmp.eq.s32.totalorder %s25, 1
      %p284 = por %p282, %p283
      %p285 = scmp.ne.s32.totalorder %s274, %s275
      %p286 = scmp.eq.s32.totalorder %s25, 0
      %p287 = por %p285, %p286
      %p288 = scmp.ne.s32.totalorder %s274, %s275
      %p289 = scmp.eq.s32.totalorder %s26, 1
      %p290 = por %p288, %p289
      %p292 = scmp.ne.s32.totalorder %s275, %s291
      %p293 = scmp.eq.s32.totalorder %s26, 0
      %p294 = por %p292, %p293
      %p295 = scmp.le.s32.totalorder 1, %s20
      %p296 = scmp.lt.s32.totalorder %s20, 3
      %p297 = pnand %p295, %p296
      %p298 = pneg %p297
      // Predicated region
      $region9: #{tpu_custom_call.1} parent=5 // pred_check
        _
      $region10: #{tpu_custom_call.1} parent=5 // pred_check_branch
        %300 = sbr.rel (%p297) target = $region12
      $region11: #{tpu_custom_call.1} parent=5 // pred_region
        %s301 = ssub.s32 %s20, 1
        // Predicated region
        $region13: #{tpu_custom_call.1} parent=11 // pred_check
          %p302 = pneg %p93
        $region14: #{tpu_custom_call.1} parent=11 // pred_check_branch
          %304 = sbr.rel (%p302) target = $region16
        $region15: #{tpu_custom_call.1} parent=11 // pred_region
          _
        $region16: #{tpu_custom_call.1} parent=11 // pred_fallthru
          _
        // Predicated region
        $region17: #{tpu_custom_call.1} parent=11 // pred_check
          %p305 = pneg %p114
        $region18: #{tpu_custom_call.1} parent=11 // pred_check_branch
          %307 = sbr.rel (%p305) target = $region20
        $region19: #{tpu_custom_call.1} parent=11 // pred_region
          _
        $region20: #{tpu_custom_call.1} parent=11 // pred_fallthru
          _
        // Predicated region
        $region21: #{tpu_custom_call.1} parent=11 // pred_check
          %p308 = pneg %p135
        $region22: #{tpu_custom_call.1} parent=11 // pred_check_branch
          %310 = sbr.rel (%p308) target = $region24
        $region23: #{tpu_custom_call.1} parent=11 // pred_region
          _
        $region24: #{tpu_custom_call.1} parent=11 // pred_fallthru
          _
        // Predicated region
        $region25: #{tpu_custom_call.1} parent=11 // pred_check
          %p311 = pneg %p156
        $region26: #{tpu_custom_call.1} parent=11 // pred_check_branch
          %313 = sbr.rel (%p311) target = $region28
        $region27: #{tpu_custom_call.1} parent=11 // pred_region
          _
        $region28: #{tpu_custom_call.1} parent=11 // pred_fallthru
          _
        // Predicated region
        $region29: #{tpu_custom_call.1} parent=11 // pred_check
          %p314 = pneg %p177
        $region30: #{tpu_custom_call.1} parent=11 // pred_check_branch
          %316 = sbr.rel (%p314) target = $region32
        $region31: #{tpu_custom_call.1} parent=11 // pred_region
          _
        $region32: #{tpu_custom_call.1} parent=11 // pred_fallthru
          _
        // Predicated region
        $region33: #{tpu_custom_call.1} parent=11 // pred_check
          %p317 = pneg %p198
        $region34: #{tpu_custom_call.1} parent=11 // pred_check_branch
          %319 = sbr.rel (%p317) target = $region36
        $region35: #{tpu_custom_call.1} parent=11 // pred_region
          _
        $region36: #{tpu_custom_call.1} parent=11 // pred_fallthru
          _
        // Predicated region
        $region37: #{tpu_custom_call.1} parent=11 // pred_check
          %p320 = pneg %p219
        $region38: #{tpu_custom_call.1} parent=11 // pred_check_branch
          %322 = sbr.rel (%p320) target = $region40
        $region39: #{tpu_custom_call.1} parent=11 // pred_region
          _
        $region40: #{tpu_custom_call.1} parent=11 // pred_fallthru
          _
        // Predicated region
        $region41: #{tpu_custom_call.1} parent=11 // pred_check
          %p323 = pneg %p240
        $region42: #{tpu_custom_call.1} parent=11 // pred_check_branch
          %325 = sbr.rel (%p323) target = $region44
        $region43: #{tpu_custom_call.1} parent=11 // pred_region
          _
        $region44: #{tpu_custom_call.1} parent=11 // pred_fallthru
          _
        // Predicated region
        $region45: #{tpu_custom_call.1} parent=11 // pred_check
          %p326 = pneg %p261
        $region46: #{tpu_custom_call.1} parent=11 // pred_check_branch
          %328 = sbr.rel (%p326) target = $region48
        $region47: #{tpu_custom_call.1} parent=11 // pred_region
          _
        $region48: #{tpu_custom_call.1} parent=11 // pred_fallthru
          _
      $region12: #{tpu_custom_call.1} parent=5 // pred_fallthru
        _
      %p329 = scmp.lt.s32.totalorder %s20, 2
      // Predicated region
      $region49: #{tpu_custom_call.1} parent=5 // pred_check
        %p330 = pneg %p329
      $region50: #{tpu_custom_call.1} parent=5 // pred_check_branch
        %332 = sbr.rel (%p330) target = $region52
      $region51: #{tpu_custom_call.1} parent=5 // pred_region
        // Predicated region
        $region53: #{tpu_custom_call.1} parent=51 // pred_check
          %p333 = pneg %p40
        $region54: #{tpu_custom_call.1} parent=51 // pred_check_branch
          %335 = sbr.rel (%p333) target = $region56
        $region55: #{tpu_custom_call.1} parent=51 // pred_region
          %p336 = scmp.lt.s32.totalorder %s20, 1
          %s337 = scalar_select %p336, %s20, 1
          %s338 = smul.addr %s337, 8
          %s339 = smul.addr %s338, 8
          %s340 = scalar_lea.vmem %s0, %s339
        $region56: #{tpu_custom_call.1} parent=51 // pred_fallthru
          _
        // Predicated region
        $region57: #{tpu_custom_call.1} parent=51 // pred_check
          %p341 = pneg %p66
        $region58: #{tpu_custom_call.1} parent=51 // pred_check_branch
          %343 = sbr.rel (%p341) target = $region60
        $region59: #{tpu_custom_call.1} parent=51 // pred_region
          %p344 = scmp.lt.s32.totalorder %s20, 1
          %s345 = scalar_select %p344, %s20, 1
          %s346 = smul.addr %s345, 32
          %s347 = smul.addr %s346, 8
          %s348 = scalar_lea.vmem %s1, %s347
        $region60: #{tpu_custom_call.1} parent=51 // pred_fallthru
          _
      $region52: #{tpu_custom_call.1} parent=5 // pred_fallthru
        _
      %p349 = scmp.le.s32.totalorder 1, %s20
      %p350 = scmp.lt.s32.totalorder %s20, 3
      %p351 = pnand %p349, %p350
      %p352 = pneg %p351
      // Predicated region
      $region61: #{tpu_custom_call.1} parent=5 // pred_check
        _
      $region62: #{tpu_custom_call.1} parent=5 // pred_check_branch
        %354 = sbr.rel (%p351) target = $region64
      $region63: #{tpu_custom_call.1} parent=5 // pred_region
        %s355 = ssub.s32 %s20, 1
        %p356 = scmp.lt.s32.totalorder %s25, 1
        %s357 = scalar_select %p356, %s25, 1
        %s358 = smul.addr %s357, 8
        %s359 = smul.addr %s358, 8
        %s360 = scalar_lea.vmem %s0, %s359
        %p361 = pneg %p46
        %p362 = pneg %p43
        %p363 = scmp.lt.s32.totalorder %s25, 1
        %s364 = scalar_select %p363, %s25, 1
        %s365 = smul.addr %s364, 32
        %s366 = smul.addr %s365, 8
        %s367 = scalar_lea.vmem %s1, %s366
        %p368 = pneg %p72
        %p369 = pneg %p69
        %p370 = pneg %p93
        %p371 = pneg %p90
        %p372 = pneg %p114
        %p373 = pneg %p111
        %p374 = pneg %p135
        %p375 = pneg %p132
        %p376 = pneg %p156
        %p377 = pneg %p153
        %p378 = pneg %p177
        %p379 = pneg %p174
        %p380 = pneg %p198
        %p381 = pneg %p195
        %p382 = pneg %p219
        %p383 = pneg %p216
        %p384 = pneg %p240
        %p385 = pneg %p237
        %p386 = pneg %p261
        %p387 = pneg %p258
        %p388 = pneg %p287
        %p389 = pneg %p284
        %s390 = sand.u32 %s274, 1
        %s391 = scalar_lea.sflag [#allocation3], %s390
        %s392 = sand.u32 %s274, 1
        %s393 = smul.addr %s392, 8
        %s394 = scalar_lea.vmem [#allocation2], %s393
        %p395 = scmp.lt.s32.totalorder %s25, 1
        %s396 = scalar_select %p395, %s25, 1
        %s397 = smul.addr %s396, 8
        %s398 = smul.addr %s397, 8
        %s399 = scalar_lea.vmem %s0, %s398
        %p400 = scmp.lt.s32.totalorder %s25, 1
        %s401 = scalar_select %p400, %s25, 1
        %s402 = smul.addr %s401, 32
        %s403 = smul.addr %s402, 8
        %s404 = scalar_lea.vmem %s1, %s403
        %v405 = vld [vmem:[%s399] sm:$0xff]
        %v406 = vld [vmem:[%s399 + $0x8] sm:$0xff]
        %v407 = vld [vmem:[%s399 + $0x10] sm:$0xff]
        %v408 = vld [vmem:[%s399 + $0x18] sm:$0xff]
        %v409 = vld [vmem:[%s399 + $0x20] sm:$0xff]
        %v410 = vld [vmem:[%s399 + $0x28] sm:$0xff]
        %v411 = vld [vmem:[%s399 + $0x30] sm:$0xff]
        %v412 = vld [vmem:[%s399 + $0x38] sm:$0xff]
        %v413 = vld [vmem:[%s404] sm:$0xff]
        %v414 = vld [vmem:[%s404 + $0x8] sm:$0xff]
        %v415 = vld [vmem:[%s404 + $0x10] sm:$0xff]
        %v416 = vld [vmem:[%s404 + $0x18] sm:$0xff]
        %v417 = vld [vmem:[%s404 + $0x20] sm:$0xff]
        %v418 = vld [vmem:[%s404 + $0x28] sm:$0xff]
        %v419 = vld [vmem:[%s404 + $0x30] sm:$0xff]
        %v420 = vld [vmem:[%s404 + $0x38] sm:$0xff]
        %v421 = vld [vmem:[%s404 + $0x40] sm:$0xff]
        %v422 = vld [vmem:[%s404 + $0x48] sm:$0xff]
        %v423 = vld [vmem:[%s404 + $0x50] sm:$0xff]
        %v424 = vld [vmem:[%s404 + $0x58] sm:$0xff]
        %v425 = vld [vmem:[%s404 + $0x60] sm:$0xff]
        %v426 = vld [vmem:[%s404 + $0x68] sm:$0xff]
        %v427 = vld [vmem:[%s404 + $0x70] sm:$0xff]
        %v428 = vld [vmem:[%s404 + $0x78] sm:$0xff]
        %v429 = vld [vmem:[%s404 + $0x80] sm:$0xff]
        %v430 = vld [vmem:[%s404 + $0x88] sm:$0xff]
        %v431 = vld [vmem:[%s404 + $0x90] sm:$0xff]
        %v432 = vld [vmem:[%s404 + $0x98] sm:$0xff]
        %v433 = vld [vmem:[%s404 + $0xa0] sm:$0xff]
        %v434 = vld [vmem:[%s404 + $0xa8] sm:$0xff]
        %v435 = vld [vmem:[%s404 + $0xb0] sm:$0xff]
        %v436 = vld [vmem:[%s404 + $0xb8] sm:$0xff]
        %v437 = vld [vmem:[%s404 + $0xc0] sm:$0xff]
        %v438 = vld [vmem:[%s404 + $0xc8] sm:$0xff]
        %v439 = vld [vmem:[%s404 + $0xd0] sm:$0xff]
        %v440 = vld [vmem:[%s404 + $0xd8] sm:$0xff]
        %v441 = vld [vmem:[%s404 + $0xe0] sm:$0xff]
        %v442 = vld [vmem:[%s404 + $0xe8] sm:$0xff]
        %v443 = vld [vmem:[%s404 + $0xf0] sm:$0xff]
        %v444 = vld [vmem:[%s404 + $0xf8] sm:$0xff]
        %v445 = vld [vmem:[%s3] sm:$0xff]
        %vm446 = vcmask 64512
        %v448 = vsel %vm446, %v405, 0
        %v451 = vsel %vm446, %v406, 0
        %v454 = vsel %vm446, %v407, 0
        %v457 = vsel %vm446, %v408, 0
        %v460 = vsel %vm446, %v409, 0
        %v463 = vsel %vm446, %v410, 0
        %v466 = vsel %vm446, %v411, 0
        %v469 = vsel %vm446, %v412, 0
        %471 = vmatpush.msra.mxu0 0.0
        %472 = vmatpush.msra.mxu0 0.0
        %473 = vmatpush.msra.mxu0 0.0
        %474 = vmatpush.msra.mxu0 0.0
        %475 = vmatpush.msra.mxu0 0.0
        %476 = vmatpush.msra.mxu0 0.0
        %477 = vmatpush.msra.mxu0 0.0
        %478 = vmatpush.msra.mxu0 0.0
        %479 = vmatpush.msra.mxu0 0.0
        %480 = vmatpush.msra.mxu0 0.0
        %481 = vmatpush.msra.mxu0 0.0
        %482 = vmatpush.msra.mxu0 0.0
        %483 = vmatpush.msra.mxu0 0.0
        %484 = vmatpush.msra.mxu0 0.0
        %485 = vmatpush.msra.mxu0 0.0
        %486 = vmatpush.msra.mxu0 %v445
        %487 = vmatmul.f32.gmra.mxu0 %v448
        %v488 = vpop.f32.mrf.mxu0
        %v489 = vadd.f32 0.0, %v488
        %490 = vmatmul.f32.gmra.mxu0 %v451
        %v491 = vpop.f32.mrf.mxu0
        %v492 = vadd.f32 0.0, %v491
        %493 = vmatmul.f32.gmra.mxu0 %v454
        %v494 = vpop.f32.mrf.mxu0
        %v495 = vadd.f32 0.0, %v494
        %496 = vmatmul.f32.gmra.mxu0 %v457
        %v497 = vpop.f32.mrf.mxu0
        %v498 = vadd.f32 0.0, %v497
        %499 = vmatmul.f32.gmra.mxu0 %v460
        %v500 = vpop.f32.mrf.mxu0
        %v501 = vadd.f32 0.0, %v500
        %502 = vmatmul.f32.gmra.mxu0 %v463
        %v503 = vpop.f32.mrf.mxu0
        %v504 = vadd.f32 0.0, %v503
        %505 = vmatmul.f32.gmra.mxu0 %v466
        %v506 = vpop.f32.mrf.mxu0
        %v507 = vadd.f32 0.0, %v506
        %508 = vmatmul.f32.gmra.mxu0 %v469
        %v509 = vpop.f32.mrf.mxu0
        %v510 = vadd.f32 0.0, %v509
        %511 = vdwg.mxu0
        %v512 = vld [vmem:[%s2] sm:$0xff]
        %v513 = vld [vmem:[%s2 + $0x8] sm:$0xff]
        %s514 = scalar_lea.vmem %s2, 16
        %v515 = vld [vmem:[%s514] sm:$0xff]
        %v516 = vld [vmem:[%s514 + $0x8] sm:$0xff]
        %518 = vrot.lane.b32.xlu0 %v489, 124
        %v519 = vpop.permute.xlu0 %518
        %v522 = vsel %vm446, %v515, 0
        %v525 = vsel %vm446, %v516, 0
        %527 = vmatpush.msra.mxu0 0.0
        %528 = vmatpush.msra.mxu0 0.0
        %529 = vmatpush.msra.mxu0 0.0
        %530 = vmatpush.msra.mxu0 0.0
        %531 = vmatpush.msra.mxu0 0.0
        %532 = vmatpush.msra.mxu0 0.0
        %533 = vmatpush.msra.mxu0 0.0
        %534 = vmatpush.msra.mxu0 0.0
        %535 = vmatpush.msra.mxu0 0.0
        %536 = vmatpush.msra.mxu0 0.0
        %537 = vmatpush.msra.mxu0 0.0
        %538 = vmatpush.msra.mxu0 0.0
        %539 = vmatpush.msra.mxu0 0.0
        %540 = vmatpush.msra.mxu0 0.0
        %541 = vmatpush.msra.mxu0 0.0
        %542 = vmatpush.msra.mxu0 %v519
        %543 = vmatmul.f32.gmra.mxu0 %v522
        %v544 = vpop.f32.mrf.mxu0
        %v545 = vadd.f32 0.0, %v544
        %546 = vmatmul.f32.gmra.mxu0 %v525
        %v547 = vpop.f32.mrf.mxu0
        %v548 = vadd.f32 0.0, %v547
        %549 = vdwg.mxu0
        %551 = vrot.lane.b32.xlu0 %v492, 124
        %v552 = vpop.permute.xlu0 %551
        %554 = vmatpush.msra.mxu0 0.0
        %555 = vmatpush.msra.mxu0 0.0
        %556 = vmatpush.msra.mxu0 0.0
        %557 = vmatpush.msra.mxu0 0.0
        %558 = vmatpush.msra.mxu0 0.0
        %559 = vmatpush.msra.mxu0 0.0
        %560 = vmatpush.msra.mxu0 0.0
        %561 = vmatpush.msra.mxu0 0.0
        %562 = vmatpush.msra.mxu0 0.0
        %563 = vmatpush.msra.mxu0 0.0
        %564 = vmatpush.msra.mxu0 0.0
        %565 = vmatpush.msra.mxu0 0.0
        %566 = vmatpush.msra.mxu0 0.0
        %567 = vmatpush.msra.mxu0 0.0
        %568 = vmatpush.msra.mxu0 0.0
        %569 = vmatpush.msra.mxu0 %v552
        %570 = vmatmul.f32.gmra.mxu0 %v522
        %v571 = vpop.f32.mrf.mxu0
        %v572 = vadd.f32 0.0, %v571
        %573 = vmatmul.f32.gmra.mxu0 %v525
        %v574 = vpop.f32.mrf.mxu0
        %v575 = vadd.f32 0.0, %v574
        %576 = vdwg.mxu0
        %578 = vrot.lane.b32.xlu0 %v495, 124
        %v579 = vpop.permute.xlu0 %578
        %581 = vmatpush.msra.mxu0 0.0
        %582 = vmatpush.msra.mxu0 0.0
        %583 = vmatpush.msra.mxu0 0.0
        %584 = vmatpush.msra.mxu0 0.0
        %585 = vmatpush.msra.mxu0 0.0
        %586 = vmatpush.msra.mxu0 0.0
        %587 = vmatpush.msra.mxu0 0.0
        %588 = vmatpush.msra.mxu0 0.0
        %589 = vmatpush.msra.mxu0 0.0
        %590 = vmatpush.msra.mxu0 0.0
        %591 = vmatpush.msra.mxu0 0.0
        %592 = vmatpush.msra.mxu0 0.0
        %593 = vmatpush.msra.mxu0 0.0
        %594 = vmatpush.msra.mxu0 0.0
        %595 = vmatpush.msra.mxu0 0.0
        %596 = vmatpush.msra.mxu0 %v579
        %597 = vmatmul.f32.gmra.mxu0 %v522
        %v598 = vpop.f32.mrf.mxu0
        %v599 = vadd.f32 0.0, %v598
        %600 = vmatmul.f32.gmra.mxu0 %v525
        %v601 = vpop.f32.mrf.mxu0
        %v602 = vadd.f32 0.0, %v601
        %603 = vdwg.mxu0
        %605 = vrot.lane.b32.xlu0 %v498, 124
        %v606 = vpop.permute.xlu0 %605
        %608 = vmatpush.msra.mxu0 0.0
        %609 = vmatpush.msra.mxu0 0.0
        %610 = vmatpush.msra.mxu0 0.0
        %611 = vmatpush.msra.mxu0 0.0
        %612 = vmatpush.msra.mxu0 0.0
        %613 = vmatpush.msra.mxu0 0.0
        %614 = vmatpush.msra.mxu0 0.0
        %615 = vmatpush.msra.mxu0 0.0
        %616 = vmatpush.msra.mxu0 0.0
        %617 = vmatpush.msra.mxu0 0.0
        %618 = vmatpush.msra.mxu0 0.0
        %619 = vmatpush.msra.mxu0 0.0
        %620 = vmatpush.msra.mxu0 0.0
        %621 = vmatpush.msra.mxu0 0.0
        %622 = vmatpush.msra.mxu0 0.0
        %623 = vmatpush.msra.mxu0 %v606
        %624 = vmatmul.f32.gmra.mxu0 %v522
        %v625 = vpop.f32.mrf.mxu0
        %v626 = vadd.f32 0.0, %v625
        %627 = vmatmul.f32.gmra.mxu0 %v525
        %v628 = vpop.f32.mrf.mxu0
        %v629 = vadd.f32 0.0, %v628
        %630 = vdwg.mxu0
        %632 = vrot.lane.b32.xlu0 %v501, 124
        %v633 = vpop.permute.xlu0 %632
        %635 = vmatpush.msra.mxu0 0.0
        %636 = vmatpush.msra.mxu0 0.0
        %637 = vmatpush.msra.mxu0 0.0
        %638 = vmatpush.msra.mxu0 0.0
        %639 = vmatpush.msra.mxu0 0.0
        %640 = vmatpush.msra.mxu0 0.0
        %641 = vmatpush.msra.mxu0 0.0
        %642 = vmatpush.msra.mxu0 0.0
        %643 = vmatpush.msra.mxu0 0.0
        %644 = vmatpush.msra.mxu0 0.0
        %645 = vmatpush.msra.mxu0 0.0
        %646 = vmatpush.msra.mxu0 0.0
        %647 = vmatpush.msra.mxu0 0.0
        %648 = vmatpush.msra.mxu0 0.0
        %649 = vmatpush.msra.mxu0 0.0
        %650 = vmatpush.msra.mxu0 %v633
        %651 = vmatmul.f32.gmra.mxu0 %v522
        %v652 = vpop.f32.mrf.mxu0
        %v653 = vadd.f32 0.0, %v652
        %654 = vmatmul.f32.gmra.mxu0 %v525
        %v655 = vpop.f32.mrf.mxu0
        %v656 = vadd.f32 0.0, %v655
        %657 = vdwg.mxu0
        %659 = vrot.lane.b32.xlu0 %v504, 124
        %v660 = vpop.permute.xlu0 %659
        %662 = vmatpush.msra.mxu0 0.0
        %663 = vmatpush.msra.mxu0 0.0
        %664 = vmatpush.msra.mxu0 0.0
        %665 = vmatpush.msra.mxu0 0.0
        %666 = vmatpush.msra.mxu0 0.0
        %667 = vmatpush.msra.mxu0 0.0
        %668 = vmatpush.msra.mxu0 0.0
        %669 = vmatpush.msra.mxu0 0.0
        %670 = vmatpush.msra.mxu0 0.0
        %671 = vmatpush.msra.mxu0 0.0
        %672 = vmatpush.msra.mxu0 0.0
        %673 = vmatpush.msra.mxu0 0.0
        %674 = vmatpush.msra.mxu0 0.0
        %675 = vmatpush.msra.mxu0 0.0
        %676 = vmatpush.msra.mxu0 0.0
        %677 = vmatpush.msra.mxu0 %v660
        %678 = vmatmul.f32.gmra.mxu0 %v522
        %v679 = vpop.f32.mrf.mxu0
        %v680 = vadd.f32 0.0, %v679
        %681 = vmatmul.f32.gmra.mxu0 %v525
        %v682 = vpop.f32.mrf.mxu0
        %v683 = vadd.f32 0.0, %v682
        %684 = vdwg.mxu0
        %686 = vrot.lane.b32.xlu0 %v507, 124
        %v687 = vpop.permute.xlu0 %686
        %689 = vmatpush.msra.mxu0 0.0
        %690 = vmatpush.msra.mxu0 0.0
        %691 = vmatpush.msra.mxu0 0.0
        %692 = vmatpush.msra.mxu0 0.0
        %693 = vmatpush.msra.mxu0 0.0
        %694 = vmatpush.msra.mxu0 0.0
        %695 = vmatpush.msra.mxu0 0.0
        %696 = vmatpush.msra.mxu0 0.0
        %697 = vmatpush.msra.mxu0 0.0
        %698 = vmatpush.msra.mxu0 0.0
        %699 = vmatpush.msra.mxu0 0.0
        %700 = vmatpush.msra.mxu0 0.0
        %701 = vmatpush.msra.mxu0 0.0
        %702 = vmatpush.msra.mxu0 0.0
        %703 = vmatpush.msra.mxu0 0.0
        %704 = vmatpush.msra.mxu0 %v687
        %705 = vmatmul.f32.gmra.mxu0 %v522
        %v706 = vpop.f32.mrf.mxu0
        %v707 = vadd.f32 0.0, %v706
        %708 = vmatmul.f32.gmra.mxu0 %v525
        %v709 = vpop.f32.mrf.mxu0
        %v710 = vadd.f32 0.0, %v709
        %711 = vdwg.mxu0
        %713 = vrot.lane.b32.xlu0 %v510, 124
        %v714 = vpop.permute.xlu0 %713
        %716 = vmatpush.msra.mxu0 0.0
        %717 = vmatpush.msra.mxu0 0.0
        %718 = vmatpush.msra.mxu0 0.0
        %719 = vmatpush.msra.mxu0 0.0
        %720 = vmatpush.msra.mxu0 0.0
        %721 = vmatpush.msra.mxu0 0.0
        %722 = vmatpush.msra.mxu0 0.0
        %723 = vmatpush.msra.mxu0 0.0
        %724 = vmatpush.msra.mxu0 0.0
        %725 = vmatpush.msra.mxu0 0.0
        %726 = vmatpush.msra.mxu0 0.0
        %727 = vmatpush.msra.mxu0 0.0
        %728 = vmatpush.msra.mxu0 0.0
        %729 = vmatpush.msra.mxu0 0.0
        %730 = vmatpush.msra.mxu0 0.0
        %731 = vmatpush.msra.mxu0 %v714
        %732 = vmatmul.f32.gmra.mxu0 %v522
        %v733 = vpop.f32.mrf.mxu0
        %v734 = vadd.f32 0.0, %v733
        %735 = vmatmul.f32.gmra.mxu0 %v525
        %v736 = vpop.f32.mrf.mxu0
        %v737 = vadd.f32 0.0, %v736
        %738 = vdwg.mxu0
        %v740 = vsel %vm446, %v512, 0
        %v743 = vsel %vm446, %v513, 0
        %745 = vmatpush.msra.mxu0 0.0
        %746 = vmatpush.msra.mxu0 0.0
        %747 = vmatpush.msra.mxu0 0.0
        %748 = vmatpush.msra.mxu0 0.0
        %749 = vmatpush.msra.mxu0 0.0
        %750 = vmatpush.msra.mxu0 0.0
        %751 = vmatpush.msra.mxu0 0.0
        %752 = vmatpush.msra.mxu0 0.0
        %753 = vmatpush.msra.mxu0 0.0
        %754 = vmatpush.msra.mxu0 0.0
        %755 = vmatpush.msra.mxu0 0.0
        %756 = vmatpush.msra.mxu0 0.0
        %757 = vmatpush.msra.mxu0 0.0
        %758 = vmatpush.msra.mxu0 0.0
        %759 = vmatpush.msra.mxu0 0.0
        %760 = vmatpush.msra.mxu0 %v489
        %761 = vmatmul.f32.gmra.mxu0 %v740
        %v762 = vpop.f32.mrf.mxu0
        %v763 = vadd.f32 %v545, %v762
        %764 = vmatmul.f32.gmra.mxu0 %v743
        %v765 = vpop.f32.mrf.mxu0
        %v766 = vadd.f32 %v548, %v765
        %767 = vdwg.mxu0
        %768 = vmatpush.msra.mxu0 0.0
        %769 = vmatpush.msra.mxu0 0.0
        %770 = vmatpush.msra.mxu0 0.0
        %771 = vmatpush.msra.mxu0 0.0
        %772 = vmatpush.msra.mxu0 0.0
        %773 = vmatpush.msra.mxu0 0.0
        %774 = vmatpush.msra.mxu0 0.0
        %775 = vmatpush.msra.mxu0 0.0
        %776 = vmatpush.msra.mxu0 0.0
        %777 = vmatpush.msra.mxu0 0.0
        %778 = vmatpush.msra.mxu0 0.0
        %779 = vmatpush.msra.mxu0 0.0
        %780 = vmatpush.msra.mxu0 0.0
        %781 = vmatpush.msra.mxu0 0.0
        %782 = vmatpush.msra.mxu0 0.0
        %783 = vmatpush.msra.mxu0 %v492
        %784 = vmatmul.f32.gmra.mxu0 %v740
        %v785 = vpop.f32.mrf.mxu0
        %v786 = vadd.f32 %v572, %v785
        %787 = vmatmul.f32.gmra.mxu0 %v743
        %v788 = vpop.f32.mrf.mxu0
        %v789 = vadd.f32 %v575, %v788
        %790 = vdwg.mxu0
        %791 = vmatpush.msra.mxu0 0.0
        %792 = vmatpush.msra.mxu0 0.0
        %793 = vmatpush.msra.mxu0 0.0
        %794 = vmatpush.msra.mxu0 0.0
        %795 = vmatpush.msra.mxu0 0.0
        %796 = vmatpush.msra.mxu0 0.0
        %797 = vmatpush.msra.mxu0 0.0
        %798 = vmatpush.msra.mxu0 0.0
        %799 = vmatpush.msra.mxu0 0.0
        %800 = vmatpush.msra.mxu0 0.0
        %801 = vmatpush.msra.mxu0 0.0
        %802 = vmatpush.msra.mxu0 0.0
        %803 = vmatpush.msra.mxu0 0.0
        %804 = vmatpush.msra.mxu0 0.0
        %805 = vmatpush.msra.mxu0 0.0
        %806 = vmatpush.msra.mxu0 %v495
        %807 = vmatmul.f32.gmra.mxu0 %v740
        %v808 = vpop.f32.mrf.mxu0
        %v809 = vadd.f32 %v599, %v808
        %810 = vmatmul.f32.gmra.mxu0 %v743
        %v811 = vpop.f32.mrf.mxu0
        %v812 = vadd.f32 %v602, %v811
        %813 = vdwg.mxu0
        %814 = vmatpush.msra.mxu0 0.0
        %815 = vmatpush.msra.mxu0 0.0
        %816 = vmatpush.msra.mxu0 0.0
        %817 = vmatpush.msra.mxu0 0.0
        %818 = vmatpush.msra.mxu0 0.0
        %819 = vmatpush.msra.mxu0 0.0
        %820 = vmatpush.msra.mxu0 0.0
        %821 = vmatpush.msra.mxu0 0.0
        %822 = vmatpush.msra.mxu0 0.0
        %823 = vmatpush.msra.mxu0 0.0
        %824 = vmatpush.msra.mxu0 0.0
        %825 = vmatpush.msra.mxu0 0.0
        %826 = vmatpush.msra.mxu0 0.0
        %827 = vmatpush.msra.mxu0 0.0
        %828 = vmatpush.msra.mxu0 0.0
        %829 = vmatpush.msra.mxu0 %v498
        %830 = vmatmul.f32.gmra.mxu0 %v740
        %v831 = vpop.f32.mrf.mxu0
        %v832 = vadd.f32 %v626, %v831
        %833 = vmatmul.f32.gmra.mxu0 %v743
        %v834 = vpop.f32.mrf.mxu0
        %v835 = vadd.f32 %v629, %v834
        %836 = vdwg.mxu0
        %837 = vmatpush.msra.mxu0 0.0
        %838 = vmatpush.msra.mxu0 0.0
        %839 = vmatpush.msra.mxu0 0.0
        %840 = vmatpush.msra.mxu0 0.0
        %841 = vmatpush.msra.mxu0 0.0
        %842 = vmatpush.msra.mxu0 0.0
        %843 = vmatpush.msra.mxu0 0.0
        %844 = vmatpush.msra.mxu0 0.0
        %845 = vmatpush.msra.mxu0 0.0
        %846 = vmatpush.msra.mxu0 0.0
        %847 = vmatpush.msra.mxu0 0.0
        %848 = vmatpush.msra.mxu0 0.0
        %849 = vmatpush.msra.mxu0 0.0
        %850 = vmatpush.msra.mxu0 0.0
        %851 = vmatpush.msra.mxu0 0.0
        %852 = vmatpush.msra.mxu0 %v501
        %853 = vmatmul.f32.gmra.mxu0 %v740
        %v854 = vpop.f32.mrf.mxu0
        %v855 = vadd.f32 %v653, %v854
        %856 = vmatmul.f32.gmra.mxu0 %v743
        %v857 = vpop.f32.mrf.mxu0
        %v858 = vadd.f32 %v656, %v857
        %859 = vdwg.mxu0
        %860 = vmatpush.msra.mxu0 0.0
        %861 = vmatpush.msra.mxu0 0.0
        %862 = vmatpush.msra.mxu0 0.0
        %863 = vmatpush.msra.mxu0 0.0
        %864 = vmatpush.msra.mxu0 0.0
        %865 = vmatpush.msra.mxu0 0.0
        %866 = vmatpush.msra.mxu0 0.0
        %867 = vmatpush.msra.mxu0 0.0
        %868 = vmatpush.msra.mxu0 0.0
        %869 = vmatpush.msra.mxu0 0.0
        %870 = vmatpush.msra.mxu0 0.0
        %871 = vmatpush.msra.mxu0 0.0
        %872 = vmatpush.msra.mxu0 0.0
        %873 = vmatpush.msra.mxu0 0.0
        %874 = vmatpush.msra.mxu0 0.0
        %875 = vmatpush.msra.mxu0 %v504
        %876 = vmatmul.f32.gmra.mxu0 %v740
        %v877 = vpop.f32.mrf.mxu0
        %v878 = vadd.f32 %v680, %v877
        %879 = vmatmul.f32.gmra.mxu0 %v743
        %v880 = vpop.f32.mrf.mxu0
        %v881 = vadd.f32 %v683, %v880
        %882 = vdwg.mxu0
        %883 = vmatpush.msra.mxu0 0.0
        %884 = vmatpush.msra.mxu0 0.0
        %885 = vmatpush.msra.mxu0 0.0
        %886 = vmatpush.msra.mxu0 0.0
        %887 = vmatpush.msra.mxu0 0.0
        %888 = vmatpush.msra.mxu0 0.0
        %889 = vmatpush.msra.mxu0 0.0
        %890 = vmatpush.msra.mxu0 0.0
        %891 = vmatpush.msra.mxu0 0.0
        %892 = vmatpush.msra.mxu0 0.0
        %893 = vmatpush.msra.mxu0 0.0
        %894 = vmatpush.msra.mxu0 0.0
        %895 = vmatpush.msra.mxu0 0.0
        %896 = vmatpush.msra.mxu0 0.0
        %897 = vmatpush.msra.mxu0 0.0
        %898 = vmatpush.msra.mxu0 %v507
        %899 = vmatmul.f32.gmra.mxu0 %v740
        %v900 = vpop.f32.mrf.mxu0
        %v901 = vadd.f32 %v707, %v900
        %902 = vmatmul.f32.gmra.mxu0 %v743
        %v903 = vpop.f32.mrf.mxu0
        %v904 = vadd.f32 %v710, %v903
        %905 = vdwg.mxu0
        %906 = vmatpush.msra.mxu0 0.0
        %907 = vmatpush.msra.mxu0 0.0
        %908 = vmatpush.msra.mxu0 0.0
        %909 = vmatpush.msra.mxu0 0.0
        %910 = vmatpush.msra.mxu0 0.0
        %911 = vmatpush.msra.mxu0 0.0
        %912 = vmatpush.msra.mxu0 0.0
        %913 = vmatpush.msra.mxu0 0.0
        %914 = vmatpush.msra.mxu0 0.0
        %915 = vmatpush.msra.mxu0 0.0
        %916 = vmatpush.msra.mxu0 0.0
        %917 = vmatpush.msra.mxu0 0.0
        %918 = vmatpush.msra.mxu0 0.0
        %919 = vmatpush.msra.mxu0 0.0
        %920 = vmatpush.msra.mxu0 0.0
        %921 = vmatpush.msra.mxu0 %v510
        %922 = vmatmul.f32.gmra.mxu0 %v740
        %v923 = vpop.f32.mrf.mxu0
        %v924 = vadd.f32 %v734, %v923
        %925 = vmatmul.f32.gmra.mxu0 %v743
        %v926 = vpop.f32.mrf.mxu0
        %v927 = vadd.f32 %v737, %v926
        %928 = vdwg.mxu0
        %929 = vrot.lane.b32.xlu0 %v489, 116
        %v930 = vpop.permute.xlu0 %929
        %932 = vmatpush.msra.mxu0 0.0
        %933 = vmatpush.msra.mxu0 0.0
        %934 = vmatpush.msra.mxu0 0.0
        %935 = vmatpush.msra.mxu0 0.0
        %936 = vmatpush.msra.mxu0 0.0
        %937 = vmatpush.msra.mxu0 0.0
        %938 = vmatpush.msra.mxu0 0.0
        %939 = vmatpush.msra.mxu0 0.0
        %940 = vmatpush.msra.mxu0 0.0
        %941 = vmatpush.msra.mxu0 0.0
        %942 = vmatpush.msra.mxu0 0.0
        %943 = vmatpush.msra.mxu0 0.0
        %944 = vmatpush.msra.mxu0 0.0
        %945 = vmatpush.msra.mxu0 0.0
        %946 = vmatpush.msra.mxu0 0.0
        %947 = vmatpush.msra.mxu0 %v930
        %948 = vmatmul.f32.gmra.mxu0 %v522
        %v949 = vpop.f32.mrf.mxu0
        %v950 = vadd.f32 0.0, %v949
        %951 = vmatmul.f32.gmra.mxu0 %v525
        %v952 = vpop.f32.mrf.mxu0
        %v953 = vadd.f32 0.0, %v952
        %954 = vdwg.mxu0
        %955 = vrot.lane.b32.xlu0 %v492, 116
        %v956 = vpop.permute.xlu0 %955
        %958 = vmatpush.msra.mxu0 0.0
        %959 = vmatpush.msra.mxu0 0.0
        %960 = vmatpush.msra.mxu0 0.0
        %961 = vmatpush.msra.mxu0 0.0
        %962 = vmatpush.msra.mxu0 0.0
        %963 = vmatpush.msra.mxu0 0.0
        %964 = vmatpush.msra.mxu0 0.0
        %965 = vmatpush.msra.mxu0 0.0
        %966 = vmatpush.msra.mxu0 0.0
        %967 = vmatpush.msra.mxu0 0.0
        %968 = vmatpush.msra.mxu0 0.0
        %969 = vmatpush.msra.mxu0 0.0
        %970 = vmatpush.msra.mxu0 0.0
        %971 = vmatpush.msra.mxu0 0.0
        %972 = vmatpush.msra.mxu0 0.0
        %973 = vmatpush.msra.mxu0 %v956
        %974 = vmatmul.f32.gmra.mxu0 %v522
        %v975 = vpop.f32.mrf.mxu0
        %v976 = vadd.f32 0.0, %v975
        %977 = vmatmul.f32.gmra.mxu0 %v525
        %v978 = vpop.f32.mrf.mxu0
        %v979 = vadd.f32 0.0, %v978
        %980 = vdwg.mxu0
        %981 = vrot.lane.b32.xlu0 %v495, 116
        %v982 = vpop.permute.xlu0 %981
        %984 = vmatpush.msra.mxu0 0.0
        %985 = vmatpush.msra.mxu0 0.0
        %986 = vmatpush.msra.mxu0 0.0
        %987 = vmatpush.msra.mxu0 0.0
        %988 = vmatpush.msra.mxu0 0.0
        %989 = vmatpush.msra.mxu0 0.0
        %990 = vmatpush.msra.mxu0 0.0
        %991 = vmatpush.msra.mxu0 0.0
        %992 = vmatpush.msra.mxu0 0.0
        %993 = vmatpush.msra.mxu0 0.0
        %994 = vmatpush.msra.mxu0 0.0
        %995 = vmatpush.msra.mxu0 0.0
        %996 = vmatpush.msra.mxu0 0.0
        %997 = vmatpush.msra.mxu0 0.0
        %998 = vmatpush.msra.mxu0 0.0
        %999 = vmatpush.msra.mxu0 %v982
        %1000 = vmatmul.f32.gmra.mxu0 %v522
        %v1001 = vpop.f32.mrf.mxu0
        %v1002 = vadd.f32 0.0, %v1001
        %1003 = vmatmul.f32.gmra.mxu0 %v525
        %v1004 = vpop.f32.mrf.mxu0
        %v1005 = vadd.f32 0.0, %v1004
        %1006 = vdwg.mxu0
        %1007 = vrot.lane.b32.xlu0 %v498, 116
        %v1008 = vpop.permute.xlu0 %1007
        %1010 = vmatpush.msra.mxu0 0.0
        %1011 = vmatpush.msra.mxu0 0.0
        %1012 = vmatpush.msra.mxu0 0.0
        %1013 = vmatpush.msra.mxu0 0.0
        %1014 = vmatpush.msra.mxu0 0.0
        %1015 = vmatpush.msra.mxu0 0.0
        %1016 = vmatpush.msra.mxu0 0.0
        %1017 = vmatpush.msra.mxu0 0.0
        %1018 = vmatpush.msra.mxu0 0.0
        %1019 = vmatpush.msra.mxu0 0.0
        %1020 = vmatpush.msra.mxu0 0.0
        %1021 = vmatpush.msra.mxu0 0.0
        %1022 = vmatpush.msra.mxu0 0.0
        %1023 = vmatpush.msra.mxu0 0.0
        %1024 = vmatpush.msra.mxu0 0.0
        %1025 = vmatpush.msra.mxu0 %v1008
        %1026 = vmatmul.f32.gmra.mxu0 %v522
        %v1027 = vpop.f32.mrf.mxu0
        %v1028 = vadd.f32 0.0, %v1027
        %1029 = vmatmul.f32.gmra.mxu0 %v525
        %v1030 = vpop.f32.mrf.mxu0
        %v1031 = vadd.f32 0.0, %v1030
        %1032 = vdwg.mxu0
        %1033 = vrot.lane.b32.xlu0 %v501, 116
        %v1034 = vpop.permute.xlu0 %1033
        %1036 = vmatpush.msra.mxu0 0.0
        %1037 = vmatpush.msra.mxu0 0.0
        %1038 = vmatpush.msra.mxu0 0.0
        %1039 = vmatpush.msra.mxu0 0.0
        %1040 = vmatpush.msra.mxu0 0.0
        %1041 = vmatpush.msra.mxu0 0.0
        %1042 = vmatpush.msra.mxu0 0.0
        %1043 = vmatpush.msra.mxu0 0.0
        %1044 = vmatpush.msra.mxu0 0.0
        %1045 = vmatpush.msra.mxu0 0.0
        %1046 = vmatpush.msra.mxu0 0.0
        %1047 = vmatpush.msra.mxu0 0.0
        %1048 = vmatpush.msra.mxu0 0.0
        %1049 = vmatpush.msra.mxu0 0.0
        %1050 = vmatpush.msra.mxu0 0.0
        %1051 = vmatpush.msra.mxu0 %v1034
        %1052 = vmatmul.f32.gmra.mxu0 %v522
        %v1053 = vpop.f32.mrf.mxu0
        %v1054 = vadd.f32 0.0, %v1053
        %1055 = vmatmul.f32.gmra.mxu0 %v525
        %v1056 = vpop.f32.mrf.mxu0
        %v1057 = vadd.f32 0.0, %v1056
        %1058 = vdwg.mxu0
        %1059 = vrot.lane.b32.xlu0 %v504, 116
        %v1060 = vpop.permute.xlu0 %1059
        %1062 = vmatpush.msra.mxu0 0.0
        %1063 = vmatpush.msra.mxu0 0.0
        %1064 = vmatpush.msra.mxu0 0.0
        %1065 = vmatpush.msra.mxu0 0.0
        %1066 = vmatpush.msra.mxu0 0.0
        %1067 = vmatpush.msra.mxu0 0.0
        %1068 = vmatpush.msra.mxu0 0.0
        %1069 = vmatpush.msra.mxu0 0.0
        %1070 = vmatpush.msra.mxu0 0.0
        %1071 = vmatpush.msra.mxu0 0.0
        %1072 = vmatpush.msra.mxu0 0.0
        %1073 = vmatpush.msra.mxu0 0.0
        %1074 = vmatpush.msra.mxu0 0.0
        %1075 = vmatpush.msra.mxu0 0.0
        %1076 = vmatpush.msra.mxu0 0.0
        %1077 = vmatpush.msra.mxu0 %v1060
        %1078 = vmatmul.f32.gmra.mxu0 %v522
        %v1079 = vpop.f32.mrf.mxu0
        %v1080 = vadd.f32 0.0, %v1079
        %1081 = vmatmul.f32.gmra.mxu0 %v525
        %v1082 = vpop.f32.mrf.mxu0
        %v1083 = vadd.f32 0.0, %v1082
        %1084 = vdwg.mxu0
        %1085 = vrot.lane.b32.xlu0 %v507, 116
        %v1086 = vpop.permute.xlu0 %1085
        %1088 = vmatpush.msra.mxu0 0.0
        %1089 = vmatpush.msra.mxu0 0.0
        %1090 = vmatpush.msra.mxu0 0.0
        %1091 = vmatpush.msra.mxu0 0.0
        %1092 = vmatpush.msra.mxu0 0.0
        %1093 = vmatpush.msra.mxu0 0.0
        %1094 = vmatpush.msra.mxu0 0.0
        %1095 = vmatpush.msra.mxu0 0.0
        %1096 = vmatpush.msra.mxu0 0.0
        %1097 = vmatpush.msra.mxu0 0.0
        %1098 = vmatpush.msra.mxu0 0.0
        %1099 = vmatpush.msra.mxu0 0.0
        %1100 = vmatpush.msra.mxu0 0.0
        %1101 = vmatpush.msra.mxu0 0.0
        %1102 = vmatpush.msra.mxu0 0.0
        %1103 = vmatpush.msra.mxu0 %v1086
        %1104 = vmatmul.f32.gmra.mxu0 %v522
        %v1105 = vpop.f32.mrf.mxu0
        %v1106 = vadd.f32 0.0, %v1105
        %1107 = vmatmul.f32.gmra.mxu0 %v525
        %v1108 = vpop.f32.mrf.mxu0
        %v1109 = vadd.f32 0.0, %v1108
        %1110 = vdwg.mxu0
        %1111 = vrot.lane.b32.xlu0 %v510, 116
        %v1112 = vpop.permute.xlu0 %1111
        %1114 = vmatpush.msra.mxu0 0.0
        %1115 = vmatpush.msra.mxu0 0.0
        %1116 = vmatpush.msra.mxu0 0.0
        %1117 = vmatpush.msra.mxu0 0.0
        %1118 = vmatpush.msra.mxu0 0.0
        %1119 = vmatpush.msra.mxu0 0.0
        %1120 = vmatpush.msra.mxu0 0.0
        %1121 = vmatpush.msra.mxu0 0.0
        %1122 = vmatpush.msra.mxu0 0.0
        %1123 = vmatpush.msra.mxu0 0.0
        %1124 = vmatpush.msra.mxu0 0.0
        %1125 = vmatpush.msra.mxu0 0.0
        %1126 = vmatpush.msra.mxu0 0.0
        %1127 = vmatpush.msra.mxu0 0.0
        %1128 = vmatpush.msra.mxu0 0.0
        %1129 = vmatpush.msra.mxu0 %v1112
        %1130 = vmatmul.f32.gmra.mxu0 %v522
        %v1131 = vpop.f32.mrf.mxu0
        %v1132 = vadd.f32 0.0, %v1131
        %1133 = vmatmul.f32.gmra.mxu0 %v525
        %v1134 = vpop.f32.mrf.mxu0
        %v1135 = vadd.f32 0.0, %v1134
        %1136 = vdwg.mxu0
        %1137 = vrot.lane.b32.xlu0 %v489, 120
        %v1138 = vpop.permute.xlu0 %1137
        %1140 = vmatpush.msra.mxu0 0.0
        %1141 = vmatpush.msra.mxu0 0.0
        %1142 = vmatpush.msra.mxu0 0.0
        %1143 = vmatpush.msra.mxu0 0.0
        %1144 = vmatpush.msra.mxu0 0.0
        %1145 = vmatpush.msra.mxu0 0.0
        %1146 = vmatpush.msra.mxu0 0.0
        %1147 = vmatpush.msra.mxu0 0.0
        %1148 = vmatpush.msra.mxu0 0.0
        %1149 = vmatpush.msra.mxu0 0.0
        %1150 = vmatpush.msra.mxu0 0.0
        %1151 = vmatpush.msra.mxu0 0.0
        %1152 = vmatpush.msra.mxu0 0.0
        %1153 = vmatpush.msra.mxu0 0.0
        %1154 = vmatpush.msra.mxu0 0.0
        %1155 = vmatpush.msra.mxu0 %v1138
        %1156 = vmatmul.f32.gmra.mxu0 %v740
        %v1157 = vpop.f32.mrf.mxu0
        %v1158 = vadd.f32 %v950, %v1157
        %1159 = vmatmul.f32.gmra.mxu0 %v743
        %v1160 = vpop.f32.mrf.mxu0
        %v1161 = vadd.f32 %v953, %v1160
        %1162 = vdwg.mxu0
        %1163 = vrot.lane.b32.xlu0 %v492, 120
        %v1164 = vpop.permute.xlu0 %1163
        %1166 = vmatpush.msra.mxu0 0.0
        %1167 = vmatpush.msra.mxu0 0.0
        %1168 = vmatpush.msra.mxu0 0.0
        %1169 = vmatpush.msra.mxu0 0.0
        %1170 = vmatpush.msra.mxu0 0.0
        %1171 = vmatpush.msra.mxu0 0.0
        %1172 = vmatpush.msra.mxu0 0.0
        %1173 = vmatpush.msra.mxu0 0.0
        %1174 = vmatpush.msra.mxu0 0.0
        %1175 = vmatpush.msra.mxu0 0.0
        %1176 = vmatpush.msra.mxu0 0.0
        %1177 = vmatpush.msra.mxu0 0.0
        %1178 = vmatpush.msra.mxu0 0.0
        %1179 = vmatpush.msra.mxu0 0.0
        %1180 = vmatpush.msra.mxu0 0.0
        %1181 = vmatpush.msra.mxu0 %v1164
        %1182 = vmatmul.f32.gmra.mxu0 %v740
        %v1183 = vpop.f32.mrf.mxu0
        %v1184 = vadd.f32 %v976, %v1183
        %1185 = vmatmul.f32.gmra.mxu0 %v743
        %v1186 = vpop.f32.mrf.mxu0
        %v1187 = vadd.f32 %v979, %v1186
        %1188 = vdwg.mxu0
        %1189 = vrot.lane.b32.xlu0 %v495, 120
        %v1190 = vpop.permute.xlu0 %1189
        %1192 = vmatpush.msra.mxu0 0.0
        %1193 = vmatpush.msra.mxu0 0.0
        %1194 = vmatpush.msra.mxu0 0.0
        %1195 = vmatpush.msra.mxu0 0.0
        %1196 = vmatpush.msra.mxu0 0.0
        %1197 = vmatpush.msra.mxu0 0.0
        %1198 = vmatpush.msra.mxu0 0.0
        %1199 = vmatpush.msra.mxu0 0.0
        %1200 = vmatpush.msra.mxu0 0.0
        %1201 = vmatpush.msra.mxu0 0.0
        %1202 = vmatpush.msra.mxu0 0.0
        %1203 = vmatpush.msra.mxu0 0.0
        %1204 = vmatpush.msra.mxu0 0.0
        %1205 = vmatpush.msra.mxu0 0.0
        %1206 = vmatpush.msra.mxu0 0.0
        %1207 = vmatpush.msra.mxu0 %v1190
        %1208 = vmatmul.f32.gmra.mxu0 %v740
        %v1209 = vpop.f32.mrf.mxu0
        %v1210 = vadd.f32 %v1002, %v1209
        %1211 = vmatmul.f32.gmra.mxu0 %v743
        %v1212 = vpop.f32.mrf.mxu0
        %v1213 = vadd.f32 %v1005, %v1212
        %1214 = vdwg.mxu0
        %1215 = vrot.lane.b32.xlu0 %v498, 120
        %v1216 = vpop.permute.xlu0 %1215
        %1218 = vmatpush.msra.mxu0 0.0
        %1219 = vmatpush.msra.mxu0 0.0
        %1220 = vmatpush.msra.mxu0 0.0
        %1221 = vmatpush.msra.mxu0 0.0
        %1222 = vmatpush.msra.mxu0 0.0
        %1223 = vmatpush.msra.mxu0 0.0
        %1224 = vmatpush.msra.mxu0 0.0
        %1225 = vmatpush.msra.mxu0 0.0
        %1226 = vmatpush.msra.mxu0 0.0
        %1227 = vmatpush.msra.mxu0 0.0
        %1228 = vmatpush.msra.mxu0 0.0
        %1229 = vmatpush.msra.mxu0 0.0
        %1230 = vmatpush.msra.mxu0 0.0
        %1231 = vmatpush.msra.mxu0 0.0
        %1232 = vmatpush.msra.mxu0 0.0
        %1233 = vmatpush.msra.mxu0 %v1216
        %1234 = vmatmul.f32.gmra.mxu0 %v740
        %v1235 = vpop.f32.mrf.mxu0
        %v1236 = vadd.f32 %v1028, %v1235
        %1237 = vmatmul.f32.gmra.mxu0 %v743
        %v1238 = vpop.f32.mrf.mxu0
        %v1239 = vadd.f32 %v1031, %v1238
        %1240 = vdwg.mxu0
        %1241 = vrot.lane.b32.xlu0 %v501, 120
        %v1242 = vpop.permute.xlu0 %1241
        %1244 = vmatpush.msra.mxu0 0.0
        %1245 = vmatpush.msra.mxu0 0.0
        %1246 = vmatpush.msra.mxu0 0.0
        %1247 = vmatpush.msra.mxu0 0.0
        %1248 = vmatpush.msra.mxu0 0.0
        %1249 = vmatpush.msra.mxu0 0.0
        %1250 = vmatpush.msra.mxu0 0.0
        %1251 = vmatpush.msra.mxu0 0.0
        %1252 = vmatpush.msra.mxu0 0.0
        %1253 = vmatpush.msra.mxu0 0.0
        %1254 = vmatpush.msra.mxu0 0.0
        %1255 = vmatpush.msra.mxu0 0.0
        %1256 = vmatpush.msra.mxu0 0.0
        %1257 = vmatpush.msra.mxu0 0.0
        %1258 = vmatpush.msra.mxu0 0.0
        %1259 = vmatpush.msra.mxu0 %v1242
        %1260 = vmatmul.f32.gmra.mxu0 %v740
        %v1261 = vpop.f32.mrf.mxu0
        %v1262 = vadd.f32 %v1054, %v1261
        %1263 = vmatmul.f32.gmra.mxu0 %v743
        %v1264 = vpop.f32.mrf.mxu0
        %v1265 = vadd.f32 %v1057, %v1264
        %1266 = vdwg.mxu0
        %1267 = vrot.lane.b32.xlu0 %v504, 120
        %v1268 = vpop.permute.xlu0 %1267
        %1270 = vmatpush.msra.mxu0 0.0
        %1271 = vmatpush.msra.mxu0 0.0
        %1272 = vmatpush.msra.mxu0 0.0
        %1273 = vmatpush.msra.mxu0 0.0
        %1274 = vmatpush.msra.mxu0 0.0
        %1275 = vmatpush.msra.mxu0 0.0
        %1276 = vmatpush.msra.mxu0 0.0
        %1277 = vmatpush.msra.mxu0 0.0
        %1278 = vmatpush.msra.mxu0 0.0
        %1279 = vmatpush.msra.mxu0 0.0
        %1280 = vmatpush.msra.mxu0 0.0
        %1281 = vmatpush.msra.mxu0 0.0
        %1282 = vmatpush.msra.mxu0 0.0
        %1283 = vmatpush.msra.mxu0 0.0
        %1284 = vmatpush.msra.mxu0 0.0
        %1285 = vmatpush.msra.mxu0 %v1268
        %1286 = vmatmul.f32.gmra.mxu0 %v740
        %v1287 = vpop.f32.mrf.mxu0
        %v1288 = vadd.f32 %v1080, %v1287
        %1289 = vmatmul.f32.gmra.mxu0 %v743
        %v1290 = vpop.f32.mrf.mxu0
        %v1291 = vadd.f32 %v1083, %v1290
        %1292 = vdwg.mxu0
        %1293 = vrot.lane.b32.xlu0 %v507, 120
        %v1294 = vpop.permute.xlu0 %1293
        %1296 = vmatpush.msra.mxu0 0.0
        %1297 = vmatpush.msra.mxu0 0.0
        %1298 = vmatpush.msra.mxu0 0.0
        %1299 = vmatpush.msra.mxu0 0.0
        %1300 = vmatpush.msra.mxu0 0.0
        %1301 = vmatpush.msra.mxu0 0.0
        %1302 = vmatpush.msra.mxu0 0.0
        %1303 = vmatpush.msra.mxu0 0.0
        %1304 = vmatpush.msra.mxu0 0.0
        %1305 = vmatpush.msra.mxu0 0.0
        %1306 = vmatpush.msra.mxu0 0.0
        %1307 = vmatpush.msra.mxu0 0.0
        %1308 = vmatpush.msra.mxu0 0.0
        %1309 = vmatpush.msra.mxu0 0.0
        %1310 = vmatpush.msra.mxu0 0.0
        %1311 = vmatpush.msra.mxu0 %v1294
        %1312 = vmatmul.f32.gmra.mxu0 %v740
        %v1313 = vpop.f32.mrf.mxu0
        %v1314 = vadd.f32 %v1106, %v1313
        %1315 = vmatmul.f32.gmra.mxu0 %v743
        %v1316 = vpop.f32.mrf.mxu0
        %v1317 = vadd.f32 %v1109, %v1316
        %1318 = vdwg.mxu0
        %1319 = vrot.lane.b32.xlu0 %v510, 120
        %v1320 = vpop.permute.xlu0 %1319
        %1322 = vmatpush.msra.mxu0 0.0
        %1323 = vmatpush.msra.mxu0 0.0
        %1324 = vmatpush.msra.mxu0 0.0
        %1325 = vmatpush.msra.mxu0 0.0
        %1326 = vmatpush.msra.mxu0 0.0
        %1327 = vmatpush.msra.mxu0 0.0
        %1328 = vmatpush.msra.mxu0 0.0
        %1329 = vmatpush.msra.mxu0 0.0
        %1330 = vmatpush.msra.mxu0 0.0
        %1331 = vmatpush.msra.mxu0 0.0
        %1332 = vmatpush.msra.mxu0 0.0
        %1333 = vmatpush.msra.mxu0 0.0
        %1334 = vmatpush.msra.mxu0 0.0
        %1335 = vmatpush.msra.mxu0 0.0
        %1336 = vmatpush.msra.mxu0 0.0
        %1337 = vmatpush.msra.mxu0 %v1320
        %1338 = vmatmul.f32.gmra.mxu0 %v740
        %v1339 = vpop.f32.mrf.mxu0
        %v1340 = vadd.f32 %v1132, %v1339
        %1341 = vmatmul.f32.gmra.mxu0 %v743
        %v1342 = vpop.f32.mrf.mxu0
        %v1343 = vadd.f32 %v1135, %v1342
        %1344 = vdwg.mxu0
        %v1345 = vld [vmem:[%s4] sm:$0x1]
        %v1347 = vperm.slane %v1345, 0
        %v1349 = vadd.f32 %v763, %v1347
        %v1350 = vadd.f32 %v766, %v1347
        %v1351 = vadd.f32 %v1158, %v1347
        %v1352 = vadd.f32 %v1161, %v1347
        %v1353 = vadd.f32 %v786, %v1347
        %v1354 = vadd.f32 %v789, %v1347
        %v1355 = vadd.f32 %v1184, %v1347
        %v1356 = vadd.f32 %v1187, %v1347
        %v1357 = vadd.f32 %v809, %v1347
        %v1358 = vadd.f32 %v812, %v1347
        %v1359 = vadd.f32 %v1210, %v1347
        %v1360 = vadd.f32 %v1213, %v1347
        %v1361 = vadd.f32 %v832, %v1347
        %v1362 = vadd.f32 %v835, %v1347
        %v1363 = vadd.f32 %v1236, %v1347
        %v1364 = vadd.f32 %v1239, %v1347
        %v1365 = vadd.f32 %v855, %v1347
        %v1366 = vadd.f32 %v858, %v1347
        %v1367 = vadd.f32 %v1262, %v1347
        %v1368 = vadd.f32 %v1265, %v1347
        %v1369 = vadd.f32 %v878, %v1347
        %v1370 = vadd.f32 %v881, %v1347
        %v1371 = vadd.f32 %v1288, %v1347
        %v1372 = vadd.f32 %v1291, %v1347
        %v1373 = vadd.f32 %v901, %v1347
        %v1374 = vadd.f32 %v904, %v1347
        %v1375 = vadd.f32 %v1314, %v1347
        %v1376 = vadd.f32 %v1317, %v1347
        %v1377 = vadd.f32 %v924, %v1347
        %v1378 = vadd.f32 %v927, %v1347
        %v1379 = vadd.f32 %v1340, %v1347
        %v1380 = vadd.f32 %v1343, %v1347
        %v1381 = vld [vmem:[%s5] sm:$0xff]
        %v1382 = vld [vmem:[%s5 + $0x8] sm:$0xff]
        %v1383 = vld [vmem:[%s5 + $0x10] sm:$0xff]
        %v1384 = vld [vmem:[%s5 + $0x18] sm:$0xff]
        %v1385 = vld [vmem:[%s5 + $0x20] sm:$0xff]
        %v1386 = vld [vmem:[%s5 + $0x28] sm:$0xff]
        %v1387 = vld [vmem:[%s5 + $0x30] sm:$0xff]
        %v1388 = vld [vmem:[%s5 + $0x38] sm:$0xff]
        %v1389 = vld [vmem:[%s5 + $0x40] sm:$0xff]
        %v1390 = vld [vmem:[%s7] sm:$0xf]
        %v1391 = vld [vmem:[%s7 + $0x4] sm:$0xf]
        %v1392 = vld [vmem:[%s7 + $0x8] sm:$0xf]
        %v1393 = vld [vmem:[%s7 + $0xc] sm:$0xf]
        %v1394 = vld [vmem:[%s7 + $0x10] sm:$0xf]
        %v1395 = vld [vmem:[%s7 + $0x14] sm:$0xf]
        %v1396 = vld [vmem:[%s7 + $0x18] sm:$0xf]
        %v1397 = vld [vmem:[%s7 + $0x1c] sm:$0xf]
        %v1398 = vld [vmem:[%s7 + $0x20] sm:$0xf]
        %v1399 = vld [vmem:[%s9] sm:$0xff]
        %vm1433 = vcmask 1040384
        %v1434 = vrot.slane 0.0, 7
        %v1435 = vsel %vm1433, %v1434, %v1434
        %v1436 = vrot.slane %v1349, 7
        %v1437 = vrot.slane %v1350, 7
        %v1438 = vsel %vm1433, %v1436, %v1437
        %v1439 = vrot.slane %v1351, 7
        %v1440 = vrot.slane %v1352, 7
        %v1441 = vsel %vm1433, %v1439, %v1440
        %v1442 = vrot.slane %v1353, 7
        %v1443 = vrot.slane %v1354, 7
        %v1444 = vsel %vm1433, %v1442, %v1443
        %v1445 = vrot.slane %v1355, 7
        %v1446 = vrot.slane %v1356, 7
        %v1447 = vsel %vm1433, %v1445, %v1446
        %v1448 = vrot.slane %v1357, 7
        %v1449 = vrot.slane %v1358, 7
        %v1450 = vsel %vm1433, %v1448, %v1449
        %v1451 = vrot.slane %v1359, 7
        %v1452 = vrot.slane %v1360, 7
        %v1453 = vsel %vm1433, %v1451, %v1452
        %v1454 = vrot.slane %v1361, 7
        %v1455 = vrot.slane %v1362, 7
        %v1456 = vsel %vm1433, %v1454, %v1455
        %v1457 = vrot.slane %v1363, 7
        %v1458 = vrot.slane %v1364, 7
        %v1459 = vsel %vm1433, %v1457, %v1458
        %v1460 = vrot.slane %v1365, 7
        %v1461 = vrot.slane %v1366, 7
        %v1462 = vsel %vm1433, %v1460, %v1461
        %v1463 = vrot.slane %v1367, 7
        %v1464 = vrot.slane %v1368, 7
        %v1465 = vsel %vm1433, %v1463, %v1464
        %v1466 = vrot.slane %v1369, 7
        %v1467 = vrot.slane %v1370, 7
        %v1468 = vsel %vm1433, %v1466, %v1467
        %v1469 = vrot.slane %v1371, 7
        %v1470 = vrot.slane %v1372, 7
        %v1471 = vsel %vm1433, %v1469, %v1470
        %v1472 = vrot.slane %v1373, 7
        %v1473 = vrot.slane %v1374, 7
        %v1474 = vsel %vm1433, %v1472, %v1473
        %v1475 = vrot.slane %v1375, 7
        %v1476 = vrot.slane %v1376, 7
        %v1477 = vsel %vm1433, %v1475, %v1476
        %v1478 = vrot.slane %v1377, 7
        %v1479 = vrot.slane %v1378, 7
        %v1480 = vsel %vm1433, %v1478, %v1479
        %v1481 = vrot.slane %v1379, 7
        %v1482 = vrot.slane %v1380, 7
        %v1483 = vsel %vm1433, %v1481, %v1482
        %v1517 = vsel %vm1433, 0.0, %v1434
        %v1518 = vsel %vm1433, 0.0, %v1436
        %v1519 = vsel %vm1433, 0.0, %v1439
        %v1520 = vsel %vm1433, 0.0, %v1442
        %v1521 = vsel %vm1433, 0.0, %v1445
        %v1522 = vsel %vm1433, 0.0, %v1448
        %v1523 = vsel %vm1433, 0.0, %v1451
        %v1524 = vsel %vm1433, 0.0, %v1454
        %v1525 = vsel %vm1433, 0.0, %v1457
        %v1526 = vsel %vm1433, 0.0, %v1460
        %v1527 = vsel %vm1433, 0.0, %v1463
        %v1528 = vsel %vm1433, 0.0, %v1466
        %v1529 = vsel %vm1433, 0.0, %v1469
        %v1530 = vsel %vm1433, 0.0, %v1472
        %v1531 = vsel %vm1433, 0.0, %v1475
        %v1532 = vsel %vm1433, 0.0, %v1478
        %v1533 = vsel %vm1433, 0.0, %v1481
        %v1534 = vsel %vm1433, %v1434, 0.0
        %v1535 = vsel %vm1433, %v1437, 0.0
        %v1536 = vsel %vm1433, %v1440, 0.0
        %v1537 = vsel %vm1433, %v1443, 0.0
        %v1538 = vsel %vm1433, %v1446, 0.0
        %v1539 = vsel %vm1433, %v1449, 0.0
        %v1540 = vsel %vm1433, %v1452, 0.0
        %v1541 = vsel %vm1433, %v1455, 0.0
        %v1542 = vsel %vm1433, %v1458, 0.0
        %v1543 = vsel %vm1433, %v1461, 0.0
        %v1544 = vsel %vm1433, %v1464, 0.0
        %v1545 = vsel %vm1433, %v1467, 0.0
        %v1546 = vsel %vm1433, %v1470, 0.0
        %v1547 = vsel %vm1433, %v1473, 0.0
        %v1548 = vsel %vm1433, %v1476, 0.0
        %v1549 = vsel %vm1433, %v1479, 0.0
        %v1550 = vsel %vm1433, %v1482, 0.0
        %v1583 = vrot.slane %v413, 7
        %v1584 = vrot.slane %v414, 7
        %v1585 = vsel %vm1433, %v1583, %v1584
        %v1586 = vrot.slane %v415, 7
        %v1587 = vrot.slane %v416, 7
        %v1588 = vsel %vm1433, %v1586, %v1587
        %v1589 = vrot.slane %v417, 7
        %v1590 = vrot.slane %v418, 7
        %v1591 = vsel %vm1433, %v1589, %v1590
        %v1592 = vrot.slane %v419, 7
        %v1593 = vrot.slane %v420, 7
        %v1594 = vsel %vm1433, %v1592, %v1593
        %v1595 = vrot.slane %v421, 7
        %v1596 = vrot.slane %v422, 7
        %v1597 = vsel %vm1433, %v1595, %v1596
        %v1598 = vrot.slane %v423, 7
        %v1599 = vrot.slane %v424, 7
        %v1600 = vsel %vm1433, %v1598, %v1599
        %v1601 = vrot.slane %v425, 7
        %v1602 = vrot.slane %v426, 7
        %v1603 = vsel %vm1433, %v1601, %v1602
        %v1604 = vrot.slane %v427, 7
        %v1605 = vrot.slane %v428, 7
        %v1606 = vsel %vm1433, %v1604, %v1605
        %v1607 = vrot.slane %v429, 7
        %v1608 = vrot.slane %v430, 7
        %v1609 = vsel %vm1433, %v1607, %v1608
        %v1610 = vrot.slane %v431, 7
        %v1611 = vrot.slane %v432, 7
        %v1612 = vsel %vm1433, %v1610, %v1611
        %v1613 = vrot.slane %v433, 7
        %v1614 = vrot.slane %v434, 7
        %v1615 = vsel %vm1433, %v1613, %v1614
        %v1616 = vrot.slane %v435, 7
        %v1617 = vrot.slane %v436, 7
        %v1618 = vsel %vm1433, %v1616, %v1617
        %v1619 = vrot.slane %v437, 7
        %v1620 = vrot.slane %v438, 7
        %v1621 = vsel %vm1433, %v1619, %v1620
        %v1622 = vrot.slane %v439, 7
        %v1623 = vrot.slane %v440, 7
        %v1624 = vsel %vm1433, %v1622, %v1623
        %v1625 = vrot.slane %v441, 7
        %v1626 = vrot.slane %v442, 7
        %v1627 = vsel %vm1433, %v1625, %v1626
        %v1628 = vrot.slane %v443, 7
        %v1629 = vrot.slane %v444, 7
        %v1630 = vsel %vm1433, %v1628, %v1629
        %v1663 = vsel %vm1433, 0.0, %v1583
        %v1664 = vsel %vm1433, 0.0, %v1586
        %v1665 = vsel %vm1433, 0.0, %v1589
        %v1666 = vsel %vm1433, 0.0, %v1592
        %v1667 = vsel %vm1433, 0.0, %v1595
        %v1668 = vsel %vm1433, 0.0, %v1598
        %v1669 = vsel %vm1433, 0.0, %v1601
        %v1670 = vsel %vm1433, 0.0, %v1604
        %v1671 = vsel %vm1433, 0.0, %v1607
        %v1672 = vsel %vm1433, 0.0, %v1610
        %v1673 = vsel %vm1433, 0.0, %v1613
        %v1674 = vsel %vm1433, 0.0, %v1616
        %v1675 = vsel %vm1433, 0.0, %v1619
        %v1676 = vsel %vm1433, 0.0, %v1622
        %v1677 = vsel %vm1433, 0.0, %v1625
        %v1678 = vsel %vm1433, 0.0, %v1628
        %v1679 = vsel %vm1433, %v1584, 0.0
        %v1680 = vsel %vm1433, %v1587, 0.0
        %v1681 = vsel %vm1433, %v1590, 0.0
        %v1682 = vsel %vm1433, %v1593, 0.0
        %v1683 = vsel %vm1433, %v1596, 0.0
        %v1684 = vsel %vm1433, %v1599, 0.0
        %v1685 = vsel %vm1433, %v1602, 0.0
        %v1686 = vsel %vm1433, %v1605, 0.0
        %v1687 = vsel %vm1433, %v1608, 0.0
        %v1688 = vsel %vm1433, %v1611, 0.0
        %v1689 = vsel %vm1433, %v1614, 0.0
        %v1690 = vsel %vm1433, %v1617, 0.0
        %v1691 = vsel %vm1433, %v1620, 0.0
        %v1692 = vsel %vm1433, %v1623, 0.0
        %v1693 = vsel %vm1433, %v1626, 0.0
        %v1694 = vsel %vm1433, %v1629, 0.0
        %v1695 = vld [vmem:[%s6] sm:$0x1]
        %v1697 = vperm.slane %v1695, 0
        %v1699 = vadd.f32 %v1697, 0.0
        %vm1700 = vcmask 31744
        %v1702 = vsel %vm1700, %v1517, 0
        %v1704 = vsel %vm1700, %v1435, 0
        %v1707 = vsel %vm1700, %v1518, 0
        %v1709 = vsel %vm1700, %v1438, 0
        %v1712 = vsel %vm1700, %v1519, 0
        %v1714 = vsel %vm1700, %v1441, 0
        %v1717 = vsel %vm1700, %v1520, 0
        %v1719 = vsel %vm1700, %v1444, 0
        %v1722 = vsel %vm1700, %v1521, 0
        %v1724 = vsel %vm1700, %v1447, 0
        %v1727 = vsel %vm1700, %v1522, 0
        %v1729 = vsel %vm1700, %v1450, 0
        %v1732 = vsel %vm1700, %v1523, 0
        %v1734 = vsel %vm1700, %v1453, 0
        %v1737 = vsel %vm1700, %v1524, 0
        %v1739 = vsel %vm1700, %v1456, 0
        %v1742 = vsel %vm1700, %v1525, 0
        %v1744 = vsel %vm1700, %v1459, 0
        %v1747 = vsel %vm1700, %v1526, 0
        %v1749 = vsel %vm1700, %v1462, 0
        %v1752 = vsel %vm1700, %v1527, 0
        %v1754 = vsel %vm1700, %v1465, 0
        %v1757 = vsel %vm1700, %v1528, 0
        %v1759 = vsel %vm1700, %v1468, 0
        %v1762 = vsel %vm1700, %v1529, 0
        %v1764 = vsel %vm1700, %v1471, 0
        %v1767 = vsel %vm1700, %v1530, 0
        %v1769 = vsel %vm1700, %v1474, 0
        %v1772 = vsel %vm1700, %v1531, 0
        %v1774 = vsel %vm1700, %v1477, 0
        %v1777 = vsel %vm1700, %v1532, 0
        %v1779 = vsel %vm1700, %v1480, 0
        %vm1781 = vcmask 1043456
        %v1783 = vsel %vm1781, %v1381, 0
        %1785 = vmatpush.msra.mxu0 0.0
        %1786 = vmatpush.msra.mxu0 0.0
        %1787 = vmatpush.msra.mxu0 0.0
        %1788 = vmatpush.msra.mxu0 0.0
        %1789 = vmatpush.msra.mxu0 0.0
        %1790 = vmatpush.msra.mxu0 0.0
        %1791 = vmatpush.msra.mxu0 0.0
        %1792 = vmatpush.msra.mxu0 0.0
        %1793 = vmatpush.msra.mxu0 0.0
        %1794 = vmatpush.msra.mxu0 0.0
        %1795 = vmatpush.msra.mxu0 0.0
        %1796 = vmatpush.msra.mxu0 0.0
        %1797 = vmatpush.msra.mxu0 0.0
        %1798 = vmatpush.msra.mxu0 0.0
        %1799 = vmatpush.msra.mxu0 0.0
        %1800 = vmatpush.msra.mxu0 %v1783
        %1801 = vmatmul.f32.gmra.mxu0 %v1702
        %v1802 = vpop.f32.mrf.mxu0
        %v1803 = vadd.f32 0.0, %v1802
        %1804 = vmatmul.f32.gmra.mxu0 %v1704
        %v1805 = vpop.f32.mrf.mxu0
        %v1806 = vadd.f32 0.0, %v1805
        %1807 = vmatmul.f32.gmra.mxu0 %v1707
        %v1808 = vpop.f32.mrf.mxu0
        %v1809 = vadd.f32 0.0, %v1808
        %1810 = vmatmul.f32.gmra.mxu0 %v1709
        %v1811 = vpop.f32.mrf.mxu0
        %v1812 = vadd.f32 0.0, %v1811
        %1813 = vmatmul.f32.gmra.mxu0 %v1712
        %v1814 = vpop.f32.mrf.mxu0
        %v1815 = vadd.f32 0.0, %v1814
        %1816 = vmatmul.f32.gmra.mxu0 %v1714
        %v1817 = vpop.f32.mrf.mxu0
        %v1818 = vadd.f32 0.0, %v1817
        %1819 = vmatmul.f32.gmra.mxu0 %v1717
        %v1820 = vpop.f32.mrf.mxu0
        %v1821 = vadd.f32 0.0, %v1820
        %1822 = vmatmul.f32.gmra.mxu0 %v1719
        %v1823 = vpop.f32.mrf.mxu0
        %v1824 = vadd.f32 0.0, %v1823
        %1825 = vmatmul.f32.gmra.mxu0 %v1722
        %v1826 = vpop.f32.mrf.mxu0
        %v1827 = vadd.f32 0.0, %v1826
        %1828 = vmatmul.f32.gmra.mxu0 %v1724
        %v1829 = vpop.f32.mrf.mxu0
        %v1830 = vadd.f32 0.0, %v1829
        %1831 = vmatmul.f32.gmra.mxu0 %v1727
        %v1832 = vpop.f32.mrf.mxu0
        %v1833 = vadd.f32 0.0, %v1832
        %1834 = vmatmul.f32.gmra.mxu0 %v1729
        %v1835 = vpop.f32.mrf.mxu0
        %v1836 = vadd.f32 0.0, %v1835
        %1837 = vmatmul.f32.gmra.mxu0 %v1732
        %v1838 = vpop.f32.mrf.mxu0
        %v1839 = vadd.f32 0.0, %v1838
        %1840 = vmatmul.f32.gmra.mxu0 %v1734
        %v1841 = vpop.f32.mrf.mxu0
        %v1842 = vadd.f32 0.0, %v1841
        %1843 = vmatmul.f32.gmra.mxu0 %v1737
        %v1844 = vpop.f32.mrf.mxu0
        %v1845 = vadd.f32 0.0, %v1844
        %1846 = vmatmul.f32.gmra.mxu0 %v1739
        %v1847 = vpop.f32.mrf.mxu0
        %v1848 = vadd.f32 0.0, %v1847
        %1849 = vmatmul.f32.gmra.mxu0 %v1742
        %v1850 = vpop.f32.mrf.mxu0
        %v1851 = vadd.f32 0.0, %v1850
        %1852 = vmatmul.f32.gmra.mxu0 %v1744
        %v1853 = vpop.f32.mrf.mxu0
        %v1854 = vadd.f32 0.0, %v1853
        %1855 = vmatmul.f32.gmra.mxu0 %v1747
        %v1856 = vpop.f32.mrf.mxu0
        %v1857 = vadd.f32 0.0, %v1856
        %1858 = vmatmul.f32.gmra.mxu0 %v1749
        %v1859 = vpop.f32.mrf.mxu0
        %v1860 = vadd.f32 0.0, %v1859
        %1861 = vmatmul.f32.gmra.mxu0 %v1752
        %v1862 = vpop.f32.mrf.mxu0
        %v1863 = vadd.f32 0.0, %v1862
        %1864 = vmatmul.f32.gmra.mxu0 %v1754
        %v1865 = vpop.f32.mrf.mxu0
        %v1866 = vadd.f32 0.0, %v1865
        %1867 = vmatmul.f32.gmra.mxu0 %v1757
        %v1868 = vpop.f32.mrf.mxu0
        %v1869 = vadd.f32 0.0, %v1868
        %1870 = vmatmul.f32.gmra.mxu0 %v1759
        %v1871 = vpop.f32.mrf.mxu0
        %v1872 = vadd.f32 0.0, %v1871
        %1873 = vmatmul.f32.gmra.mxu0 %v1762
        %v1874 = vpop.f32.mrf.mxu0
        %v1875 = vadd.f32 0.0, %v1874
        %1876 = vmatmul.f32.gmra.mxu0 %v1764
        %v1877 = vpop.f32.mrf.mxu0
        %v1878 = vadd.f32 0.0, %v1877
        %1879 = vmatmul.f32.gmra.mxu0 %v1767
        %v1880 = vpop.f32.mrf.mxu0
        %v1881 = vadd.f32 0.0, %v1880
        %1882 = vmatmul.f32.gmra.mxu0 %v1769
        %v1883 = vpop.f32.mrf.mxu0
        %v1884 = vadd.f32 0.0, %v1883
        %1885 = vmatmul.f32.gmra.mxu0 %v1772
        %v1886 = vpop.f32.mrf.mxu0
        %v1887 = vadd.f32 0.0, %v1886
        %1888 = vmatmul.f32.gmra.mxu0 %v1774
        %v1889 = vpop.f32.mrf.mxu0
        %v1890 = vadd.f32 0.0, %v1889
        %1891 = vmatmul.f32.gmra.mxu0 %v1777
        %v1892 = vpop.f32.mrf.mxu0
        %v1893 = vadd.f32 0.0, %v1892
        %1894 = vmatmul.f32.gmra.mxu0 %v1779
        %v1895 = vpop.f32.mrf.mxu0
        %v1896 = vadd.f32 0.0, %v1895
        %1897 = vdwg.mxu0
        %v1898 = vadd.f32 %v1699, %v1803
        %v1899 = vadd.f32 %v1699, %v1806
        %v1900 = vadd.f32 %v1699, %v1809
        %v1901 = vadd.f32 %v1699, %v1812
        %v1902 = vadd.f32 %v1699, %v1815
        %v1903 = vadd.f32 %v1699, %v1818
        %v1904 = vadd.f32 %v1699, %v1821
        %v1905 = vadd.f32 %v1699, %v1824
        %v1906 = vadd.f32 %v1699, %v1827
        %v1907 = vadd.f32 %v1699, %v1830
        %v1908 = vadd.f32 %v1699, %v1833
        %v1909 = vadd.f32 %v1699, %v1836
        %v1910 = vadd.f32 %v1699, %v1839
        %v1911 = vadd.f32 %v1699, %v1842
        %v1912 = vadd.f32 %v1699, %v1845
        %v1913 = vadd.f32 %v1699, %v1848
        %v1914 = vadd.f32 %v1699, %v1851
        %v1915 = vadd.f32 %v1699, %v1854
        %v1916 = vadd.f32 %v1699, %v1857
        %v1917 = vadd.f32 %v1699, %v1860
        %v1918 = vadd.f32 %v1699, %v1863
        %v1919 = vadd.f32 %v1699, %v1866
        %v1920 = vadd.f32 %v1699, %v1869
        %v1921 = vadd.f32 %v1699, %v1872
        %v1922 = vadd.f32 %v1699, %v1875
        %v1923 = vadd.f32 %v1699, %v1878
        %v1924 = vadd.f32 %v1699, %v1881
        %v1925 = vadd.f32 %v1699, %v1884
        %v1926 = vadd.f32 %v1699, %v1887
        %v1927 = vadd.f32 %v1699, %v1890
        %v1928 = vadd.f32 %v1699, %v1893
        %v1929 = vadd.f32 %v1699, %v1896
        %vm1946 = vcmask 1046528
        %v1947 = vrot.slane %v1517, 1
        %v1948 = vrot.slane %v1435, 1
        %v1949 = vsel %vm1946, %v1947, %v1948
        %v1950 = vrot.slane %v1534, 1
        %v1951 = vsel %vm1946, %v1948, %v1950
        %v1952 = vrot.slane %v1518, 1
        %v1953 = vrot.slane %v1438, 1
        %v1954 = vsel %vm1946, %v1952, %v1953
        %v1955 = vrot.slane %v1535, 1
        %v1956 = vsel %vm1946, %v1953, %v1955
        %v1957 = vrot.slane %v1519, 1
        %v1958 = vrot.slane %v1441, 1
        %v1959 = vsel %vm1946, %v1957, %v1958
        %v1960 = vrot.slane %v1536, 1
        %v1961 = vsel %vm1946, %v1958, %v1960
        %v1962 = vrot.slane %v1520, 1
        %v1963 = vrot.slane %v1444, 1
        %v1964 = vsel %vm1946, %v1962, %v1963
        %v1965 = vrot.slane %v1537, 1
        %v1966 = vsel %vm1946, %v1963, %v1965
        %v1967 = vrot.slane %v1521, 1
        %v1968 = vrot.slane %v1447, 1
        %v1969 = vsel %vm1946, %v1967, %v1968
        %v1970 = vrot.slane %v1538, 1
        %v1971 = vsel %vm1946, %v1968, %v1970
        %v1972 = vrot.slane %v1522, 1
        %v1973 = vrot.slane %v1450, 1
        %v1974 = vsel %vm1946, %v1972, %v1973
        %v1975 = vrot.slane %v1539, 1
        %v1976 = vsel %vm1946, %v1973, %v1975
        %v1977 = vrot.slane %v1523, 1
        %v1978 = vrot.slane %v1453, 1
        %v1979 = vsel %vm1946, %v1977, %v1978
        %v1980 = vrot.slane %v1540, 1
        %v1981 = vsel %vm1946, %v1978, %v1980
        %v1982 = vrot.slane %v1524, 1
        %v1983 = vrot.slane %v1456, 1
        %v1984 = vsel %vm1946, %v1982, %v1983
        %v1985 = vrot.slane %v1541, 1
        %v1986 = vsel %vm1946, %v1983, %v1985
        %v1987 = vrot.slane %v1525, 1
        %v1988 = vrot.slane %v1459, 1
        %v1989 = vsel %vm1946, %v1987, %v1988
        %v1990 = vrot.slane %v1542, 1
        %v1991 = vsel %vm1946, %v1988, %v1990
        %v1992 = vrot.slane %v1526, 1
        %v1993 = vrot.slane %v1462, 1
        %v1994 = vsel %vm1946, %v1992, %v1993
        %v1995 = vrot.slane %v1543, 1
        %v1996 = vsel %vm1946, %v1993, %v1995
        %v1997 = vrot.slane %v1527, 1
        %v1998 = vrot.slane %v1465, 1
        %v1999 = vsel %vm1946, %v1997, %v1998
        %v2000 = vrot.slane %v1544, 1
        %v2001 = vsel %vm1946, %v1998, %v2000
        %v2002 = vrot.slane %v1528, 1
        %v2003 = vrot.slane %v1468, 1
        %v2004 = vsel %vm1946, %v2002, %v2003
        %v2005 = vrot.slane %v1545, 1
        %v2006 = vsel %vm1946, %v2003, %v2005
        %v2007 = vrot.slane %v1529, 1
        %v2008 = vrot.slane %v1471, 1
        %v2009 = vsel %vm1946, %v2007, %v2008
        %v2010 = vrot.slane %v1546, 1
        %v2011 = vsel %vm1946, %v2008, %v2010
        %v2012 = vrot.slane %v1530, 1
        %v2013 = vrot.slane %v1474, 1
        %v2014 = vsel %vm1946, %v2012, %v2013
        %v2015 = vrot.slane %v1547, 1
        %v2016 = vsel %vm1946, %v2013, %v2015
        %v2017 = vrot.slane %v1531, 1
        %v2018 = vrot.slane %v1477, 1
        %v2019 = vsel %vm1946, %v2017, %v2018
        %v2020 = vrot.slane %v1548, 1
        %v2021 = vsel %vm1946, %v2018, %v2020
        %v2022 = vrot.slane %v1532, 1
        %v2023 = vrot.slane %v1480, 1
        %v2024 = vsel %vm1946, %v2022, %v2023
        %v2025 = vrot.slane %v1549, 1
        %v2026 = vsel %vm1946, %v2023, %v2025
        %v2027 = vsel %vm1700, %v1949, 0
        %v2029 = vsel %vm1700, %v1951, 0
        %v2031 = vsel %vm1700, %v1954, 0
        %v2033 = vsel %vm1700, %v1956, 0
        %v2035 = vsel %vm1700, %v1959, 0
        %v2037 = vsel %vm1700, %v1961, 0
        %v2039 = vsel %vm1700, %v1964, 0
        %v2041 = vsel %vm1700, %v1966, 0
        %v2043 = vsel %vm1700, %v1969, 0
        %v2045 = vsel %vm1700, %v1971, 0
        %v2047 = vsel %vm1700, %v1974, 0
        %v2049 = vsel %vm1700, %v1976, 0
        %v2051 = vsel %vm1700, %v1979, 0
        %v2053 = vsel %vm1700, %v1981, 0
        %v2055 = vsel %vm1700, %v1984, 0
        %v2057 = vsel %vm1700, %v1986, 0
        %v2059 = vsel %vm1700, %v1989, 0
        %v2061 = vsel %vm1700, %v1991, 0
        %v2063 = vsel %vm1700, %v1994, 0
        %v2065 = vsel %vm1700, %v1996, 0
        %v2067 = vsel %vm1700, %v1999, 0
        %v2069 = vsel %vm1700, %v2001, 0
        %v2071 = vsel %vm1700, %v2004, 0
        %v2073 = vsel %vm1700, %v2006, 0
        %v2075 = vsel %vm1700, %v2009, 0
        %v2077 = vsel %vm1700, %v2011, 0
        %v2079 = vsel %vm1700, %v2014, 0
        %v2081 = vsel %vm1700, %v2016, 0
        %v2083 = vsel %vm1700, %v2019, 0
        %v2085 = vsel %vm1700, %v2021, 0
        %v2087 = vsel %vm1700, %v2024, 0
        %v2089 = vsel %vm1700, %v2026, 0
        %v2092 = vsel %vm1781, %v1382, 0
        %2094 = vmatpush.msra.mxu0 0.0
        %2095 = vmatpush.msra.mxu0 0.0
        %2096 = vmatpush.msra.mxu0 0.0
        %2097 = vmatpush.msra.mxu0 0.0
        %2098 = vmatpush.msra.mxu0 0.0
        %2099 = vmatpush.msra.mxu0 0.0
        %2100 = vmatpush.msra.mxu0 0.0
        %2101 = vmatpush.msra.mxu0 0.0
        %2102 = vmatpush.msra.mxu0 0.0
        %2103 = vmatpush.msra.mxu0 0.0
        %2104 = vmatpush.msra.mxu0 0.0
        %2105 = vmatpush.msra.mxu0 0.0
        %2106 = vmatpush.msra.mxu0 0.0
        %2107 = vmatpush.msra.mxu0 0.0
        %2108 = vmatpush.msra.mxu0 0.0
        %2109 = vmatpush.msra.mxu0 %v2092
        %2110 = vmatmul.f32.gmra.mxu0 %v2027
        %v2111 = vpop.f32.mrf.mxu0
        %v2112 = vadd.f32 0.0, %v2111
        %2113 = vmatmul.f32.gmra.mxu0 %v2029
        %v2114 = vpop.f32.mrf.mxu0
        %v2115 = vadd.f32 0.0, %v2114
        %2116 = vmatmul.f32.gmra.mxu0 %v2031
        %v2117 = vpop.f32.mrf.mxu0
        %v2118 = vadd.f32 0.0, %v2117
        %2119 = vmatmul.f32.gmra.mxu0 %v2033
        %v2120 = vpop.f32.mrf.mxu0
        %v2121 = vadd.f32 0.0, %v2120
        %2122 = vmatmul.f32.gmra.mxu0 %v2035
        %v2123 = vpop.f32.mrf.mxu0
        %v2124 = vadd.f32 0.0, %v2123
        %2125 = vmatmul.f32.gmra.mxu0 %v2037
        %v2126 = vpop.f32.mrf.mxu0
        %v2127 = vadd.f32 0.0, %v2126
        %2128 = vmatmul.f32.gmra.mxu0 %v2039
        %v2129 = vpop.f32.mrf.mxu0
        %v2130 = vadd.f32 0.0, %v2129
        %2131 = vmatmul.f32.gmra.mxu0 %v2041
        %v2132 = vpop.f32.mrf.mxu0
        %v2133 = vadd.f32 0.0, %v2132
        %2134 = vmatmul.f32.gmra.mxu0 %v2043
        %v2135 = vpop.f32.mrf.mxu0
        %v2136 = vadd.f32 0.0, %v2135
        %2137 = vmatmul.f32.gmra.mxu0 %v2045
        %v2138 = vpop.f32.mrf.mxu0
        %v2139 = vadd.f32 0.0, %v2138
        %2140 = vmatmul.f32.gmra.mxu0 %v2047
        %v2141 = vpop.f32.mrf.mxu0
        %v2142 = vadd.f32 0.0, %v2141
        %2143 = vmatmul.f32.gmra.mxu0 %v2049
        %v2144 = vpop.f32.mrf.mxu0
        %v2145 = vadd.f32 0.0, %v2144
        %2146 = vmatmul.f32.gmra.mxu0 %v2051
        %v2147 = vpop.f32.mrf.mxu0
        %v2148 = vadd.f32 0.0, %v2147
        %2149 = vmatmul.f32.gmra.mxu0 %v2053
        %v2150 = vpop.f32.mrf.mxu0
        %v2151 = vadd.f32 0.0, %v2150
        %2152 = vmatmul.f32.gmra.mxu0 %v2055
        %v2153 = vpop.f32.mrf.mxu0
        %v2154 = vadd.f32 0.0, %v2153
        %2155 = vmatmul.f32.gmra.mxu0 %v2057
        %v2156 = vpop.f32.mrf.mxu0
        %v2157 = vadd.f32 0.0, %v2156
        %2158 = vmatmul.f32.gmra.mxu0 %v2059
        %v2159 = vpop.f32.mrf.mxu0
        %v2160 = vadd.f32 0.0, %v2159
        %2161 = vmatmul.f32.gmra.mxu0 %v2061
        %v2162 = vpop.f32.mrf.mxu0
        %v2163 = vadd.f32 0.0, %v2162
        %2164 = vmatmul.f32.gmra.mxu0 %v2063
        %v2165 = vpop.f32.mrf.mxu0
        %v2166 = vadd.f32 0.0, %v2165
        %2167 = vmatmul.f32.gmra.mxu0 %v2065
        %v2168 = vpop.f32.mrf.mxu0
        %v2169 = vadd.f32 0.0, %v2168
        %2170 = vmatmul.f32.gmra.mxu0 %v2067
        %v2171 = vpop.f32.mrf.mxu0
        %v2172 = vadd.f32 0.0, %v2171
        %2173 = vmatmul.f32.gmra.mxu0 %v2069
        %v2174 = vpop.f32.mrf.mxu0
        %v2175 = vadd.f32 0.0, %v2174
        %2176 = vmatmul.f32.gmra.mxu0 %v2071
        %v2177 = vpop.f32.mrf.mxu0
        %v2178 = vadd.f32 0.0, %v2177
        %2179 = vmatmul.f32.gmra.mxu0 %v2073
        %v2180 = vpop.f32.mrf.mxu0
        %v2181 = vadd.f32 0.0, %v2180
        %2182 = vmatmul.f32.gmra.mxu0 %v2075
        %v2183 = vpop.f32.mrf.mxu0
        %v2184 = vadd.f32 0.0, %v2183
        %2185 = vmatmul.f32.gmra.mxu0 %v2077
        %v2186 = vpop.f32.mrf.mxu0
        %v2187 = vadd.f32 0.0, %v2186
        %2188 = vmatmul.f32.gmra.mxu0 %v2079
        %v2189 = vpop.f32.mrf.mxu0
        %v2190 = vadd.f32 0.0, %v2189
        %2191 = vmatmul.f32.gmra.mxu0 %v2081
        %v2192 = vpop.f32.mrf.mxu0
        %v2193 = vadd.f32 0.0, %v2192
        %2194 = vmatmul.f32.gmra.mxu0 %v2083
        %v2195 = vpop.f32.mrf.mxu0
        %v2196 = vadd.f32 0.0, %v2195
        %2197 = vmatmul.f32.gmra.mxu0 %v2085
        %v2198 = vpop.f32.mrf.mxu0
        %v2199 = vadd.f32 0.0, %v2198
        %2200 = vmatmul.f32.gmra.mxu0 %v2087
        %v2201 = vpop.f32.mrf.mxu0
        %v2202 = vadd.f32 0.0, %v2201
        %2203 = vmatmul.f32.gmra.mxu0 %v2089
        %v2204 = vpop.f32.mrf.mxu0
        %v2205 = vadd.f32 0.0, %v2204
        %2206 = vdwg.mxu0
        %v2207 = vadd.f32 %v1898, %v2112
        %v2208 = vadd.f32 %v1899, %v2115
        %v2209 = vadd.f32 %v1900, %v2118
        %v2210 = vadd.f32 %v1901, %v2121
        %v2211 = vadd.f32 %v1902, %v2124
        %v2212 = vadd.f32 %v1903, %v2127
        %v2213 = vadd.f32 %v1904, %v2130
        %v2214 = vadd.f32 %v1905, %v2133
        %v2215 = vadd.f32 %v1906, %v2136
        %v2216 = vadd.f32 %v1907, %v2139
        %v2217 = vadd.f32 %v1908, %v2142
        %v2218 = vadd.f32 %v1909, %v2145
        %v2219 = vadd.f32 %v1910, %v2148
        %v2220 = vadd.f32 %v1911, %v2151
        %v2221 = vadd.f32 %v1912, %v2154
        %v2222 = vadd.f32 %v1913, %v2157
        %v2223 = vadd.f32 %v1914, %v2160
        %v2224 = vadd.f32 %v1915, %v2163
        %v2225 = vadd.f32 %v1916, %v2166
        %v2226 = vadd.f32 %v1917, %v2169
        %v2227 = vadd.f32 %v1918, %v2172
        %v2228 = vadd.f32 %v1919, %v2175
        %v2229 = vadd.f32 %v1920, %v2178
        %v2230 = vadd.f32 %v1921, %v2181
        %v2231 = vadd.f32 %v1922, %v2184
        %v2232 = vadd.f32 %v1923, %v2187
        %v2233 = vadd.f32 %v1924, %v2190
        %v2234 = vadd.f32 %v1925, %v2193
        %v2235 = vadd.f32 %v1926, %v2196
        %v2236 = vadd.f32 %v1927, %v2199
        %v2237 = vadd.f32 %v1928, %v2202
        %v2238 = vadd.f32 %v1929, %v2205
        %vm2239 = vcmask 1045504
        %v2240 = vrot.slane %v1517, 2
        %v2241 = vrot.slane %v1435, 2
        %v2242 = vsel %vm2239, %v2240, %v2241
        %v2243 = vrot.slane %v1534, 2
        %v2244 = vsel %vm2239, %v2241, %v2243
        %v2245 = vrot.slane %v1518, 2
        %v2246 = vrot.slane %v1438, 2
        %v2247 = vsel %vm2239, %v2245, %v2246
        %v2248 = vrot.slane %v1535, 2
        %v2249 = vsel %vm2239, %v2246, %v2248
        %v2250 = vrot.slane %v1519, 2
        %v2251 = vrot.slane %v1441, 2
        %v2252 = vsel %vm2239, %v2250, %v2251
        %v2253 = vrot.slane %v1536, 2
        %v2254 = vsel %vm2239, %v2251, %v2253
        %v2255 = vrot.slane %v1520, 2
        %v2256 = vrot.slane %v1444, 2
        %v2257 = vsel %vm2239, %v2255, %v2256
        %v2258 = vrot.slane %v1537, 2
        %v2259 = vsel %vm2239, %v2256, %v2258
        %v2260 = vrot.slane %v1521, 2
        %v2261 = vrot.slane %v1447, 2
        %v2262 = vsel %vm2239, %v2260, %v2261
        %v2263 = vrot.slane %v1538, 2
        %v2264 = vsel %vm2239, %v2261, %v2263
        %v2265 = vrot.slane %v1522, 2
        %v2266 = vrot.slane %v1450, 2
        %v2267 = vsel %vm2239, %v2265, %v2266
        %v2268 = vrot.slane %v1539, 2
        %v2269 = vsel %vm2239, %v2266, %v2268
        %v2270 = vrot.slane %v1523, 2
        %v2271 = vrot.slane %v1453, 2
        %v2272 = vsel %vm2239, %v2270, %v2271
        %v2273 = vrot.slane %v1540, 2
        %v2274 = vsel %vm2239, %v2271, %v2273
        %v2275 = vrot.slane %v1524, 2
        %v2276 = vrot.slane %v1456, 2
        %v2277 = vsel %vm2239, %v2275, %v2276
        %v2278 = vrot.slane %v1541, 2
        %v2279 = vsel %vm2239, %v2276, %v2278
        %v2280 = vrot.slane %v1525, 2
        %v2281 = vrot.slane %v1459, 2
        %v2282 = vsel %vm2239, %v2280, %v2281
        %v2283 = vrot.slane %v1542, 2
        %v2284 = vsel %vm2239, %v2281, %v2283
        %v2285 = vrot.slane %v1526, 2
        %v2286 = vrot.slane %v1462, 2
        %v2287 = vsel %vm2239, %v2285, %v2286
        %v2288 = vrot.slane %v1543, 2
        %v2289 = vsel %vm2239, %v2286, %v2288
        %v2290 = vrot.slane %v1527, 2
        %v2291 = vrot.slane %v1465, 2
        %v2292 = vsel %vm2239, %v2290, %v2291
        %v2293 = vrot.slane %v1544, 2
        %v2294 = vsel %vm2239, %v2291, %v2293
        %v2295 = vrot.slane %v1528, 2
        %v2296 = vrot.slane %v1468, 2
        %v2297 = vsel %vm2239, %v2295, %v2296
        %v2298 = vrot.slane %v1545, 2
        %v2299 = vsel %vm2239, %v2296, %v2298
        %v2300 = vrot.slane %v1529, 2
        %v2301 = vrot.slane %v1471, 2
        %v2302 = vsel %vm2239, %v2300, %v2301
        %v2303 = vrot.slane %v1546, 2
        %v2304 = vsel %vm2239, %v2301, %v2303
        %v2305 = vrot.slane %v1530, 2
        %v2306 = vrot.slane %v1474, 2
        %v2307 = vsel %vm2239, %v2305, %v2306
        %v2308 = vrot.slane %v1547, 2
        %v2309 = vsel %vm2239, %v2306, %v2308
        %v2310 = vrot.slane %v1531, 2
        %v2311 = vrot.slane %v1477, 2
        %v2312 = vsel %vm2239, %v2310, %v2311
        %v2313 = vrot.slane %v1548, 2
        %v2314 = vsel %vm2239, %v2311, %v2313
        %v2315 = vrot.slane %v1532, 2
        %v2316 = vrot.slane %v1480, 2
        %v2317 = vsel %vm2239, %v2315, %v2316
        %v2318 = vrot.slane %v1549, 2
        %v2319 = vsel %vm2239, %v2316, %v2318
        %v2320 = vsel %vm1700, %v2242, 0
        %v2322 = vsel %vm1700, %v2244, 0
        %v2324 = vsel %vm1700, %v2247, 0
        %v2326 = vsel %vm1700, %v2249, 0
        %v2328 = vsel %vm1700, %v2252, 0
        %v2330 = vsel %vm1700, %v2254, 0
        %v2332 = vsel %vm1700, %v2257, 0
        %v2334 = vsel %vm1700, %v2259, 0
        %v2336 = vsel %vm1700, %v2262, 0
        %v2338 = vsel %vm1700, %v2264, 0
        %v2340 = vsel %vm1700, %v2267, 0
        %v2342 = vsel %vm1700, %v2269, 0
        %v2344 = vsel %vm1700, %v2272, 0
        %v2346 = vsel %vm1700, %v2274, 0
        %v2348 = vsel %vm1700, %v2277, 0
        %v2350 = vsel %vm1700, %v2279, 0
        %v2352 = vsel %vm1700, %v2282, 0
        %v2354 = vsel %vm1700, %v2284, 0
        %v2356 = vsel %vm1700, %v2287, 0
        %v2358 = vsel %vm1700, %v2289, 0
        %v2360 = vsel %vm1700, %v2292, 0
        %v2362 = vsel %vm1700, %v2294, 0
        %v2364 = vsel %vm1700, %v2297, 0
        %v2366 = vsel %vm1700, %v2299, 0
        %v2368 = vsel %vm1700, %v2302, 0
        %v2370 = vsel %vm1700, %v2304, 0
        %v2372 = vsel %vm1700, %v2307, 0
        %v2374 = vsel %vm1700, %v2309, 0
        %v2376 = vsel %vm1700, %v2312, 0
        %v2378 = vsel %vm1700, %v2314, 0
        %v2380 = vsel %vm1700, %v2317, 0
        %v2382 = vsel %vm1700, %v2319, 0
        %v2385 = vsel %vm1781, %v1383, 0
        %2387 = vmatpush.msra.mxu0 0.0
        %2388 = vmatpush.msra.mxu0 0.0
        %2389 = vmatpush.msra.mxu0 0.0
        %2390 = vmatpush.msra.mxu0 0.0
        %2391 = vmatpush.msra.mxu0 0.0
        %2392 = vmatpush.msra.mxu0 0.0
        %2393 = vmatpush.msra.mxu0 0.0
        %2394 = vmatpush.msra.mxu0 0.0
        %2395 = vmatpush.msra.mxu0 0.0
        %2396 = vmatpush.msra.mxu0 0.0
        %2397 = vmatpush.msra.mxu0 0.0
        %2398 = vmatpush.msra.mxu0 0.0
        %2399 = vmatpush.msra.mxu0 0.0
        %2400 = vmatpush.msra.mxu0 0.0
        %2401 = vmatpush.msra.mxu0 0.0
        %2402 = vmatpush.msra.mxu0 %v2385
        %2403 = vmatmul.f32.gmra.mxu0 %v2320
        %v2404 = vpop.f32.mrf.mxu0
        %v2405 = vadd.f32 0.0, %v2404
        %2406 = vmatmul.f32.gmra.mxu0 %v2322
        %v2407 = vpop.f32.mrf.mxu0
        %v2408 = vadd.f32 0.0, %v2407
        %2409 = vmatmul.f32.gmra.mxu0 %v2324
        %v2410 = vpop.f32.mrf.mxu0
        %v2411 = vadd.f32 0.0, %v2410
        %2412 = vmatmul.f32.gmra.mxu0 %v2326
        %v2413 = vpop.f32.mrf.mxu0
        %v2414 = vadd.f32 0.0, %v2413
        %2415 = vmatmul.f32.gmra.mxu0 %v2328
        %v2416 = vpop.f32.mrf.mxu0
        %v2417 = vadd.f32 0.0, %v2416
        %2418 = vmatmul.f32.gmra.mxu0 %v2330
        %v2419 = vpop.f32.mrf.mxu0
        %v2420 = vadd.f32 0.0, %v2419
        %2421 = vmatmul.f32.gmra.mxu0 %v2332
        %v2422 = vpop.f32.mrf.mxu0
        %v2423 = vadd.f32 0.0, %v2422
        %2424 = vmatmul.f32.gmra.mxu0 %v2334
        %v2425 = vpop.f32.mrf.mxu0
        %v2426 = vadd.f32 0.0, %v2425
        %2427 = vmatmul.f32.gmra.mxu0 %v2336
        %v2428 = vpop.f32.mrf.mxu0
        %v2429 = vadd.f32 0.0, %v2428
        %2430 = vmatmul.f32.gmra.mxu0 %v2338
        %v2431 = vpop.f32.mrf.mxu0
        %v2432 = vadd.f32 0.0, %v2431
        %2433 = vmatmul.f32.gmra.mxu0 %v2340
        %v2434 = vpop.f32.mrf.mxu0
        %v2435 = vadd.f32 0.0, %v2434
        %2436 = vmatmul.f32.gmra.mxu0 %v2342
        %v2437 = vpop.f32.mrf.mxu0
        %v2438 = vadd.f32 0.0, %v2437
        %2439 = vmatmul.f32.gmra.mxu0 %v2344
        %v2440 = vpop.f32.mrf.mxu0
        %v2441 = vadd.f32 0.0, %v2440
        %2442 = vmatmul.f32.gmra.mxu0 %v2346
        %v2443 = vpop.f32.mrf.mxu0
        %v2444 = vadd.f32 0.0, %v2443
        %2445 = vmatmul.f32.gmra.mxu0 %v2348
        %v2446 = vpop.f32.mrf.mxu0
        %v2447 = vadd.f32 0.0, %v2446
        %2448 = vmatmul.f32.gmra.mxu0 %v2350
        %v2449 = vpop.f32.mrf.mxu0
        %v2450 = vadd.f32 0.0, %v2449
        %2451 = vmatmul.f32.gmra.mxu0 %v2352
        %v2452 = vpop.f32.mrf.mxu0
        %v2453 = vadd.f32 0.0, %v2452
        %2454 = vmatmul.f32.gmra.mxu0 %v2354
        %v2455 = vpop.f32.mrf.mxu0
        %v2456 = vadd.f32 0.0, %v2455
        %2457 = vmatmul.f32.gmra.mxu0 %v2356
        %v2458 = vpop.f32.mrf.mxu0
        %v2459 = vadd.f32 0.0, %v2458
        %2460 = vmatmul.f32.gmra.mxu0 %v2358
        %v2461 = vpop.f32.mrf.mxu0
        %v2462 = vadd.f32 0.0, %v2461
        %2463 = vmatmul.f32.gmra.mxu0 %v2360
        %v2464 = vpop.f32.mrf.mxu0
        %v2465 = vadd.f32 0.0, %v2464
        %2466 = vmatmul.f32.gmra.mxu0 %v2362
        %v2467 = vpop.f32.mrf.mxu0
        %v2468 = vadd.f32 0.0, %v2467
        %2469 = vmatmul.f32.gmra.mxu0 %v2364
        %v2470 = vpop.f32.mrf.mxu0
        %v2471 = vadd.f32 0.0, %v2470
        %2472 = vmatmul.f32.gmra.mxu0 %v2366
        %v2473 = vpop.f32.mrf.mxu0
        %v2474 = vadd.f32 0.0, %v2473
        %2475 = vmatmul.f32.gmra.mxu0 %v2368
        %v2476 = vpop.f32.mrf.mxu0
        %v2477 = vadd.f32 0.0, %v2476
        %2478 = vmatmul.f32.gmra.mxu0 %v2370
        %v2479 = vpop.f32.mrf.mxu0
        %v2480 = vadd.f32 0.0, %v2479
        %2481 = vmatmul.f32.gmra.mxu0 %v2372
        %v2482 = vpop.f32.mrf.mxu0
        %v2483 = vadd.f32 0.0, %v2482
        %2484 = vmatmul.f32.gmra.mxu0 %v2374
        %v2485 = vpop.f32.mrf.mxu0
        %v2486 = vadd.f32 0.0, %v2485
        %2487 = vmatmul.f32.gmra.mxu0 %v2376
        %v2488 = vpop.f32.mrf.mxu0
        %v2489 = vadd.f32 0.0, %v2488
        %2490 = vmatmul.f32.gmra.mxu0 %v2378
        %v2491 = vpop.f32.mrf.mxu0
        %v2492 = vadd.f32 0.0, %v2491
        %2493 = vmatmul.f32.gmra.mxu0 %v2380
        %v2494 = vpop.f32.mrf.mxu0
        %v2495 = vadd.f32 0.0, %v2494
        %2496 = vmatmul.f32.gmra.mxu0 %v2382
        %v2497 = vpop.f32.mrf.mxu0
        %v2498 = vadd.f32 0.0, %v2497
        %2499 = vdwg.mxu0
        %v2500 = vadd.f32 %v2207, %v2405
        %v2501 = vadd.f32 %v2208, %v2408
        %v2502 = vadd.f32 %v2209, %v2411
        %v2503 = vadd.f32 %v2210, %v2414
        %v2504 = vadd.f32 %v2211, %v2417
        %v2505 = vadd.f32 %v2212, %v2420
        %v2506 = vadd.f32 %v2213, %v2423
        %v2507 = vadd.f32 %v2214, %v2426
        %v2508 = vadd.f32 %v2215, %v2429
        %v2509 = vadd.f32 %v2216, %v2432
        %v2510 = vadd.f32 %v2217, %v2435
        %v2511 = vadd.f32 %v2218, %v2438
        %v2512 = vadd.f32 %v2219, %v2441
        %v2513 = vadd.f32 %v2220, %v2444
        %v2514 = vadd.f32 %v2221, %v2447
        %v2515 = vadd.f32 %v2222, %v2450
        %v2516 = vadd.f32 %v2223, %v2453
        %v2517 = vadd.f32 %v2224, %v2456
        %v2518 = vadd.f32 %v2225, %v2459
        %v2519 = vadd.f32 %v2226, %v2462
        %v2520 = vadd.f32 %v2227, %v2465
        %v2521 = vadd.f32 %v2228, %v2468
        %v2522 = vadd.f32 %v2229, %v2471
        %v2523 = vadd.f32 %v2230, %v2474
        %v2524 = vadd.f32 %v2231, %v2477
        %v2525 = vadd.f32 %v2232, %v2480
        %v2526 = vadd.f32 %v2233, %v2483
        %v2527 = vadd.f32 %v2234, %v2486
        %v2528 = vadd.f32 %v2235, %v2489
        %v2529 = vadd.f32 %v2236, %v2492
        %v2530 = vadd.f32 %v2237, %v2495
        %v2531 = vadd.f32 %v2238, %v2498
        %v2533 = vsel %vm1700, %v1533, 0
        %v2535 = vsel %vm1700, %v1483, 0
        %v2538 = vsel %vm1781, %v1384, 0
        %2540 = vmatpush.msra.mxu0 0.0
        %2541 = vmatpush.msra.mxu0 0.0
        %2542 = vmatpush.msra.mxu0 0.0
        %2543 = vmatpush.msra.mxu0 0.0
        %2544 = vmatpush.msra.mxu0 0.0
        %2545 = vmatpush.msra.mxu0 0.0
        %2546 = vmatpush.msra.mxu0 0.0
        %2547 = vmatpush.msra.mxu0 0.0
        %2548 = vmatpush.msra.mxu0 0.0
        %2549 = vmatpush.msra.mxu0 0.0
        %2550 = vmatpush.msra.mxu0 0.0
        %2551 = vmatpush.msra.mxu0 0.0
        %2552 = vmatpush.msra.mxu0 0.0
        %2553 = vmatpush.msra.mxu0 0.0
        %2554 = vmatpush.msra.mxu0 0.0
        %2555 = vmatpush.msra.mxu0 %v2538
        %2556 = vmatmul.f32.gmra.mxu0 %v1707
        %v2557 = vpop.f32.mrf.mxu0
        %v2558 = vadd.f32 0.0, %v2557
        %2559 = vmatmul.f32.gmra.mxu0 %v1709
        %v2560 = vpop.f32.mrf.mxu0
        %v2561 = vadd.f32 0.0, %v2560
        %2562 = vmatmul.f32.gmra.mxu0 %v1712
        %v2563 = vpop.f32.mrf.mxu0
        %v2564 = vadd.f32 0.0, %v2563
        %2565 = vmatmul.f32.gmra.mxu0 %v1714
        %v2566 = vpop.f32.mrf.mxu0
        %v2567 = vadd.f32 0.0, %v2566
        %2568 = vmatmul.f32.gmra.mxu0 %v1717
        %v2569 = vpop.f32.mrf.mxu0
        %v2570 = vadd.f32 0.0, %v2569
        %2571 = vmatmul.f32.gmra.mxu0 %v1719
        %v2572 = vpop.f32.mrf.mxu0
        %v2573 = vadd.f32 0.0, %v2572
        %2574 = vmatmul.f32.gmra.mxu0 %v1722
        %v2575 = vpop.f32.mrf.mxu0
        %v2576 = vadd.f32 0.0, %v2575
        %2577 = vmatmul.f32.gmra.mxu0 %v1724
        %v2578 = vpop.f32.mrf.mxu0
        %v2579 = vadd.f32 0.0, %v2578
        %2580 = vmatmul.f32.gmra.mxu0 %v1727
        %v2581 = vpop.f32.mrf.mxu0
        %v2582 = vadd.f32 0.0, %v2581
        %2583 = vmatmul.f32.gmra.mxu0 %v1729
        %v2584 = vpop.f32.mrf.mxu0
        %v2585 = vadd.f32 0.0, %v2584
        %2586 = vmatmul.f32.gmra.mxu0 %v1732
        %v2587 = vpop.f32.mrf.mxu0
        %v2588 = vadd.f32 0.0, %v2587
        %2589 = vmatmul.f32.gmra.mxu0 %v1734
        %v2590 = vpop.f32.mrf.mxu0
        %v2591 = vadd.f32 0.0, %v2590
        %2592 = vmatmul.f32.gmra.mxu0 %v1737
        %v2593 = vpop.f32.mrf.mxu0
        %v2594 = vadd.f32 0.0, %v2593
        %2595 = vmatmul.f32.gmra.mxu0 %v1739
        %v2596 = vpop.f32.mrf.mxu0
        %v2597 = vadd.f32 0.0, %v2596
        %2598 = vmatmul.f32.gmra.mxu0 %v1742
        %v2599 = vpop.f32.mrf.mxu0
        %v2600 = vadd.f32 0.0, %v2599
        %2601 = vmatmul.f32.gmra.mxu0 %v1744
        %v2602 = vpop.f32.mrf.mxu0
        %v2603 = vadd.f32 0.0, %v2602
        %2604 = vmatmul.f32.gmra.mxu0 %v1747
        %v2605 = vpop.f32.mrf.mxu0
        %v2606 = vadd.f32 0.0, %v2605
        %2607 = vmatmul.f32.gmra.mxu0 %v1749
        %v2608 = vpop.f32.mrf.mxu0
        %v2609 = vadd.f32 0.0, %v2608
        %2610 = vmatmul.f32.gmra.mxu0 %v1752
        %v2611 = vpop.f32.mrf.mxu0
        %v2612 = vadd.f32 0.0, %v2611
        %2613 = vmatmul.f32.gmra.mxu0 %v1754
        %v2614 = vpop.f32.mrf.mxu0
        %v2615 = vadd.f32 0.0, %v2614
        %2616 = vmatmul.f32.gmra.mxu0 %v1757
        %v2617 = vpop.f32.mrf.mxu0
        %v2618 = vadd.f32 0.0, %v2617
        %2619 = vmatmul.f32.gmra.mxu0 %v1759
        %v2620 = vpop.f32.mrf.mxu0
        %v2621 = vadd.f32 0.0, %v2620
        %2622 = vmatmul.f32.gmra.mxu0 %v1762
        %v2623 = vpop.f32.mrf.mxu0
        %v2624 = vadd.f32 0.0, %v2623
        %2625 = vmatmul.f32.gmra.mxu0 %v1764
        %v2626 = vpop.f32.mrf.mxu0
        %v2627 = vadd.f32 0.0, %v2626
        %2628 = vmatmul.f32.gmra.mxu0 %v1767
        %v2629 = vpop.f32.mrf.mxu0
        %v2630 = vadd.f32 0.0, %v2629
        %2631 = vmatmul.f32.gmra.mxu0 %v1769
        %v2632 = vpop.f32.mrf.mxu0
        %v2633 = vadd.f32 0.0, %v2632
        %2634 = vmatmul.f32.gmra.mxu0 %v1772
        %v2635 = vpop.f32.mrf.mxu0
        %v2636 = vadd.f32 0.0, %v2635
        %2637 = vmatmul.f32.gmra.mxu0 %v1774
        %v2638 = vpop.f32.mrf.mxu0
        %v2639 = vadd.f32 0.0, %v2638
        %2640 = vmatmul.f32.gmra.mxu0 %v1777
        %v2641 = vpop.f32.mrf.mxu0
        %v2642 = vadd.f32 0.0, %v2641
        %2643 = vmatmul.f32.gmra.mxu0 %v1779
        %v2644 = vpop.f32.mrf.mxu0
        %v2645 = vadd.f32 0.0, %v2644
        %2646 = vmatmul.f32.gmra.mxu0 %v2533
        %v2647 = vpop.f32.mrf.mxu0
        %v2648 = vadd.f32 0.0, %v2647
        %2649 = vmatmul.f32.gmra.mxu0 %v2535
        %v2650 = vpop.f32.mrf.mxu0
        %v2651 = vadd.f32 0.0, %v2650
        %2652 = vdwg.mxu0
        %v2653 = vadd.f32 %v2500, %v2558
        %v2654 = vadd.f32 %v2501, %v2561
        %v2655 = vadd.f32 %v2502, %v2564
        %v2656 = vadd.f32 %v2503, %v2567
        %v2657 = vadd.f32 %v2504, %v2570
        %v2658 = vadd.f32 %v2505, %v2573
        %v2659 = vadd.f32 %v2506, %v2576
        %v2660 = vadd.f32 %v2507, %v2579
        %v2661 = vadd.f32 %v2508, %v2582
        %v2662 = vadd.f32 %v2509, %v2585
        %v2663 = vadd.f32 %v2510, %v2588
        %v2664 = vadd.f32 %v2511, %v2591
        %v2665 = vadd.f32 %v2512, %v2594
        %v2666 = vadd.f32 %v2513, %v2597
        %v2667 = vadd.f32 %v2514, %v2600
        %v2668 = vadd.f32 %v2515, %v2603
        %v2669 = vadd.f32 %v2516, %v2606
        %v2670 = vadd.f32 %v2517, %v2609
        %v2671 = vadd.f32 %v2518, %v2612
        %v2672 = vadd.f32 %v2519, %v2615
        %v2673 = vadd.f32 %v2520, %v2618
        %v2674 = vadd.f32 %v2521, %v2621
        %v2675 = vadd.f32 %v2522, %v2624
        %v2676 = vadd.f32 %v2523, %v2627
        %v2677 = vadd.f32 %v2524, %v2630
        %v2678 = vadd.f32 %v2525, %v2633
        %v2679 = vadd.f32 %v2526, %v2636
        %v2680 = vadd.f32 %v2527, %v2639
        %v2681 = vadd.f32 %v2528, %v2642
        %v2682 = vadd.f32 %v2529, %v2645
        %v2683 = vadd.f32 %v2530, %v2648
        %v2684 = vadd.f32 %v2531, %v2651
        %v2686 = vrot.slane %v1533, 1
        %v2687 = vrot.slane %v1483, 1
        %v2688 = vsel %vm1946, %v2686, %v2687
        %v2689 = vrot.slane %v1550, 1
        %v2690 = vsel %vm1946, %v2687, %v2689
        %v2691 = vsel %vm1700, %v2688, 0
        %v2693 = vsel %vm1700, %v2690, 0
        %v2696 = vsel %vm1781, %v1385, 0
        %2698 = vmatpush.msra.mxu0 0.0
        %2699 = vmatpush.msra.mxu0 0.0
        %2700 = vmatpush.msra.mxu0 0.0
        %2701 = vmatpush.msra.mxu0 0.0
        %2702 = vmatpush.msra.mxu0 0.0
        %2703 = vmatpush.msra.mxu0 0.0
        %2704 = vmatpush.msra.mxu0 0.0
        %2705 = vmatpush.msra.mxu0 0.0
        %2706 = vmatpush.msra.mxu0 0.0
        %2707 = vmatpush.msra.mxu0 0.0
        %2708 = vmatpush.msra.mxu0 0.0
        %2709 = vmatpush.msra.mxu0 0.0
        %2710 = vmatpush.msra.mxu0 0.0
        %2711 = vmatpush.msra.mxu0 0.0
        %2712 = vmatpush.msra.mxu0 0.0
        %2713 = vmatpush.msra.mxu0 %v2696
        %2714 = vmatmul.f32.gmra.mxu0 %v2031
        %v2715 = vpop.f32.mrf.mxu0
        %v2716 = vadd.f32 0.0, %v2715
        %2717 = vmatmul.f32.gmra.mxu0 %v2033
        %v2718 = vpop.f32.mrf.mxu0
        %v2719 = vadd.f32 0.0, %v2718
        %2720 = vmatmul.f32.gmra.mxu0 %v2035
        %v2721 = vpop.f32.mrf.mxu0
        %v2722 = vadd.f32 0.0, %v2721
        %2723 = vmatmul.f32.gmra.mxu0 %v2037
        %v2724 = vpop.f32.mrf.mxu0
        %v2725 = vadd.f32 0.0, %v2724
        %2726 = vmatmul.f32.gmra.mxu0 %v2039
        %v2727 = vpop.f32.mrf.mxu0
        %v2728 = vadd.f32 0.0, %v2727
        %2729 = vmatmul.f32.gmra.mxu0 %v2041
        %v2730 = vpop.f32.mrf.mxu0
        %v2731 = vadd.f32 0.0, %v2730
        %2732 = vmatmul.f32.gmra.mxu0 %v2043
        %v2733 = vpop.f32.mrf.mxu0
        %v2734 = vadd.f32 0.0, %v2733
        %2735 = vmatmul.f32.gmra.mxu0 %v2045
        %v2736 = vpop.f32.mrf.mxu0
        %v2737 = vadd.f32 0.0, %v2736
        %2738 = vmatmul.f32.gmra.mxu0 %v2047
        %v2739 = vpop.f32.mrf.mxu0
        %v2740 = vadd.f32 0.0, %v2739
        %2741 = vmatmul.f32.gmra.mxu0 %v2049
        %v2742 = vpop.f32.mrf.mxu0
        %v2743 = vadd.f32 0.0, %v2742
        %2744 = vmatmul.f32.gmra.mxu0 %v2051
        %v2745 = vpop.f32.mrf.mxu0
        %v2746 = vadd.f32 0.0, %v2745
        %2747 = vmatmul.f32.gmra.mxu0 %v2053
        %v2748 = vpop.f32.mrf.mxu0
        %v2749 = vadd.f32 0.0, %v2748
        %2750 = vmatmul.f32.gmra.mxu0 %v2055
        %v2751 = vpop.f32.mrf.mxu0
        %v2752 = vadd.f32 0.0, %v2751
        %2753 = vmatmul.f32.gmra.mxu0 %v2057
        %v2754 = vpop.f32.mrf.mxu0
        %v2755 = vadd.f32 0.0, %v2754
        %2756 = vmatmul.f32.gmra.mxu0 %v2059
        %v2757 = vpop.f32.mrf.mxu0
        %v2758 = vadd.f32 0.0, %v2757
        %2759 = vmatmul.f32.gmra.mxu0 %v2061
        %v2760 = vpop.f32.mrf.mxu0
        %v2761 = vadd.f32 0.0, %v2760
        %2762 = vmatmul.f32.gmra.mxu0 %v2063
        %v2763 = vpop.f32.mrf.mxu0
        %v2764 = vadd.f32 0.0, %v2763
        %2765 = vmatmul.f32.gmra.mxu0 %v2065
        %v2766 = vpop.f32.mrf.mxu0
        %v2767 = vadd.f32 0.0, %v2766
        %2768 = vmatmul.f32.gmra.mxu0 %v2067
        %v2769 = vpop.f32.mrf.mxu0
        %v2770 = vadd.f32 0.0, %v2769
        %2771 = vmatmul.f32.gmra.mxu0 %v2069
        %v2772 = vpop.f32.mrf.mxu0
        %v2773 = vadd.f32 0.0, %v2772
        %2774 = vmatmul.f32.gmra.mxu0 %v2071
        %v2775 = vpop.f32.mrf.mxu0
        %v2776 = vadd.f32 0.0, %v2775
        %2777 = vmatmul.f32.gmra.mxu0 %v2073
        %v2778 = vpop.f32.mrf.mxu0
        %v2779 = vadd.f32 0.0, %v2778
        %2780 = vmatmul.f32.gmra.mxu0 %v2075
        %v2781 = vpop.f32.mrf.mxu0
        %v2782 = vadd.f32 0.0, %v2781
        %2783 = vmatmul.f32.gmra.mxu0 %v2077
        %v2784 = vpop.f32.mrf.mxu0
        %v2785 = vadd.f32 0.0, %v2784
        %2786 = vmatmul.f32.gmra.mxu0 %v2079
        %v2787 = vpop.f32.mrf.mxu0
        %v2788 = vadd.f32 0.0, %v2787
        %2789 = vmatmul.f32.gmra.mxu0 %v2081
        %v2790 = vpop.f32.mrf.mxu0
        %v2791 = vadd.f32 0.0, %v2790
        %2792 = vmatmul.f32.gmra.mxu0 %v2083
        %v2793 = vpop.f32.mrf.mxu0
        %v2794 = vadd.f32 0.0, %v2793
        %2795 = vmatmul.f32.gmra.mxu0 %v2085
        %v2796 = vpop.f32.mrf.mxu0
        %v2797 = vadd.f32 0.0, %v2796
        %2798 = vmatmul.f32.gmra.mxu0 %v2087
        %v2799 = vpop.f32.mrf.mxu0
        %v2800 = vadd.f32 0.0, %v2799
        %2801 = vmatmul.f32.gmra.mxu0 %v2089
        %v2802 = vpop.f32.mrf.mxu0
        %v2803 = vadd.f32 0.0, %v2802
        %2804 = vmatmul.f32.gmra.mxu0 %v2691
        %v2805 = vpop.f32.mrf.mxu0
        %v2806 = vadd.f32 0.0, %v2805
        %2807 = vmatmul.f32.gmra.mxu0 %v2693
        %v2808 = vpop.f32.mrf.mxu0
        %v2809 = vadd.f32 0.0, %v2808
        %2810 = vdwg.mxu0
        %v2811 = vadd.f32 %v2653, %v2716
        %v2812 = vadd.f32 %v2654, %v2719
        %v2813 = vadd.f32 %v2655, %v2722
        %v2814 = vadd.f32 %v2656, %v2725
        %v2815 = vadd.f32 %v2657, %v2728
        %v2816 = vadd.f32 %v2658, %v2731
        %v2817 = vadd.f32 %v2659, %v2734
        %v2818 = vadd.f32 %v2660, %v2737
        %v2819 = vadd.f32 %v2661, %v2740
        %v2820 = vadd.f32 %v2662, %v2743
        %v2821 = vadd.f32 %v2663, %v2746
        %v2822 = vadd.f32 %v2664, %v2749
        %v2823 = vadd.f32 %v2665, %v2752
        %v2824 = vadd.f32 %v2666, %v2755
        %v2825 = vadd.f32 %v2667, %v2758
        %v2826 = vadd.f32 %v2668, %v2761
        %v2827 = vadd.f32 %v2669, %v2764
        %v2828 = vadd.f32 %v2670, %v2767
        %v2829 = vadd.f32 %v2671, %v2770
        %v2830 = vadd.f32 %v2672, %v2773
        %v2831 = vadd.f32 %v2673, %v2776
        %v2832 = vadd.f32 %v2674, %v2779
        %v2833 = vadd.f32 %v2675, %v2782
        %v2834 = vadd.f32 %v2676, %v2785
        %v2835 = vadd.f32 %v2677, %v2788
        %v2836 = vadd.f32 %v2678, %v2791
        %v2837 = vadd.f32 %v2679, %v2794
        %v2838 = vadd.f32 %v2680, %v2797
        %v2839 = vadd.f32 %v2681, %v2800
        %v2840 = vadd.f32 %v2682, %v2803
        %v2841 = vadd.f32 %v2683, %v2806
        %v2842 = vadd.f32 %v2684, %v2809
        %v2843 = vrot.slane %v1533, 2
        %v2844 = vrot.slane %v1483, 2
        %v2845 = vsel %vm2239, %v2843, %v2844
        %v2846 = vrot.slane %v1550, 2
        %v2847 = vsel %vm2239, %v2844, %v2846
        %v2848 = vsel %vm1700, %v2845, 0
        %v2850 = vsel %vm1700, %v2847, 0
        %v2853 = vsel %vm1781, %v1386, 0
        %2855 = vmatpush.msra.mxu0 0.0
        %2856 = vmatpush.msra.mxu0 0.0
        %2857 = vmatpush.msra.mxu0 0.0
        %2858 = vmatpush.msra.mxu0 0.0
        %2859 = vmatpush.msra.mxu0 0.0
        %2860 = vmatpush.msra.mxu0 0.0
        %2861 = vmatpush.msra.mxu0 0.0
        %2862 = vmatpush.msra.mxu0 0.0
        %2863 = vmatpush.msra.mxu0 0.0
        %2864 = vmatpush.msra.mxu0 0.0
        %2865 = vmatpush.msra.mxu0 0.0
        %2866 = vmatpush.msra.mxu0 0.0
        %2867 = vmatpush.msra.mxu0 0.0
        %2868 = vmatpush.msra.mxu0 0.0
        %2869 = vmatpush.msra.mxu0 0.0
        %2870 = vmatpush.msra.mxu0 %v2853
        %2871 = vmatmul.f32.gmra.mxu0 %v2324
        %v2872 = vpop.f32.mrf.mxu0
        %v2873 = vadd.f32 0.0, %v2872
        %2874 = vmatmul.f32.gmra.mxu0 %v2326
        %v2875 = vpop.f32.mrf.mxu0
        %v2876 = vadd.f32 0.0, %v2875
        %2877 = vmatmul.f32.gmra.mxu0 %v2328
        %v2878 = vpop.f32.mrf.mxu0
        %v2879 = vadd.f32 0.0, %v2878
        %2880 = vmatmul.f32.gmra.mxu0 %v2330
        %v2881 = vpop.f32.mrf.mxu0
        %v2882 = vadd.f32 0.0, %v2881
        %2883 = vmatmul.f32.gmra.mxu0 %v2332
        %v2884 = vpop.f32.mrf.mxu0
        %v2885 = vadd.f32 0.0, %v2884
        %2886 = vmatmul.f32.gmra.mxu0 %v2334
        %v2887 = vpop.f32.mrf.mxu0
        %v2888 = vadd.f32 0.0, %v2887
        %2889 = vmatmul.f32.gmra.mxu0 %v2336
        %v2890 = vpop.f32.mrf.mxu0
        %v2891 = vadd.f32 0.0, %v2890
        %2892 = vmatmul.f32.gmra.mxu0 %v2338
        %v2893 = vpop.f32.mrf.mxu0
        %v2894 = vadd.f32 0.0, %v2893
        %2895 = vmatmul.f32.gmra.mxu0 %v2340
        %v2896 = vpop.f32.mrf.mxu0
        %v2897 = vadd.f32 0.0, %v2896
        %2898 = vmatmul.f32.gmra.mxu0 %v2342
        %v2899 = vpop.f32.mrf.mxu0
        %v2900 = vadd.f32 0.0, %v2899
        %2901 = vmatmul.f32.gmra.mxu0 %v2344
        %v2902 = vpop.f32.mrf.mxu0
        %v2903 = vadd.f32 0.0, %v2902
        %2904 = vmatmul.f32.gmra.mxu0 %v2346
        %v2905 = vpop.f32.mrf.mxu0
        %v2906 = vadd.f32 0.0, %v2905
        %2907 = vmatmul.f32.gmra.mxu0 %v2348
        %v2908 = vpop.f32.mrf.mxu0
        %v2909 = vadd.f32 0.0, %v2908
        %2910 = vmatmul.f32.gmra.mxu0 %v2350
        %v2911 = vpop.f32.mrf.mxu0
        %v2912 = vadd.f32 0.0, %v2911
        %2913 = vmatmul.f32.gmra.mxu0 %v2352
        %v2914 = vpop.f32.mrf.mxu0
        %v2915 = vadd.f32 0.0, %v2914
        %2916 = vmatmul.f32.gmra.mxu0 %v2354
        %v2917 = vpop.f32.mrf.mxu0
        %v2918 = vadd.f32 0.0, %v2917
        %2919 = vmatmul.f32.gmra.mxu0 %v2356
        %v2920 = vpop.f32.mrf.mxu0
        %v2921 = vadd.f32 0.0, %v2920
        %2922 = vmatmul.f32.gmra.mxu0 %v2358
        %v2923 = vpop.f32.mrf.mxu0
        %v2924 = vadd.f32 0.0, %v2923
        %2925 = vmatmul.f32.gmra.mxu0 %v2360
        %v2926 = vpop.f32.mrf.mxu0
        %v2927 = vadd.f32 0.0, %v2926
        %2928 = vmatmul.f32.gmra.mxu0 %v2362
        %v2929 = vpop.f32.mrf.mxu0
        %v2930 = vadd.f32 0.0, %v2929
        %2931 = vmatmul.f32.gmra.mxu0 %v2364
        %v2932 = vpop.f32.mrf.mxu0
        %v2933 = vadd.f32 0.0, %v2932
        %2934 = vmatmul.f32.gmra.mxu0 %v2366
        %v2935 = vpop.f32.mrf.mxu0
        %v2936 = vadd.f32 0.0, %v2935
        %2937 = vmatmul.f32.gmra.mxu0 %v2368
        %v2938 = vpop.f32.mrf.mxu0
        %v2939 = vadd.f32 0.0, %v2938
        %2940 = vmatmul.f32.gmra.mxu0 %v2370
        %v2941 = vpop.f32.mrf.mxu0
        %v2942 = vadd.f32 0.0, %v2941
        %2943 = vmatmul.f32.gmra.mxu0 %v2372
        %v2944 = vpop.f32.mrf.mxu0
        %v2945 = vadd.f32 0.0, %v2944
        %2946 = vmatmul.f32.gmra.mxu0 %v2374
        %v2947 = vpop.f32.mrf.mxu0
        %v2948 = vadd.f32 0.0, %v2947
        %2949 = vmatmul.f32.gmra.mxu0 %v2376
        %v2950 = vpop.f32.mrf.mxu0
        %v2951 = vadd.f32 0.0, %v2950
        %2952 = vmatmul.f32.gmra.mxu0 %v2378
        %v2953 = vpop.f32.mrf.mxu0
        %v2954 = vadd.f32 0.0, %v2953
        %2955 = vmatmul.f32.gmra.mxu0 %v2380
        %v2956 = vpop.f32.mrf.mxu0
        %v2957 = vadd.f32 0.0, %v2956
        %2958 = vmatmul.f32.gmra.mxu0 %v2382
        %v2959 = vpop.f32.mrf.mxu0
        %v2960 = vadd.f32 0.0, %v2959
        %2961 = vmatmul.f32.gmra.mxu0 %v2848
        %v2962 = vpop.f32.mrf.mxu0
        %v2963 = vadd.f32 0.0, %v2962
        %2964 = vmatmul.f32.gmra.mxu0 %v2850
        %v2965 = vpop.f32.mrf.mxu0
        %v2966 = vadd.f32 0.0, %v2965
        %2967 = vdwg.mxu0
        %v2968 = vadd.f32 %v2811, %v2873
        %v2969 = vadd.f32 %v2812, %v2876
        %v2970 = vadd.f32 %v2813, %v2879
        %v2971 = vadd.f32 %v2814, %v2882
        %v2972 = vadd.f32 %v2815, %v2885
        %v2973 = vadd.f32 %v2816, %v2888
        %v2974 = vadd.f32 %v2817, %v2891
        %v2975 = vadd.f32 %v2818, %v2894
        %v2976 = vadd.f32 %v2819, %v2897
        %v2977 = vadd.f32 %v2820, %v2900
        %v2978 = vadd.f32 %v2821, %v2903
        %v2979 = vadd.f32 %v2822, %v2906
        %v2980 = vadd.f32 %v2823, %v2909
        %v2981 = vadd.f32 %v2824, %v2912
        %v2982 = vadd.f32 %v2825, %v2915
        %v2983 = vadd.f32 %v2826, %v2918
        %v2984 = vadd.f32 %v2827, %v2921
        %v2985 = vadd.f32 %v2828, %v2924
        %v2986 = vadd.f32 %v2829, %v2927
        %v2987 = vadd.f32 %v2830, %v2930
        %v2988 = vadd.f32 %v2831, %v2933
        %v2989 = vadd.f32 %v2832, %v2936
        %v2990 = vadd.f32 %v2833, %v2939
        %v2991 = vadd.f32 %v2834, %v2942
        %v2992 = vadd.f32 %v2835, %v2945
        %v2993 = vadd.f32 %v2836, %v2948
        %v2994 = vadd.f32 %v2837, %v2951
        %v2995 = vadd.f32 %v2838, %v2954
        %v2996 = vadd.f32 %v2839, %v2957
        %v2997 = vadd.f32 %v2840, %v2960
        %v2998 = vadd.f32 %v2841, %v2963
        %v2999 = vadd.f32 %v2842, %v2966
        %v3001 = vsel %vm1781, %v1387, 0
        %3003 = vmatpush.msra.mxu0 0.0
        %3004 = vmatpush.msra.mxu0 0.0
        %3005 = vmatpush.msra.mxu0 0.0
        %3006 = vmatpush.msra.mxu0 0.0
        %3007 = vmatpush.msra.mxu0 0.0
        %3008 = vmatpush.msra.mxu0 0.0
        %3009 = vmatpush.msra.mxu0 0.0
        %3010 = vmatpush.msra.mxu0 0.0
        %3011 = vmatpush.msra.mxu0 0.0
        %3012 = vmatpush.msra.mxu0 0.0
        %3013 = vmatpush.msra.mxu0 0.0
        %3014 = vmatpush.msra.mxu0 0.0
        %3015 = vmatpush.msra.mxu0 0.0
        %3016 = vmatpush.msra.mxu0 0.0
        %3017 = vmatpush.msra.mxu0 0.0
        %3018 = vmatpush.msra.mxu0 %v3001
        %3019 = vmatmul.f32.gmra.mxu0 %v1712
        %v3020 = vpop.f32.mrf.mxu0
        %v3021 = vadd.f32 0.0, %v3020
        %3022 = vmatmul.f32.gmra.mxu0 %v1714
        %v3023 = vpop.f32.mrf.mxu0
        %v3024 = vadd.f32 0.0, %v3023
        %3025 = vmatmul.f32.gmra.mxu0 %v1717
        %v3026 = vpop.f32.mrf.mxu0
        %v3027 = vadd.f32 0.0, %v3026
        %3028 = vmatmul.f32.gmra.mxu0 %v1719
        %v3029 = vpop.f32.mrf.mxu0
        %v3030 = vadd.f32 0.0, %v3029
        %3031 = vmatmul.f32.gmra.mxu0 %v1722
        %v3032 = vpop.f32.mrf.mxu0
        %v3033 = vadd.f32 0.0, %v3032
        %3034 = vmatmul.f32.gmra.mxu0 %v1724
        %v3035 = vpop.f32.mrf.mxu0
        %v3036 = vadd.f32 0.0, %v3035
        %3037 = vmatmul.f32.gmra.mxu0 %v1727
        %v3038 = vpop.f32.mrf.mxu0
        %v3039 = vadd.f32 0.0, %v3038
        %3040 = vmatmul.f32.gmra.mxu0 %v1729
        %v3041 = vpop.f32.mrf.mxu0
        %v3042 = vadd.f32 0.0, %v3041
        %3043 = vmatmul.f32.gmra.mxu0 %v1732
        %v3044 = vpop.f32.mrf.mxu0
        %v3045 = vadd.f32 0.0, %v3044
        %3046 = vmatmul.f32.gmra.mxu0 %v1734
        %v3047 = vpop.f32.mrf.mxu0
        %v3048 = vadd.f32 0.0, %v3047
        %3049 = vmatmul.f32.gmra.mxu0 %v1737
        %v3050 = vpop.f32.mrf.mxu0
        %v3051 = vadd.f32 0.0, %v3050
        %3052 = vmatmul.f32.gmra.mxu0 %v1739
        %v3053 = vpop.f32.mrf.mxu0
        %v3054 = vadd.f32 0.0, %v3053
        %3055 = vmatmul.f32.gmra.mxu0 %v1742
        %v3056 = vpop.f32.mrf.mxu0
        %v3057 = vadd.f32 0.0, %v3056
        %3058 = vmatmul.f32.gmra.mxu0 %v1744
        %v3059 = vpop.f32.mrf.mxu0
        %v3060 = vadd.f32 0.0, %v3059
        %3061 = vmatmul.f32.gmra.mxu0 %v1747
        %v3062 = vpop.f32.mrf.mxu0
        %v3063 = vadd.f32 0.0, %v3062
        %3064 = vmatmul.f32.gmra.mxu0 %v1749
        %v3065 = vpop.f32.mrf.mxu0
        %v3066 = vadd.f32 0.0, %v3065
        %3067 = vmatmul.f32.gmra.mxu0 %v1752
        %v3068 = vpop.f32.mrf.mxu0
        %v3069 = vadd.f32 0.0, %v3068
        %3070 = vmatmul.f32.gmra.mxu0 %v1754
        %v3071 = vpop.f32.mrf.mxu0
        %v3072 = vadd.f32 0.0, %v3071
        %3073 = vmatmul.f32.gmra.mxu0 %v1757
        %v3074 = vpop.f32.mrf.mxu0
        %v3075 = vadd.f32 0.0, %v3074
        %3076 = vmatmul.f32.gmra.mxu0 %v1759
        %v3077 = vpop.f32.mrf.mxu0
        %v3078 = vadd.f32 0.0, %v3077
        %3079 = vmatmul.f32.gmra.mxu0 %v1762
        %v3080 = vpop.f32.mrf.mxu0
        %v3081 = vadd.f32 0.0, %v3080
        %3082 = vmatmul.f32.gmra.mxu0 %v1764
        %v3083 = vpop.f32.mrf.mxu0
        %v3084 = vadd.f32 0.0, %v3083
        %3085 = vmatmul.f32.gmra.mxu0 %v1767
        %v3086 = vpop.f32.mrf.mxu0
        %v3087 = vadd.f32 0.0, %v3086
        %3088 = vmatmul.f32.gmra.mxu0 %v1769
        %v3089 = vpop.f32.mrf.mxu0
        %v3090 = vadd.f32 0.0, %v3089
        %3091 = vmatmul.f32.gmra.mxu0 %v1772
        %v3092 = vpop.f32.mrf.mxu0
        %v3093 = vadd.f32 0.0, %v3092
        %3094 = vmatmul.f32.gmra.mxu0 %v1774
        %v3095 = vpop.f32.mrf.mxu0
        %v3096 = vadd.f32 0.0, %v3095
        %3097 = vmatmul.f32.gmra.mxu0 %v1777
        %v3098 = vpop.f32.mrf.mxu0
        %v3099 = vadd.f32 0.0, %v3098
        %3100 = vmatmul.f32.gmra.mxu0 %v1779
        %v3101 = vpop.f32.mrf.mxu0
        %v3102 = vadd.f32 0.0, %v3101
        %3103 = vmatmul.f32.gmra.mxu0 %v2533
        %v3104 = vpop.f32.mrf.mxu0
        %v3105 = vadd.f32 0.0, %v3104
        %3106 = vmatmul.f32.gmra.mxu0 %v2535
        %v3107 = vpop.f32.mrf.mxu0
        %v3108 = vadd.f32 0.0, %v3107
        %3109 = vmatmul.f32.gmra.mxu0 %v1702
        %v3110 = vpop.f32.mrf.mxu0
        %v3111 = vadd.f32 0.0, %v3110
        %3112 = vmatmul.f32.gmra.mxu0 %v1704
        %v3113 = vpop.f32.mrf.mxu0
        %v3114 = vadd.f32 0.0, %v3113
        %3115 = vdwg.mxu0
        %v3116 = vadd.f32 %v2968, %v3021
        %v3117 = vadd.f32 %v2969, %v3024
        %v3118 = vadd.f32 %v2970, %v3027
        %v3119 = vadd.f32 %v2971, %v3030
        %v3120 = vadd.f32 %v2972, %v3033
        %v3121 = vadd.f32 %v2973, %v3036
        %v3122 = vadd.f32 %v2974, %v3039
        %v3123 = vadd.f32 %v2975, %v3042
        %v3124 = vadd.f32 %v2976, %v3045
        %v3125 = vadd.f32 %v2977, %v3048
        %v3126 = vadd.f32 %v2978, %v3051
        %v3127 = vadd.f32 %v2979, %v3054
        %v3128 = vadd.f32 %v2980, %v3057
        %v3129 = vadd.f32 %v2981, %v3060
        %v3130 = vadd.f32 %v2982, %v3063
        %v3131 = vadd.f32 %v2983, %v3066
        %v3132 = vadd.f32 %v2984, %v3069
        %v3133 = vadd.f32 %v2985, %v3072
        %v3134 = vadd.f32 %v2986, %v3075
        %v3135 = vadd.f32 %v2987, %v3078
        %v3136 = vadd.f32 %v2988, %v3081
        %v3137 = vadd.f32 %v2989, %v3084
        %v3138 = vadd.f32 %v2990, %v3087
        %v3139 = vadd.f32 %v2991, %v3090
        %v3140 = vadd.f32 %v2992, %v3093
        %v3141 = vadd.f32 %v2993, %v3096
        %v3142 = vadd.f32 %v2994, %v3099
        %v3143 = vadd.f32 %v2995, %v3102
        %v3144 = vadd.f32 %v2996, %v3105
        %v3145 = vadd.f32 %v2997, %v3108
        %v3146 = vadd.f32 %v2998, %v3111
        %v3147 = vadd.f32 %v2999, %v3114
        %v3149 = vsel %vm1781, %v1388, 0
        %3151 = vmatpush.msra.mxu0 0.0
        %3152 = vmatpush.msra.mxu0 0.0
        %3153 = vmatpush.msra.mxu0 0.0
        %3154 = vmatpush.msra.mxu0 0.0
        %3155 = vmatpush.msra.mxu0 0.0
        %3156 = vmatpush.msra.mxu0 0.0
        %3157 = vmatpush.msra.mxu0 0.0
        %3158 = vmatpush.msra.mxu0 0.0
        %3159 = vmatpush.msra.mxu0 0.0
        %3160 = vmatpush.msra.mxu0 0.0
        %3161 = vmatpush.msra.mxu0 0.0
        %3162 = vmatpush.msra.mxu0 0.0
        %3163 = vmatpush.msra.mxu0 0.0
        %3164 = vmatpush.msra.mxu0 0.0
        %3165 = vmatpush.msra.mxu0 0.0
        %3166 = vmatpush.msra.mxu0 %v3149
        %3167 = vmatmul.f32.gmra.mxu0 %v2035
        %v3168 = vpop.f32.mrf.mxu0
        %v3169 = vadd.f32 0.0, %v3168
        %3170 = vmatmul.f32.gmra.mxu0 %v2037
        %v3171 = vpop.f32.mrf.mxu0
        %v3172 = vadd.f32 0.0, %v3171
        %3173 = vmatmul.f32.gmra.mxu0 %v2039
        %v3174 = vpop.f32.mrf.mxu0
        %v3175 = vadd.f32 0.0, %v3174
        %3176 = vmatmul.f32.gmra.mxu0 %v2041
        %v3177 = vpop.f32.mrf.mxu0
        %v3178 = vadd.f32 0.0, %v3177
        %3179 = vmatmul.f32.gmra.mxu0 %v2043
        %v3180 = vpop.f32.mrf.mxu0
        %v3181 = vadd.f32 0.0, %v3180
        %3182 = vmatmul.f32.gmra.mxu0 %v2045
        %v3183 = vpop.f32.mrf.mxu0
        %v3184 = vadd.f32 0.0, %v3183
        %3185 = vmatmul.f32.gmra.mxu0 %v2047
        %v3186 = vpop.f32.mrf.mxu0
        %v3187 = vadd.f32 0.0, %v3186
        %3188 = vmatmul.f32.gmra.mxu0 %v2049
        %v3189 = vpop.f32.mrf.mxu0
        %v3190 = vadd.f32 0.0, %v3189
        %3191 = vmatmul.f32.gmra.mxu0 %v2051
        %v3192 = vpop.f32.mrf.mxu0
        %v3193 = vadd.f32 0.0, %v3192
        %3194 = vmatmul.f32.gmra.mxu0 %v2053
        %v3195 = vpop.f32.mrf.mxu0
        %v3196 = vadd.f32 0.0, %v3195
        %3197 = vmatmul.f32.gmra.mxu0 %v2055
        %v3198 = vpop.f32.mrf.mxu0
        %v3199 = vadd.f32 0.0, %v3198
        %3200 = vmatmul.f32.gmra.mxu0 %v2057
        %v3201 = vpop.f32.mrf.mxu0
        %v3202 = vadd.f32 0.0, %v3201
        %3203 = vmatmul.f32.gmra.mxu0 %v2059
        %v3204 = vpop.f32.mrf.mxu0
        %v3205 = vadd.f32 0.0, %v3204
        %3206 = vmatmul.f32.gmra.mxu0 %v2061
        %v3207 = vpop.f32.mrf.mxu0
        %v3208 = vadd.f32 0.0, %v3207
        %3209 = vmatmul.f32.gmra.mxu0 %v2063
        %v3210 = vpop.f32.mrf.mxu0
        %v3211 = vadd.f32 0.0, %v3210
        %3212 = vmatmul.f32.gmra.mxu0 %v2065
        %v3213 = vpop.f32.mrf.mxu0
        %v3214 = vadd.f32 0.0, %v3213
        %3215 = vmatmul.f32.gmra.mxu0 %v2067
        %v3216 = vpop.f32.mrf.mxu0
        %v3217 = vadd.f32 0.0, %v3216
        %3218 = vmatmul.f32.gmra.mxu0 %v2069
        %v3219 = vpop.f32.mrf.mxu0
        %v3220 = vadd.f32 0.0, %v3219
        %3221 = vmatmul.f32.gmra.mxu0 %v2071
        %v3222 = vpop.f32.mrf.mxu0
        %v3223 = vadd.f32 0.0, %v3222
        %3224 = vmatmul.f32.gmra.mxu0 %v2073
        %v3225 = vpop.f32.mrf.mxu0
        %v3226 = vadd.f32 0.0, %v3225
        %3227 = vmatmul.f32.gmra.mxu0 %v2075
        %v3228 = vpop.f32.mrf.mxu0
        %v3229 = vadd.f32 0.0, %v3228
        %3230 = vmatmul.f32.gmra.mxu0 %v2077
        %v3231 = vpop.f32.mrf.mxu0
        %v3232 = vadd.f32 0.0, %v3231
        %3233 = vmatmul.f32.gmra.mxu0 %v2079
        %v3234 = vpop.f32.mrf.mxu0
        %v3235 = vadd.f32 0.0, %v3234
        %3236 = vmatmul.f32.gmra.mxu0 %v2081
        %v3237 = vpop.f32.mrf.mxu0
        %v3238 = vadd.f32 0.0, %v3237
        %3239 = vmatmul.f32.gmra.mxu0 %v2083
        %v3240 = vpop.f32.mrf.mxu0
        %v3241 = vadd.f32 0.0, %v3240
        %3242 = vmatmul.f32.gmra.mxu0 %v2085
        %v3243 = vpop.f32.mrf.mxu0
        %v3244 = vadd.f32 0.0, %v3243
        %3245 = vmatmul.f32.gmra.mxu0 %v2087
        %v3246 = vpop.f32.mrf.mxu0
        %v3247 = vadd.f32 0.0, %v3246
        %3248 = vmatmul.f32.gmra.mxu0 %v2089
        %v3249 = vpop.f32.mrf.mxu0
        %v3250 = vadd.f32 0.0, %v3249
        %3251 = vmatmul.f32.gmra.mxu0 %v2691
        %v3252 = vpop.f32.mrf.mxu0
        %v3253 = vadd.f32 0.0, %v3252
        %3254 = vmatmul.f32.gmra.mxu0 %v2693
        %v3255 = vpop.f32.mrf.mxu0
        %v3256 = vadd.f32 0.0, %v3255
        %3257 = vmatmul.f32.gmra.mxu0 %v2027
        %v3258 = vpop.f32.mrf.mxu0
        %v3259 = vadd.f32 0.0, %v3258
        %3260 = vmatmul.f32.gmra.mxu0 %v2029
        %v3261 = vpop.f32.mrf.mxu0
        %v3262 = vadd.f32 0.0, %v3261
        %3263 = vdwg.mxu0
        %v3264 = vadd.f32 %v3116, %v3169
        %v3265 = vadd.f32 %v3117, %v3172
        %v3266 = vadd.f32 %v3118, %v3175
        %v3267 = vadd.f32 %v3119, %v3178
        %v3268 = vadd.f32 %v3120, %v3181
        %v3269 = vadd.f32 %v3121, %v3184
        %v3270 = vadd.f32 %v3122, %v3187
        %v3271 = vadd.f32 %v3123, %v3190
        %v3272 = vadd.f32 %v3124, %v3193
        %v3273 = vadd.f32 %v3125, %v3196
        %v3274 = vadd.f32 %v3126, %v3199
        %v3275 = vadd.f32 %v3127, %v3202
        %v3276 = vadd.f32 %v3128, %v3205
        %v3277 = vadd.f32 %v3129, %v3208
        %v3278 = vadd.f32 %v3130, %v3211
        %v3279 = vadd.f32 %v3131, %v3214
        %v3280 = vadd.f32 %v3132, %v3217
        %v3281 = vadd.f32 %v3133, %v3220
        %v3282 = vadd.f32 %v3134, %v3223
        %v3283 = vadd.f32 %v3135, %v3226
        %v3284 = vadd.f32 %v3136, %v3229
        %v3285 = vadd.f32 %v3137, %v3232
        %v3286 = vadd.f32 %v3138, %v3235
        %v3287 = vadd.f32 %v3139, %v3238
        %v3288 = vadd.f32 %v3140, %v3241
        %v3289 = vadd.f32 %v3141, %v3244
        %v3290 = vadd.f32 %v3142, %v3247
        %v3291 = vadd.f32 %v3143, %v3250
        %v3292 = vadd.f32 %v3144, %v3253
        %v3293 = vadd.f32 %v3145, %v3256
        %v3294 = vadd.f32 %v3146, %v3259
        %v3295 = vadd.f32 %v3147, %v3262
        %v3297 = vsel %vm1781, %v1389, 0
        %3299 = vmatpush.msra.mxu0 0.0
        %3300 = vmatpush.msra.mxu0 0.0
        %3301 = vmatpush.msra.mxu0 0.0
        %3302 = vmatpush.msra.mxu0 0.0
        %3303 = vmatpush.msra.mxu0 0.0
        %3304 = vmatpush.msra.mxu0 0.0
        %3305 = vmatpush.msra.mxu0 0.0
        %3306 = vmatpush.msra.mxu0 0.0
        %3307 = vmatpush.msra.mxu0 0.0
        %3308 = vmatpush.msra.mxu0 0.0
        %3309 = vmatpush.msra.mxu0 0.0
        %3310 = vmatpush.msra.mxu0 0.0
        %3311 = vmatpush.msra.mxu0 0.0
        %3312 = vmatpush.msra.mxu0 0.0
        %3313 = vmatpush.msra.mxu0 0.0
        %3314 = vmatpush.msra.mxu0 %v3297
        %3315 = vmatmul.f32.gmra.mxu0 %v2328
        %v3316 = vpop.f32.mrf.mxu0
        %v3317 = vadd.f32 0.0, %v3316
        %3318 = vmatmul.f32.gmra.mxu0 %v2330
        %v3319 = vpop.f32.mrf.mxu0
        %v3320 = vadd.f32 0.0, %v3319
        %3321 = vmatmul.f32.gmra.mxu0 %v2332
        %v3322 = vpop.f32.mrf.mxu0
        %v3323 = vadd.f32 0.0, %v3322
        %3324 = vmatmul.f32.gmra.mxu0 %v2334
        %v3325 = vpop.f32.mrf.mxu0
        %v3326 = vadd.f32 0.0, %v3325
        %3327 = vmatmul.f32.gmra.mxu0 %v2336
        %v3328 = vpop.f32.mrf.mxu0
        %v3329 = vadd.f32 0.0, %v3328
        %3330 = vmatmul.f32.gmra.mxu0 %v2338
        %v3331 = vpop.f32.mrf.mxu0
        %v3332 = vadd.f32 0.0, %v3331
        %3333 = vmatmul.f32.gmra.mxu0 %v2340
        %v3334 = vpop.f32.mrf.mxu0
        %v3335 = vadd.f32 0.0, %v3334
        %3336 = vmatmul.f32.gmra.mxu0 %v2342
        %v3337 = vpop.f32.mrf.mxu0
        %v3338 = vadd.f32 0.0, %v3337
        %3339 = vmatmul.f32.gmra.mxu0 %v2344
        %v3340 = vpop.f32.mrf.mxu0
        %v3341 = vadd.f32 0.0, %v3340
        %3342 = vmatmul.f32.gmra.mxu0 %v2346
        %v3343 = vpop.f32.mrf.mxu0
        %v3344 = vadd.f32 0.0, %v3343
        %3345 = vmatmul.f32.gmra.mxu0 %v2348
        %v3346 = vpop.f32.mrf.mxu0
        %v3347 = vadd.f32 0.0, %v3346
        %3348 = vmatmul.f32.gmra.mxu0 %v2350
        %v3349 = vpop.f32.mrf.mxu0
        %v3350 = vadd.f32 0.0, %v3349
        %3351 = vmatmul.f32.gmra.mxu0 %v2352
        %v3352 = vpop.f32.mrf.mxu0
        %v3353 = vadd.f32 0.0, %v3352
        %3354 = vmatmul.f32.gmra.mxu0 %v2354
        %v3355 = vpop.f32.mrf.mxu0
        %v3356 = vadd.f32 0.0, %v3355
        %3357 = vmatmul.f32.gmra.mxu0 %v2356
        %v3358 = vpop.f32.mrf.mxu0
        %v3359 = vadd.f32 0.0, %v3358
        %3360 = vmatmul.f32.gmra.mxu0 %v2358
        %v3361 = vpop.f32.mrf.mxu0
        %v3362 = vadd.f32 0.0, %v3361
        %3363 = vmatmul.f32.gmra.mxu0 %v2360
        %v3364 = vpop.f32.mrf.mxu0
        %v3365 = vadd.f32 0.0, %v3364
        %3366 = vmatmul.f32.gmra.mxu0 %v2362
        %v3367 = vpop.f32.mrf.mxu0
        %v3368 = vadd.f32 0.0, %v3367
        %3369 = vmatmul.f32.gmra.mxu0 %v2364
        %v3370 = vpop.f32.mrf.mxu0
        %v3371 = vadd.f32 0.0, %v3370
        %3372 = vmatmul.f32.gmra.mxu0 %v2366
        %v3373 = vpop.f32.mrf.mxu0
        %v3374 = vadd.f32 0.0, %v3373
        %3375 = vmatmul.f32.gmra.mxu0 %v2368
        %v3376 = vpop.f32.mrf.mxu0
        %v3377 = vadd.f32 0.0, %v3376
        %3378 = vmatmul.f32.gmra.mxu0 %v2370
        %v3379 = vpop.f32.mrf.mxu0
        %v3380 = vadd.f32 0.0, %v3379
        %3381 = vmatmul.f32.gmra.mxu0 %v2372
        %v3382 = vpop.f32.mrf.mxu0
        %v3383 = vadd.f32 0.0, %v3382
        %3384 = vmatmul.f32.gmra.mxu0 %v2374
        %v3385 = vpop.f32.mrf.mxu0
        %v3386 = vadd.f32 0.0, %v3385
        %3387 = vmatmul.f32.gmra.mxu0 %v2376
        %v3388 = vpop.f32.mrf.mxu0
        %v3389 = vadd.f32 0.0, %v3388
        %3390 = vmatmul.f32.gmra.mxu0 %v2378
        %v3391 = vpop.f32.mrf.mxu0
        %v3392 = vadd.f32 0.0, %v3391
        %3393 = vmatmul.f32.gmra.mxu0 %v2380
        %v3394 = vpop.f32.mrf.mxu0
        %v3395 = vadd.f32 0.0, %v3394
        %3396 = vmatmul.f32.gmra.mxu0 %v2382
        %v3397 = vpop.f32.mrf.mxu0
        %v3398 = vadd.f32 0.0, %v3397
        %3399 = vmatmul.f32.gmra.mxu0 %v2848
        %v3400 = vpop.f32.mrf.mxu0
        %v3401 = vadd.f32 0.0, %v3400
        %3402 = vmatmul.f32.gmra.mxu0 %v2850
        %v3403 = vpop.f32.mrf.mxu0
        %v3404 = vadd.f32 0.0, %v3403
        %3405 = vmatmul.f32.gmra.mxu0 %v2320
        %v3406 = vpop.f32.mrf.mxu0
        %v3407 = vadd.f32 0.0, %v3406
        %3408 = vmatmul.f32.gmra.mxu0 %v2322
        %v3409 = vpop.f32.mrf.mxu0
        %v3410 = vadd.f32 0.0, %v3409
        %3411 = vdwg.mxu0
        %v3412 = vadd.f32 %v3264, %v3317
        %v3413 = vadd.f32 %v3265, %v3320
        %v3414 = vadd.f32 %v3266, %v3323
        %v3415 = vadd.f32 %v3267, %v3326
        %v3416 = vadd.f32 %v3268, %v3329
        %v3417 = vadd.f32 %v3269, %v3332
        %v3418 = vadd.f32 %v3270, %v3335
        %v3419 = vadd.f32 %v3271, %v3338
        %v3420 = vadd.f32 %v3272, %v3341
        %v3421 = vadd.f32 %v3273, %v3344
        %v3422 = vadd.f32 %v3274, %v3347
        %v3423 = vadd.f32 %v3275, %v3350
        %v3424 = vadd.f32 %v3276, %v3353
        %v3425 = vadd.f32 %v3277, %v3356
        %v3426 = vadd.f32 %v3278, %v3359
        %v3427 = vadd.f32 %v3279, %v3362
        %v3428 = vadd.f32 %v3280, %v3365
        %v3429 = vadd.f32 %v3281, %v3368
        %v3430 = vadd.f32 %v3282, %v3371
        %v3431 = vadd.f32 %v3283, %v3374
        %v3432 = vadd.f32 %v3284, %v3377
        %v3433 = vadd.f32 %v3285, %v3380
        %v3434 = vadd.f32 %v3286, %v3383
        %v3435 = vadd.f32 %v3287, %v3386
        %v3436 = vadd.f32 %v3288, %v3389
        %v3437 = vadd.f32 %v3289, %v3392
        %v3438 = vadd.f32 %v3290, %v3395
        %v3439 = vadd.f32 %v3291, %v3398
        %v3440 = vadd.f32 %v3292, %v3401
        %v3441 = vadd.f32 %v3293, %v3404
        %v3442 = vadd.f32 %v3294, %v3407
        %v3443 = vadd.f32 %v3295, %v3410
        %v3444 = vrot.slane %v1381, 4
        %v3446 = vsel %vm1700, %v1663, 0
        %v3448 = vsel %vm1700, %v1585, 0
        %v3451 = vsel %vm1700, %v1664, 0
        %v3453 = vsel %vm1700, %v1588, 0
        %v3456 = vsel %vm1700, %v1665, 0
        %v3458 = vsel %vm1700, %v1591, 0
        %v3461 = vsel %vm1700, %v1666, 0
        %v3463 = vsel %vm1700, %v1594, 0
        %v3466 = vsel %vm1700, %v1667, 0
        %v3468 = vsel %vm1700, %v1597, 0
        %v3471 = vsel %vm1700, %v1668, 0
        %v3473 = vsel %vm1700, %v1600, 0
        %v3476 = vsel %vm1700, %v1669, 0
        %v3478 = vsel %vm1700, %v1603, 0
        %v3481 = vsel %vm1700, %v1670, 0
        %v3483 = vsel %vm1700, %v1606, 0
        %v3486 = vsel %vm1700, %v1671, 0
        %v3488 = vsel %vm1700, %v1609, 0
        %v3491 = vsel %vm1700, %v1672, 0
        %v3493 = vsel %vm1700, %v1612, 0
        %v3496 = vsel %vm1700, %v1673, 0
        %v3498 = vsel %vm1700, %v1615, 0
        %v3501 = vsel %vm1700, %v1674, 0
        %v3503 = vsel %vm1700, %v1618, 0
        %v3506 = vsel %vm1700, %v1675, 0
        %v3508 = vsel %vm1700, %v1621, 0
        %v3511 = vsel %vm1700, %v1676, 0
        %v3513 = vsel %vm1700, %v1624, 0
        %v3516 = vsel %vm1700, %v1677, 0
        %v3518 = vsel %vm1700, %v1627, 0
        %v3520 = vsel %vm1781, %v3444, 0
        %3522 = vmatpush.msra.mxu0 0.0
        %3523 = vmatpush.msra.mxu0 0.0
        %3524 = vmatpush.msra.mxu0 0.0
        %3525 = vmatpush.msra.mxu0 0.0
        %3526 = vmatpush.msra.mxu0 0.0
        %3527 = vmatpush.msra.mxu0 0.0
        %3528 = vmatpush.msra.mxu0 0.0
        %3529 = vmatpush.msra.mxu0 0.0
        %3530 = vmatpush.msra.mxu0 0.0
        %3531 = vmatpush.msra.mxu0 0.0
        %3532 = vmatpush.msra.mxu0 0.0
        %3533 = vmatpush.msra.mxu0 0.0
        %3534 = vmatpush.msra.mxu0 0.0
        %3535 = vmatpush.msra.mxu0 0.0
        %3536 = vmatpush.msra.mxu0 0.0
        %3537 = vmatpush.msra.mxu0 %v3520
        %3538 = vmatmul.f32.gmra.mxu0 %v1702
        %v3539 = vpop.f32.mrf.mxu0
        %v3540 = vadd.f32 0.0, %v3539
        %3541 = vmatmul.f32.gmra.mxu0 %v1704
        %v3542 = vpop.f32.mrf.mxu0
        %v3543 = vadd.f32 0.0, %v3542
        %3544 = vmatmul.f32.gmra.mxu0 %v3446
        %v3545 = vpop.f32.mrf.mxu0
        %v3546 = vadd.f32 0.0, %v3545
        %3547 = vmatmul.f32.gmra.mxu0 %v3448
        %v3548 = vpop.f32.mrf.mxu0
        %v3549 = vadd.f32 0.0, %v3548
        %3550 = vmatmul.f32.gmra.mxu0 %v3451
        %v3551 = vpop.f32.mrf.mxu0
        %v3552 = vadd.f32 0.0, %v3551
        %3553 = vmatmul.f32.gmra.mxu0 %v3453
        %v3554 = vpop.f32.mrf.mxu0
        %v3555 = vadd.f32 0.0, %v3554
        %3556 = vmatmul.f32.gmra.mxu0 %v3456
        %v3557 = vpop.f32.mrf.mxu0
        %v3558 = vadd.f32 0.0, %v3557
        %3559 = vmatmul.f32.gmra.mxu0 %v3458
        %v3560 = vpop.f32.mrf.mxu0
        %v3561 = vadd.f32 0.0, %v3560
        %3562 = vmatmul.f32.gmra.mxu0 %v3461
        %v3563 = vpop.f32.mrf.mxu0
        %v3564 = vadd.f32 0.0, %v3563
        %3565 = vmatmul.f32.gmra.mxu0 %v3463
        %v3566 = vpop.f32.mrf.mxu0
        %v3567 = vadd.f32 0.0, %v3566
        %3568 = vmatmul.f32.gmra.mxu0 %v3466
        %v3569 = vpop.f32.mrf.mxu0
        %v3570 = vadd.f32 0.0, %v3569
        %3571 = vmatmul.f32.gmra.mxu0 %v3468
        %v3572 = vpop.f32.mrf.mxu0
        %v3573 = vadd.f32 0.0, %v3572
        %3574 = vmatmul.f32.gmra.mxu0 %v3471
        %v3575 = vpop.f32.mrf.mxu0
        %v3576 = vadd.f32 0.0, %v3575
        %3577 = vmatmul.f32.gmra.mxu0 %v3473
        %v3578 = vpop.f32.mrf.mxu0
        %v3579 = vadd.f32 0.0, %v3578
        %3580 = vmatmul.f32.gmra.mxu0 %v3476
        %v3581 = vpop.f32.mrf.mxu0
        %v3582 = vadd.f32 0.0, %v3581
        %3583 = vmatmul.f32.gmra.mxu0 %v3478
        %v3584 = vpop.f32.mrf.mxu0
        %v3585 = vadd.f32 0.0, %v3584
        %3586 = vmatmul.f32.gmra.mxu0 %v3481
        %v3587 = vpop.f32.mrf.mxu0
        %v3588 = vadd.f32 0.0, %v3587
        %3589 = vmatmul.f32.gmra.mxu0 %v3483
        %v3590 = vpop.f32.mrf.mxu0
        %v3591 = vadd.f32 0.0, %v3590
        %3592 = vmatmul.f32.gmra.mxu0 %v3486
        %v3593 = vpop.f32.mrf.mxu0
        %v3594 = vadd.f32 0.0, %v3593
        %3595 = vmatmul.f32.gmra.mxu0 %v3488
        %v3596 = vpop.f32.mrf.mxu0
        %v3597 = vadd.f32 0.0, %v3596
        %3598 = vmatmul.f32.gmra.mxu0 %v3491
        %v3599 = vpop.f32.mrf.mxu0
        %v3600 = vadd.f32 0.0, %v3599
        %3601 = vmatmul.f32.gmra.mxu0 %v3493
        %v3602 = vpop.f32.mrf.mxu0
        %v3603 = vadd.f32 0.0, %v3602
        %3604 = vmatmul.f32.gmra.mxu0 %v3496
        %v3605 = vpop.f32.mrf.mxu0
        %v3606 = vadd.f32 0.0, %v3605
        %3607 = vmatmul.f32.gmra.mxu0 %v3498
        %v3608 = vpop.f32.mrf.mxu0
        %v3609 = vadd.f32 0.0, %v3608
        %3610 = vmatmul.f32.gmra.mxu0 %v3501
        %v3611 = vpop.f32.mrf.mxu0
        %v3612 = vadd.f32 0.0, %v3611
        %3613 = vmatmul.f32.gmra.mxu0 %v3503
        %v3614 = vpop.f32.mrf.mxu0
        %v3615 = vadd.f32 0.0, %v3614
        %3616 = vmatmul.f32.gmra.mxu0 %v3506
        %v3617 = vpop.f32.mrf.mxu0
        %v3618 = vadd.f32 0.0, %v3617
        %3619 = vmatmul.f32.gmra.mxu0 %v3508
        %v3620 = vpop.f32.mrf.mxu0
        %v3621 = vadd.f32 0.0, %v3620
        %3622 = vmatmul.f32.gmra.mxu0 %v3511
        %v3623 = vpop.f32.mrf.mxu0
        %v3624 = vadd.f32 0.0, %v3623
        %3625 = vmatmul.f32.gmra.mxu0 %v3513
        %v3626 = vpop.f32.mrf.mxu0
        %v3627 = vadd.f32 0.0, %v3626
        %3628 = vmatmul.f32.gmra.mxu0 %v3516
        %v3629 = vpop.f32.mrf.mxu0
        %v3630 = vadd.f32 0.0, %v3629
        %3631 = vmatmul.f32.gmra.mxu0 %v3518
        %v3632 = vpop.f32.mrf.mxu0
        %v3633 = vadd.f32 0.0, %v3632
        %3634 = vdwg.mxu0
        %v3635 = vadd.f32 %v3412, %v3540
        %v3636 = vadd.f32 %v3413, %v3543
        %v3637 = vadd.f32 %v3414, %v3546
        %v3638 = vadd.f32 %v3415, %v3549
        %v3639 = vadd.f32 %v3416, %v3552
        %v3640 = vadd.f32 %v3417, %v3555
        %v3641 = vadd.f32 %v3418, %v3558
        %v3642 = vadd.f32 %v3419, %v3561
        %v3643 = vadd.f32 %v3420, %v3564
        %v3644 = vadd.f32 %v3421, %v3567
        %v3645 = vadd.f32 %v3422, %v3570
        %v3646 = vadd.f32 %v3423, %v3573
        %v3647 = vadd.f32 %v3424, %v3576
        %v3648 = vadd.f32 %v3425, %v3579
        %v3649 = vadd.f32 %v3426, %v3582
        %v3650 = vadd.f32 %v3427, %v3585
        %v3651 = vadd.f32 %v3428, %v3588
        %v3652 = vadd.f32 %v3429, %v3591
        %v3653 = vadd.f32 %v3430, %v3594
        %v3654 = vadd.f32 %v3431, %v3597
        %v3655 = vadd.f32 %v3432, %v3600
        %v3656 = vadd.f32 %v3433, %v3603
        %v3657 = vadd.f32 %v3434, %v3606
        %v3658 = vadd.f32 %v3435, %v3609
        %v3659 = vadd.f32 %v3436, %v3612
        %v3660 = vadd.f32 %v3437, %v3615
        %v3661 = vadd.f32 %v3438, %v3618
        %v3662 = vadd.f32 %v3439, %v3621
        %v3663 = vadd.f32 %v3440, %v3624
        %v3664 = vadd.f32 %v3441, %v3627
        %v3665 = vadd.f32 %v3442, %v3630
        %v3666 = vadd.f32 %v3443, %v3633
        %v3682 = vrot.slane %v1663, 1
        %v3683 = vrot.slane %v1585, 1
        %v3684 = vsel %vm1946, %v3682, %v3683
        %v3685 = vrot.slane %v1679, 1
        %v3686 = vsel %vm1946, %v3683, %v3685
        %v3687 = vrot.slane %v1664, 1
        %v3688 = vrot.slane %v1588, 1
        %v3689 = vsel %vm1946, %v3687, %v3688
        %v3690 = vrot.slane %v1680, 1
        %v3691 = vsel %vm1946, %v3688, %v3690
        %v3692 = vrot.slane %v1665, 1
        %v3693 = vrot.slane %v1591, 1
        %v3694 = vsel %vm1946, %v3692, %v3693
        %v3695 = vrot.slane %v1681, 1
        %v3696 = vsel %vm1946, %v3693, %v3695
        %v3697 = vrot.slane %v1666, 1
        %v3698 = vrot.slane %v1594, 1
        %v3699 = vsel %vm1946, %v3697, %v3698
        %v3700 = vrot.slane %v1682, 1
        %v3701 = vsel %vm1946, %v3698, %v3700
        %v3702 = vrot.slane %v1667, 1
        %v3703 = vrot.slane %v1597, 1
        %v3704 = vsel %vm1946, %v3702, %v3703
        %v3705 = vrot.slane %v1683, 1
        %v3706 = vsel %vm1946, %v3703, %v3705
        %v3707 = vrot.slane %v1668, 1
        %v3708 = vrot.slane %v1600, 1
        %v3709 = vsel %vm1946, %v3707, %v3708
        %v3710 = vrot.slane %v1684, 1
        %v3711 = vsel %vm1946, %v3708, %v3710
        %v3712 = vrot.slane %v1669, 1
        %v3713 = vrot.slane %v1603, 1
        %v3714 = vsel %vm1946, %v3712, %v3713
        %v3715 = vrot.slane %v1685, 1
        %v3716 = vsel %vm1946, %v3713, %v3715
        %v3717 = vrot.slane %v1670, 1
        %v3718 = vrot.slane %v1606, 1
        %v3719 = vsel %vm1946, %v3717, %v3718
        %v3720 = vrot.slane %v1686, 1
        %v3721 = vsel %vm1946, %v3718, %v3720
        %v3722 = vrot.slane %v1671, 1
        %v3723 = vrot.slane %v1609, 1
        %v3724 = vsel %vm1946, %v3722, %v3723
        %v3725 = vrot.slane %v1687, 1
        %v3726 = vsel %vm1946, %v3723, %v3725
        %v3727 = vrot.slane %v1672, 1
        %v3728 = vrot.slane %v1612, 1
        %v3729 = vsel %vm1946, %v3727, %v3728
        %v3730 = vrot.slane %v1688, 1
        %v3731 = vsel %vm1946, %v3728, %v3730
        %v3732 = vrot.slane %v1673, 1
        %v3733 = vrot.slane %v1615, 1
        %v3734 = vsel %vm1946, %v3732, %v3733
        %v3735 = vrot.slane %v1689, 1
        %v3736 = vsel %vm1946, %v3733, %v3735
        %v3737 = vrot.slane %v1674, 1
        %v3738 = vrot.slane %v1618, 1
        %v3739 = vsel %vm1946, %v3737, %v3738
        %v3740 = vrot.slane %v1690, 1
        %v3741 = vsel %vm1946, %v3738, %v3740
        %v3742 = vrot.slane %v1675, 1
        %v3743 = vrot.slane %v1621, 1
        %v3744 = vsel %vm1946, %v3742, %v3743
        %v3745 = vrot.slane %v1691, 1
        %v3746 = vsel %vm1946, %v3743, %v3745
        %v3747 = vrot.slane %v1676, 1
        %v3748 = vrot.slane %v1624, 1
        %v3749 = vsel %vm1946, %v3747, %v3748
        %v3750 = vrot.slane %v1692, 1
        %v3751 = vsel %vm1946, %v3748, %v3750
        %v3752 = vrot.slane %v1677, 1
        %v3753 = vrot.slane %v1627, 1
        %v3754 = vsel %vm1946, %v3752, %v3753
        %v3755 = vrot.slane %v1693, 1
        %v3756 = vsel %vm1946, %v3753, %v3755
        %v3757 = vrot.slane %v1382, 4
        %v3758 = vsel %vm1700, %v3684, 0
        %v3760 = vsel %vm1700, %v3686, 0
        %v3762 = vsel %vm1700, %v3689, 0
        %v3764 = vsel %vm1700, %v3691, 0
        %v3766 = vsel %vm1700, %v3694, 0
        %v3768 = vsel %vm1700, %v3696, 0
        %v3770 = vsel %vm1700, %v3699, 0
        %v3772 = vsel %vm1700, %v3701, 0
        %v3774 = vsel %vm1700, %v3704, 0
        %v3776 = vsel %vm1700, %v3706, 0
        %v3778 = vsel %vm1700, %v3709, 0
        %v3780 = vsel %vm1700, %v3711, 0
        %v3782 = vsel %vm1700, %v3714, 0
        %v3784 = vsel %vm1700, %v3716, 0
        %v3786 = vsel %vm1700, %v3719, 0
        %v3788 = vsel %vm1700, %v3721, 0
        %v3790 = vsel %vm1700, %v3724, 0
        %v3792 = vsel %vm1700, %v3726, 0
        %v3794 = vsel %vm1700, %v3729, 0
        %v3796 = vsel %vm1700, %v3731, 0
        %v3798 = vsel %vm1700, %v3734, 0
        %v3800 = vsel %vm1700, %v3736, 0
        %v3802 = vsel %vm1700, %v3739, 0
        %v3804 = vsel %vm1700, %v3741, 0
        %v3806 = vsel %vm1700, %v3744, 0
        %v3808 = vsel %vm1700, %v3746, 0
        %v3810 = vsel %vm1700, %v3749, 0
        %v3812 = vsel %vm1700, %v3751, 0
        %v3814 = vsel %vm1700, %v3754, 0
        %v3816 = vsel %vm1700, %v3756, 0
        %v3818 = vsel %vm1781, %v3757, 0
        %3820 = vmatpush.msra.mxu0 0.0
        %3821 = vmatpush.msra.mxu0 0.0
        %3822 = vmatpush.msra.mxu0 0.0
        %3823 = vmatpush.msra.mxu0 0.0
        %3824 = vmatpush.msra.mxu0 0.0
        %3825 = vmatpush.msra.mxu0 0.0
        %3826 = vmatpush.msra.mxu0 0.0
        %3827 = vmatpush.msra.mxu0 0.0
        %3828 = vmatpush.msra.mxu0 0.0
        %3829 = vmatpush.msra.mxu0 0.0
        %3830 = vmatpush.msra.mxu0 0.0
        %3831 = vmatpush.msra.mxu0 0.0
        %3832 = vmatpush.msra.mxu0 0.0
        %3833 = vmatpush.msra.mxu0 0.0
        %3834 = vmatpush.msra.mxu0 0.0
        %3835 = vmatpush.msra.mxu0 %v3818
        %3836 = vmatmul.f32.gmra.mxu0 %v2027
        %v3837 = vpop.f32.mrf.mxu0
        %v3838 = vadd.f32 0.0, %v3837
        %3839 = vmatmul.f32.gmra.mxu0 %v2029
        %v3840 = vpop.f32.mrf.mxu0
        %v3841 = vadd.f32 0.0, %v3840
        %3842 = vmatmul.f32.gmra.mxu0 %v3758
        %v3843 = vpop.f32.mrf.mxu0
        %v3844 = vadd.f32 0.0, %v3843
        %3845 = vmatmul.f32.gmra.mxu0 %v3760
        %v3846 = vpop.f32.mrf.mxu0
        %v3847 = vadd.f32 0.0, %v3846
        %3848 = vmatmul.f32.gmra.mxu0 %v3762
        %v3849 = vpop.f32.mrf.mxu0
        %v3850 = vadd.f32 0.0, %v3849
        %3851 = vmatmul.f32.gmra.mxu0 %v3764
        %v3852 = vpop.f32.mrf.mxu0
        %v3853 = vadd.f32 0.0, %v3852
        %3854 = vmatmul.f32.gmra.mxu0 %v3766
        %v3855 = vpop.f32.mrf.mxu0
        %v3856 = vadd.f32 0.0, %v3855
        %3857 = vmatmul.f32.gmra.mxu0 %v3768
        %v3858 = vpop.f32.mrf.mxu0
        %v3859 = vadd.f32 0.0, %v3858
        %3860 = vmatmul.f32.gmra.mxu0 %v3770
        %v3861 = vpop.f32.mrf.mxu0
        %v3862 = vadd.f32 0.0, %v3861
        %3863 = vmatmul.f32.gmra.mxu0 %v3772
        %v3864 = vpop.f32.mrf.mxu0
        %v3865 = vadd.f32 0.0, %v3864
        %3866 = vmatmul.f32.gmra.mxu0 %v3774
        %v3867 = vpop.f32.mrf.mxu0
        %v3868 = vadd.f32 0.0, %v3867
        %3869 = vmatmul.f32.gmra.mxu0 %v3776
        %v3870 = vpop.f32.mrf.mxu0
        %v3871 = vadd.f32 0.0, %v3870
        %3872 = vmatmul.f32.gmra.mxu0 %v3778
        %v3873 = vpop.f32.mrf.mxu0
        %v3874 = vadd.f32 0.0, %v3873
        %3875 = vmatmul.f32.gmra.mxu0 %v3780
        %v3876 = vpop.f32.mrf.mxu0
        %v3877 = vadd.f32 0.0, %v3876
        %3878 = vmatmul.f32.gmra.mxu0 %v3782
        %v3879 = vpop.f32.mrf.mxu0
        %v3880 = vadd.f32 0.0, %v3879
        %3881 = vmatmul.f32.gmra.mxu0 %v3784
        %v3882 = vpop.f32.mrf.mxu0
        %v3883 = vadd.f32 0.0, %v3882
        %3884 = vmatmul.f32.gmra.mxu0 %v3786
        %v3885 = vpop.f32.mrf.mxu0
        %v3886 = vadd.f32 0.0, %v3885
        %3887 = vmatmul.f32.gmra.mxu0 %v3788
        %v3888 = vpop.f32.mrf.mxu0
        %v3889 = vadd.f32 0.0, %v3888
        %3890 = vmatmul.f32.gmra.mxu0 %v3790
        %v3891 = vpop.f32.mrf.mxu0
        %v3892 = vadd.f32 0.0, %v3891
        %3893 = vmatmul.f32.gmra.mxu0 %v3792
        %v3894 = vpop.f32.mrf.mxu0
        %v3895 = vadd.f32 0.0, %v3894
        %3896 = vmatmul.f32.gmra.mxu0 %v3794
        %v3897 = vpop.f32.mrf.mxu0
        %v3898 = vadd.f32 0.0, %v3897
        %3899 = vmatmul.f32.gmra.mxu0 %v3796
        %v3900 = vpop.f32.mrf.mxu0
        %v3901 = vadd.f32 0.0, %v3900
        %3902 = vmatmul.f32.gmra.mxu0 %v3798
        %v3903 = vpop.f32.mrf.mxu0
        %v3904 = vadd.f32 0.0, %v3903
        %3905 = vmatmul.f32.gmra.mxu0 %v3800
        %v3906 = vpop.f32.mrf.mxu0
        %v3907 = vadd.f32 0.0, %v3906
        %3908 = vmatmul.f32.gmra.mxu0 %v3802
        %v3909 = vpop.f32.mrf.mxu0
        %v3910 = vadd.f32 0.0, %v3909
        %3911 = vmatmul.f32.gmra.mxu0 %v3804
        %v3912 = vpop.f32.mrf.mxu0
        %v3913 = vadd.f32 0.0, %v3912
        %3914 = vmatmul.f32.gmra.mxu0 %v3806
        %v3915 = vpop.f32.mrf.mxu0
        %v3916 = vadd.f32 0.0, %v3915
        %3917 = vmatmul.f32.gmra.mxu0 %v3808
        %v3918 = vpop.f32.mrf.mxu0
        %v3919 = vadd.f32 0.0, %v3918
        %3920 = vmatmul.f32.gmra.mxu0 %v3810
        %v3921 = vpop.f32.mrf.mxu0
        %v3922 = vadd.f32 0.0, %v3921
        %3923 = vmatmul.f32.gmra.mxu0 %v3812
        %v3924 = vpop.f32.mrf.mxu0
        %v3925 = vadd.f32 0.0, %v3924
        %3926 = vmatmul.f32.gmra.mxu0 %v3814
        %v3927 = vpop.f32.mrf.mxu0
        %v3928 = vadd.f32 0.0, %v3927
        %3929 = vmatmul.f32.gmra.mxu0 %v3816
        %v3930 = vpop.f32.mrf.mxu0
        %v3931 = vadd.f32 0.0, %v3930
        %3932 = vdwg.mxu0
        %v3933 = vadd.f32 %v3635, %v3838
        %v3934 = vadd.f32 %v3636, %v3841
        %v3935 = vadd.f32 %v3637, %v3844
        %v3936 = vadd.f32 %v3638, %v3847
        %v3937 = vadd.f32 %v3639, %v3850
        %v3938 = vadd.f32 %v3640, %v3853
        %v3939 = vadd.f32 %v3641, %v3856
        %v3940 = vadd.f32 %v3642, %v3859
        %v3941 = vadd.f32 %v3643, %v3862
        %v3942 = vadd.f32 %v3644, %v3865
        %v3943 = vadd.f32 %v3645, %v3868
        %v3944 = vadd.f32 %v3646, %v3871
        %v3945 = vadd.f32 %v3647, %v3874
        %v3946 = vadd.f32 %v3648, %v3877
        %v3947 = vadd.f32 %v3649, %v3880
        %v3948 = vadd.f32 %v3650, %v3883
        %v3949 = vadd.f32 %v3651, %v3886
        %v3950 = vadd.f32 %v3652, %v3889
        %v3951 = vadd.f32 %v3653, %v3892
        %v3952 = vadd.f32 %v3654, %v3895
        %v3953 = vadd.f32 %v3655, %v3898
        %v3954 = vadd.f32 %v3656, %v3901
        %v3955 = vadd.f32 %v3657, %v3904
        %v3956 = vadd.f32 %v3658, %v3907
        %v3957 = vadd.f32 %v3659, %v3910
        %v3958 = vadd.f32 %v3660, %v3913
        %v3959 = vadd.f32 %v3661, %v3916
        %v3960 = vadd.f32 %v3662, %v3919
        %v3961 = vadd.f32 %v3663, %v3922
        %v3962 = vadd.f32 %v3664, %v3925
        %v3963 = vadd.f32 %v3665, %v3928
        %v3964 = vadd.f32 %v3666, %v3931
        %v3965 = vrot.slane %v1663, 2
        %v3966 = vrot.slane %v1585, 2
        %v3967 = vsel %vm2239, %v3965, %v3966
        %v3968 = vrot.slane %v1679, 2
        %v3969 = vsel %vm2239, %v3966, %v3968
        %v3970 = vrot.slane %v1664, 2
        %v3971 = vrot.slane %v1588, 2
        %v3972 = vsel %vm2239, %v3970, %v3971
        %v3973 = vrot.slane %v1680, 2
        %v3974 = vsel %vm2239, %v3971, %v3973
        %v3975 = vrot.slane %v1665, 2
        %v3976 = vrot.slane %v1591, 2
        %v3977 = vsel %vm2239, %v3975, %v3976
        %v3978 = vrot.slane %v1681, 2
        %v3979 = vsel %vm2239, %v3976, %v3978
        %v3980 = vrot.slane %v1666, 2
        %v3981 = vrot.slane %v1594, 2
        %v3982 = vsel %vm2239, %v3980, %v3981
        %v3983 = vrot.slane %v1682, 2
        %v3984 = vsel %vm2239, %v3981, %v3983
        %v3985 = vrot.slane %v1667, 2
        %v3986 = vrot.slane %v1597, 2
        %v3987 = vsel %vm2239, %v3985, %v3986
        %v3988 = vrot.slane %v1683, 2
        %v3989 = vsel %vm2239, %v3986, %v3988
        %v3990 = vrot.slane %v1668, 2
        %v3991 = vrot.slane %v1600, 2
        %v3992 = vsel %vm2239, %v3990, %v3991
        %v3993 = vrot.slane %v1684, 2
        %v3994 = vsel %vm2239, %v3991, %v3993
        %v3995 = vrot.slane %v1669, 2
        %v3996 = vrot.slane %v1603, 2
        %v3997 = vsel %vm2239, %v3995, %v3996
        %v3998 = vrot.slane %v1685, 2
        %v3999 = vsel %vm2239, %v3996, %v3998
        %v4000 = vrot.slane %v1670, 2
        %v4001 = vrot.slane %v1606, 2
        %v4002 = vsel %vm2239, %v4000, %v4001
        %v4003 = vrot.slane %v1686, 2
        %v4004 = vsel %vm2239, %v4001, %v4003
        %v4005 = vrot.slane %v1671, 2
        %v4006 = vrot.slane %v1609, 2
        %v4007 = vsel %vm2239, %v4005, %v4006
        %v4008 = vrot.slane %v1687, 2
        %v4009 = vsel %vm2239, %v4006, %v4008
        %v4010 = vrot.slane %v1672, 2
        %v4011 = vrot.slane %v1612, 2
        %v4012 = vsel %vm2239, %v4010, %v4011
        %v4013 = vrot.slane %v1688, 2
        %v4014 = vsel %vm2239, %v4011, %v4013
        %v4015 = vrot.slane %v1673, 2
        %v4016 = vrot.slane %v1615, 2
        %v4017 = vsel %vm2239, %v4015, %v4016
        %v4018 = vrot.slane %v1689, 2
        %v4019 = vsel %vm2239, %v4016, %v4018
        %v4020 = vrot.slane %v1674, 2
        %v4021 = vrot.slane %v1618, 2
        %v4022 = vsel %vm2239, %v4020, %v4021
        %v4023 = vrot.slane %v1690, 2
        %v4024 = vsel %vm2239, %v4021, %v4023
        %v4025 = vrot.slane %v1675, 2
        %v4026 = vrot.slane %v1621, 2
        %v4027 = vsel %vm2239, %v4025, %v4026
        %v4028 = vrot.slane %v1691, 2
        %v4029 = vsel %vm2239, %v4026, %v4028
        %v4030 = vrot.slane %v1676, 2
        %v4031 = vrot.slane %v1624, 2
        %v4032 = vsel %vm2239, %v4030, %v4031
        %v4033 = vrot.slane %v1692, 2
        %v4034 = vsel %vm2239, %v4031, %v4033
        %v4035 = vrot.slane %v1677, 2
        %v4036 = vrot.slane %v1627, 2
        %v4037 = vsel %vm2239, %v4035, %v4036
        %v4038 = vrot.slane %v1693, 2
        %v4039 = vsel %vm2239, %v4036, %v4038
        %v4040 = vrot.slane %v1383, 4
        %v4041 = vsel %vm1700, %v3967, 0
        %v4043 = vsel %vm1700, %v3969, 0
        %v4045 = vsel %vm1700, %v3972, 0
        %v4047 = vsel %vm1700, %v3974, 0
        %v4049 = vsel %vm1700, %v3977, 0
        %v4051 = vsel %vm1700, %v3979, 0
        %v4053 = vsel %vm1700, %v3982, 0
        %v4055 = vsel %vm1700, %v3984, 0
        %v4057 = vsel %vm1700, %v3987, 0
        %v4059 = vsel %vm1700, %v3989, 0
        %v4061 = vsel %vm1700, %v3992, 0
        %v4063 = vsel %vm1700, %v3994, 0
        %v4065 = vsel %vm1700, %v3997, 0
        %v4067 = vsel %vm1700, %v3999, 0
        %v4069 = vsel %vm1700, %v4002, 0
        %v4071 = vsel %vm1700, %v4004, 0
        %v4073 = vsel %vm1700, %v4007, 0
        %v4075 = vsel %vm1700, %v4009, 0
        %v4077 = vsel %vm1700, %v4012, 0
        %v4079 = vsel %vm1700, %v4014, 0
        %v4081 = vsel %vm1700, %v4017, 0
        %v4083 = vsel %vm1700, %v4019, 0
        %v4085 = vsel %vm1700, %v4022, 0
        %v4087 = vsel %vm1700, %v4024, 0
        %v4089 = vsel %vm1700, %v4027, 0
        %v4091 = vsel %vm1700, %v4029, 0
        %v4093 = vsel %vm1700, %v4032, 0
        %v4095 = vsel %vm1700, %v4034, 0
        %v4097 = vsel %vm1700, %v4037, 0
        %v4099 = vsel %vm1700, %v4039, 0
        %v4101 = vsel %vm1781, %v4040, 0
        %4103 = vmatpush.msra.mxu0 0.0
        %4104 = vmatpush.msra.mxu0 0.0
        %4105 = vmatpush.msra.mxu0 0.0
        %4106 = vmatpush.msra.mxu0 0.0
        %4107 = vmatpush.msra.mxu0 0.0
        %4108 = vmatpush.msra.mxu0 0.0
        %4109 = vmatpush.msra.mxu0 0.0
        %4110 = vmatpush.msra.mxu0 0.0
        %4111 = vmatpush.msra.mxu0 0.0
        %4112 = vmatpush.msra.mxu0 0.0
        %4113 = vmatpush.msra.mxu0 0.0
        %4114 = vmatpush.msra.mxu0 0.0
        %4115 = vmatpush.msra.mxu0 0.0
        %4116 = vmatpush.msra.mxu0 0.0
        %4117 = vmatpush.msra.mxu0 0.0
        %4118 = vmatpush.msra.mxu0 %v4101
        %4119 = vmatmul.f32.gmra.mxu0 %v2320
        %v4120 = vpop.f32.mrf.mxu0
        %v4121 = vadd.f32 0.0, %v4120
        %4122 = vmatmul.f32.gmra.mxu0 %v2322
        %v4123 = vpop.f32.mrf.mxu0
        %v4124 = vadd.f32 0.0, %v4123
        %4125 = vmatmul.f32.gmra.mxu0 %v4041
        %v4126 = vpop.f32.mrf.mxu0
        %v4127 = vadd.f32 0.0, %v4126
        %4128 = vmatmul.f32.gmra.mxu0 %v4043
        %v4129 = vpop.f32.mrf.mxu0
        %v4130 = vadd.f32 0.0, %v4129
        %4131 = vmatmul.f32.gmra.mxu0 %v4045
        %v4132 = vpop.f32.mrf.mxu0
        %v4133 = vadd.f32 0.0, %v4132
        %4134 = vmatmul.f32.gmra.mxu0 %v4047
        %v4135 = vpop.f32.mrf.mxu0
        %v4136 = vadd.f32 0.0, %v4135
        %4137 = vmatmul.f32.gmra.mxu0 %v4049
        %v4138 = vpop.f32.mrf.mxu0
        %v4139 = vadd.f32 0.0, %v4138
        %4140 = vmatmul.f32.gmra.mxu0 %v4051
        %v4141 = vpop.f32.mrf.mxu0
        %v4142 = vadd.f32 0.0, %v4141
        %4143 = vmatmul.f32.gmra.mxu0 %v4053
        %v4144 = vpop.f32.mrf.mxu0
        %v4145 = vadd.f32 0.0, %v4144
        %4146 = vmatmul.f32.gmra.mxu0 %v4055
        %v4147 = vpop.f32.mrf.mxu0
        %v4148 = vadd.f32 0.0, %v4147
        %4149 = vmatmul.f32.gmra.mxu0 %v4057
        %v4150 = vpop.f32.mrf.mxu0
        %v4151 = vadd.f32 0.0, %v4150
        %4152 = vmatmul.f32.gmra.mxu0 %v4059
        %v4153 = vpop.f32.mrf.mxu0
        %v4154 = vadd.f32 0.0, %v4153
        %4155 = vmatmul.f32.gmra.mxu0 %v4061
        %v4156 = vpop.f32.mrf.mxu0
        %v4157 = vadd.f32 0.0, %v4156
        %4158 = vmatmul.f32.gmra.mxu0 %v4063
        %v4159 = vpop.f32.mrf.mxu0
        %v4160 = vadd.f32 0.0, %v4159
        %4161 = vmatmul.f32.gmra.mxu0 %v4065
        %v4162 = vpop.f32.mrf.mxu0
        %v4163 = vadd.f32 0.0, %v4162
        %4164 = vmatmul.f32.gmra.mxu0 %v4067
        %v4165 = vpop.f32.mrf.mxu0
        %v4166 = vadd.f32 0.0, %v4165
        %4167 = vmatmul.f32.gmra.mxu0 %v4069
        %v4168 = vpop.f32.mrf.mxu0
        %v4169 = vadd.f32 0.0, %v4168
        %4170 = vmatmul.f32.gmra.mxu0 %v4071
        %v4171 = vpop.f32.mrf.mxu0
        %v4172 = vadd.f32 0.0, %v4171
        %4173 = vmatmul.f32.gmra.mxu0 %v4073
        %v4174 = vpop.f32.mrf.mxu0
        %v4175 = vadd.f32 0.0, %v4174
        %4176 = vmatmul.f32.gmra.mxu0 %v4075
        %v4177 = vpop.f32.mrf.mxu0
        %v4178 = vadd.f32 0.0, %v4177
        %4179 = vmatmul.f32.gmra.mxu0 %v4077
        %v4180 = vpop.f32.mrf.mxu0
        %v4181 = vadd.f32 0.0, %v4180
        %4182 = vmatmul.f32.gmra.mxu0 %v4079
        %v4183 = vpop.f32.mrf.mxu0
        %v4184 = vadd.f32 0.0, %v4183
        %4185 = vmatmul.f32.gmra.mxu0 %v4081
        %v4186 = vpop.f32.mrf.mxu0
        %v4187 = vadd.f32 0.0, %v4186
        %4188 = vmatmul.f32.gmra.mxu0 %v4083
        %v4189 = vpop.f32.mrf.mxu0
        %v4190 = vadd.f32 0.0, %v4189
        %4191 = vmatmul.f32.gmra.mxu0 %v4085
        %v4192 = vpop.f32.mrf.mxu0
        %v4193 = vadd.f32 0.0, %v4192
        %4194 = vmatmul.f32.gmra.mxu0 %v4087
        %v4195 = vpop.f32.mrf.mxu0
        %v4196 = vadd.f32 0.0, %v4195
        %4197 = vmatmul.f32.gmra.mxu0 %v4089
        %v4198 = vpop.f32.mrf.mxu0
        %v4199 = vadd.f32 0.0, %v4198
        %4200 = vmatmul.f32.gmra.mxu0 %v4091
        %v4201 = vpop.f32.mrf.mxu0
        %v4202 = vadd.f32 0.0, %v4201
        %4203 = vmatmul.f32.gmra.mxu0 %v4093
        %v4204 = vpop.f32.mrf.mxu0
        %v4205 = vadd.f32 0.0, %v4204
        %4206 = vmatmul.f32.gmra.mxu0 %v4095
        %v4207 = vpop.f32.mrf.mxu0
        %v4208 = vadd.f32 0.0, %v4207
        %4209 = vmatmul.f32.gmra.mxu0 %v4097
        %v4210 = vpop.f32.mrf.mxu0
        %v4211 = vadd.f32 0.0, %v4210
        %4212 = vmatmul.f32.gmra.mxu0 %v4099
        %v4213 = vpop.f32.mrf.mxu0
        %v4214 = vadd.f32 0.0, %v4213
        %4215 = vdwg.mxu0
        %v4216 = vadd.f32 %v3933, %v4121
        %v4217 = vadd.f32 %v3934, %v4124
        %v4218 = vadd.f32 %v3935, %v4127
        %v4219 = vadd.f32 %v3936, %v4130
        %v4220 = vadd.f32 %v3937, %v4133
        %v4221 = vadd.f32 %v3938, %v4136
        %v4222 = vadd.f32 %v3939, %v4139
        %v4223 = vadd.f32 %v3940, %v4142
        %v4224 = vadd.f32 %v3941, %v4145
        %v4225 = vadd.f32 %v3942, %v4148
        %v4226 = vadd.f32 %v3943, %v4151
        %v4227 = vadd.f32 %v3944, %v4154
        %v4228 = vadd.f32 %v3945, %v4157
        %v4229 = vadd.f32 %v3946, %v4160
        %v4230 = vadd.f32 %v3947, %v4163
        %v4231 = vadd.f32 %v3948, %v4166
        %v4232 = vadd.f32 %v3949, %v4169
        %v4233 = vadd.f32 %v3950, %v4172
        %v4234 = vadd.f32 %v3951, %v4175
        %v4235 = vadd.f32 %v3952, %v4178
        %v4236 = vadd.f32 %v3953, %v4181
        %v4237 = vadd.f32 %v3954, %v4184
        %v4238 = vadd.f32 %v3955, %v4187
        %v4239 = vadd.f32 %v3956, %v4190
        %v4240 = vadd.f32 %v3957, %v4193
        %v4241 = vadd.f32 %v3958, %v4196
        %v4242 = vadd.f32 %v3959, %v4199
        %v4243 = vadd.f32 %v3960, %v4202
        %v4244 = vadd.f32 %v3961, %v4205
        %v4245 = vadd.f32 %v3962, %v4208
        %v4246 = vadd.f32 %v3963, %v4211
        %v4247 = vadd.f32 %v3964, %v4214
        %v4248 = vrot.slane %v1384, 4
        %v4250 = vsel %vm1700, %v1678, 0
        %v4252 = vsel %vm1700, %v1630, 0
        %v4254 = vsel %vm1781, %v4248, 0
        %4256 = vmatpush.msra.mxu0 0.0
        %4257 = vmatpush.msra.mxu0 0.0
        %4258 = vmatpush.msra.mxu0 0.0
        %4259 = vmatpush.msra.mxu0 0.0
        %4260 = vmatpush.msra.mxu0 0.0
        %4261 = vmatpush.msra.mxu0 0.0
        %4262 = vmatpush.msra.mxu0 0.0
        %4263 = vmatpush.msra.mxu0 0.0
        %4264 = vmatpush.msra.mxu0 0.0
        %4265 = vmatpush.msra.mxu0 0.0
        %4266 = vmatpush.msra.mxu0 0.0
        %4267 = vmatpush.msra.mxu0 0.0
        %4268 = vmatpush.msra.mxu0 0.0
        %4269 = vmatpush.msra.mxu0 0.0
        %4270 = vmatpush.msra.mxu0 0.0
        %4271 = vmatpush.msra.mxu0 %v4254
        %4272 = vmatmul.f32.gmra.mxu0 %v3446
        %v4273 = vpop.f32.mrf.mxu0
        %v4274 = vadd.f32 0.0, %v4273
        %4275 = vmatmul.f32.gmra.mxu0 %v3448
        %v4276 = vpop.f32.mrf.mxu0
        %v4277 = vadd.f32 0.0, %v4276
        %4278 = vmatmul.f32.gmra.mxu0 %v3451
        %v4279 = vpop.f32.mrf.mxu0
        %v4280 = vadd.f32 0.0, %v4279
        %4281 = vmatmul.f32.gmra.mxu0 %v3453
        %v4282 = vpop.f32.mrf.mxu0
        %v4283 = vadd.f32 0.0, %v4282
        %4284 = vmatmul.f32.gmra.mxu0 %v3456
        %v4285 = vpop.f32.mrf.mxu0
        %v4286 = vadd.f32 0.0, %v4285
        %4287 = vmatmul.f32.gmra.mxu0 %v3458
        %v4288 = vpop.f32.mrf.mxu0
        %v4289 = vadd.f32 0.0, %v4288
        %4290 = vmatmul.f32.gmra.mxu0 %v3461
        %v4291 = vpop.f32.mrf.mxu0
        %v4292 = vadd.f32 0.0, %v4291
        %4293 = vmatmul.f32.gmra.mxu0 %v3463
        %v4294 = vpop.f32.mrf.mxu0
        %v4295 = vadd.f32 0.0, %v4294
        %4296 = vmatmul.f32.gmra.mxu0 %v3466
        %v4297 = vpop.f32.mrf.mxu0
        %v4298 = vadd.f32 0.0, %v4297
        %4299 = vmatmul.f32.gmra.mxu0 %v3468
        %v4300 = vpop.f32.mrf.mxu0
        %v4301 = vadd.f32 0.0, %v4300
        %4302 = vmatmul.f32.gmra.mxu0 %v3471
        %v4303 = vpop.f32.mrf.mxu0
        %v4304 = vadd.f32 0.0, %v4303
        %4305 = vmatmul.f32.gmra.mxu0 %v3473
        %v4306 = vpop.f32.mrf.mxu0
        %v4307 = vadd.f32 0.0, %v4306
        %4308 = vmatmul.f32.gmra.mxu0 %v3476
        %v4309 = vpop.f32.mrf.mxu0
        %v4310 = vadd.f32 0.0, %v4309
        %4311 = vmatmul.f32.gmra.mxu0 %v3478
        %v4312 = vpop.f32.mrf.mxu0
        %v4313 = vadd.f32 0.0, %v4312
        %4314 = vmatmul.f32.gmra.mxu0 %v3481
        %v4315 = vpop.f32.mrf.mxu0
        %v4316 = vadd.f32 0.0, %v4315
        %4317 = vmatmul.f32.gmra.mxu0 %v3483
        %v4318 = vpop.f32.mrf.mxu0
        %v4319 = vadd.f32 0.0, %v4318
        %4320 = vmatmul.f32.gmra.mxu0 %v3486
        %v4321 = vpop.f32.mrf.mxu0
        %v4322 = vadd.f32 0.0, %v4321
        %4323 = vmatmul.f32.gmra.mxu0 %v3488
        %v4324 = vpop.f32.mrf.mxu0
        %v4325 = vadd.f32 0.0, %v4324
        %4326 = vmatmul.f32.gmra.mxu0 %v3491
        %v4327 = vpop.f32.mrf.mxu0
        %v4328 = vadd.f32 0.0, %v4327
        %4329 = vmatmul.f32.gmra.mxu0 %v3493
        %v4330 = vpop.f32.mrf.mxu0
        %v4331 = vadd.f32 0.0, %v4330
        %4332 = vmatmul.f32.gmra.mxu0 %v3496
        %v4333 = vpop.f32.mrf.mxu0
        %v4334 = vadd.f32 0.0, %v4333
        %4335 = vmatmul.f32.gmra.mxu0 %v3498
        %v4336 = vpop.f32.mrf.mxu0
        %v4337 = vadd.f32 0.0, %v4336
        %4338 = vmatmul.f32.gmra.mxu0 %v3501
        %v4339 = vpop.f32.mrf.mxu0
        %v4340 = vadd.f32 0.0, %v4339
        %4341 = vmatmul.f32.gmra.mxu0 %v3503
        %v4342 = vpop.f32.mrf.mxu0
        %v4343 = vadd.f32 0.0, %v4342
        %4344 = vmatmul.f32.gmra.mxu0 %v3506
        %v4345 = vpop.f32.mrf.mxu0
        %v4346 = vadd.f32 0.0, %v4345
        %4347 = vmatmul.f32.gmra.mxu0 %v3508
        %v4348 = vpop.f32.mrf.mxu0
        %v4349 = vadd.f32 0.0, %v4348
        %4350 = vmatmul.f32.gmra.mxu0 %v3511
        %v4351 = vpop.f32.mrf.mxu0
        %v4352 = vadd.f32 0.0, %v4351
        %4353 = vmatmul.f32.gmra.mxu0 %v3513
        %v4354 = vpop.f32.mrf.mxu0
        %v4355 = vadd.f32 0.0, %v4354
        %4356 = vmatmul.f32.gmra.mxu0 %v3516
        %v4357 = vpop.f32.mrf.mxu0
        %v4358 = vadd.f32 0.0, %v4357
        %4359 = vmatmul.f32.gmra.mxu0 %v3518
        %v4360 = vpop.f32.mrf.mxu0
        %v4361 = vadd.f32 0.0, %v4360
        %4362 = vmatmul.f32.gmra.mxu0 %v4250
        %v4363 = vpop.f32.mrf.mxu0
        %v4364 = vadd.f32 0.0, %v4363
        %4365 = vmatmul.f32.gmra.mxu0 %v4252
        %v4366 = vpop.f32.mrf.mxu0
        %v4367 = vadd.f32 0.0, %v4366
        %4368 = vdwg.mxu0
        %v4369 = vadd.f32 %v4216, %v4274
        %v4370 = vadd.f32 %v4217, %v4277
        %v4371 = vadd.f32 %v4218, %v4280
        %v4372 = vadd.f32 %v4219, %v4283
        %v4373 = vadd.f32 %v4220, %v4286
        %v4374 = vadd.f32 %v4221, %v4289
        %v4375 = vadd.f32 %v4222, %v4292
        %v4376 = vadd.f32 %v4223, %v4295
        %v4377 = vadd.f32 %v4224, %v4298
        %v4378 = vadd.f32 %v4225, %v4301
        %v4379 = vadd.f32 %v4226, %v4304
        %v4380 = vadd.f32 %v4227, %v4307
        %v4381 = vadd.f32 %v4228, %v4310
        %v4382 = vadd.f32 %v4229, %v4313
        %v4383 = vadd.f32 %v4230, %v4316
        %v4384 = vadd.f32 %v4231, %v4319
        %v4385 = vadd.f32 %v4232, %v4322
        %v4386 = vadd.f32 %v4233, %v4325
        %v4387 = vadd.f32 %v4234, %v4328
        %v4388 = vadd.f32 %v4235, %v4331
        %v4389 = vadd.f32 %v4236, %v4334
        %v4390 = vadd.f32 %v4237, %v4337
        %v4391 = vadd.f32 %v4238, %v4340
        %v4392 = vadd.f32 %v4239, %v4343
        %v4393 = vadd.f32 %v4240, %v4346
        %v4394 = vadd.f32 %v4241, %v4349
        %v4395 = vadd.f32 %v4242, %v4352
        %v4396 = vadd.f32 %v4243, %v4355
        %v4397 = vadd.f32 %v4244, %v4358
        %v4398 = vadd.f32 %v4245, %v4361
        %v4399 = vadd.f32 %v4246, %v4364
        %v4400 = vadd.f32 %v4247, %v4367
        %v4402 = vrot.slane %v1678, 1
        %v4403 = vrot.slane %v1630, 1
        %v4404 = vsel %vm1946, %v4402, %v4403
        %v4405 = vrot.slane %v1694, 1
        %v4406 = vsel %vm1946, %v4403, %v4405
        %v4407 = vrot.slane %v1385, 4
        %v4408 = vsel %vm1700, %v4404, 0
        %v4410 = vsel %vm1700, %v4406, 0
        %v4412 = vsel %vm1781, %v4407, 0
        %4414 = vmatpush.msra.mxu0 0.0
        %4415 = vmatpush.msra.mxu0 0.0
        %4416 = vmatpush.msra.mxu0 0.0
        %4417 = vmatpush.msra.mxu0 0.0
        %4418 = vmatpush.msra.mxu0 0.0
        %4419 = vmatpush.msra.mxu0 0.0
        %4420 = vmatpush.msra.mxu0 0.0
        %4421 = vmatpush.msra.mxu0 0.0
        %4422 = vmatpush.msra.mxu0 0.0
        %4423 = vmatpush.msra.mxu0 0.0
        %4424 = vmatpush.msra.mxu0 0.0
        %4425 = vmatpush.msra.mxu0 0.0
        %4426 = vmatpush.msra.mxu0 0.0
        %4427 = vmatpush.msra.mxu0 0.0
        %4428 = vmatpush.msra.mxu0 0.0
        %4429 = vmatpush.msra.mxu0 %v4412
        %4430 = vmatmul.f32.gmra.mxu0 %v3758
        %v4431 = vpop.f32.mrf.mxu0
        %v4432 = vadd.f32 0.0, %v4431
        %4433 = vmatmul.f32.gmra.mxu0 %v3760
        %v4434 = vpop.f32.mrf.mxu0
        %v4435 = vadd.f32 0.0, %v4434
        %4436 = vmatmul.f32.gmra.mxu0 %v3762
        %v4437 = vpop.f32.mrf.mxu0
        %v4438 = vadd.f32 0.0, %v4437
        %4439 = vmatmul.f32.gmra.mxu0 %v3764
        %v4440 = vpop.f32.mrf.mxu0
        %v4441 = vadd.f32 0.0, %v4440
        %4442 = vmatmul.f32.gmra.mxu0 %v3766
        %v4443 = vpop.f32.mrf.mxu0
        %v4444 = vadd.f32 0.0, %v4443
        %4445 = vmatmul.f32.gmra.mxu0 %v3768
        %v4446 = vpop.f32.mrf.mxu0
        %v4447 = vadd.f32 0.0, %v4446
        %4448 = vmatmul.f32.gmra.mxu0 %v3770
        %v4449 = vpop.f32.mrf.mxu0
        %v4450 = vadd.f32 0.0, %v4449
        %4451 = vmatmul.f32.gmra.mxu0 %v3772
        %v4452 = vpop.f32.mrf.mxu0
        %v4453 = vadd.f32 0.0, %v4452
        %4454 = vmatmul.f32.gmra.mxu0 %v3774
        %v4455 = vpop.f32.mrf.mxu0
        %v4456 = vadd.f32 0.0, %v4455
        %4457 = vmatmul.f32.gmra.mxu0 %v3776
        %v4458 = vpop.f32.mrf.mxu0
        %v4459 = vadd.f32 0.0, %v4458
        %4460 = vmatmul.f32.gmra.mxu0 %v3778
        %v4461 = vpop.f32.mrf.mxu0
        %v4462 = vadd.f32 0.0, %v4461
        %4463 = vmatmul.f32.gmra.mxu0 %v3780
        %v4464 = vpop.f32.mrf.mxu0
        %v4465 = vadd.f32 0.0, %v4464
        %4466 = vmatmul.f32.gmra.mxu0 %v3782
        %v4467 = vpop.f32.mrf.mxu0
        %v4468 = vadd.f32 0.0, %v4467
        %4469 = vmatmul.f32.gmra.mxu0 %v3784
        %v4470 = vpop.f32.mrf.mxu0
        %v4471 = vadd.f32 0.0, %v4470
        %4472 = vmatmul.f32.gmra.mxu0 %v3786
        %v4473 = vpop.f32.mrf.mxu0
        %v4474 = vadd.f32 0.0, %v4473
        %4475 = vmatmul.f32.gmra.mxu0 %v3788
        %v4476 = vpop.f32.mrf.mxu0
        %v4477 = vadd.f32 0.0, %v4476
        %4478 = vmatmul.f32.gmra.mxu0 %v3790
        %v4479 = vpop.f32.mrf.mxu0
        %v4480 = vadd.f32 0.0, %v4479
        %4481 = vmatmul.f32.gmra.mxu0 %v3792
        %v4482 = vpop.f32.mrf.mxu0
        %v4483 = vadd.f32 0.0, %v4482
        %4484 = vmatmul.f32.gmra.mxu0 %v3794
        %v4485 = vpop.f32.mrf.mxu0
        %v4486 = vadd.f32 0.0, %v4485
        %4487 = vmatmul.f32.gmra.mxu0 %v3796
        %v4488 = vpop.f32.mrf.mxu0
        %v4489 = vadd.f32 0.0, %v4488
        %4490 = vmatmul.f32.gmra.mxu0 %v3798
        %v4491 = vpop.f32.mrf.mxu0
        %v4492 = vadd.f32 0.0, %v4491
        %4493 = vmatmul.f32.gmra.mxu0 %v3800
        %v4494 = vpop.f32.mrf.mxu0
        %v4495 = vadd.f32 0.0, %v4494
        %4496 = vmatmul.f32.gmra.mxu0 %v3802
        %v4497 = vpop.f32.mrf.mxu0
        %v4498 = vadd.f32 0.0, %v4497
        %4499 = vmatmul.f32.gmra.mxu0 %v3804
        %v4500 = vpop.f32.mrf.mxu0
        %v4501 = vadd.f32 0.0, %v4500
        %4502 = vmatmul.f32.gmra.mxu0 %v3806
        %v4503 = vpop.f32.mrf.mxu0
        %v4504 = vadd.f32 0.0, %v4503
        %4505 = vmatmul.f32.gmra.mxu0 %v3808
        %v4506 = vpop.f32.mrf.mxu0
        %v4507 = vadd.f32 0.0, %v4506
        %4508 = vmatmul.f32.gmra.mxu0 %v3810
        %v4509 = vpop.f32.mrf.mxu0
        %v4510 = vadd.f32 0.0, %v4509
        %4511 = vmatmul.f32.gmra.mxu0 %v3812
        %v4512 = vpop.f32.mrf.mxu0
        %v4513 = vadd.f32 0.0, %v4512
        %4514 = vmatmul.f32.gmra.mxu0 %v3814
        %v4515 = vpop.f32.mrf.mxu0
        %v4516 = vadd.f32 0.0, %v4515
        %4517 = vmatmul.f32.gmra.mxu0 %v3816
        %v4518 = vpop.f32.mrf.mxu0
        %v4519 = vadd.f32 0.0, %v4518
        %4520 = vmatmul.f32.gmra.mxu0 %v4408
        %v4521 = vpop.f32.mrf.mxu0
        %v4522 = vadd.f32 0.0, %v4521
        %4523 = vmatmul.f32.gmra.mxu0 %v4410
        %v4524 = vpop.f32.mrf.mxu0
        %v4525 = vadd.f32 0.0, %v4524
        %4526 = vdwg.mxu0
        %v4527 = vadd.f32 %v4369, %v4432
        %v4528 = vadd.f32 %v4370, %v4435
        %v4529 = vadd.f32 %v4371, %v4438
        %v4530 = vadd.f32 %v4372, %v4441
        %v4531 = vadd.f32 %v4373, %v4444
        %v4532 = vadd.f32 %v4374, %v4447
        %v4533 = vadd.f32 %v4375, %v4450
        %v4534 = vadd.f32 %v4376, %v4453
        %v4535 = vadd.f32 %v4377, %v4456
        %v4536 = vadd.f32 %v4378, %v4459
        %v4537 = vadd.f32 %v4379, %v4462
        %v4538 = vadd.f32 %v4380, %v4465
        %v4539 = vadd.f32 %v4381, %v4468
        %v4540 = vadd.f32 %v4382, %v4471
        %v4541 = vadd.f32 %v4383, %v4474
        %v4542 = vadd.f32 %v4384, %v4477
        %v4543 = vadd.f32 %v4385, %v4480
        %v4544 = vadd.f32 %v4386, %v4483
        %v4545 = vadd.f32 %v4387, %v4486
        %v4546 = vadd.f32 %v4388, %v4489
        %v4547 = vadd.f32 %v4389, %v4492
        %v4548 = vadd.f32 %v4390, %v4495
        %v4549 = vadd.f32 %v4391, %v4498
        %v4550 = vadd.f32 %v4392, %v4501
        %v4551 = vadd.f32 %v4393, %v4504
        %v4552 = vadd.f32 %v4394, %v4507
        %v4553 = vadd.f32 %v4395, %v4510
        %v4554 = vadd.f32 %v4396, %v4513
        %v4555 = vadd.f32 %v4397, %v4516
        %v4556 = vadd.f32 %v4398, %v4519
        %v4557 = vadd.f32 %v4399, %v4522
        %v4558 = vadd.f32 %v4400, %v4525
        %v4559 = vrot.slane %v1678, 2
        %v4560 = vrot.slane %v1630, 2
        %v4561 = vsel %vm2239, %v4559, %v4560
        %v4562 = vrot.slane %v1694, 2
        %v4563 = vsel %vm2239, %v4560, %v4562
        %v4564 = vrot.slane %v1386, 4
        %v4565 = vsel %vm1700, %v4561, 0
        %v4567 = vsel %vm1700, %v4563, 0
        %v4569 = vsel %vm1781, %v4564, 0
        %4571 = vmatpush.msra.mxu0 0.0
        %4572 = vmatpush.msra.mxu0 0.0
        %4573 = vmatpush.msra.mxu0 0.0
        %4574 = vmatpush.msra.mxu0 0.0
        %4575 = vmatpush.msra.mxu0 0.0
        %4576 = vmatpush.msra.mxu0 0.0
        %4577 = vmatpush.msra.mxu0 0.0
        %4578 = vmatpush.msra.mxu0 0.0
        %4579 = vmatpush.msra.mxu0 0.0
        %4580 = vmatpush.msra.mxu0 0.0
        %4581 = vmatpush.msra.mxu0 0.0
        %4582 = vmatpush.msra.mxu0 0.0
        %4583 = vmatpush.msra.mxu0 0.0
        %4584 = vmatpush.msra.mxu0 0.0
        %4585 = vmatpush.msra.mxu0 0.0
        %4586 = vmatpush.msra.mxu0 %v4569
        %4587 = vmatmul.f32.gmra.mxu0 %v4041
        %v4588 = vpop.f32.mrf.mxu0
        %v4589 = vadd.f32 0.0, %v4588
        %4590 = vmatmul.f32.gmra.mxu0 %v4043
        %v4591 = vpop.f32.mrf.mxu0
        %v4592 = vadd.f32 0.0, %v4591
        %4593 = vmatmul.f32.gmra.mxu0 %v4045
        %v4594 = vpop.f32.mrf.mxu0
        %v4595 = vadd.f32 0.0, %v4594
        %4596 = vmatmul.f32.gmra.mxu0 %v4047
        %v4597 = vpop.f32.mrf.mxu0
        %v4598 = vadd.f32 0.0, %v4597
        %4599 = vmatmul.f32.gmra.mxu0 %v4049
        %v4600 = vpop.f32.mrf.mxu0
        %v4601 = vadd.f32 0.0, %v4600
        %4602 = vmatmul.f32.gmra.mxu0 %v4051
        %v4603 = vpop.f32.mrf.mxu0
        %v4604 = vadd.f32 0.0, %v4603
        %4605 = vmatmul.f32.gmra.mxu0 %v4053
        %v4606 = vpop.f32.mrf.mxu0
        %v4607 = vadd.f32 0.0, %v4606
        %4608 = vmatmul.f32.gmra.mxu0 %v4055
        %v4609 = vpop.f32.mrf.mxu0
        %v4610 = vadd.f32 0.0, %v4609
        %4611 = vmatmul.f32.gmra.mxu0 %v4057
        %v4612 = vpop.f32.mrf.mxu0
        %v4613 = vadd.f32 0.0, %v4612
        %4614 = vmatmul.f32.gmra.mxu0 %v4059
        %v4615 = vpop.f32.mrf.mxu0
        %v4616 = vadd.f32 0.0, %v4615
        %4617 = vmatmul.f32.gmra.mxu0 %v4061
        %v4618 = vpop.f32.mrf.mxu0
        %v4619 = vadd.f32 0.0, %v4618
        %4620 = vmatmul.f32.gmra.mxu0 %v4063
        %v4621 = vpop.f32.mrf.mxu0
        %v4622 = vadd.f32 0.0, %v4621
        %4623 = vmatmul.f32.gmra.mxu0 %v4065
        %v4624 = vpop.f32.mrf.mxu0
        %v4625 = vadd.f32 0.0, %v4624
        %4626 = vmatmul.f32.gmra.mxu0 %v4067
        %v4627 = vpop.f32.mrf.mxu0
        %v4628 = vadd.f32 0.0, %v4627
        %4629 = vmatmul.f32.gmra.mxu0 %v4069
        %v4630 = vpop.f32.mrf.mxu0
        %v4631 = vadd.f32 0.0, %v4630
        %4632 = vmatmul.f32.gmra.mxu0 %v4071
        %v4633 = vpop.f32.mrf.mxu0
        %v4634 = vadd.f32 0.0, %v4633
        %4635 = vmatmul.f32.gmra.mxu0 %v4073
        %v4636 = vpop.f32.mrf.mxu0
        %v4637 = vadd.f32 0.0, %v4636
        %4638 = vmatmul.f32.gmra.mxu0 %v4075
        %v4639 = vpop.f32.mrf.mxu0
        %v4640 = vadd.f32 0.0, %v4639
        %4641 = vmatmul.f32.gmra.mxu0 %v4077
        %v4642 = vpop.f32.mrf.mxu0
        %v4643 = vadd.f32 0.0, %v4642
        %4644 = vmatmul.f32.gmra.mxu0 %v4079
        %v4645 = vpop.f32.mrf.mxu0
        %v4646 = vadd.f32 0.0, %v4645
        %4647 = vmatmul.f32.gmra.mxu0 %v4081
        %v4648 = vpop.f32.mrf.mxu0
        %v4649 = vadd.f32 0.0, %v4648
        %4650 = vmatmul.f32.gmra.mxu0 %v4083
        %v4651 = vpop.f32.mrf.mxu0
        %v4652 = vadd.f32 0.0, %v4651
        %4653 = vmatmul.f32.gmra.mxu0 %v4085
        %v4654 = vpop.f32.mrf.mxu0
        %v4655 = vadd.f32 0.0, %v4654
        %4656 = vmatmul.f32.gmra.mxu0 %v4087
        %v4657 = vpop.f32.mrf.mxu0
        %v4658 = vadd.f32 0.0, %v4657
        %4659 = vmatmul.f32.gmra.mxu0 %v4089
        %v4660 = vpop.f32.mrf.mxu0
        %v4661 = vadd.f32 0.0, %v4660
        %4662 = vmatmul.f32.gmra.mxu0 %v4091
        %v4663 = vpop.f32.mrf.mxu0
        %v4664 = vadd.f32 0.0, %v4663
        %4665 = vmatmul.f32.gmra.mxu0 %v4093
        %v4666 = vpop.f32.mrf.mxu0
        %v4667 = vadd.f32 0.0, %v4666
        %4668 = vmatmul.f32.gmra.mxu0 %v4095
        %v4669 = vpop.f32.mrf.mxu0
        %v4670 = vadd.f32 0.0, %v4669
        %4671 = vmatmul.f32.gmra.mxu0 %v4097
        %v4672 = vpop.f32.mrf.mxu0
        %v4673 = vadd.f32 0.0, %v4672
        %4674 = vmatmul.f32.gmra.mxu0 %v4099
        %v4675 = vpop.f32.mrf.mxu0
        %v4676 = vadd.f32 0.0, %v4675
        %4677 = vmatmul.f32.gmra.mxu0 %v4565
        %v4678 = vpop.f32.mrf.mxu0
        %v4679 = vadd.f32 0.0, %v4678
        %4680 = vmatmul.f32.gmra.mxu0 %v4567
        %v4681 = vpop.f32.mrf.mxu0
        %v4682 = vadd.f32 0.0, %v4681
        %4683 = vdwg.mxu0
        %v4684 = vadd.f32 %v4527, %v4589
        %v4685 = vadd.f32 %v4528, %v4592
        %v4686 = vadd.f32 %v4529, %v4595
        %v4687 = vadd.f32 %v4530, %v4598
        %v4688 = vadd.f32 %v4531, %v4601
        %v4689 = vadd.f32 %v4532, %v4604
        %v4690 = vadd.f32 %v4533, %v4607
        %v4691 = vadd.f32 %v4534, %v4610
        %v4692 = vadd.f32 %v4535, %v4613
        %v4693 = vadd.f32 %v4536, %v4616
        %v4694 = vadd.f32 %v4537, %v4619
        %v4695 = vadd.f32 %v4538, %v4622
        %v4696 = vadd.f32 %v4539, %v4625
        %v4697 = vadd.f32 %v4540, %v4628
        %v4698 = vadd.f32 %v4541, %v4631
        %v4699 = vadd.f32 %v4542, %v4634
        %v4700 = vadd.f32 %v4543, %v4637
        %v4701 = vadd.f32 %v4544, %v4640
        %v4702 = vadd.f32 %v4545, %v4643
        %v4703 = vadd.f32 %v4546, %v4646
        %v4704 = vadd.f32 %v4547, %v4649
        %v4705 = vadd.f32 %v4548, %v4652
        %v4706 = vadd.f32 %v4549, %v4655
        %v4707 = vadd.f32 %v4550, %v4658
        %v4708 = vadd.f32 %v4551, %v4661
        %v4709 = vadd.f32 %v4552, %v4664
        %v4710 = vadd.f32 %v4553, %v4667
        %v4711 = vadd.f32 %v4554, %v4670
        %v4712 = vadd.f32 %v4555, %v4673
        %v4713 = vadd.f32 %v4556, %v4676
        %v4714 = vadd.f32 %v4557, %v4679
        %v4715 = vadd.f32 %v4558, %v4682
        %v4716 = vrot.slane %v1387, 4
        %v4717 = vsel %vm1781, %v4716, 0
        %4719 = vmatpush.msra.mxu0 0.0
        %4720 = vmatpush.msra.mxu0 0.0
        %4721 = vmatpush.msra.mxu0 0.0
        %4722 = vmatpush.msra.mxu0 0.0
        %4723 = vmatpush.msra.mxu0 0.0
        %4724 = vmatpush.msra.mxu0 0.0
        %4725 = vmatpush.msra.mxu0 0.0
        %4726 = vmatpush.msra.mxu0 0.0
        %4727 = vmatpush.msra.mxu0 0.0
        %4728 = vmatpush.msra.mxu0 0.0
        %4729 = vmatpush.msra.mxu0 0.0
        %4730 = vmatpush.msra.mxu0 0.0
        %4731 = vmatpush.msra.mxu0 0.0
        %4732 = vmatpush.msra.mxu0 0.0
        %4733 = vmatpush.msra.mxu0 0.0
        %4734 = vmatpush.msra.mxu0 %v4717
        %4735 = vmatmul.f32.gmra.mxu0 %v3451
        %v4736 = vpop.f32.mrf.mxu0
        %v4737 = vadd.f32 0.0, %v4736
        %4738 = vmatmul.f32.gmra.mxu0 %v3453
        %v4739 = vpop.f32.mrf.mxu0
        %v4740 = vadd.f32 0.0, %v4739
        %4741 = vmatmul.f32.gmra.mxu0 %v3456
        %v4742 = vpop.f32.mrf.mxu0
        %v4743 = vadd.f32 0.0, %v4742
        %4744 = vmatmul.f32.gmra.mxu0 %v3458
        %v4745 = vpop.f32.mrf.mxu0
        %v4746 = vadd.f32 0.0, %v4745
        %4747 = vmatmul.f32.gmra.mxu0 %v3461
        %v4748 = vpop.f32.mrf.mxu0
        %v4749 = vadd.f32 0.0, %v4748
        %4750 = vmatmul.f32.gmra.mxu0 %v3463
        %v4751 = vpop.f32.mrf.mxu0
        %v4752 = vadd.f32 0.0, %v4751
        %4753 = vmatmul.f32.gmra.mxu0 %v3466
        %v4754 = vpop.f32.mrf.mxu0
        %v4755 = vadd.f32 0.0, %v4754
        %4756 = vmatmul.f32.gmra.mxu0 %v3468
        %v4757 = vpop.f32.mrf.mxu0
        %v4758 = vadd.f32 0.0, %v4757
        %4759 = vmatmul.f32.gmra.mxu0 %v3471
        %v4760 = vpop.f32.mrf.mxu0
        %v4761 = vadd.f32 0.0, %v4760
        %4762 = vmatmul.f32.gmra.mxu0 %v3473
        %v4763 = vpop.f32.mrf.mxu0
        %v4764 = vadd.f32 0.0, %v4763
        %4765 = vmatmul.f32.gmra.mxu0 %v3476
        %v4766 = vpop.f32.mrf.mxu0
        %v4767 = vadd.f32 0.0, %v4766
        %4768 = vmatmul.f32.gmra.mxu0 %v3478
        %v4769 = vpop.f32.mrf.mxu0
        %v4770 = vadd.f32 0.0, %v4769
        %4771 = vmatmul.f32.gmra.mxu0 %v3481
        %v4772 = vpop.f32.mrf.mxu0
        %v4773 = vadd.f32 0.0, %v4772
        %4774 = vmatmul.f32.gmra.mxu0 %v3483
        %v4775 = vpop.f32.mrf.mxu0
        %v4776 = vadd.f32 0.0, %v4775
        %4777 = vmatmul.f32.gmra.mxu0 %v3486
        %v4778 = vpop.f32.mrf.mxu0
        %v4779 = vadd.f32 0.0, %v4778
        %4780 = vmatmul.f32.gmra.mxu0 %v3488
        %v4781 = vpop.f32.mrf.mxu0
        %v4782 = vadd.f32 0.0, %v4781
        %4783 = vmatmul.f32.gmra.mxu0 %v3491
        %v4784 = vpop.f32.mrf.mxu0
        %v4785 = vadd.f32 0.0, %v4784
        %4786 = vmatmul.f32.gmra.mxu0 %v3493
        %v4787 = vpop.f32.mrf.mxu0
        %v4788 = vadd.f32 0.0, %v4787
        %4789 = vmatmul.f32.gmra.mxu0 %v3496
        %v4790 = vpop.f32.mrf.mxu0
        %v4791 = vadd.f32 0.0, %v4790
        %4792 = vmatmul.f32.gmra.mxu0 %v3498
        %v4793 = vpop.f32.mrf.mxu0
        %v4794 = vadd.f32 0.0, %v4793
        %4795 = vmatmul.f32.gmra.mxu0 %v3501
        %v4796 = vpop.f32.mrf.mxu0
        %v4797 = vadd.f32 0.0, %v4796
        %4798 = vmatmul.f32.gmra.mxu0 %v3503
        %v4799 = vpop.f32.mrf.mxu0
        %v4800 = vadd.f32 0.0, %v4799
        %4801 = vmatmul.f32.gmra.mxu0 %v3506
        %v4802 = vpop.f32.mrf.mxu0
        %v4803 = vadd.f32 0.0, %v4802
        %4804 = vmatmul.f32.gmra.mxu0 %v3508
        %v4805 = vpop.f32.mrf.mxu0
        %v4806 = vadd.f32 0.0, %v4805
        %4807 = vmatmul.f32.gmra.mxu0 %v3511
        %v4808 = vpop.f32.mrf.mxu0
        %v4809 = vadd.f32 0.0, %v4808
        %4810 = vmatmul.f32.gmra.mxu0 %v3513
        %v4811 = vpop.f32.mrf.mxu0
        %v4812 = vadd.f32 0.0, %v4811
        %4813 = vmatmul.f32.gmra.mxu0 %v3516
        %v4814 = vpop.f32.mrf.mxu0
        %v4815 = vadd.f32 0.0, %v4814
        %4816 = vmatmul.f32.gmra.mxu0 %v3518
        %v4817 = vpop.f32.mrf.mxu0
        %v4818 = vadd.f32 0.0, %v4817
        %4819 = vmatmul.f32.gmra.mxu0 %v4250
        %v4820 = vpop.f32.mrf.mxu0
        %v4821 = vadd.f32 0.0, %v4820
        %4822 = vmatmul.f32.gmra.mxu0 %v4252
        %v4823 = vpop.f32.mrf.mxu0
        %v4824 = vadd.f32 0.0, %v4823
        %4825 = vmatmul.f32.gmra.mxu0 %v1702
        %v4826 = vpop.f32.mrf.mxu0
        %v4827 = vadd.f32 0.0, %v4826
        %4828 = vmatmul.f32.gmra.mxu0 %v1704
        %v4829 = vpop.f32.mrf.mxu0
        %v4830 = vadd.f32 0.0, %v4829
        %4831 = vdwg.mxu0
        %v4832 = vadd.f32 %v4684, %v4737
        %v4833 = vadd.f32 %v4685, %v4740
        %v4834 = vadd.f32 %v4686, %v4743
        %v4835 = vadd.f32 %v4687, %v4746
        %v4836 = vadd.f32 %v4688, %v4749
        %v4837 = vadd.f32 %v4689, %v4752
        %v4838 = vadd.f32 %v4690, %v4755
        %v4839 = vadd.f32 %v4691, %v4758
        %v4840 = vadd.f32 %v4692, %v4761
        %v4841 = vadd.f32 %v4693, %v4764
        %v4842 = vadd.f32 %v4694, %v4767
        %v4843 = vadd.f32 %v4695, %v4770
        %v4844 = vadd.f32 %v4696, %v4773
        %v4845 = vadd.f32 %v4697, %v4776
        %v4846 = vadd.f32 %v4698, %v4779
        %v4847 = vadd.f32 %v4699, %v4782
        %v4848 = vadd.f32 %v4700, %v4785
        %v4849 = vadd.f32 %v4701, %v4788
        %v4850 = vadd.f32 %v4702, %v4791
        %v4851 = vadd.f32 %v4703, %v4794
        %v4852 = vadd.f32 %v4704, %v4797
        %v4853 = vadd.f32 %v4705, %v4800
        %v4854 = vadd.f32 %v4706, %v4803
        %v4855 = vadd.f32 %v4707, %v4806
        %v4856 = vadd.f32 %v4708, %v4809
        %v4857 = vadd.f32 %v4709, %v4812
        %v4858 = vadd.f32 %v4710, %v4815
        %v4859 = vadd.f32 %v4711, %v4818
        %v4860 = vadd.f32 %v4712, %v4821
        %v4861 = vadd.f32 %v4713, %v4824
        %v4862 = vadd.f32 %v4714, %v4827
        %v4863 = vadd.f32 %v4715, %v4830
        %v4864 = vrot.slane %v1388, 4
        %v4865 = vsel %vm1781, %v4864, 0
        %4867 = vmatpush.msra.mxu0 0.0
        %4868 = vmatpush.msra.mxu0 0.0
        %4869 = vmatpush.msra.mxu0 0.0
        %4870 = vmatpush.msra.mxu0 0.0
        %4871 = vmatpush.msra.mxu0 0.0
        %4872 = vmatpush.msra.mxu0 0.0
        %4873 = vmatpush.msra.mxu0 0.0
        %4874 = vmatpush.msra.mxu0 0.0
        %4875 = vmatpush.msra.mxu0 0.0
        %4876 = vmatpush.msra.mxu0 0.0
        %4877 = vmatpush.msra.mxu0 0.0
        %4878 = vmatpush.msra.mxu0 0.0
        %4879 = vmatpush.msra.mxu0 0.0
        %4880 = vmatpush.msra.mxu0 0.0
        %4881 = vmatpush.msra.mxu0 0.0
        %4882 = vmatpush.msra.mxu0 %v4865
        %4883 = vmatmul.f32.gmra.mxu0 %v3762
        %v4884 = vpop.f32.mrf.mxu0
        %v4885 = vadd.f32 0.0, %v4884
        %4886 = vmatmul.f32.gmra.mxu0 %v3764
        %v4887 = vpop.f32.mrf.mxu0
        %v4888 = vadd.f32 0.0, %v4887
        %4889 = vmatmul.f32.gmra.mxu0 %v3766
        %v4890 = vpop.f32.mrf.mxu0
        %v4891 = vadd.f32 0.0, %v4890
        %4892 = vmatmul.f32.gmra.mxu0 %v3768
        %v4893 = vpop.f32.mrf.mxu0
        %v4894 = vadd.f32 0.0, %v4893
        %4895 = vmatmul.f32.gmra.mxu0 %v3770
        %v4896 = vpop.f32.mrf.mxu0
        %v4897 = vadd.f32 0.0, %v4896
        %4898 = vmatmul.f32.gmra.mxu0 %v3772
        %v4899 = vpop.f32.mrf.mxu0
        %v4900 = vadd.f32 0.0, %v4899
        %4901 = vmatmul.f32.gmra.mxu0 %v3774
        %v4902 = vpop.f32.mrf.mxu0
        %v4903 = vadd.f32 0.0, %v4902
        %4904 = vmatmul.f32.gmra.mxu0 %v3776
        %v4905 = vpop.f32.mrf.mxu0
        %v4906 = vadd.f32 0.0, %v4905
        %4907 = vmatmul.f32.gmra.mxu0 %v3778
        %v4908 = vpop.f32.mrf.mxu0
        %v4909 = vadd.f32 0.0, %v4908
        %4910 = vmatmul.f32.gmra.mxu0 %v3780
        %v4911 = vpop.f32.mrf.mxu0
        %v4912 = vadd.f32 0.0, %v4911
        %4913 = vmatmul.f32.gmra.mxu0 %v3782
        %v4914 = vpop.f32.mrf.mxu0
        %v4915 = vadd.f32 0.0, %v4914
        %4916 = vmatmul.f32.gmra.mxu0 %v3784
        %v4917 = vpop.f32.mrf.mxu0
        %v4918 = vadd.f32 0.0, %v4917
        %4919 = vmatmul.f32.gmra.mxu0 %v3786
        %v4920 = vpop.f32.mrf.mxu0
        %v4921 = vadd.f32 0.0, %v4920
        %4922 = vmatmul.f32.gmra.mxu0 %v3788
        %v4923 = vpop.f32.mrf.mxu0
        %v4924 = vadd.f32 0.0, %v4923
        %4925 = vmatmul.f32.gmra.mxu0 %v3790
        %v4926 = vpop.f32.mrf.mxu0
        %v4927 = vadd.f32 0.0, %v4926
        %4928 = vmatmul.f32.gmra.mxu0 %v3792
        %v4929 = vpop.f32.mrf.mxu0
        %v4930 = vadd.f32 0.0, %v4929
        %4931 = vmatmul.f32.gmra.mxu0 %v3794
        %v4932 = vpop.f32.mrf.mxu0
        %v4933 = vadd.f32 0.0, %v4932
        %4934 = vmatmul.f32.gmra.mxu0 %v3796
        %v4935 = vpop.f32.mrf.mxu0
        %v4936 = vadd.f32 0.0, %v4935
        %4937 = vmatmul.f32.gmra.mxu0 %v3798
        %v4938 = vpop.f32.mrf.mxu0
        %v4939 = vadd.f32 0.0, %v4938
        %4940 = vmatmul.f32.gmra.mxu0 %v3800
        %v4941 = vpop.f32.mrf.mxu0
        %v4942 = vadd.f32 0.0, %v4941
        %4943 = vmatmul.f32.gmra.mxu0 %v3802
        %v4944 = vpop.f32.mrf.mxu0
        %v4945 = vadd.f32 0.0, %v4944
        %4946 = vmatmul.f32.gmra.mxu0 %v3804
        %v4947 = vpop.f32.mrf.mxu0
        %v4948 = vadd.f32 0.0, %v4947
        %4949 = vmatmul.f32.gmra.mxu0 %v3806
        %v4950 = vpop.f32.mrf.mxu0
        %v4951 = vadd.f32 0.0, %v4950
        %4952 = vmatmul.f32.gmra.mxu0 %v3808
        %v4953 = vpop.f32.mrf.mxu0
        %v4954 = vadd.f32 0.0, %v4953
        %4955 = vmatmul.f32.gmra.mxu0 %v3810
        %v4956 = vpop.f32.mrf.mxu0
        %v4957 = vadd.f32 0.0, %v4956
        %4958 = vmatmul.f32.gmra.mxu0 %v3812
        %v4959 = vpop.f32.mrf.mxu0
        %v4960 = vadd.f32 0.0, %v4959
        %4961 = vmatmul.f32.gmra.mxu0 %v3814
        %v4962 = vpop.f32.mrf.mxu0
        %v4963 = vadd.f32 0.0, %v4962
        %4964 = vmatmul.f32.gmra.mxu0 %v3816
        %v4965 = vpop.f32.mrf.mxu0
        %v4966 = vadd.f32 0.0, %v4965
        %4967 = vmatmul.f32.gmra.mxu0 %v4408
        %v4968 = vpop.f32.mrf.mxu0
        %v4969 = vadd.f32 0.0, %v4968
        %4970 = vmatmul.f32.gmra.mxu0 %v4410
        %v4971 = vpop.f32.mrf.mxu0
        %v4972 = vadd.f32 0.0, %v4971
        %4973 = vmatmul.f32.gmra.mxu0 %v2027
        %v4974 = vpop.f32.mrf.mxu0
        %v4975 = vadd.f32 0.0, %v4974
        %4976 = vmatmul.f32.gmra.mxu0 %v2029
        %v4977 = vpop.f32.mrf.mxu0
        %v4978 = vadd.f32 0.0, %v4977
        %4979 = vdwg.mxu0
        %v4980 = vadd.f32 %v4832, %v4885
        %v4981 = vadd.f32 %v4833, %v4888
        %v4982 = vadd.f32 %v4834, %v4891
        %v4983 = vadd.f32 %v4835, %v4894
        %v4984 = vadd.f32 %v4836, %v4897
        %v4985 = vadd.f32 %v4837, %v4900
        %v4986 = vadd.f32 %v4838, %v4903
        %v4987 = vadd.f32 %v4839, %v4906
        %v4988 = vadd.f32 %v4840, %v4909
        %v4989 = vadd.f32 %v4841, %v4912
        %v4990 = vadd.f32 %v4842, %v4915
        %v4991 = vadd.f32 %v4843, %v4918
        %v4992 = vadd.f32 %v4844, %v4921
        %v4993 = vadd.f32 %v4845, %v4924
        %v4994 = vadd.f32 %v4846, %v4927
        %v4995 = vadd.f32 %v4847, %v4930
        %v4996 = vadd.f32 %v4848, %v4933
        %v4997 = vadd.f32 %v4849, %v4936
        %v4998 = vadd.f32 %v4850, %v4939
        %v4999 = vadd.f32 %v4851, %v4942
        %v5000 = vadd.f32 %v4852, %v4945
        %v5001 = vadd.f32 %v4853, %v4948
        %v5002 = vadd.f32 %v4854, %v4951
        %v5003 = vadd.f32 %v4855, %v4954
        %v5004 = vadd.f32 %v4856, %v4957
        %v5005 = vadd.f32 %v4857, %v4960
        %v5006 = vadd.f32 %v4858, %v4963
        %v5007 = vadd.f32 %v4859, %v4966
        %v5008 = vadd.f32 %v4860, %v4969
        %v5009 = vadd.f32 %v4861, %v4972
        %v5010 = vadd.f32 %v4862, %v4975
        %v5011 = vadd.f32 %v4863, %v4978
        %v5012 = vrot.slane %v1389, 4
        %v5013 = vsel %vm1781, %v5012, 0
        %5015 = vmatpush.msra.mxu0 0.0
        %5016 = vmatpush.msra.mxu0 0.0
        %5017 = vmatpush.msra.mxu0 0.0
        %5018 = vmatpush.msra.mxu0 0.0
        %5019 = vmatpush.msra.mxu0 0.0
        %5020 = vmatpush.msra.mxu0 0.0
        %5021 = vmatpush.msra.mxu0 0.0
        %5022 = vmatpush.msra.mxu0 0.0
        %5023 = vmatpush.msra.mxu0 0.0
        %5024 = vmatpush.msra.mxu0 0.0
        %5025 = vmatpush.msra.mxu0 0.0
        %5026 = vmatpush.msra.mxu0 0.0
        %5027 = vmatpush.msra.mxu0 0.0
        %5028 = vmatpush.msra.mxu0 0.0
        %5029 = vmatpush.msra.mxu0 0.0
        %5030 = vmatpush.msra.mxu0 %v5013
        %5031 = vmatmul.f32.gmra.mxu0 %v4045
        %v5032 = vpop.f32.mrf.mxu0
        %v5033 = vadd.f32 0.0, %v5032
        %5034 = vmatmul.f32.gmra.mxu0 %v4047
        %v5035 = vpop.f32.mrf.mxu0
        %v5036 = vadd.f32 0.0, %v5035
        %5037 = vmatmul.f32.gmra.mxu0 %v4049
        %v5038 = vpop.f32.mrf.mxu0
        %v5039 = vadd.f32 0.0, %v5038
        %5040 = vmatmul.f32.gmra.mxu0 %v4051
        %v5041 = vpop.f32.mrf.mxu0
        %v5042 = vadd.f32 0.0, %v5041
        %5043 = vmatmul.f32.gmra.mxu0 %v4053
        %v5044 = vpop.f32.mrf.mxu0
        %v5045 = vadd.f32 0.0, %v5044
        %5046 = vmatmul.f32.gmra.mxu0 %v4055
        %v5047 = vpop.f32.mrf.mxu0
        %v5048 = vadd.f32 0.0, %v5047
        %5049 = vmatmul.f32.gmra.mxu0 %v4057
        %v5050 = vpop.f32.mrf.mxu0
        %v5051 = vadd.f32 0.0, %v5050
        %5052 = vmatmul.f32.gmra.mxu0 %v4059
        %v5053 = vpop.f32.mrf.mxu0
        %v5054 = vadd.f32 0.0, %v5053
        %5055 = vmatmul.f32.gmra.mxu0 %v4061
        %v5056 = vpop.f32.mrf.mxu0
        %v5057 = vadd.f32 0.0, %v5056
        %5058 = vmatmul.f32.gmra.mxu0 %v4063
        %v5059 = vpop.f32.mrf.mxu0
        %v5060 = vadd.f32 0.0, %v5059
        %5061 = vmatmul.f32.gmra.mxu0 %v4065
        %v5062 = vpop.f32.mrf.mxu0
        %v5063 = vadd.f32 0.0, %v5062
        %5064 = vmatmul.f32.gmra.mxu0 %v4067
        %v5065 = vpop.f32.mrf.mxu0
        %v5066 = vadd.f32 0.0, %v5065
        %5067 = vmatmul.f32.gmra.mxu0 %v4069
        %v5068 = vpop.f32.mrf.mxu0
        %v5069 = vadd.f32 0.0, %v5068
        %5070 = vmatmul.f32.gmra.mxu0 %v4071
        %v5071 = vpop.f32.mrf.mxu0
        %v5072 = vadd.f32 0.0, %v5071
        %5073 = vmatmul.f32.gmra.mxu0 %v4073
        %v5074 = vpop.f32.mrf.mxu0
        %v5075 = vadd.f32 0.0, %v5074
        %5076 = vmatmul.f32.gmra.mxu0 %v4075
        %v5077 = vpop.f32.mrf.mxu0
        %v5078 = vadd.f32 0.0, %v5077
        %5079 = vmatmul.f32.gmra.mxu0 %v4077
        %v5080 = vpop.f32.mrf.mxu0
        %v5081 = vadd.f32 0.0, %v5080
        %5082 = vmatmul.f32.gmra.mxu0 %v4079
        %v5083 = vpop.f32.mrf.mxu0
        %v5084 = vadd.f32 0.0, %v5083
        %5085 = vmatmul.f32.gmra.mxu0 %v4081
        %v5086 = vpop.f32.mrf.mxu0
        %v5087 = vadd.f32 0.0, %v5086
        %5088 = vmatmul.f32.gmra.mxu0 %v4083
        %v5089 = vpop.f32.mrf.mxu0
        %v5090 = vadd.f32 0.0, %v5089
        %5091 = vmatmul.f32.gmra.mxu0 %v4085
        %v5092 = vpop.f32.mrf.mxu0
        %v5093 = vadd.f32 0.0, %v5092
        %5094 = vmatmul.f32.gmra.mxu0 %v4087
        %v5095 = vpop.f32.mrf.mxu0
        %v5096 = vadd.f32 0.0, %v5095
        %5097 = vmatmul.f32.gmra.mxu0 %v4089
        %v5098 = vpop.f32.mrf.mxu0
        %v5099 = vadd.f32 0.0, %v5098
        %5100 = vmatmul.f32.gmra.mxu0 %v4091
        %v5101 = vpop.f32.mrf.mxu0
        %v5102 = vadd.f32 0.0, %v5101
        %5103 = vmatmul.f32.gmra.mxu0 %v4093
        %v5104 = vpop.f32.mrf.mxu0
        %v5105 = vadd.f32 0.0, %v5104
        %5106 = vmatmul.f32.gmra.mxu0 %v4095
        %v5107 = vpop.f32.mrf.mxu0
        %v5108 = vadd.f32 0.0, %v5107
        %5109 = vmatmul.f32.gmra.mxu0 %v4097
        %v5110 = vpop.f32.mrf.mxu0
        %v5111 = vadd.f32 0.0, %v5110
        %5112 = vmatmul.f32.gmra.mxu0 %v4099
        %v5113 = vpop.f32.mrf.mxu0
        %v5114 = vadd.f32 0.0, %v5113
        %5115 = vmatmul.f32.gmra.mxu0 %v4565
        %v5116 = vpop.f32.mrf.mxu0
        %v5117 = vadd.f32 0.0, %v5116
        %5118 = vmatmul.f32.gmra.mxu0 %v4567
        %v5119 = vpop.f32.mrf.mxu0
        %v5120 = vadd.f32 0.0, %v5119
        %5121 = vmatmul.f32.gmra.mxu0 %v2320
        %v5122 = vpop.f32.mrf.mxu0
        %v5123 = vadd.f32 0.0, %v5122
        %5124 = vmatmul.f32.gmra.mxu0 %v2322
        %v5125 = vpop.f32.mrf.mxu0
        %v5126 = vadd.f32 0.0, %v5125
        %5127 = vdwg.mxu0
        %v5128 = vadd.f32 %v4980, %v5033
        %v5129 = vadd.f32 %v4981, %v5036
        %v5130 = vadd.f32 %v4982, %v5039
        %v5131 = vadd.f32 %v4983, %v5042
        %v5132 = vadd.f32 %v4984, %v5045
        %v5133 = vadd.f32 %v4985, %v5048
        %v5134 = vadd.f32 %v4986, %v5051
        %v5135 = vadd.f32 %v4987, %v5054
        %v5136 = vadd.f32 %v4988, %v5057
        %v5137 = vadd.f32 %v4989, %v5060
        %v5138 = vadd.f32 %v4990, %v5063
        %v5139 = vadd.f32 %v4991, %v5066
        %v5140 = vadd.f32 %v4992, %v5069
        %v5141 = vadd.f32 %v4993, %v5072
        %v5142 = vadd.f32 %v4994, %v5075
        %v5143 = vadd.f32 %v4995, %v5078
        %v5144 = vadd.f32 %v4996, %v5081
        %v5145 = vadd.f32 %v4997, %v5084
        %v5146 = vadd.f32 %v4998, %v5087
        %v5147 = vadd.f32 %v4999, %v5090
        %v5148 = vadd.f32 %v5000, %v5093
        %v5149 = vadd.f32 %v5001, %v5096
        %v5150 = vadd.f32 %v5002, %v5099
        %v5151 = vadd.f32 %v5003, %v5102
        %v5152 = vadd.f32 %v5004, %v5105
        %v5153 = vadd.f32 %v5005, %v5108
        %v5154 = vadd.f32 %v5006, %v5111
        %v5155 = vadd.f32 %v5007, %v5114
        %v5156 = vadd.f32 %v5008, %v5117
        %v5157 = vadd.f32 %v5009, %v5120
        %v5158 = vadd.f32 %v5010, %v5123
        %v5159 = vadd.f32 %v5011, %v5126
        %vm5160 = vcmp.ge.f32.partialorder %v5128, 0.0
        %vm5161 = vcmp.ge.f32.partialorder %v5129, 0.0
        %vm5162 = vcmp.ge.f32.partialorder %v5130, 0.0
        %vm5163 = vcmp.ge.f32.partialorder %v5131, 0.0
        %vm5164 = vcmp.ge.f32.partialorder %v5132, 0.0
        %vm5165 = vcmp.ge.f32.partialorder %v5133, 0.0
        %vm5166 = vcmp.ge.f32.partialorder %v5134, 0.0
        %vm5167 = vcmp.ge.f32.partialorder %v5135, 0.0
        %vm5168 = vcmp.ge.f32.partialorder %v5136, 0.0
        %vm5169 = vcmp.ge.f32.partialorder %v5137, 0.0
        %vm5170 = vcmp.ge.f32.partialorder %v5138, 0.0
        %vm5171 = vcmp.ge.f32.partialorder %v5139, 0.0
        %vm5172 = vcmp.ge.f32.partialorder %v5140, 0.0
        %vm5173 = vcmp.ge.f32.partialorder %v5141, 0.0
        %vm5174 = vcmp.ge.f32.partialorder %v5142, 0.0
        %vm5175 = vcmp.ge.f32.partialorder %v5143, 0.0
        %vm5176 = vcmp.ge.f32.partialorder %v5144, 0.0
        %vm5177 = vcmp.ge.f32.partialorder %v5145, 0.0
        %vm5178 = vcmp.ge.f32.partialorder %v5146, 0.0
        %vm5179 = vcmp.ge.f32.partialorder %v5147, 0.0
        %vm5180 = vcmp.ge.f32.partialorder %v5148, 0.0
        %vm5181 = vcmp.ge.f32.partialorder %v5149, 0.0
        %vm5182 = vcmp.ge.f32.partialorder %v5150, 0.0
        %vm5183 = vcmp.ge.f32.partialorder %v5151, 0.0
        %vm5184 = vcmp.ge.f32.partialorder %v5152, 0.0
        %vm5185 = vcmp.ge.f32.partialorder %v5153, 0.0
        %vm5186 = vcmp.ge.f32.partialorder %v5154, 0.0
        %vm5187 = vcmp.ge.f32.partialorder %v5155, 0.0
        %vm5188 = vcmp.ge.f32.partialorder %v5156, 0.0
        %vm5189 = vcmp.ge.f32.partialorder %v5157, 0.0
        %vm5190 = vcmp.ge.f32.partialorder %v5158, 0.0
        %vm5191 = vcmp.ge.f32.partialorder %v5159, 0.0
        %v5192 = vmul.f32 %v5128, 0.2
        %v5193 = vmul.f32 %v5129, 0.2
        %v5194 = vmul.f32 %v5130, 0.2
        %v5195 = vmul.f32 %v5131, 0.2
        %v5196 = vmul.f32 %v5132, 0.2
        %v5197 = vmul.f32 %v5133, 0.2
        %v5198 = vmul.f32 %v5134, 0.2
        %v5199 = vmul.f32 %v5135, 0.2
        %v5200 = vmul.f32 %v5136, 0.2
        %v5201 = vmul.f32 %v5137, 0.2
        %v5202 = vmul.f32 %v5138, 0.2
        %v5203 = vmul.f32 %v5139, 0.2
        %v5204 = vmul.f32 %v5140, 0.2
        %v5205 = vmul.f32 %v5141, 0.2
        %v5206 = vmul.f32 %v5142, 0.2
        %v5207 = vmul.f32 %v5143, 0.2
        %v5208 = vmul.f32 %v5144, 0.2
        %v5209 = vmul.f32 %v5145, 0.2
        %v5210 = vmul.f32 %v5146, 0.2
        %v5211 = vmul.f32 %v5147, 0.2
        %v5212 = vmul.f32 %v5148, 0.2
        %v5213 = vmul.f32 %v5149, 0.2
        %v5214 = vmul.f32 %v5150, 0.2
        %v5215 = vmul.f32 %v5151, 0.2
        %v5216 = vmul.f32 %v5152, 0.2
        %v5217 = vmul.f32 %v5153, 0.2
        %v5218 = vmul.f32 %v5154, 0.2
        %v5219 = vmul.f32 %v5155, 0.2
        %v5220 = vmul.f32 %v5156, 0.2
        %v5221 = vmul.f32 %v5157, 0.2
        %v5222 = vmul.f32 %v5158, 0.2
        %v5223 = vmul.f32 %v5159, 0.2
        %v5224 = vsel %vm5160, %v5128, %v5192
        %v5225 = vsel %vm5161, %v5129, %v5193
        %v5226 = vsel %vm5162, %v5130, %v5194
        %v5227 = vsel %vm5163, %v5131, %v5195
        %v5228 = vsel %vm5164, %v5132, %v5196
        %v5229 = vsel %vm5165, %v5133, %v5197
        %v5230 = vsel %vm5166, %v5134, %v5198
        %v5231 = vsel %vm5167, %v5135, %v5199
        %v5232 = vsel %vm5168, %v5136, %v5200
        %v5233 = vsel %vm5169, %v5137, %v5201
        %v5234 = vsel %vm5170, %v5138, %v5202
        %v5235 = vsel %vm5171, %v5139, %v5203
        %v5236 = vsel %vm5172, %v5140, %v5204
        %v5237 = vsel %vm5173, %v5141, %v5205
        %v5238 = vsel %vm5174, %v5142, %v5206
        %v5239 = vsel %vm5175, %v5143, %v5207
        %v5240 = vsel %vm5176, %v5144, %v5208
        %v5241 = vsel %vm5177, %v5145, %v5209
        %v5242 = vsel %vm5178, %v5146, %v5210
        %v5243 = vsel %vm5179, %v5147, %v5211
        %v5244 = vsel %vm5180, %v5148, %v5212
        %v5245 = vsel %vm5181, %v5149, %v5213
        %v5246 = vsel %vm5182, %v5150, %v5214
        %v5247 = vsel %vm5183, %v5151, %v5215
        %v5248 = vsel %vm5184, %v5152, %v5216
        %v5249 = vsel %vm5185, %v5153, %v5217
        %v5250 = vsel %vm5186, %v5154, %v5218
        %v5251 = vsel %vm5187, %v5155, %v5219
        %v5252 = vsel %vm5188, %v5156, %v5220
        %v5253 = vsel %vm5189, %v5157, %v5221
        %v5254 = vsel %vm5190, %v5158, %v5222
        %v5255 = vsel %vm5191, %v5159, %v5223
        %v5288 = vrot.slane %v5224, 7
        %v5289 = vrot.slane %v5225, 7
        %v5290 = vsel %vm1433, %v5288, %v5289
        %v5291 = vrot.slane %v5226, 7
        %v5292 = vrot.slane %v5227, 7
        %v5293 = vsel %vm1433, %v5291, %v5292
        %v5294 = vrot.slane %v5228, 7
        %v5295 = vrot.slane %v5229, 7
        %v5296 = vsel %vm1433, %v5294, %v5295
        %v5297 = vrot.slane %v5230, 7
        %v5298 = vrot.slane %v5231, 7
        %v5299 = vsel %vm1433, %v5297, %v5298
        %v5300 = vrot.slane %v5232, 7
        %v5301 = vrot.slane %v5233, 7
        %v5302 = vsel %vm1433, %v5300, %v5301
        %v5303 = vrot.slane %v5234, 7
        %v5304 = vrot.slane %v5235, 7
        %v5305 = vsel %vm1433, %v5303, %v5304
        %v5306 = vrot.slane %v5236, 7
        %v5307 = vrot.slane %v5237, 7
        %v5308 = vsel %vm1433, %v5306, %v5307
        %v5309 = vrot.slane %v5238, 7
        %v5310 = vrot.slane %v5239, 7
        %v5311 = vsel %vm1433, %v5309, %v5310
        %v5312 = vrot.slane %v5240, 7
        %v5313 = vrot.slane %v5241, 7
        %v5314 = vsel %vm1433, %v5312, %v5313
        %v5315 = vrot.slane %v5242, 7
        %v5316 = vrot.slane %v5243, 7
        %v5317 = vsel %vm1433, %v5315, %v5316
        %v5318 = vrot.slane %v5244, 7
        %v5319 = vrot.slane %v5245, 7
        %v5320 = vsel %vm1433, %v5318, %v5319
        %v5321 = vrot.slane %v5246, 7
        %v5322 = vrot.slane %v5247, 7
        %v5323 = vsel %vm1433, %v5321, %v5322
        %v5324 = vrot.slane %v5248, 7
        %v5325 = vrot.slane %v5249, 7
        %v5326 = vsel %vm1433, %v5324, %v5325
        %v5327 = vrot.slane %v5250, 7
        %v5328 = vrot.slane %v5251, 7
        %v5329 = vsel %vm1433, %v5327, %v5328
        %v5330 = vrot.slane %v5252, 7
        %v5331 = vrot.slane %v5253, 7
        %v5332 = vsel %vm1433, %v5330, %v5331
        %v5333 = vrot.slane %v5254, 7
        %v5334 = vrot.slane %v5255, 7
        %v5335 = vsel %vm1433, %v5333, %v5334
        %v5368 = vsel %vm1433, 0.0, %v5288
        %v5369 = vsel %vm1433, 0.0, %v5291
        %v5370 = vsel %vm1433, 0.0, %v5294
        %v5371 = vsel %vm1433, 0.0, %v5297
        %v5372 = vsel %vm1433, 0.0, %v5300
        %v5373 = vsel %vm1433, 0.0, %v5303
        %v5374 = vsel %vm1433, 0.0, %v5306
        %v5375 = vsel %vm1433, 0.0, %v5309
        %v5376 = vsel %vm1433, 0.0, %v5312
        %v5377 = vsel %vm1433, 0.0, %v5315
        %v5378 = vsel %vm1433, 0.0, %v5318
        %v5379 = vsel %vm1433, 0.0, %v5321
        %v5380 = vsel %vm1433, 0.0, %v5324
        %v5381 = vsel %vm1433, 0.0, %v5327
        %v5382 = vsel %vm1433, 0.0, %v5330
        %v5383 = vsel %vm1433, 0.0, %v5333
        %v5384 = vsel %vm1433, %v5289, 0.0
        %v5385 = vsel %vm1433, %v5292, 0.0
        %v5386 = vsel %vm1433, %v5295, 0.0
        %v5387 = vsel %vm1433, %v5298, 0.0
        %v5388 = vsel %vm1433, %v5301, 0.0
        %v5389 = vsel %vm1433, %v5304, 0.0
        %v5390 = vsel %vm1433, %v5307, 0.0
        %v5391 = vsel %vm1433, %v5310, 0.0
        %v5392 = vsel %vm1433, %v5313, 0.0
        %v5393 = vsel %vm1433, %v5316, 0.0
        %v5394 = vsel %vm1433, %v5319, 0.0
        %v5395 = vsel %vm1433, %v5322, 0.0
        %v5396 = vsel %vm1433, %v5325, 0.0
        %v5397 = vsel %vm1433, %v5328, 0.0
        %v5398 = vsel %vm1433, %v5331, 0.0
        %v5399 = vsel %vm1433, %v5334, 0.0
        %v5400 = vld [vmem:[%s8] sm:$0x1]
        %v5402 = vperm.slane %v5400, 0
        %v5404 = vadd.f32 %v5402, 0.0
        %v5406 = vsel %vm1700, %v5368, 0
        %v5408 = vsel %vm1700, %v5290, 0
        %v5411 = vsel %vm1700, %v5369, 0
        %v5413 = vsel %vm1700, %v5293, 0
        %v5416 = vsel %vm1700, %v5370, 0
        %v5418 = vsel %vm1700, %v5296, 0
        %v5421 = vsel %vm1700, %v5371, 0
        %v5423 = vsel %vm1700, %v5299, 0
        %v5426 = vsel %vm1700, %v5372, 0
        %v5428 = vsel %vm1700, %v5302, 0
        %v5431 = vsel %vm1700, %v5373, 0
        %v5433 = vsel %vm1700, %v5305, 0
        %v5436 = vsel %vm1700, %v5374, 0
        %v5438 = vsel %vm1700, %v5308, 0
        %v5441 = vsel %vm1700, %v5375, 0
        %v5443 = vsel %vm1700, %v5311, 0
        %v5446 = vsel %vm1700, %v5376, 0
        %v5448 = vsel %vm1700, %v5314, 0
        %v5451 = vsel %vm1700, %v5377, 0
        %v5453 = vsel %vm1700, %v5317, 0
        %v5456 = vsel %vm1700, %v5378, 0
        %v5458 = vsel %vm1700, %v5320, 0
        %v5461 = vsel %vm1700, %v5379, 0
        %v5463 = vsel %vm1700, %v5323, 0
        %v5466 = vsel %vm1700, %v5380, 0
        %v5468 = vsel %vm1700, %v5326, 0
        %v5471 = vsel %vm1700, %v5381, 0
        %v5473 = vsel %vm1700, %v5329, 0
        %v5476 = vsel %vm1700, %v5382, 0
        %v5478 = vsel %vm1700, %v5332, 0
        %v5481 = vsel %vm1781, %v1390, 0
        %5483 = vmatpush.msra.mxu0 0.0
        %5484 = vmatpush.msra.mxu0 0.0
        %5485 = vmatpush.msra.mxu0 0.0
        %5486 = vmatpush.msra.mxu0 0.0
        %5487 = vmatpush.msra.mxu0 0.0
        %5488 = vmatpush.msra.mxu0 0.0
        %5489 = vmatpush.msra.mxu0 0.0
        %5490 = vmatpush.msra.mxu0 0.0
        %5491 = vmatpush.msra.mxu0 0.0
        %5492 = vmatpush.msra.mxu0 0.0
        %5493 = vmatpush.msra.mxu0 0.0
        %5494 = vmatpush.msra.mxu0 0.0
        %5495 = vmatpush.msra.mxu0 0.0
        %5496 = vmatpush.msra.mxu0 0.0
        %5497 = vmatpush.msra.mxu0 0.0
        %5498 = vmatpush.msra.mxu0 %v5481
        %5499 = vmatmul.f32.gmra.mxu0 %v1702
        %v5500 = vpop.f32.mrf.mxu0
        %v5501 = vadd.f32 0.0, %v5500
        %5502 = vmatmul.f32.gmra.mxu0 %v1704
        %v5503 = vpop.f32.mrf.mxu0
        %v5504 = vadd.f32 0.0, %v5503
        %5505 = vmatmul.f32.gmra.mxu0 %v5406
        %v5506 = vpop.f32.mrf.mxu0
        %v5507 = vadd.f32 0.0, %v5506
        %5508 = vmatmul.f32.gmra.mxu0 %v5408
        %v5509 = vpop.f32.mrf.mxu0
        %v5510 = vadd.f32 0.0, %v5509
        %5511 = vmatmul.f32.gmra.mxu0 %v5411
        %v5512 = vpop.f32.mrf.mxu0
        %v5513 = vadd.f32 0.0, %v5512
        %5514 = vmatmul.f32.gmra.mxu0 %v5413
        %v5515 = vpop.f32.mrf.mxu0
        %v5516 = vadd.f32 0.0, %v5515
        %5517 = vmatmul.f32.gmra.mxu0 %v5416
        %v5518 = vpop.f32.mrf.mxu0
        %v5519 = vadd.f32 0.0, %v5518
        %5520 = vmatmul.f32.gmra.mxu0 %v5418
        %v5521 = vpop.f32.mrf.mxu0
        %v5522 = vadd.f32 0.0, %v5521
        %5523 = vmatmul.f32.gmra.mxu0 %v5421
        %v5524 = vpop.f32.mrf.mxu0
        %v5525 = vadd.f32 0.0, %v5524
        %5526 = vmatmul.f32.gmra.mxu0 %v5423
        %v5527 = vpop.f32.mrf.mxu0
        %v5528 = vadd.f32 0.0, %v5527
        %5529 = vmatmul.f32.gmra.mxu0 %v5426
        %v5530 = vpop.f32.mrf.mxu0
        %v5531 = vadd.f32 0.0, %v5530
        %5532 = vmatmul.f32.gmra.mxu0 %v5428
        %v5533 = vpop.f32.mrf.mxu0
        %v5534 = vadd.f32 0.0, %v5533
        %5535 = vmatmul.f32.gmra.mxu0 %v5431
        %v5536 = vpop.f32.mrf.mxu0
        %v5537 = vadd.f32 0.0, %v5536
        %5538 = vmatmul.f32.gmra.mxu0 %v5433
        %v5539 = vpop.f32.mrf.mxu0
        %v5540 = vadd.f32 0.0, %v5539
        %5541 = vmatmul.f32.gmra.mxu0 %v5436
        %v5542 = vpop.f32.mrf.mxu0
        %v5543 = vadd.f32 0.0, %v5542
        %5544 = vmatmul.f32.gmra.mxu0 %v5438
        %v5545 = vpop.f32.mrf.mxu0
        %v5546 = vadd.f32 0.0, %v5545
        %5547 = vmatmul.f32.gmra.mxu0 %v5441
        %v5548 = vpop.f32.mrf.mxu0
        %v5549 = vadd.f32 0.0, %v5548
        %5550 = vmatmul.f32.gmra.mxu0 %v5443
        %v5551 = vpop.f32.mrf.mxu0
        %v5552 = vadd.f32 0.0, %v5551
        %5553 = vmatmul.f32.gmra.mxu0 %v5446
        %v5554 = vpop.f32.mrf.mxu0
        %v5555 = vadd.f32 0.0, %v5554
        %5556 = vmatmul.f32.gmra.mxu0 %v5448
        %v5557 = vpop.f32.mrf.mxu0
        %v5558 = vadd.f32 0.0, %v5557
        %5559 = vmatmul.f32.gmra.mxu0 %v5451
        %v5560 = vpop.f32.mrf.mxu0
        %v5561 = vadd.f32 0.0, %v5560
        %5562 = vmatmul.f32.gmra.mxu0 %v5453
        %v5563 = vpop.f32.mrf.mxu0
        %v5564 = vadd.f32 0.0, %v5563
        %5565 = vmatmul.f32.gmra.mxu0 %v5456
        %v5566 = vpop.f32.mrf.mxu0
        %v5567 = vadd.f32 0.0, %v5566
        %5568 = vmatmul.f32.gmra.mxu0 %v5458
        %v5569 = vpop.f32.mrf.mxu0
        %v5570 = vadd.f32 0.0, %v5569
        %5571 = vmatmul.f32.gmra.mxu0 %v5461
        %v5572 = vpop.f32.mrf.mxu0
        %v5573 = vadd.f32 0.0, %v5572
        %5574 = vmatmul.f32.gmra.mxu0 %v5463
        %v5575 = vpop.f32.mrf.mxu0
        %v5576 = vadd.f32 0.0, %v5575
        %5577 = vmatmul.f32.gmra.mxu0 %v5466
        %v5578 = vpop.f32.mrf.mxu0
        %v5579 = vadd.f32 0.0, %v5578
        %5580 = vmatmul.f32.gmra.mxu0 %v5468
        %v5581 = vpop.f32.mrf.mxu0
        %v5582 = vadd.f32 0.0, %v5581
        %5583 = vmatmul.f32.gmra.mxu0 %v5471
        %v5584 = vpop.f32.mrf.mxu0
        %v5585 = vadd.f32 0.0, %v5584
        %5586 = vmatmul.f32.gmra.mxu0 %v5473
        %v5587 = vpop.f32.mrf.mxu0
        %v5588 = vadd.f32 0.0, %v5587
        %5589 = vmatmul.f32.gmra.mxu0 %v5476
        %v5590 = vpop.f32.mrf.mxu0
        %v5591 = vadd.f32 0.0, %v5590
        %5592 = vmatmul.f32.gmra.mxu0 %v5478
        %v5593 = vpop.f32.mrf.mxu0
        %v5594 = vadd.f32 0.0, %v5593
        %5595 = vdwg.mxu0
        %v5596 = vadd.f32 %v5404, %v5501
        %v5597 = vadd.f32 %v5404, %v5504
        %v5598 = vadd.f32 %v5404, %v5507
        %v5599 = vadd.f32 %v5404, %v5510
        %v5600 = vadd.f32 %v5404, %v5513
        %v5601 = vadd.f32 %v5404, %v5516
        %v5602 = vadd.f32 %v5404, %v5519
        %v5603 = vadd.f32 %v5404, %v5522
        %v5604 = vadd.f32 %v5404, %v5525
        %v5605 = vadd.f32 %v5404, %v5528
        %v5606 = vadd.f32 %v5404, %v5531
        %v5607 = vadd.f32 %v5404, %v5534
        %v5608 = vadd.f32 %v5404, %v5537
        %v5609 = vadd.f32 %v5404, %v5540
        %v5610 = vadd.f32 %v5404, %v5543
        %v5611 = vadd.f32 %v5404, %v5546
        %v5612 = vadd.f32 %v5404, %v5549
        %v5613 = vadd.f32 %v5404, %v5552
        %v5614 = vadd.f32 %v5404, %v5555
        %v5615 = vadd.f32 %v5404, %v5558
        %v5616 = vadd.f32 %v5404, %v5561
        %v5617 = vadd.f32 %v5404, %v5564
        %v5618 = vadd.f32 %v5404, %v5567
        %v5619 = vadd.f32 %v5404, %v5570
        %v5620 = vadd.f32 %v5404, %v5573
        %v5621 = vadd.f32 %v5404, %v5576
        %v5622 = vadd.f32 %v5404, %v5579
        %v5623 = vadd.f32 %v5404, %v5582
        %v5624 = vadd.f32 %v5404, %v5585
        %v5625 = vadd.f32 %v5404, %v5588
        %v5626 = vadd.f32 %v5404, %v5591
        %v5627 = vadd.f32 %v5404, %v5594
        %v5643 = vrot.slane %v5368, 1
        %v5644 = vrot.slane %v5290, 1
        %v5645 = vsel %vm1946, %v5643, %v5644
        %v5646 = vrot.slane %v5384, 1
        %v5647 = vsel %vm1946, %v5644, %v5646
        %v5648 = vrot.slane %v5369, 1
        %v5649 = vrot.slane %v5293, 1
        %v5650 = vsel %vm1946, %v5648, %v5649
        %v5651 = vrot.slane %v5385, 1
        %v5652 = vsel %vm1946, %v5649, %v5651
        %v5653 = vrot.slane %v5370, 1
        %v5654 = vrot.slane %v5296, 1
        %v5655 = vsel %vm1946, %v5653, %v5654
        %v5656 = vrot.slane %v5386, 1
        %v5657 = vsel %vm1946, %v5654, %v5656
        %v5658 = vrot.slane %v5371, 1
        %v5659 = vrot.slane %v5299, 1
        %v5660 = vsel %vm1946, %v5658, %v5659
        %v5661 = vrot.slane %v5387, 1
        %v5662 = vsel %vm1946, %v5659, %v5661
        %v5663 = vrot.slane %v5372, 1
        %v5664 = vrot.slane %v5302, 1
        %v5665 = vsel %vm1946, %v5663, %v5664
        %v5666 = vrot.slane %v5388, 1
        %v5667 = vsel %vm1946, %v5664, %v5666
        %v5668 = vrot.slane %v5373, 1
        %v5669 = vrot.slane %v5305, 1
        %v5670 = vsel %vm1946, %v5668, %v5669
        %v5671 = vrot.slane %v5389, 1
        %v5672 = vsel %vm1946, %v5669, %v5671
        %v5673 = vrot.slane %v5374, 1
        %v5674 = vrot.slane %v5308, 1
        %v5675 = vsel %vm1946, %v5673, %v5674
        %v5676 = vrot.slane %v5390, 1
        %v5677 = vsel %vm1946, %v5674, %v5676
        %v5678 = vrot.slane %v5375, 1
        %v5679 = vrot.slane %v5311, 1
        %v5680 = vsel %vm1946, %v5678, %v5679
        %v5681 = vrot.slane %v5391, 1
        %v5682 = vsel %vm1946, %v5679, %v5681
        %v5683 = vrot.slane %v5376, 1
        %v5684 = vrot.slane %v5314, 1
        %v5685 = vsel %vm1946, %v5683, %v5684
        %v5686 = vrot.slane %v5392, 1
        %v5687 = vsel %vm1946, %v5684, %v5686
        %v5688 = vrot.slane %v5377, 1
        %v5689 = vrot.slane %v5317, 1
        %v5690 = vsel %vm1946, %v5688, %v5689
        %v5691 = vrot.slane %v5393, 1
        %v5692 = vsel %vm1946, %v5689, %v5691
        %v5693 = vrot.slane %v5378, 1
        %v5694 = vrot.slane %v5320, 1
        %v5695 = vsel %vm1946, %v5693, %v5694
        %v5696 = vrot.slane %v5394, 1
        %v5697 = vsel %vm1946, %v5694, %v5696
        %v5698 = vrot.slane %v5379, 1
        %v5699 = vrot.slane %v5323, 1
        %v5700 = vsel %vm1946, %v5698, %v5699
        %v5701 = vrot.slane %v5395, 1
        %v5702 = vsel %vm1946, %v5699, %v5701
        %v5703 = vrot.slane %v5380, 1
        %v5704 = vrot.slane %v5326, 1
        %v5705 = vsel %vm1946, %v5703, %v5704
        %v5706 = vrot.slane %v5396, 1
        %v5707 = vsel %vm1946, %v5704, %v5706
        %v5708 = vrot.slane %v5381, 1
        %v5709 = vrot.slane %v5329, 1
        %v5710 = vsel %vm1946, %v5708, %v5709
        %v5711 = vrot.slane %v5397, 1
        %v5712 = vsel %vm1946, %v5709, %v5711
        %v5713 = vrot.slane %v5382, 1
        %v5714 = vrot.slane %v5332, 1
        %v5715 = vsel %vm1946, %v5713, %v5714
        %v5716 = vrot.slane %v5398, 1
        %v5717 = vsel %vm1946, %v5714, %v5716
        %v5718 = vsel %vm1700, %v5645, 0
        %v5720 = vsel %vm1700, %v5647, 0
        %v5722 = vsel %vm1700, %v5650, 0
        %v5724 = vsel %vm1700, %v5652, 0
        %v5726 = vsel %vm1700, %v5655, 0
        %v5728 = vsel %vm1700, %v5657, 0
        %v5730 = vsel %vm1700, %v5660, 0
        %v5732 = vsel %vm1700, %v5662, 0
        %v5734 = vsel %vm1700, %v5665, 0
        %v5736 = vsel %vm1700, %v5667, 0
        %v5738 = vsel %vm1700, %v5670, 0
        %v5740 = vsel %vm1700, %v5672, 0
        %v5742 = vsel %vm1700, %v5675, 0
        %v5744 = vsel %vm1700, %v5677, 0
        %v5746 = vsel %vm1700, %v5680, 0
        %v5748 = vsel %vm1700, %v5682, 0
        %v5750 = vsel %vm1700, %v5685, 0
        %v5752 = vsel %vm1700, %v5687, 0
        %v5754 = vsel %vm1700, %v5690, 0
        %v5756 = vsel %vm1700, %v5692, 0
        %v5758 = vsel %vm1700, %v5695, 0
        %v5760 = vsel %vm1700, %v5697, 0
        %v5762 = vsel %vm1700, %v5700, 0
        %v5764 = vsel %vm1700, %v5702, 0
        %v5766 = vsel %vm1700, %v5705, 0
        %v5768 = vsel %vm1700, %v5707, 0
        %v5770 = vsel %vm1700, %v5710, 0
        %v5772 = vsel %vm1700, %v5712, 0
        %v5774 = vsel %vm1700, %v5715, 0
        %v5776 = vsel %vm1700, %v5717, 0
        %v5779 = vsel %vm1781, %v1391, 0
        %5781 = vmatpush.msra.mxu0 0.0
        %5782 = vmatpush.msra.mxu0 0.0
        %5783 = vmatpush.msra.mxu0 0.0
        %5784 = vmatpush.msra.mxu0 0.0
        %5785 = vmatpush.msra.mxu0 0.0
        %5786 = vmatpush.msra.mxu0 0.0
        %5787 = vmatpush.msra.mxu0 0.0
        %5788 = vmatpush.msra.mxu0 0.0
        %5789 = vmatpush.msra.mxu0 0.0
        %5790 = vmatpush.msra.mxu0 0.0
        %5791 = vmatpush.msra.mxu0 0.0
        %5792 = vmatpush.msra.mxu0 0.0
        %5793 = vmatpush.msra.mxu0 0.0
        %5794 = vmatpush.msra.mxu0 0.0
        %5795 = vmatpush.msra.mxu0 0.0
        %5796 = vmatpush.msra.mxu0 %v5779
        %5797 = vmatmul.f32.gmra.mxu0 %v2027
        %v5798 = vpop.f32.mrf.mxu0
        %v5799 = vadd.f32 0.0, %v5798
        %5800 = vmatmul.f32.gmra.mxu0 %v2029
        %v5801 = vpop.f32.mrf.mxu0
        %v5802 = vadd.f32 0.0, %v5801
        %5803 = vmatmul.f32.gmra.mxu0 %v5718
        %v5804 = vpop.f32.mrf.mxu0
        %v5805 = vadd.f32 0.0, %v5804
        %5806 = vmatmul.f32.gmra.mxu0 %v5720
        %v5807 = vpop.f32.mrf.mxu0
        %v5808 = vadd.f32 0.0, %v5807
        %5809 = vmatmul.f32.gmra.mxu0 %v5722
        %v5810 = vpop.f32.mrf.mxu0
        %v5811 = vadd.f32 0.0, %v5810
        %5812 = vmatmul.f32.gmra.mxu0 %v5724
        %v5813 = vpop.f32.mrf.mxu0
        %v5814 = vadd.f32 0.0, %v5813
        %5815 = vmatmul.f32.gmra.mxu0 %v5726
        %v5816 = vpop.f32.mrf.mxu0
        %v5817 = vadd.f32 0.0, %v5816
        %5818 = vmatmul.f32.gmra.mxu0 %v5728
        %v5819 = vpop.f32.mrf.mxu0
        %v5820 = vadd.f32 0.0, %v5819
        %5821 = vmatmul.f32.gmra.mxu0 %v5730
        %v5822 = vpop.f32.mrf.mxu0
        %v5823 = vadd.f32 0.0, %v5822
        %5824 = vmatmul.f32.gmra.mxu0 %v5732
        %v5825 = vpop.f32.mrf.mxu0
        %v5826 = vadd.f32 0.0, %v5825
        %5827 = vmatmul.f32.gmra.mxu0 %v5734
        %v5828 = vpop.f32.mrf.mxu0
        %v5829 = vadd.f32 0.0, %v5828
        %5830 = vmatmul.f32.gmra.mxu0 %v5736
        %v5831 = vpop.f32.mrf.mxu0
        %v5832 = vadd.f32 0.0, %v5831
        %5833 = vmatmul.f32.gmra.mxu0 %v5738
        %v5834 = vpop.f32.mrf.mxu0
        %v5835 = vadd.f32 0.0, %v5834
        %5836 = vmatmul.f32.gmra.mxu0 %v5740
        %v5837 = vpop.f32.mrf.mxu0
        %v5838 = vadd.f32 0.0, %v5837
        %5839 = vmatmul.f32.gmra.mxu0 %v5742
        %v5840 = vpop.f32.mrf.mxu0
        %v5841 = vadd.f32 0.0, %v5840
        %5842 = vmatmul.f32.gmra.mxu0 %v5744
        %v5843 = vpop.f32.mrf.mxu0
        %v5844 = vadd.f32 0.0, %v5843
        %5845 = vmatmul.f32.gmra.mxu0 %v5746
        %v5846 = vpop.f32.mrf.mxu0
        %v5847 = vadd.f32 0.0, %v5846
        %5848 = vmatmul.f32.gmra.mxu0 %v5748
        %v5849 = vpop.f32.mrf.mxu0
        %v5850 = vadd.f32 0.0, %v5849
        %5851 = vmatmul.f32.gmra.mxu0 %v5750
        %v5852 = vpop.f32.mrf.mxu0
        %v5853 = vadd.f32 0.0, %v5852
        %5854 = vmatmul.f32.gmra.mxu0 %v5752
        %v5855 = vpop.f32.mrf.mxu0
        %v5856 = vadd.f32 0.0, %v5855
        %5857 = vmatmul.f32.gmra.mxu0 %v5754
        %v5858 = vpop.f32.mrf.mxu0
        %v5859 = vadd.f32 0.0, %v5858
        %5860 = vmatmul.f32.gmra.mxu0 %v5756
        %v5861 = vpop.f32.mrf.mxu0
        %v5862 = vadd.f32 0.0, %v5861
        %5863 = vmatmul.f32.gmra.mxu0 %v5758
        %v5864 = vpop.f32.mrf.mxu0
        %v5865 = vadd.f32 0.0, %v5864
        %5866 = vmatmul.f32.gmra.mxu0 %v5760
        %v5867 = vpop.f32.mrf.mxu0
        %v5868 = vadd.f32 0.0, %v5867
        %5869 = vmatmul.f32.gmra.mxu0 %v5762
        %v5870 = vpop.f32.mrf.mxu0
        %v5871 = vadd.f32 0.0, %v5870
        %5872 = vmatmul.f32.gmra.mxu0 %v5764
        %v5873 = vpop.f32.mrf.mxu0
        %v5874 = vadd.f32 0.0, %v5873
        %5875 = vmatmul.f32.gmra.mxu0 %v5766
        %v5876 = vpop.f32.mrf.mxu0
        %v5877 = vadd.f32 0.0, %v5876
        %5878 = vmatmul.f32.gmra.mxu0 %v5768
        %v5879 = vpop.f32.mrf.mxu0
        %v5880 = vadd.f32 0.0, %v5879
        %5881 = vmatmul.f32.gmra.mxu0 %v5770
        %v5882 = vpop.f32.mrf.mxu0
        %v5883 = vadd.f32 0.0, %v5882
        %5884 = vmatmul.f32.gmra.mxu0 %v5772
        %v5885 = vpop.f32.mrf.mxu0
        %v5886 = vadd.f32 0.0, %v5885
        %5887 = vmatmul.f32.gmra.mxu0 %v5774
        %v5888 = vpop.f32.mrf.mxu0
        %v5889 = vadd.f32 0.0, %v5888
        %5890 = vmatmul.f32.gmra.mxu0 %v5776
        %v5891 = vpop.f32.mrf.mxu0
        %v5892 = vadd.f32 0.0, %v5891
        %5893 = vdwg.mxu0
        %v5894 = vadd.f32 %v5596, %v5799
        %v5895 = vadd.f32 %v5597, %v5802
        %v5896 = vadd.f32 %v5598, %v5805
        %v5897 = vadd.f32 %v5599, %v5808
        %v5898 = vadd.f32 %v5600, %v5811
        %v5899 = vadd.f32 %v5601, %v5814
        %v5900 = vadd.f32 %v5602, %v5817
        %v5901 = vadd.f32 %v5603, %v5820
        %v5902 = vadd.f32 %v5604, %v5823
        %v5903 = vadd.f32 %v5605, %v5826
        %v5904 = vadd.f32 %v5606, %v5829
        %v5905 = vadd.f32 %v5607, %v5832
        %v5906 = vadd.f32 %v5608, %v5835
        %v5907 = vadd.f32 %v5609, %v5838
        %v5908 = vadd.f32 %v5610, %v5841
        %v5909 = vadd.f32 %v5611, %v5844
        %v5910 = vadd.f32 %v5612, %v5847
        %v5911 = vadd.f32 %v5613, %v5850
        %v5912 = vadd.f32 %v5614, %v5853
        %v5913 = vadd.f32 %v5615, %v5856
        %v5914 = vadd.f32 %v5616, %v5859
        %v5915 = vadd.f32 %v5617, %v5862
        %v5916 = vadd.f32 %v5618, %v5865
        %v5917 = vadd.f32 %v5619, %v5868
        %v5918 = vadd.f32 %v5620, %v5871
        %v5919 = vadd.f32 %v5621, %v5874
        %v5920 = vadd.f32 %v5622, %v5877
        %v5921 = vadd.f32 %v5623, %v5880
        %v5922 = vadd.f32 %v5624, %v5883
        %v5923 = vadd.f32 %v5625, %v5886
        %v5924 = vadd.f32 %v5626, %v5889
        %v5925 = vadd.f32 %v5627, %v5892
        %v5926 = vrot.slane %v5368, 2
        %v5927 = vrot.slane %v5290, 2
        %v5928 = vsel %vm2239, %v5926, %v5927
        %v5929 = vrot.slane %v5384, 2
        %v5930 = vsel %vm2239, %v5927, %v5929
        %v5931 = vrot.slane %v5369, 2
        %v5932 = vrot.slane %v5293, 2
        %v5933 = vsel %vm2239, %v5931, %v5932
        %v5934 = vrot.slane %v5385, 2
        %v5935 = vsel %vm2239, %v5932, %v5934
        %v5936 = vrot.slane %v5370, 2
        %v5937 = vrot.slane %v5296, 2
        %v5938 = vsel %vm2239, %v5936, %v5937
        %v5939 = vrot.slane %v5386, 2
        %v5940 = vsel %vm2239, %v5937, %v5939
        %v5941 = vrot.slane %v5371, 2
        %v5942 = vrot.slane %v5299, 2
        %v5943 = vsel %vm2239, %v5941, %v5942
        %v5944 = vrot.slane %v5387, 2
        %v5945 = vsel %vm2239, %v5942, %v5944
        %v5946 = vrot.slane %v5372, 2
        %v5947 = vrot.slane %v5302, 2
        %v5948 = vsel %vm2239, %v5946, %v5947
        %v5949 = vrot.slane %v5388, 2
        %v5950 = vsel %vm2239, %v5947, %v5949
        %v5951 = vrot.slane %v5373, 2
        %v5952 = vrot.slane %v5305, 2
        %v5953 = vsel %vm2239, %v5951, %v5952
        %v5954 = vrot.slane %v5389, 2
        %v5955 = vsel %vm2239, %v5952, %v5954
        %v5956 = vrot.slane %v5374, 2
        %v5957 = vrot.slane %v5308, 2
        %v5958 = vsel %vm2239, %v5956, %v5957
        %v5959 = vrot.slane %v5390, 2
        %v5960 = vsel %vm2239, %v5957, %v5959
        %v5961 = vrot.slane %v5375, 2
        %v5962 = vrot.slane %v5311, 2
        %v5963 = vsel %vm2239, %v5961, %v5962
        %v5964 = vrot.slane %v5391, 2
        %v5965 = vsel %vm2239, %v5962, %v5964
        %v5966 = vrot.slane %v5376, 2
        %v5967 = vrot.slane %v5314, 2
        %v5968 = vsel %vm2239, %v5966, %v5967
        %v5969 = vrot.slane %v5392, 2
        %v5970 = vsel %vm2239, %v5967, %v5969
        %v5971 = vrot.slane %v5377, 2
        %v5972 = vrot.slane %v5317, 2
        %v5973 = vsel %vm2239, %v5971, %v5972
        %v5974 = vrot.slane %v5393, 2
        %v5975 = vsel %vm2239, %v5972, %v5974
        %v5976 = vrot.slane %v5378, 2
        %v5977 = vrot.slane %v5320, 2
        %v5978 = vsel %vm2239, %v5976, %v5977
        %v5979 = vrot.slane %v5394, 2
        %v5980 = vsel %vm2239, %v5977, %v5979
        %v5981 = vrot.slane %v5379, 2
        %v5982 = vrot.slane %v5323, 2
        %v5983 = vsel %vm2239, %v5981, %v5982
        %v5984 = vrot.slane %v5395, 2
        %v5985 = vsel %vm2239, %v5982, %v5984
        %v5986 = vrot.slane %v5380, 2
        %v5987 = vrot.slane %v5326, 2
        %v5988 = vsel %vm2239, %v5986, %v5987
        %v5989 = vrot.slane %v5396, 2
        %v5990 = vsel %vm2239, %v5987, %v5989
        %v5991 = vrot.slane %v5381, 2
        %v5992 = vrot.slane %v5329, 2
        %v5993 = vsel %vm2239, %v5991, %v5992
        %v5994 = vrot.slane %v5397, 2
        %v5995 = vsel %vm2239, %v5992, %v5994
        %v5996 = vrot.slane %v5382, 2
        %v5997 = vrot.slane %v5332, 2
        %v5998 = vsel %vm2239, %v5996, %v5997
        %v5999 = vrot.slane %v5398, 2
        %v6000 = vsel %vm2239, %v5997, %v5999
        %v6001 = vsel %vm1700, %v5928, 0
        %v6003 = vsel %vm1700, %v5930, 0
        %v6005 = vsel %vm1700, %v5933, 0
        %v6007 = vsel %vm1700, %v5935, 0
        %v6009 = vsel %vm1700, %v5938, 0
        %v6011 = vsel %vm1700, %v5940, 0
        %v6013 = vsel %vm1700, %v5943, 0
        %v6015 = vsel %vm1700, %v5945, 0
        %v6017 = vsel %vm1700, %v5948, 0
        %v6019 = vsel %vm1700, %v5950, 0
        %v6021 = vsel %vm1700, %v5953, 0
        %v6023 = vsel %vm1700, %v5955, 0
        %v6025 = vsel %vm1700, %v5958, 0
        %v6027 = vsel %vm1700, %v5960, 0
        %v6029 = vsel %vm1700, %v5963, 0
        %v6031 = vsel %vm1700, %v5965, 0
        %v6033 = vsel %vm1700, %v5968, 0
        %v6035 = vsel %vm1700, %v5970, 0
        %v6037 = vsel %vm1700, %v5973, 0
        %v6039 = vsel %vm1700, %v5975, 0
        %v6041 = vsel %vm1700, %v5978, 0
        %v6043 = vsel %vm1700, %v5980, 0
        %v6045 = vsel %vm1700, %v5983, 0
        %v6047 = vsel %vm1700, %v5985, 0
        %v6049 = vsel %vm1700, %v5988, 0
        %v6051 = vsel %vm1700, %v5990, 0
        %v6053 = vsel %vm1700, %v5993, 0
        %v6055 = vsel %vm1700, %v5995, 0
        %v6057 = vsel %vm1700, %v5998, 0
        %v6059 = vsel %vm1700, %v6000, 0
        %v6062 = vsel %vm1781, %v1392, 0
        %6064 = vmatpush.msra.mxu0 0.0
        %6065 = vmatpush.msra.mxu0 0.0
        %6066 = vmatpush.msra.mxu0 0.0
        %6067 = vmatpush.msra.mxu0 0.0
        %6068 = vmatpush.msra.mxu0 0.0
        %6069 = vmatpush.msra.mxu0 0.0
        %6070 = vmatpush.msra.mxu0 0.0
        %6071 = vmatpush.msra.mxu0 0.0
        %6072 = vmatpush.msra.mxu0 0.0
        %6073 = vmatpush.msra.mxu0 0.0
        %6074 = vmatpush.msra.mxu0 0.0
        %6075 = vmatpush.msra.mxu0 0.0
        %6076 = vmatpush.msra.mxu0 0.0
        %6077 = vmatpush.msra.mxu0 0.0
        %6078 = vmatpush.msra.mxu0 0.0
        %6079 = vmatpush.msra.mxu0 %v6062
        %6080 = vmatmul.f32.gmra.mxu0 %v2320
        %v6081 = vpop.f32.mrf.mxu0
        %v6082 = vadd.f32 0.0, %v6081
        %6083 = vmatmul.f32.gmra.mxu0 %v2322
        %v6084 = vpop.f32.mrf.mxu0
        %v6085 = vadd.f32 0.0, %v6084
        %6086 = vmatmul.f32.gmra.mxu0 %v6001
        %v6087 = vpop.f32.mrf.mxu0
        %v6088 = vadd.f32 0.0, %v6087
        %6089 = vmatmul.f32.gmra.mxu0 %v6003
        %v6090 = vpop.f32.mrf.mxu0
        %v6091 = vadd.f32 0.0, %v6090
        %6092 = vmatmul.f32.gmra.mxu0 %v6005
        %v6093 = vpop.f32.mrf.mxu0
        %v6094 = vadd.f32 0.0, %v6093
        %6095 = vmatmul.f32.gmra.mxu0 %v6007
        %v6096 = vpop.f32.mrf.mxu0
        %v6097 = vadd.f32 0.0, %v6096
        %6098 = vmatmul.f32.gmra.mxu0 %v6009
        %v6099 = vpop.f32.mrf.mxu0
        %v6100 = vadd.f32 0.0, %v6099
        %6101 = vmatmul.f32.gmra.mxu0 %v6011
        %v6102 = vpop.f32.mrf.mxu0
        %v6103 = vadd.f32 0.0, %v6102
        %6104 = vmatmul.f32.gmra.mxu0 %v6013
        %v6105 = vpop.f32.mrf.mxu0
        %v6106 = vadd.f32 0.0, %v6105
        %6107 = vmatmul.f32.gmra.mxu0 %v6015
        %v6108 = vpop.f32.mrf.mxu0
        %v6109 = vadd.f32 0.0, %v6108
        %6110 = vmatmul.f32.gmra.mxu0 %v6017
        %v6111 = vpop.f32.mrf.mxu0
        %v6112 = vadd.f32 0.0, %v6111
        %6113 = vmatmul.f32.gmra.mxu0 %v6019
        %v6114 = vpop.f32.mrf.mxu0
        %v6115 = vadd.f32 0.0, %v6114
        %6116 = vmatmul.f32.gmra.mxu0 %v6021
        %v6117 = vpop.f32.mrf.mxu0
        %v6118 = vadd.f32 0.0, %v6117
        %6119 = vmatmul.f32.gmra.mxu0 %v6023
        %v6120 = vpop.f32.mrf.mxu0
        %v6121 = vadd.f32 0.0, %v6120
        %6122 = vmatmul.f32.gmra.mxu0 %v6025
        %v6123 = vpop.f32.mrf.mxu0
        %v6124 = vadd.f32 0.0, %v6123
        %6125 = vmatmul.f32.gmra.mxu0 %v6027
        %v6126 = vpop.f32.mrf.mxu0
        %v6127 = vadd.f32 0.0, %v6126
        %6128 = vmatmul.f32.gmra.mxu0 %v6029
        %v6129 = vpop.f32.mrf.mxu0
        %v6130 = vadd.f32 0.0, %v6129
        %6131 = vmatmul.f32.gmra.mxu0 %v6031
        %v6132 = vpop.f32.mrf.mxu0
        %v6133 = vadd.f32 0.0, %v6132
        %6134 = vmatmul.f32.gmra.mxu0 %v6033
        %v6135 = vpop.f32.mrf.mxu0
        %v6136 = vadd.f32 0.0, %v6135
        %6137 = vmatmul.f32.gmra.mxu0 %v6035
        %v6138 = vpop.f32.mrf.mxu0
        %v6139 = vadd.f32 0.0, %v6138
        %6140 = vmatmul.f32.gmra.mxu0 %v6037
        %v6141 = vpop.f32.mrf.mxu0
        %v6142 = vadd.f32 0.0, %v6141
        %6143 = vmatmul.f32.gmra.mxu0 %v6039
        %v6144 = vpop.f32.mrf.mxu0
        %v6145 = vadd.f32 0.0, %v6144
        %6146 = vmatmul.f32.gmra.mxu0 %v6041
        %v6147 = vpop.f32.mrf.mxu0
        %v6148 = vadd.f32 0.0, %v6147
        %6149 = vmatmul.f32.gmra.mxu0 %v6043
        %v6150 = vpop.f32.mrf.mxu0
        %v6151 = vadd.f32 0.0, %v6150
        %6152 = vmatmul.f32.gmra.mxu0 %v6045
        %v6153 = vpop.f32.mrf.mxu0
        %v6154 = vadd.f32 0.0, %v6153
        %6155 = vmatmul.f32.gmra.mxu0 %v6047
        %v6156 = vpop.f32.mrf.mxu0
        %v6157 = vadd.f32 0.0, %v6156
        %6158 = vmatmul.f32.gmra.mxu0 %v6049
        %v6159 = vpop.f32.mrf.mxu0
        %v6160 = vadd.f32 0.0, %v6159
        %6161 = vmatmul.f32.gmra.mxu0 %v6051
        %v6162 = vpop.f32.mrf.mxu0
        %v6163 = vadd.f32 0.0, %v6162
        %6164 = vmatmul.f32.gmra.mxu0 %v6053
        %v6165 = vpop.f32.mrf.mxu0
        %v6166 = vadd.f32 0.0, %v6165
        %6167 = vmatmul.f32.gmra.mxu0 %v6055
        %v6168 = vpop.f32.mrf.mxu0
        %v6169 = vadd.f32 0.0, %v6168
        %6170 = vmatmul.f32.gmra.mxu0 %v6057
        %v6171 = vpop.f32.mrf.mxu0
        %v6172 = vadd.f32 0.0, %v6171
        %6173 = vmatmul.f32.gmra.mxu0 %v6059
        %v6174 = vpop.f32.mrf.mxu0
        %v6175 = vadd.f32 0.0, %v6174
        %6176 = vdwg.mxu0
        %v6177 = vadd.f32 %v5894, %v6082
        %v6178 = vadd.f32 %v5895, %v6085
        %v6179 = vadd.f32 %v5896, %v6088
        %v6180 = vadd.f32 %v5897, %v6091
        %v6181 = vadd.f32 %v5898, %v6094
        %v6182 = vadd.f32 %v5899, %v6097
        %v6183 = vadd.f32 %v5900, %v6100
        %v6184 = vadd.f32 %v5901, %v6103
        %v6185 = vadd.f32 %v5902, %v6106
        %v6186 = vadd.f32 %v5903, %v6109
        %v6187 = vadd.f32 %v5904, %v6112
        %v6188 = vadd.f32 %v5905, %v6115
        %v6189 = vadd.f32 %v5906, %v6118
        %v6190 = vadd.f32 %v5907, %v6121
        %v6191 = vadd.f32 %v5908, %v6124
        %v6192 = vadd.f32 %v5909, %v6127
        %v6193 = vadd.f32 %v5910, %v6130
        %v6194 = vadd.f32 %v5911, %v6133
        %v6195 = vadd.f32 %v5912, %v6136
        %v6196 = vadd.f32 %v5913, %v6139
        %v6197 = vadd.f32 %v5914, %v6142
        %v6198 = vadd.f32 %v5915, %v6145
        %v6199 = vadd.f32 %v5916, %v6148
        %v6200 = vadd.f32 %v5917, %v6151
        %v6201 = vadd.f32 %v5918, %v6154
        %v6202 = vadd.f32 %v5919, %v6157
        %v6203 = vadd.f32 %v5920, %v6160
        %v6204 = vadd.f32 %v5921, %v6163
        %v6205 = vadd.f32 %v5922, %v6166
        %v6206 = vadd.f32 %v5923, %v6169
        %v6207 = vadd.f32 %v5924, %v6172
        %v6208 = vadd.f32 %v5925, %v6175
        %v6210 = vsel %vm1700, %v5383, 0
        %v6212 = vsel %vm1700, %v5335, 0
        %v6215 = vsel %vm1781, %v1393, 0
        %6217 = vmatpush.msra.mxu0 0.0
        %6218 = vmatpush.msra.mxu0 0.0
        %6219 = vmatpush.msra.mxu0 0.0
        %6220 = vmatpush.msra.mxu0 0.0
        %6221 = vmatpush.msra.mxu0 0.0
        %6222 = vmatpush.msra.mxu0 0.0
        %6223 = vmatpush.msra.mxu0 0.0
        %6224 = vmatpush.msra.mxu0 0.0
        %6225 = vmatpush.msra.mxu0 0.0
        %6226 = vmatpush.msra.mxu0 0.0
        %6227 = vmatpush.msra.mxu0 0.0
        %6228 = vmatpush.msra.mxu0 0.0
        %6229 = vmatpush.msra.mxu0 0.0
        %6230 = vmatpush.msra.mxu0 0.0
        %6231 = vmatpush.msra.mxu0 0.0
        %6232 = vmatpush.msra.mxu0 %v6215
        %6233 = vmatmul.f32.gmra.mxu0 %v5406
        %v6234 = vpop.f32.mrf.mxu0
        %v6235 = vadd.f32 0.0, %v6234
        %6236 = vmatmul.f32.gmra.mxu0 %v5408
        %v6237 = vpop.f32.mrf.mxu0
        %v6238 = vadd.f32 0.0, %v6237
        %6239 = vmatmul.f32.gmra.mxu0 %v5411
        %v6240 = vpop.f32.mrf.mxu0
        %v6241 = vadd.f32 0.0, %v6240
        %6242 = vmatmul.f32.gmra.mxu0 %v5413
        %v6243 = vpop.f32.mrf.mxu0
        %v6244 = vadd.f32 0.0, %v6243
        %6245 = vmatmul.f32.gmra.mxu0 %v5416
        %v6246 = vpop.f32.mrf.mxu0
        %v6247 = vadd.f32 0.0, %v6246
        %6248 = vmatmul.f32.gmra.mxu0 %v5418
        %v6249 = vpop.f32.mrf.mxu0
        %v6250 = vadd.f32 0.0, %v6249
        %6251 = vmatmul.f32.gmra.mxu0 %v5421
        %v6252 = vpop.f32.mrf.mxu0
        %v6253 = vadd.f32 0.0, %v6252
        %6254 = vmatmul.f32.gmra.mxu0 %v5423
        %v6255 = vpop.f32.mrf.mxu0
        %v6256 = vadd.f32 0.0, %v6255
        %6257 = vmatmul.f32.gmra.mxu0 %v5426
        %v6258 = vpop.f32.mrf.mxu0
        %v6259 = vadd.f32 0.0, %v6258
        %6260 = vmatmul.f32.gmra.mxu0 %v5428
        %v6261 = vpop.f32.mrf.mxu0
        %v6262 = vadd.f32 0.0, %v6261
        %6263 = vmatmul.f32.gmra.mxu0 %v5431
        %v6264 = vpop.f32.mrf.mxu0
        %v6265 = vadd.f32 0.0, %v6264
        %6266 = vmatmul.f32.gmra.mxu0 %v5433
        %v6267 = vpop.f32.mrf.mxu0
        %v6268 = vadd.f32 0.0, %v6267
        %6269 = vmatmul.f32.gmra.mxu0 %v5436
        %v6270 = vpop.f32.mrf.mxu0
        %v6271 = vadd.f32 0.0, %v6270
        %6272 = vmatmul.f32.gmra.mxu0 %v5438
        %v6273 = vpop.f32.mrf.mxu0
        %v6274 = vadd.f32 0.0, %v6273
        %6275 = vmatmul.f32.gmra.mxu0 %v5441
        %v6276 = vpop.f32.mrf.mxu0
        %v6277 = vadd.f32 0.0, %v6276
        %6278 = vmatmul.f32.gmra.mxu0 %v5443
        %v6279 = vpop.f32.mrf.mxu0
        %v6280 = vadd.f32 0.0, %v6279
        %6281 = vmatmul.f32.gmra.mxu0 %v5446
        %v6282 = vpop.f32.mrf.mxu0
        %v6283 = vadd.f32 0.0, %v6282
        %6284 = vmatmul.f32.gmra.mxu0 %v5448
        %v6285 = vpop.f32.mrf.mxu0
        %v6286 = vadd.f32 0.0, %v6285
        %6287 = vmatmul.f32.gmra.mxu0 %v5451
        %v6288 = vpop.f32.mrf.mxu0
        %v6289 = vadd.f32 0.0, %v6288
        %6290 = vmatmul.f32.gmra.mxu0 %v5453
        %v6291 = vpop.f32.mrf.mxu0
        %v6292 = vadd.f32 0.0, %v6291
        %6293 = vmatmul.f32.gmra.mxu0 %v5456
        %v6294 = vpop.f32.mrf.mxu0
        %v6295 = vadd.f32 0.0, %v6294
        %6296 = vmatmul.f32.gmra.mxu0 %v5458
        %v6297 = vpop.f32.mrf.mxu0
        %v6298 = vadd.f32 0.0, %v6297
        %6299 = vmatmul.f32.gmra.mxu0 %v5461
        %v6300 = vpop.f32.mrf.mxu0
        %v6301 = vadd.f32 0.0, %v6300
        %6302 = vmatmul.f32.gmra.mxu0 %v5463
        %v6303 = vpop.f32.mrf.mxu0
        %v6304 = vadd.f32 0.0, %v6303
        %6305 = vmatmul.f32.gmra.mxu0 %v5466
        %v6306 = vpop.f32.mrf.mxu0
        %v6307 = vadd.f32 0.0, %v6306
        %6308 = vmatmul.f32.gmra.mxu0 %v5468
        %v6309 = vpop.f32.mrf.mxu0
        %v6310 = vadd.f32 0.0, %v6309
        %6311 = vmatmul.f32.gmra.mxu0 %v5471
        %v6312 = vpop.f32.mrf.mxu0
        %v6313 = vadd.f32 0.0, %v6312
        %6314 = vmatmul.f32.gmra.mxu0 %v5473
        %v6315 = vpop.f32.mrf.mxu0
        %v6316 = vadd.f32 0.0, %v6315
        %6317 = vmatmul.f32.gmra.mxu0 %v5476
        %v6318 = vpop.f32.mrf.mxu0
        %v6319 = vadd.f32 0.0, %v6318
        %6320 = vmatmul.f32.gmra.mxu0 %v5478
        %v6321 = vpop.f32.mrf.mxu0
        %v6322 = vadd.f32 0.0, %v6321
        %6323 = vmatmul.f32.gmra.mxu0 %v6210
        %v6324 = vpop.f32.mrf.mxu0
        %v6325 = vadd.f32 0.0, %v6324
        %6326 = vmatmul.f32.gmra.mxu0 %v6212
        %v6327 = vpop.f32.mrf.mxu0
        %v6328 = vadd.f32 0.0, %v6327
        %6329 = vdwg.mxu0
        %v6330 = vadd.f32 %v6177, %v6235
        %v6331 = vadd.f32 %v6178, %v6238
        %v6332 = vadd.f32 %v6179, %v6241
        %v6333 = vadd.f32 %v6180, %v6244
        %v6334 = vadd.f32 %v6181, %v6247
        %v6335 = vadd.f32 %v6182, %v6250
        %v6336 = vadd.f32 %v6183, %v6253
        %v6337 = vadd.f32 %v6184, %v6256
        %v6338 = vadd.f32 %v6185, %v6259
        %v6339 = vadd.f32 %v6186, %v6262
        %v6340 = vadd.f32 %v6187, %v6265
        %v6341 = vadd.f32 %v6188, %v6268
        %v6342 = vadd.f32 %v6189, %v6271
        %v6343 = vadd.f32 %v6190, %v6274
        %v6344 = vadd.f32 %v6191, %v6277
        %v6345 = vadd.f32 %v6192, %v6280
        %v6346 = vadd.f32 %v6193, %v6283
        %v6347 = vadd.f32 %v6194, %v6286
        %v6348 = vadd.f32 %v6195, %v6289
        %v6349 = vadd.f32 %v6196, %v6292
        %v6350 = vadd.f32 %v6197, %v6295
        %v6351 = vadd.f32 %v6198, %v6298
        %v6352 = vadd.f32 %v6199, %v6301
        %v6353 = vadd.f32 %v6200, %v6304
        %v6354 = vadd.f32 %v6201, %v6307
        %v6355 = vadd.f32 %v6202, %v6310
        %v6356 = vadd.f32 %v6203, %v6313
        %v6357 = vadd.f32 %v6204, %v6316
        %v6358 = vadd.f32 %v6205, %v6319
        %v6359 = vadd.f32 %v6206, %v6322
        %v6360 = vadd.f32 %v6207, %v6325
        %v6361 = vadd.f32 %v6208, %v6328
        %v6363 = vrot.slane %v5383, 1
        %v6364 = vrot.slane %v5335, 1
        %v6365 = vsel %vm1946, %v6363, %v6364
        %v6366 = vrot.slane %v5399, 1
        %v6367 = vsel %vm1946, %v6364, %v6366
        %v6368 = vsel %vm1700, %v6365, 0
        %v6370 = vsel %vm1700, %v6367, 0
        %v6373 = vsel %vm1781, %v1394, 0
        %6375 = vmatpush.msra.mxu0 0.0
        %6376 = vmatpush.msra.mxu0 0.0
        %6377 = vmatpush.msra.mxu0 0.0
        %6378 = vmatpush.msra.mxu0 0.0
        %6379 = vmatpush.msra.mxu0 0.0
        %6380 = vmatpush.msra.mxu0 0.0
        %6381 = vmatpush.msra.mxu0 0.0
        %6382 = vmatpush.msra.mxu0 0.0
        %6383 = vmatpush.msra.mxu0 0.0
        %6384 = vmatpush.msra.mxu0 0.0
        %6385 = vmatpush.msra.mxu0 0.0
        %6386 = vmatpush.msra.mxu0 0.0
        %6387 = vmatpush.msra.mxu0 0.0
        %6388 = vmatpush.msra.mxu0 0.0
        %6389 = vmatpush.msra.mxu0 0.0
        %6390 = vmatpush.msra.mxu0 %v6373
        %6391 = vmatmul.f32.gmra.mxu0 %v5718
        %v6392 = vpop.f32.mrf.mxu0
        %v6393 = vadd.f32 0.0, %v6392
        %6394 = vmatmul.f32.gmra.mxu0 %v5720
        %v6395 = vpop.f32.mrf.mxu0
        %v6396 = vadd.f32 0.0, %v6395
        %6397 = vmatmul.f32.gmra.mxu0 %v5722
        %v6398 = vpop.f32.mrf.mxu0
        %v6399 = vadd.f32 0.0, %v6398
        %6400 = vmatmul.f32.gmra.mxu0 %v5724
        %v6401 = vpop.f32.mrf.mxu0
        %v6402 = vadd.f32 0.0, %v6401
        %6403 = vmatmul.f32.gmra.mxu0 %v5726
        %v6404 = vpop.f32.mrf.mxu0
        %v6405 = vadd.f32 0.0, %v6404
        %6406 = vmatmul.f32.gmra.mxu0 %v5728
        %v6407 = vpop.f32.mrf.mxu0
        %v6408 = vadd.f32 0.0, %v6407
        %6409 = vmatmul.f32.gmra.mxu0 %v5730
        %v6410 = vpop.f32.mrf.mxu0
        %v6411 = vadd.f32 0.0, %v6410
        %6412 = vmatmul.f32.gmra.mxu0 %v5732
        %v6413 = vpop.f32.mrf.mxu0
        %v6414 = vadd.f32 0.0, %v6413
        %6415 = vmatmul.f32.gmra.mxu0 %v5734
        %v6416 = vpop.f32.mrf.mxu0
        %v6417 = vadd.f32 0.0, %v6416
        %6418 = vmatmul.f32.gmra.mxu0 %v5736
        %v6419 = vpop.f32.mrf.mxu0
        %v6420 = vadd.f32 0.0, %v6419
        %6421 = vmatmul.f32.gmra.mxu0 %v5738
        %v6422 = vpop.f32.mrf.mxu0
        %v6423 = vadd.f32 0.0, %v6422
        %6424 = vmatmul.f32.gmra.mxu0 %v5740
        %v6425 = vpop.f32.mrf.mxu0
        %v6426 = vadd.f32 0.0, %v6425
        %6427 = vmatmul.f32.gmra.mxu0 %v5742
        %v6428 = vpop.f32.mrf.mxu0
        %v6429 = vadd.f32 0.0, %v6428
        %6430 = vmatmul.f32.gmra.mxu0 %v5744
        %v6431 = vpop.f32.mrf.mxu0
        %v6432 = vadd.f32 0.0, %v6431
        %6433 = vmatmul.f32.gmra.mxu0 %v5746
        %v6434 = vpop.f32.mrf.mxu0
        %v6435 = vadd.f32 0.0, %v6434
        %6436 = vmatmul.f32.gmra.mxu0 %v5748
        %v6437 = vpop.f32.mrf.mxu0
        %v6438 = vadd.f32 0.0, %v6437
        %6439 = vmatmul.f32.gmra.mxu0 %v5750
        %v6440 = vpop.f32.mrf.mxu0
        %v6441 = vadd.f32 0.0, %v6440
        %6442 = vmatmul.f32.gmra.mxu0 %v5752
        %v6443 = vpop.f32.mrf.mxu0
        %v6444 = vadd.f32 0.0, %v6443
        %6445 = vmatmul.f32.gmra.mxu0 %v5754
        %v6446 = vpop.f32.mrf.mxu0
        %v6447 = vadd.f32 0.0, %v6446
        %6448 = vmatmul.f32.gmra.mxu0 %v5756
        %v6449 = vpop.f32.mrf.mxu0
        %v6450 = vadd.f32 0.0, %v6449
        %6451 = vmatmul.f32.gmra.mxu0 %v5758
        %v6452 = vpop.f32.mrf.mxu0
        %v6453 = vadd.f32 0.0, %v6452
        %6454 = vmatmul.f32.gmra.mxu0 %v5760
        %v6455 = vpop.f32.mrf.mxu0
        %v6456 = vadd.f32 0.0, %v6455
        %6457 = vmatmul.f32.gmra.mxu0 %v5762
        %v6458 = vpop.f32.mrf.mxu0
        %v6459 = vadd.f32 0.0, %v6458
        %6460 = vmatmul.f32.gmra.mxu0 %v5764
        %v6461 = vpop.f32.mrf.mxu0
        %v6462 = vadd.f32 0.0, %v6461
        %6463 = vmatmul.f32.gmra.mxu0 %v5766
        %v6464 = vpop.f32.mrf.mxu0
        %v6465 = vadd.f32 0.0, %v6464
        %6466 = vmatmul.f32.gmra.mxu0 %v5768
        %v6467 = vpop.f32.mrf.mxu0
        %v6468 = vadd.f32 0.0, %v6467
        %6469 = vmatmul.f32.gmra.mxu0 %v5770
        %v6470 = vpop.f32.mrf.mxu0
        %v6471 = vadd.f32 0.0, %v6470
        %6472 = vmatmul.f32.gmra.mxu0 %v5772
        %v6473 = vpop.f32.mrf.mxu0
        %v6474 = vadd.f32 0.0, %v6473
        %6475 = vmatmul.f32.gmra.mxu0 %v5774
        %v6476 = vpop.f32.mrf.mxu0
        %v6477 = vadd.f32 0.0, %v6476
        %6478 = vmatmul.f32.gmra.mxu0 %v5776
        %v6479 = vpop.f32.mrf.mxu0
        %v6480 = vadd.f32 0.0, %v6479
        %6481 = vmatmul.f32.gmra.mxu0 %v6368
        %v6482 = vpop.f32.mrf.mxu0
        %v6483 = vadd.f32 0.0, %v6482
        %6484 = vmatmul.f32.gmra.mxu0 %v6370
        %v6485 = vpop.f32.mrf.mxu0
        %v6486 = vadd.f32 0.0, %v6485
        %6487 = vdwg.mxu0
        %v6488 = vadd.f32 %v6330, %v6393
        %v6489 = vadd.f32 %v6331, %v6396
        %v6490 = vadd.f32 %v6332, %v6399
        %v6491 = vadd.f32 %v6333, %v6402
        %v6492 = vadd.f32 %v6334, %v6405
        %v6493 = vadd.f32 %v6335, %v6408
        %v6494 = vadd.f32 %v6336, %v6411
        %v6495 = vadd.f32 %v6337, %v6414
        %v6496 = vadd.f32 %v6338, %v6417
        %v6497 = vadd.f32 %v6339, %v6420
        %v6498 = vadd.f32 %v6340, %v6423
        %v6499 = vadd.f32 %v6341, %v6426
        %v6500 = vadd.f32 %v6342, %v6429
        %v6501 = vadd.f32 %v6343, %v6432
        %v6502 = vadd.f32 %v6344, %v6435
        %v6503 = vadd.f32 %v6345, %v6438
        %v6504 = vadd.f32 %v6346, %v6441
        %v6505 = vadd.f32 %v6347, %v6444
        %v6506 = vadd.f32 %v6348, %v6447
        %v6507 = vadd.f32 %v6349, %v6450
        %v6508 = vadd.f32 %v6350, %v6453
        %v6509 = vadd.f32 %v6351, %v6456
        %v6510 = vadd.f32 %v6352, %v6459
        %v6511 = vadd.f32 %v6353, %v6462
        %v6512 = vadd.f32 %v6354, %v6465
        %v6513 = vadd.f32 %v6355, %v6468
        %v6514 = vadd.f32 %v6356, %v6471
        %v6515 = vadd.f32 %v6357, %v6474
        %v6516 = vadd.f32 %v6358, %v6477
        %v6517 = vadd.f32 %v6359, %v6480
        %v6518 = vadd.f32 %v6360, %v6483
        %v6519 = vadd.f32 %v6361, %v6486
        %v6520 = vrot.slane %v5383, 2
        %v6521 = vrot.slane %v5335, 2
        %v6522 = vsel %vm2239, %v6520, %v6521
        %v6523 = vrot.slane %v5399, 2
        %v6524 = vsel %vm2239, %v6521, %v6523
        %v6525 = vsel %vm1700, %v6522, 0
        %v6527 = vsel %vm1700, %v6524, 0
        %v6530 = vsel %vm1781, %v1395, 0
        %6532 = vmatpush.msra.mxu0 0.0
        %6533 = vmatpush.msra.mxu0 0.0
        %6534 = vmatpush.msra.mxu0 0.0
        %6535 = vmatpush.msra.mxu0 0.0
        %6536 = vmatpush.msra.mxu0 0.0
        %6537 = vmatpush.msra.mxu0 0.0
        %6538 = vmatpush.msra.mxu0 0.0
        %6539 = vmatpush.msra.mxu0 0.0
        %6540 = vmatpush.msra.mxu0 0.0
        %6541 = vmatpush.msra.mxu0 0.0
        %6542 = vmatpush.msra.mxu0 0.0
        %6543 = vmatpush.msra.mxu0 0.0
        %6544 = vmatpush.msra.mxu0 0.0
        %6545 = vmatpush.msra.mxu0 0.0
        %6546 = vmatpush.msra.mxu0 0.0
        %6547 = vmatpush.msra.mxu0 %v6530
        %6548 = vmatmul.f32.gmra.mxu0 %v6001
        %v6549 = vpop.f32.mrf.mxu0
        %v6550 = vadd.f32 0.0, %v6549
        %6551 = vmatmul.f32.gmra.mxu0 %v6003
        %v6552 = vpop.f32.mrf.mxu0
        %v6553 = vadd.f32 0.0, %v6552
        %6554 = vmatmul.f32.gmra.mxu0 %v6005
        %v6555 = vpop.f32.mrf.mxu0
        %v6556 = vadd.f32 0.0, %v6555
        %6557 = vmatmul.f32.gmra.mxu0 %v6007
        %v6558 = vpop.f32.mrf.mxu0
        %v6559 = vadd.f32 0.0, %v6558
        %6560 = vmatmul.f32.gmra.mxu0 %v6009
        %v6561 = vpop.f32.mrf.mxu0
        %v6562 = vadd.f32 0.0, %v6561
        %6563 = vmatmul.f32.gmra.mxu0 %v6011
        %v6564 = vpop.f32.mrf.mxu0
        %v6565 = vadd.f32 0.0, %v6564
        %6566 = vmatmul.f32.gmra.mxu0 %v6013
        %v6567 = vpop.f32.mrf.mxu0
        %v6568 = vadd.f32 0.0, %v6567
        %6569 = vmatmul.f32.gmra.mxu0 %v6015
        %v6570 = vpop.f32.mrf.mxu0
        %v6571 = vadd.f32 0.0, %v6570
        %6572 = vmatmul.f32.gmra.mxu0 %v6017
        %v6573 = vpop.f32.mrf.mxu0
        %v6574 = vadd.f32 0.0, %v6573
        %6575 = vmatmul.f32.gmra.mxu0 %v6019
        %v6576 = vpop.f32.mrf.mxu0
        %v6577 = vadd.f32 0.0, %v6576
        %6578 = vmatmul.f32.gmra.mxu0 %v6021
        %v6579 = vpop.f32.mrf.mxu0
        %v6580 = vadd.f32 0.0, %v6579
        %6581 = vmatmul.f32.gmra.mxu0 %v6023
        %v6582 = vpop.f32.mrf.mxu0
        %v6583 = vadd.f32 0.0, %v6582
        %6584 = vmatmul.f32.gmra.mxu0 %v6025
        %v6585 = vpop.f32.mrf.mxu0
        %v6586 = vadd.f32 0.0, %v6585
        %6587 = vmatmul.f32.gmra.mxu0 %v6027
        %v6588 = vpop.f32.mrf.mxu0
        %v6589 = vadd.f32 0.0, %v6588
        %6590 = vmatmul.f32.gmra.mxu0 %v6029
        %v6591 = vpop.f32.mrf.mxu0
        %v6592 = vadd.f32 0.0, %v6591
        %6593 = vmatmul.f32.gmra.mxu0 %v6031
        %v6594 = vpop.f32.mrf.mxu0
        %v6595 = vadd.f32 0.0, %v6594
        %6596 = vmatmul.f32.gmra.mxu0 %v6033
        %v6597 = vpop.f32.mrf.mxu0
        %v6598 = vadd.f32 0.0, %v6597
        %6599 = vmatmul.f32.gmra.mxu0 %v6035
        %v6600 = vpop.f32.mrf.mxu0
        %v6601 = vadd.f32 0.0, %v6600
        %6602 = vmatmul.f32.gmra.mxu0 %v6037
        %v6603 = vpop.f32.mrf.mxu0
        %v6604 = vadd.f32 0.0, %v6603
        %6605 = vmatmul.f32.gmra.mxu0 %v6039
        %v6606 = vpop.f32.mrf.mxu0
        %v6607 = vadd.f32 0.0, %v6606
        %6608 = vmatmul.f32.gmra.mxu0 %v6041
        %v6609 = vpop.f32.mrf.mxu0
        %v6610 = vadd.f32 0.0, %v6609
        %6611 = vmatmul.f32.gmra.mxu0 %v6043
        %v6612 = vpop.f32.mrf.mxu0
        %v6613 = vadd.f32 0.0, %v6612
        %6614 = vmatmul.f32.gmra.mxu0 %v6045
        %v6615 = vpop.f32.mrf.mxu0
        %v6616 = vadd.f32 0.0, %v6615
        %6617 = vmatmul.f32.gmra.mxu0 %v6047
        %v6618 = vpop.f32.mrf.mxu0
        %v6619 = vadd.f32 0.0, %v6618
        %6620 = vmatmul.f32.gmra.mxu0 %v6049
        %v6621 = vpop.f32.mrf.mxu0
        %v6622 = vadd.f32 0.0, %v6621
        %6623 = vmatmul.f32.gmra.mxu0 %v6051
        %v6624 = vpop.f32.mrf.mxu0
        %v6625 = vadd.f32 0.0, %v6624
        %6626 = vmatmul.f32.gmra.mxu0 %v6053
        %v6627 = vpop.f32.mrf.mxu0
        %v6628 = vadd.f32 0.0, %v6627
        %6629 = vmatmul.f32.gmra.mxu0 %v6055
        %v6630 = vpop.f32.mrf.mxu0
        %v6631 = vadd.f32 0.0, %v6630
        %6632 = vmatmul.f32.gmra.mxu0 %v6057
        %v6633 = vpop.f32.mrf.mxu0
        %v6634 = vadd.f32 0.0, %v6633
        %6635 = vmatmul.f32.gmra.mxu0 %v6059
        %v6636 = vpop.f32.mrf.mxu0
        %v6637 = vadd.f32 0.0, %v6636
        %6638 = vmatmul.f32.gmra.mxu0 %v6525
        %v6639 = vpop.f32.mrf.mxu0
        %v6640 = vadd.f32 0.0, %v6639
        %6641 = vmatmul.f32.gmra.mxu0 %v6527
        %v6642 = vpop.f32.mrf.mxu0
        %v6643 = vadd.f32 0.0, %v6642
        %6644 = vdwg.mxu0
        %v6645 = vadd.f32 %v6488, %v6550
        %v6646 = vadd.f32 %v6489, %v6553
        %v6647 = vadd.f32 %v6490, %v6556
        %v6648 = vadd.f32 %v6491, %v6559
        %v6649 = vadd.f32 %v6492, %v6562
        %v6650 = vadd.f32 %v6493, %v6565
        %v6651 = vadd.f32 %v6494, %v6568
        %v6652 = vadd.f32 %v6495, %v6571
        %v6653 = vadd.f32 %v6496, %v6574
        %v6654 = vadd.f32 %v6497, %v6577
        %v6655 = vadd.f32 %v6498, %v6580
        %v6656 = vadd.f32 %v6499, %v6583
        %v6657 = vadd.f32 %v6500, %v6586
        %v6658 = vadd.f32 %v6501, %v6589
        %v6659 = vadd.f32 %v6502, %v6592
        %v6660 = vadd.f32 %v6503, %v6595
        %v6661 = vadd.f32 %v6504, %v6598
        %v6662 = vadd.f32 %v6505, %v6601
        %v6663 = vadd.f32 %v6506, %v6604
        %v6664 = vadd.f32 %v6507, %v6607
        %v6665 = vadd.f32 %v6508, %v6610
        %v6666 = vadd.f32 %v6509, %v6613
        %v6667 = vadd.f32 %v6510, %v6616
        %v6668 = vadd.f32 %v6511, %v6619
        %v6669 = vadd.f32 %v6512, %v6622
        %v6670 = vadd.f32 %v6513, %v6625
        %v6671 = vadd.f32 %v6514, %v6628
        %v6672 = vadd.f32 %v6515, %v6631
        %v6673 = vadd.f32 %v6516, %v6634
        %v6674 = vadd.f32 %v6517, %v6637
        %v6675 = vadd.f32 %v6518, %v6640
        %v6676 = vadd.f32 %v6519, %v6643
        %v6678 = vsel %vm1781, %v1396, 0
        %6680 = vmatpush.msra.mxu0 0.0
        %6681 = vmatpush.msra.mxu0 0.0
        %6682 = vmatpush.msra.mxu0 0.0
        %6683 = vmatpush.msra.mxu0 0.0
        %6684 = vmatpush.msra.mxu0 0.0
        %6685 = vmatpush.msra.mxu0 0.0
        %6686 = vmatpush.msra.mxu0 0.0
        %6687 = vmatpush.msra.mxu0 0.0
        %6688 = vmatpush.msra.mxu0 0.0
        %6689 = vmatpush.msra.mxu0 0.0
        %6690 = vmatpush.msra.mxu0 0.0
        %6691 = vmatpush.msra.mxu0 0.0
        %6692 = vmatpush.msra.mxu0 0.0
        %6693 = vmatpush.msra.mxu0 0.0
        %6694 = vmatpush.msra.mxu0 0.0
        %6695 = vmatpush.msra.mxu0 %v6678
        %6696 = vmatmul.f32.gmra.mxu0 %v5411
        %v6697 = vpop.f32.mrf.mxu0
        %v6698 = vadd.f32 0.0, %v6697
        %6699 = vmatmul.f32.gmra.mxu0 %v5413
        %v6700 = vpop.f32.mrf.mxu0
        %v6701 = vadd.f32 0.0, %v6700
        %6702 = vmatmul.f32.gmra.mxu0 %v5416
        %v6703 = vpop.f32.mrf.mxu0
        %v6704 = vadd.f32 0.0, %v6703
        %6705 = vmatmul.f32.gmra.mxu0 %v5418
        %v6706 = vpop.f32.mrf.mxu0
        %v6707 = vadd.f32 0.0, %v6706
        %6708 = vmatmul.f32.gmra.mxu0 %v5421
        %v6709 = vpop.f32.mrf.mxu0
        %v6710 = vadd.f32 0.0, %v6709
        %6711 = vmatmul.f32.gmra.mxu0 %v5423
        %v6712 = vpop.f32.mrf.mxu0
        %v6713 = vadd.f32 0.0, %v6712
        %6714 = vmatmul.f32.gmra.mxu0 %v5426
        %v6715 = vpop.f32.mrf.mxu0
        %v6716 = vadd.f32 0.0, %v6715
        %6717 = vmatmul.f32.gmra.mxu0 %v5428
        %v6718 = vpop.f32.mrf.mxu0
        %v6719 = vadd.f32 0.0, %v6718
        %6720 = vmatmul.f32.gmra.mxu0 %v5431
        %v6721 = vpop.f32.mrf.mxu0
        %v6722 = vadd.f32 0.0, %v6721
        %6723 = vmatmul.f32.gmra.mxu0 %v5433
        %v6724 = vpop.f32.mrf.mxu0
        %v6725 = vadd.f32 0.0, %v6724
        %6726 = vmatmul.f32.gmra.mxu0 %v5436
        %v6727 = vpop.f32.mrf.mxu0
        %v6728 = vadd.f32 0.0, %v6727
        %6729 = vmatmul.f32.gmra.mxu0 %v5438
        %v6730 = vpop.f32.mrf.mxu0
        %v6731 = vadd.f32 0.0, %v6730
        %6732 = vmatmul.f32.gmra.mxu0 %v5441
        %v6733 = vpop.f32.mrf.mxu0
        %v6734 = vadd.f32 0.0, %v6733
        %6735 = vmatmul.f32.gmra.mxu0 %v5443
        %v6736 = vpop.f32.mrf.mxu0
        %v6737 = vadd.f32 0.0, %v6736
        %6738 = vmatmul.f32.gmra.mxu0 %v5446
        %v6739 = vpop.f32.mrf.mxu0
        %v6740 = vadd.f32 0.0, %v6739
        %6741 = vmatmul.f32.gmra.mxu0 %v5448
        %v6742 = vpop.f32.mrf.mxu0
        %v6743 = vadd.f32 0.0, %v6742
        %6744 = vmatmul.f32.gmra.mxu0 %v5451
        %v6745 = vpop.f32.mrf.mxu0
        %v6746 = vadd.f32 0.0, %v6745
        %6747 = vmatmul.f32.gmra.mxu0 %v5453
        %v6748 = vpop.f32.mrf.mxu0
        %v6749 = vadd.f32 0.0, %v6748
        %6750 = vmatmul.f32.gmra.mxu0 %v5456
        %v6751 = vpop.f32.mrf.mxu0
        %v6752 = vadd.f32 0.0, %v6751
        %6753 = vmatmul.f32.gmra.mxu0 %v5458
        %v6754 = vpop.f32.mrf.mxu0
        %v6755 = vadd.f32 0.0, %v6754
        %6756 = vmatmul.f32.gmra.mxu0 %v5461
        %v6757 = vpop.f32.mrf.mxu0
        %v6758 = vadd.f32 0.0, %v6757
        %6759 = vmatmul.f32.gmra.mxu0 %v5463
        %v6760 = vpop.f32.mrf.mxu0
        %v6761 = vadd.f32 0.0, %v6760
        %6762 = vmatmul.f32.gmra.mxu0 %v5466
        %v6763 = vpop.f32.mrf.mxu0
        %v6764 = vadd.f32 0.0, %v6763
        %6765 = vmatmul.f32.gmra.mxu0 %v5468
        %v6766 = vpop.f32.mrf.mxu0
        %v6767 = vadd.f32 0.0, %v6766
        %6768 = vmatmul.f32.gmra.mxu0 %v5471
        %v6769 = vpop.f32.mrf.mxu0
        %v6770 = vadd.f32 0.0, %v6769
        %6771 = vmatmul.f32.gmra.mxu0 %v5473
        %v6772 = vpop.f32.mrf.mxu0
        %v6773 = vadd.f32 0.0, %v6772
        %6774 = vmatmul.f32.gmra.mxu0 %v5476
        %v6775 = vpop.f32.mrf.mxu0
        %v6776 = vadd.f32 0.0, %v6775
        %6777 = vmatmul.f32.gmra.mxu0 %v5478
        %v6778 = vpop.f32.mrf.mxu0
        %v6779 = vadd.f32 0.0, %v6778
        %6780 = vmatmul.f32.gmra.mxu0 %v6210
        %v6781 = vpop.f32.mrf.mxu0
        %v6782 = vadd.f32 0.0, %v6781
        %6783 = vmatmul.f32.gmra.mxu0 %v6212
        %v6784 = vpop.f32.mrf.mxu0
        %v6785 = vadd.f32 0.0, %v6784
        %6786 = vmatmul.f32.gmra.mxu0 %v1702
        %v6787 = vpop.f32.mrf.mxu0
        %v6788 = vadd.f32 0.0, %v6787
        %6789 = vmatmul.f32.gmra.mxu0 %v1704
        %v6790 = vpop.f32.mrf.mxu0
        %v6791 = vadd.f32 0.0, %v6790
        %6792 = vdwg.mxu0
        %v6793 = vadd.f32 %v6645, %v6698
        %v6794 = vadd.f32 %v6646, %v6701
        %v6795 = vadd.f32 %v6647, %v6704
        %v6796 = vadd.f32 %v6648, %v6707
        %v6797 = vadd.f32 %v6649, %v6710
        %v6798 = vadd.f32 %v6650, %v6713
        %v6799 = vadd.f32 %v6651, %v6716
        %v6800 = vadd.f32 %v6652, %v6719
        %v6801 = vadd.f32 %v6653, %v6722
        %v6802 = vadd.f32 %v6654, %v6725
        %v6803 = vadd.f32 %v6655, %v6728
        %v6804 = vadd.f32 %v6656, %v6731
        %v6805 = vadd.f32 %v6657, %v6734
        %v6806 = vadd.f32 %v6658, %v6737
        %v6807 = vadd.f32 %v6659, %v6740
        %v6808 = vadd.f32 %v6660, %v6743
        %v6809 = vadd.f32 %v6661, %v6746
        %v6810 = vadd.f32 %v6662, %v6749
        %v6811 = vadd.f32 %v6663, %v6752
        %v6812 = vadd.f32 %v6664, %v6755
        %v6813 = vadd.f32 %v6665, %v6758
        %v6814 = vadd.f32 %v6666, %v6761
        %v6815 = vadd.f32 %v6667, %v6764
        %v6816 = vadd.f32 %v6668, %v6767
        %v6817 = vadd.f32 %v6669, %v6770
        %v6818 = vadd.f32 %v6670, %v6773
        %v6819 = vadd.f32 %v6671, %v6776
        %v6820 = vadd.f32 %v6672, %v6779
        %v6821 = vadd.f32 %v6673, %v6782
        %v6822 = vadd.f32 %v6674, %v6785
        %v6823 = vadd.f32 %v6675, %v6788
        %v6824 = vadd.f32 %v6676, %v6791
        %v6826 = vsel %vm1781, %v1397, 0
        %6828 = vmatpush.msra.mxu0 0.0
        %6829 = vmatpush.msra.mxu0 0.0
        %6830 = vmatpush.msra.mxu0 0.0
        %6831 = vmatpush.msra.mxu0 0.0
        %6832 = vmatpush.msra.mxu0 0.0
        %6833 = vmatpush.msra.mxu0 0.0
        %6834 = vmatpush.msra.mxu0 0.0
        %6835 = vmatpush.msra.mxu0 0.0
        %6836 = vmatpush.msra.mxu0 0.0
        %6837 = vmatpush.msra.mxu0 0.0
        %6838 = vmatpush.msra.mxu0 0.0
        %6839 = vmatpush.msra.mxu0 0.0
        %6840 = vmatpush.msra.mxu0 0.0
        %6841 = vmatpush.msra.mxu0 0.0
        %6842 = vmatpush.msra.mxu0 0.0
        %6843 = vmatpush.msra.mxu0 %v6826
        %6844 = vmatmul.f32.gmra.mxu0 %v5722
        %v6845 = vpop.f32.mrf.mxu0
        %v6846 = vadd.f32 0.0, %v6845
        %6847 = vmatmul.f32.gmra.mxu0 %v5724
        %v6848 = vpop.f32.mrf.mxu0
        %v6849 = vadd.f32 0.0, %v6848
        %6850 = vmatmul.f32.gmra.mxu0 %v5726
        %v6851 = vpop.f32.mrf.mxu0
        %v6852 = vadd.f32 0.0, %v6851
        %6853 = vmatmul.f32.gmra.mxu0 %v5728
        %v6854 = vpop.f32.mrf.mxu0
        %v6855 = vadd.f32 0.0, %v6854
        %6856 = vmatmul.f32.gmra.mxu0 %v5730
        %v6857 = vpop.f32.mrf.mxu0
        %v6858 = vadd.f32 0.0, %v6857
        %6859 = vmatmul.f32.gmra.mxu0 %v5732
        %v6860 = vpop.f32.mrf.mxu0
        %v6861 = vadd.f32 0.0, %v6860
        %6862 = vmatmul.f32.gmra.mxu0 %v5734
        %v6863 = vpop.f32.mrf.mxu0
        %v6864 = vadd.f32 0.0, %v6863
        %6865 = vmatmul.f32.gmra.mxu0 %v5736
        %v6866 = vpop.f32.mrf.mxu0
        %v6867 = vadd.f32 0.0, %v6866
        %6868 = vmatmul.f32.gmra.mxu0 %v5738
        %v6869 = vpop.f32.mrf.mxu0
        %v6870 = vadd.f32 0.0, %v6869
        %6871 = vmatmul.f32.gmra.mxu0 %v5740
        %v6872 = vpop.f32.mrf.mxu0
        %v6873 = vadd.f32 0.0, %v6872
        %6874 = vmatmul.f32.gmra.mxu0 %v5742
        %v6875 = vpop.f32.mrf.mxu0
        %v6876 = vadd.f32 0.0, %v6875
        %6877 = vmatmul.f32.gmra.mxu0 %v5744
        %v6878 = vpop.f32.mrf.mxu0
        %v6879 = vadd.f32 0.0, %v6878
        %6880 = vmatmul.f32.gmra.mxu0 %v5746
        %v6881 = vpop.f32.mrf.mxu0
        %v6882 = vadd.f32 0.0, %v6881
        %6883 = vmatmul.f32.gmra.mxu0 %v5748
        %v6884 = vpop.f32.mrf.mxu0
        %v6885 = vadd.f32 0.0, %v6884
        %6886 = vmatmul.f32.gmra.mxu0 %v5750
        %v6887 = vpop.f32.mrf.mxu0
        %v6888 = vadd.f32 0.0, %v6887
        %6889 = vmatmul.f32.gmra.mxu0 %v5752
        %v6890 = vpop.f32.mrf.mxu0
        %v6891 = vadd.f32 0.0, %v6890
        %6892 = vmatmul.f32.gmra.mxu0 %v5754
        %v6893 = vpop.f32.mrf.mxu0
        %v6894 = vadd.f32 0.0, %v6893
        %6895 = vmatmul.f32.gmra.mxu0 %v5756
        %v6896 = vpop.f32.mrf.mxu0
        %v6897 = vadd.f32 0.0, %v6896
        %6898 = vmatmul.f32.gmra.mxu0 %v5758
        %v6899 = vpop.f32.mrf.mxu0
        %v6900 = vadd.f32 0.0, %v6899
        %6901 = vmatmul.f32.gmra.mxu0 %v5760
        %v6902 = vpop.f32.mrf.mxu0
        %v6903 = vadd.f32 0.0, %v6902
        %6904 = vmatmul.f32.gmra.mxu0 %v5762
        %v6905 = vpop.f32.mrf.mxu0
        %v6906 = vadd.f32 0.0, %v6905
        %6907 = vmatmul.f32.gmra.mxu0 %v5764
        %v6908 = vpop.f32.mrf.mxu0
        %v6909 = vadd.f32 0.0, %v6908
        %6910 = vmatmul.f32.gmra.mxu0 %v5766
        %v6911 = vpop.f32.mrf.mxu0
        %v6912 = vadd.f32 0.0, %v6911
        %6913 = vmatmul.f32.gmra.mxu0 %v5768
        %v6914 = vpop.f32.mrf.mxu0
        %v6915 = vadd.f32 0.0, %v6914
        %6916 = vmatmul.f32.gmra.mxu0 %v5770
        %v6917 = vpop.f32.mrf.mxu0
        %v6918 = vadd.f32 0.0, %v6917
        %6919 = vmatmul.f32.gmra.mxu0 %v5772
        %v6920 = vpop.f32.mrf.mxu0
        %v6921 = vadd.f32 0.0, %v6920
        %6922 = vmatmul.f32.gmra.mxu0 %v5774
        %v6923 = vpop.f32.mrf.mxu0
        %v6924 = vadd.f32 0.0, %v6923
        %6925 = vmatmul.f32.gmra.mxu0 %v5776
        %v6926 = vpop.f32.mrf.mxu0
        %v6927 = vadd.f32 0.0, %v6926
        %6928 = vmatmul.f32.gmra.mxu0 %v6368
        %v6929 = vpop.f32.mrf.mxu0
        %v6930 = vadd.f32 0.0, %v6929
        %6931 = vmatmul.f32.gmra.mxu0 %v6370
        %v6932 = vpop.f32.mrf.mxu0
        %v6933 = vadd.f32 0.0, %v6932
        %6934 = vmatmul.f32.gmra.mxu0 %v2027
        %v6935 = vpop.f32.mrf.mxu0
        %v6936 = vadd.f32 0.0, %v6935
        %6937 = vmatmul.f32.gmra.mxu0 %v2029
        %v6938 = vpop.f32.mrf.mxu0
        %v6939 = vadd.f32 0.0, %v6938
        %6940 = vdwg.mxu0
        %v6941 = vadd.f32 %v6793, %v6846
        %v6942 = vadd.f32 %v6794, %v6849
        %v6943 = vadd.f32 %v6795, %v6852
        %v6944 = vadd.f32 %v6796, %v6855
        %v6945 = vadd.f32 %v6797, %v6858
        %v6946 = vadd.f32 %v6798, %v6861
        %v6947 = vadd.f32 %v6799, %v6864
        %v6948 = vadd.f32 %v6800, %v6867
        %v6949 = vadd.f32 %v6801, %v6870
        %v6950 = vadd.f32 %v6802, %v6873
        %v6951 = vadd.f32 %v6803, %v6876
        %v6952 = vadd.f32 %v6804, %v6879
        %v6953 = vadd.f32 %v6805, %v6882
        %v6954 = vadd.f32 %v6806, %v6885
        %v6955 = vadd.f32 %v6807, %v6888
        %v6956 = vadd.f32 %v6808, %v6891
        %v6957 = vadd.f32 %v6809, %v6894
        %v6958 = vadd.f32 %v6810, %v6897
        %v6959 = vadd.f32 %v6811, %v6900
        %v6960 = vadd.f32 %v6812, %v6903
        %v6961 = vadd.f32 %v6813, %v6906
        %v6962 = vadd.f32 %v6814, %v6909
        %v6963 = vadd.f32 %v6815, %v6912
        %v6964 = vadd.f32 %v6816, %v6915
        %v6965 = vadd.f32 %v6817, %v6918
        %v6966 = vadd.f32 %v6818, %v6921
        %v6967 = vadd.f32 %v6819, %v6924
        %v6968 = vadd.f32 %v6820, %v6927
        %v6969 = vadd.f32 %v6821, %v6930
        %v6970 = vadd.f32 %v6822, %v6933
        %v6971 = vadd.f32 %v6823, %v6936
        %v6972 = vadd.f32 %v6824, %v6939
        %v6974 = vsel %vm1781, %v1398, 0
        %6976 = vmatpush.msra.mxu0 0.0
        %6977 = vmatpush.msra.mxu0 0.0
        %6978 = vmatpush.msra.mxu0 0.0
        %6979 = vmatpush.msra.mxu0 0.0
        %6980 = vmatpush.msra.mxu0 0.0
        %6981 = vmatpush.msra.mxu0 0.0
        %6982 = vmatpush.msra.mxu0 0.0
        %6983 = vmatpush.msra.mxu0 0.0
        %6984 = vmatpush.msra.mxu0 0.0
        %6985 = vmatpush.msra.mxu0 0.0
        %6986 = vmatpush.msra.mxu0 0.0
        %6987 = vmatpush.msra.mxu0 0.0
        %6988 = vmatpush.msra.mxu0 0.0
        %6989 = vmatpush.msra.mxu0 0.0
        %6990 = vmatpush.msra.mxu0 0.0
        %6991 = vmatpush.msra.mxu0 %v6974
        %6992 = vmatmul.f32.gmra.mxu0 %v6005
        %v6993 = vpop.f32.mrf.mxu0
        %v6994 = vadd.f32 0.0, %v6993
        %6995 = vmatmul.f32.gmra.mxu0 %v6007
        %v6996 = vpop.f32.mrf.mxu0
        %v6997 = vadd.f32 0.0, %v6996
        %6998 = vmatmul.f32.gmra.mxu0 %v6009
        %v6999 = vpop.f32.mrf.mxu0
        %v7000 = vadd.f32 0.0, %v6999
        %7001 = vmatmul.f32.gmra.mxu0 %v6011
        %v7002 = vpop.f32.mrf.mxu0
        %v7003 = vadd.f32 0.0, %v7002
        %7004 = vmatmul.f32.gmra.mxu0 %v6013
        %v7005 = vpop.f32.mrf.mxu0
        %v7006 = vadd.f32 0.0, %v7005
        %7007 = vmatmul.f32.gmra.mxu0 %v6015
        %v7008 = vpop.f32.mrf.mxu0
        %v7009 = vadd.f32 0.0, %v7008
        %7010 = vmatmul.f32.gmra.mxu0 %v6017
        %v7011 = vpop.f32.mrf.mxu0
        %v7012 = vadd.f32 0.0, %v7011
        %7013 = vmatmul.f32.gmra.mxu0 %v6019
        %v7014 = vpop.f32.mrf.mxu0
        %v7015 = vadd.f32 0.0, %v7014
        %7016 = vmatmul.f32.gmra.mxu0 %v6021
        %v7017 = vpop.f32.mrf.mxu0
        %v7018 = vadd.f32 0.0, %v7017
        %7019 = vmatmul.f32.gmra.mxu0 %v6023
        %v7020 = vpop.f32.mrf.mxu0
        %v7021 = vadd.f32 0.0, %v7020
        %7022 = vmatmul.f32.gmra.mxu0 %v6025
        %v7023 = vpop.f32.mrf.mxu0
        %v7024 = vadd.f32 0.0, %v7023
        %7025 = vmatmul.f32.gmra.mxu0 %v6027
        %v7026 = vpop.f32.mrf.mxu0
        %v7027 = vadd.f32 0.0, %v7026
        %7028 = vmatmul.f32.gmra.mxu0 %v6029
        %v7029 = vpop.f32.mrf.mxu0
        %v7030 = vadd.f32 0.0, %v7029
        %7031 = vmatmul.f32.gmra.mxu0 %v6031
        %v7032 = vpop.f32.mrf.mxu0
        %v7033 = vadd.f32 0.0, %v7032
        %7034 = vmatmul.f32.gmra.mxu0 %v6033
        %v7035 = vpop.f32.mrf.mxu0
        %v7036 = vadd.f32 0.0, %v7035
        %7037 = vmatmul.f32.gmra.mxu0 %v6035
        %v7038 = vpop.f32.mrf.mxu0
        %v7039 = vadd.f32 0.0, %v7038
        %7040 = vmatmul.f32.gmra.mxu0 %v6037
        %v7041 = vpop.f32.mrf.mxu0
        %v7042 = vadd.f32 0.0, %v7041
        %7043 = vmatmul.f32.gmra.mxu0 %v6039
        %v7044 = vpop.f32.mrf.mxu0
        %v7045 = vadd.f32 0.0, %v7044
        %7046 = vmatmul.f32.gmra.mxu0 %v6041
        %v7047 = vpop.f32.mrf.mxu0
        %v7048 = vadd.f32 0.0, %v7047
        %7049 = vmatmul.f32.gmra.mxu0 %v6043
        %v7050 = vpop.f32.mrf.mxu0
        %v7051 = vadd.f32 0.0, %v7050
        %7052 = vmatmul.f32.gmra.mxu0 %v6045
        %v7053 = vpop.f32.mrf.mxu0
        %v7054 = vadd.f32 0.0, %v7053
        %7055 = vmatmul.f32.gmra.mxu0 %v6047
        %v7056 = vpop.f32.mrf.mxu0
        %v7057 = vadd.f32 0.0, %v7056
        %7058 = vmatmul.f32.gmra.mxu0 %v6049
        %v7059 = vpop.f32.mrf.mxu0
        %v7060 = vadd.f32 0.0, %v7059
        %7061 = vmatmul.f32.gmra.mxu0 %v6051
        %v7062 = vpop.f32.mrf.mxu0
        %v7063 = vadd.f32 0.0, %v7062
        %7064 = vmatmul.f32.gmra.mxu0 %v6053
        %v7065 = vpop.f32.mrf.mxu0
        %v7066 = vadd.f32 0.0, %v7065
        %7067 = vmatmul.f32.gmra.mxu0 %v6055
        %v7068 = vpop.f32.mrf.mxu0
        %v7069 = vadd.f32 0.0, %v7068
        %7070 = vmatmul.f32.gmra.mxu0 %v6057
        %v7071 = vpop.f32.mrf.mxu0
        %v7072 = vadd.f32 0.0, %v7071
        %7073 = vmatmul.f32.gmra.mxu0 %v6059
        %v7074 = vpop.f32.mrf.mxu0
        %v7075 = vadd.f32 0.0, %v7074
        %7076 = vmatmul.f32.gmra.mxu0 %v6525
        %v7077 = vpop.f32.mrf.mxu0
        %v7078 = vadd.f32 0.0, %v7077
        %7079 = vmatmul.f32.gmra.mxu0 %v6527
        %v7080 = vpop.f32.mrf.mxu0
        %v7081 = vadd.f32 0.0, %v7080
        %7082 = vmatmul.f32.gmra.mxu0 %v2320
        %v7083 = vpop.f32.mrf.mxu0
        %v7084 = vadd.f32 0.0, %v7083
        %7085 = vmatmul.f32.gmra.mxu0 %v2322
        %v7086 = vpop.f32.mrf.mxu0
        %v7087 = vadd.f32 0.0, %v7086
        %7088 = vdwg.mxu0
        %v7089 = vadd.f32 %v6941, %v6994
        %v7090 = vadd.f32 %v6942, %v6997
        %v7091 = vadd.f32 %v6943, %v7000
        %v7092 = vadd.f32 %v6944, %v7003
        %v7093 = vadd.f32 %v6945, %v7006
        %v7094 = vadd.f32 %v6946, %v7009
        %v7095 = vadd.f32 %v6947, %v7012
        %v7096 = vadd.f32 %v6948, %v7015
        %v7097 = vadd.f32 %v6949, %v7018
        %v7098 = vadd.f32 %v6950, %v7021
        %v7099 = vadd.f32 %v6951, %v7024
        %v7100 = vadd.f32 %v6952, %v7027
        %v7101 = vadd.f32 %v6953, %v7030
        %v7102 = vadd.f32 %v6954, %v7033
        %v7103 = vadd.f32 %v6955, %v7036
        %v7104 = vadd.f32 %v6956, %v7039
        %v7105 = vadd.f32 %v6957, %v7042
        %v7106 = vadd.f32 %v6958, %v7045
        %v7107 = vadd.f32 %v6959, %v7048
        %v7108 = vadd.f32 %v6960, %v7051
        %v7109 = vadd.f32 %v6961, %v7054
        %v7110 = vadd.f32 %v6962, %v7057
        %v7111 = vadd.f32 %v6963, %v7060
        %v7112 = vadd.f32 %v6964, %v7063
        %v7113 = vadd.f32 %v6965, %v7066
        %v7114 = vadd.f32 %v6966, %v7069
        %v7115 = vadd.f32 %v6967, %v7072
        %v7116 = vadd.f32 %v6968, %v7075
        %v7117 = vadd.f32 %v6969, %v7078
        %v7118 = vadd.f32 %v6970, %v7081
        %v7119 = vadd.f32 %v6971, %v7084
        %v7120 = vadd.f32 %v6972, %v7087
        %vm7121 = vcmp.ge.f32.partialorder %v7089, 0.0
        %vm7122 = vcmp.ge.f32.partialorder %v7090, 0.0
        %vm7123 = vcmp.ge.f32.partialorder %v7091, 0.0
        %vm7124 = vcmp.ge.f32.partialorder %v7092, 0.0
        %vm7125 = vcmp.ge.f32.partialorder %v7093, 0.0
        %vm7126 = vcmp.ge.f32.partialorder %v7094, 0.0
        %vm7127 = vcmp.ge.f32.partialorder %v7095, 0.0
        %vm7128 = vcmp.ge.f32.partialorder %v7096, 0.0
        %vm7129 = vcmp.ge.f32.partialorder %v7097, 0.0
        %vm7130 = vcmp.ge.f32.partialorder %v7098, 0.0
        %vm7131 = vcmp.ge.f32.partialorder %v7099, 0.0
        %vm7132 = vcmp.ge.f32.partialorder %v7100, 0.0
        %vm7133 = vcmp.ge.f32.partialorder %v7101, 0.0
        %vm7134 = vcmp.ge.f32.partialorder %v7102, 0.0
        %vm7135 = vcmp.ge.f32.partialorder %v7103, 0.0
        %vm7136 = vcmp.ge.f32.partialorder %v7104, 0.0
        %vm7137 = vcmp.ge.f32.partialorder %v7105, 0.0
        %vm7138 = vcmp.ge.f32.partialorder %v7106, 0.0
        %vm7139 = vcmp.ge.f32.partialorder %v7107, 0.0
        %vm7140 = vcmp.ge.f32.partialorder %v7108, 0.0
        %vm7141 = vcmp.ge.f32.partialorder %v7109, 0.0
        %vm7142 = vcmp.ge.f32.partialorder %v7110, 0.0
        %vm7143 = vcmp.ge.f32.partialorder %v7111, 0.0
        %vm7144 = vcmp.ge.f32.partialorder %v7112, 0.0
        %vm7145 = vcmp.ge.f32.partialorder %v7113, 0.0
        %vm7146 = vcmp.ge.f32.partialorder %v7114, 0.0
        %vm7147 = vcmp.ge.f32.partialorder %v7115, 0.0
        %vm7148 = vcmp.ge.f32.partialorder %v7116, 0.0
        %vm7149 = vcmp.ge.f32.partialorder %v7117, 0.0
        %vm7150 = vcmp.ge.f32.partialorder %v7118, 0.0
        %vm7151 = vcmp.ge.f32.partialorder %v7119, 0.0
        %vm7152 = vcmp.ge.f32.partialorder %v7120, 0.0
        %v7153 = vmul.f32 %v7089, 0.2
        %v7154 = vmul.f32 %v7090, 0.2
        %v7155 = vmul.f32 %v7091, 0.2
        %v7156 = vmul.f32 %v7092, 0.2
        %v7157 = vmul.f32 %v7093, 0.2
        %v7158 = vmul.f32 %v7094, 0.2
        %v7159 = vmul.f32 %v7095, 0.2
        %v7160 = vmul.f32 %v7096, 0.2
        %v7161 = vmul.f32 %v7097, 0.2
        %v7162 = vmul.f32 %v7098, 0.2
        %v7163 = vmul.f32 %v7099, 0.2
        %v7164 = vmul.f32 %v7100, 0.2
        %v7165 = vmul.f32 %v7101, 0.2
        %v7166 = vmul.f32 %v7102, 0.2
        %v7167 = vmul.f32 %v7103, 0.2
        %v7168 = vmul.f32 %v7104, 0.2
        %v7169 = vmul.f32 %v7105, 0.2
        %v7170 = vmul.f32 %v7106, 0.2
        %v7171 = vmul.f32 %v7107, 0.2
        %v7172 = vmul.f32 %v7108, 0.2
        %v7173 = vmul.f32 %v7109, 0.2
        %v7174 = vmul.f32 %v7110, 0.2
        %v7175 = vmul.f32 %v7111, 0.2
        %v7176 = vmul.f32 %v7112, 0.2
        %v7177 = vmul.f32 %v7113, 0.2
        %v7178 = vmul.f32 %v7114, 0.2
        %v7179 = vmul.f32 %v7115, 0.2
        %v7180 = vmul.f32 %v7116, 0.2
        %v7181 = vmul.f32 %v7117, 0.2
        %v7182 = vmul.f32 %v7118, 0.2
        %v7183 = vmul.f32 %v7119, 0.2
        %v7184 = vmul.f32 %v7120, 0.2
        %v7185 = vsel %vm7121, %v7089, %v7153
        %v7186 = vsel %vm7122, %v7090, %v7154
        %v7187 = vsel %vm7123, %v7091, %v7155
        %v7188 = vsel %vm7124, %v7092, %v7156
        %v7189 = vsel %vm7125, %v7093, %v7157
        %v7190 = vsel %vm7126, %v7094, %v7158
        %v7191 = vsel %vm7127, %v7095, %v7159
        %v7192 = vsel %vm7128, %v7096, %v7160
        %v7193 = vsel %vm7129, %v7097, %v7161
        %v7194 = vsel %vm7130, %v7098, %v7162
        %v7195 = vsel %vm7131, %v7099, %v7163
        %v7196 = vsel %vm7132, %v7100, %v7164
        %v7197 = vsel %vm7133, %v7101, %v7165
        %v7198 = vsel %vm7134, %v7102, %v7166
        %v7199 = vsel %vm7135, %v7103, %v7167
        %v7200 = vsel %vm7136, %v7104, %v7168
        %v7201 = vsel %vm7137, %v7105, %v7169
        %v7202 = vsel %vm7138, %v7106, %v7170
        %v7203 = vsel %vm7139, %v7107, %v7171
        %v7204 = vsel %vm7140, %v7108, %v7172
        %v7205 = vsel %vm7141, %v7109, %v7173
        %v7206 = vsel %vm7142, %v7110, %v7174
        %v7207 = vsel %vm7143, %v7111, %v7175
        %v7208 = vsel %vm7144, %v7112, %v7176
        %v7209 = vsel %vm7145, %v7113, %v7177
        %v7210 = vsel %vm7146, %v7114, %v7178
        %v7211 = vsel %vm7147, %v7115, %v7179
        %v7212 = vsel %vm7148, %v7116, %v7180
        %v7213 = vsel %vm7149, %v7117, %v7181
        %v7214 = vsel %vm7150, %v7118, %v7182
        %v7215 = vsel %vm7151, %v7119, %v7183
        %v7216 = vsel %vm7152, %v7120, %v7184
        %v7218 = vrot.slane %v1399, 4
        %v7219 = vsel %vm1700, %v413, 0
        %v7221 = vsel %vm1700, %v414, 0
        %v7223 = vsel %vm1700, %v415, 0
        %v7225 = vsel %vm1700, %v416, 0
        %v7227 = vsel %vm1700, %v417, 0
        %v7229 = vsel %vm1700, %v418, 0
        %v7231 = vsel %vm1700, %v419, 0
        %v7233 = vsel %vm1700, %v420, 0
        %v7235 = vsel %vm1700, %v421, 0
        %v7237 = vsel %vm1700, %v422, 0
        %v7239 = vsel %vm1700, %v423, 0
        %v7241 = vsel %vm1700, %v424, 0
        %v7243 = vsel %vm1700, %v425, 0
        %v7245 = vsel %vm1700, %v426, 0
        %v7247 = vsel %vm1700, %v427, 0
        %v7249 = vsel %vm1700, %v428, 0
        %v7251 = vsel %vm1700, %v429, 0
        %v7253 = vsel %vm1700, %v430, 0
        %v7255 = vsel %vm1700, %v431, 0
        %v7257 = vsel %vm1700, %v432, 0
        %v7259 = vsel %vm1700, %v433, 0
        %v7261 = vsel %vm1700, %v434, 0
        %v7263 = vsel %vm1700, %v435, 0
        %v7265 = vsel %vm1700, %v436, 0
        %v7267 = vsel %vm1700, %v437, 0
        %v7269 = vsel %vm1700, %v438, 0
        %v7271 = vsel %vm1700, %v439, 0
        %v7273 = vsel %vm1700, %v440, 0
        %v7275 = vsel %vm1700, %v441, 0
        %v7277 = vsel %vm1700, %v442, 0
        %v7279 = vsel %vm1700, %v443, 0
        %v7281 = vsel %vm1700, %v444, 0
        %v7283 = vsel %vm1781, %v7218, 0
        %7285 = vmatpush.msra.mxu0 0.0
        %7286 = vmatpush.msra.mxu0 0.0
        %7287 = vmatpush.msra.mxu0 0.0
        %7288 = vmatpush.msra.mxu0 0.0
        %7289 = vmatpush.msra.mxu0 0.0
        %7290 = vmatpush.msra.mxu0 0.0
        %7291 = vmatpush.msra.mxu0 0.0
        %7292 = vmatpush.msra.mxu0 0.0
        %7293 = vmatpush.msra.mxu0 0.0
        %7294 = vmatpush.msra.mxu0 0.0
        %7295 = vmatpush.msra.mxu0 0.0
        %7296 = vmatpush.msra.mxu0 0.0
        %7297 = vmatpush.msra.mxu0 0.0
        %7298 = vmatpush.msra.mxu0 0.0
        %7299 = vmatpush.msra.mxu0 0.0
        %7300 = vmatpush.msra.mxu0 %v7283
        %7301 = vmatmul.f32.gmra.mxu0 %v7219
        %v7302 = vpop.f32.mrf.mxu0
        %v7303 = vadd.f32 0.0, %v7302
        %7304 = vmatmul.f32.gmra.mxu0 %v7221
        %v7305 = vpop.f32.mrf.mxu0
        %v7306 = vadd.f32 0.0, %v7305
        %7307 = vmatmul.f32.gmra.mxu0 %v7223
        %v7308 = vpop.f32.mrf.mxu0
        %v7309 = vadd.f32 0.0, %v7308
        %7310 = vmatmul.f32.gmra.mxu0 %v7225
        %v7311 = vpop.f32.mrf.mxu0
        %v7312 = vadd.f32 0.0, %v7311
        %7313 = vmatmul.f32.gmra.mxu0 %v7227
        %v7314 = vpop.f32.mrf.mxu0
        %v7315 = vadd.f32 0.0, %v7314
        %7316 = vmatmul.f32.gmra.mxu0 %v7229
        %v7317 = vpop.f32.mrf.mxu0
        %v7318 = vadd.f32 0.0, %v7317
        %7319 = vmatmul.f32.gmra.mxu0 %v7231
        %v7320 = vpop.f32.mrf.mxu0
        %v7321 = vadd.f32 0.0, %v7320
        %7322 = vmatmul.f32.gmra.mxu0 %v7233
        %v7323 = vpop.f32.mrf.mxu0
        %v7324 = vadd.f32 0.0, %v7323
        %7325 = vmatmul.f32.gmra.mxu0 %v7235
        %v7326 = vpop.f32.mrf.mxu0
        %v7327 = vadd.f32 0.0, %v7326
        %7328 = vmatmul.f32.gmra.mxu0 %v7237
        %v7329 = vpop.f32.mrf.mxu0
        %v7330 = vadd.f32 0.0, %v7329
        %7331 = vmatmul.f32.gmra.mxu0 %v7239
        %v7332 = vpop.f32.mrf.mxu0
        %v7333 = vadd.f32 0.0, %v7332
        %7334 = vmatmul.f32.gmra.mxu0 %v7241
        %v7335 = vpop.f32.mrf.mxu0
        %v7336 = vadd.f32 0.0, %v7335
        %7337 = vmatmul.f32.gmra.mxu0 %v7243
        %v7338 = vpop.f32.mrf.mxu0
        %v7339 = vadd.f32 0.0, %v7338
        %7340 = vmatmul.f32.gmra.mxu0 %v7245
        %v7341 = vpop.f32.mrf.mxu0
        %v7342 = vadd.f32 0.0, %v7341
        %7343 = vmatmul.f32.gmra.mxu0 %v7247
        %v7344 = vpop.f32.mrf.mxu0
        %v7345 = vadd.f32 0.0, %v7344
        %7346 = vmatmul.f32.gmra.mxu0 %v7249
        %v7347 = vpop.f32.mrf.mxu0
        %v7348 = vadd.f32 0.0, %v7347
        %7349 = vmatmul.f32.gmra.mxu0 %v7251
        %v7350 = vpop.f32.mrf.mxu0
        %v7351 = vadd.f32 0.0, %v7350
        %7352 = vmatmul.f32.gmra.mxu0 %v7253
        %v7353 = vpop.f32.mrf.mxu0
        %v7354 = vadd.f32 0.0, %v7353
        %7355 = vmatmul.f32.gmra.mxu0 %v7255
        %v7356 = vpop.f32.mrf.mxu0
        %v7357 = vadd.f32 0.0, %v7356
        %7358 = vmatmul.f32.gmra.mxu0 %v7257
        %v7359 = vpop.f32.mrf.mxu0
        %v7360 = vadd.f32 0.0, %v7359
        %7361 = vmatmul.f32.gmra.mxu0 %v7259
        %v7362 = vpop.f32.mrf.mxu0
        %v7363 = vadd.f32 0.0, %v7362
        %7364 = vmatmul.f32.gmra.mxu0 %v7261
        %v7365 = vpop.f32.mrf.mxu0
        %v7366 = vadd.f32 0.0, %v7365
        %7367 = vmatmul.f32.gmra.mxu0 %v7263
        %v7368 = vpop.f32.mrf.mxu0
        %v7369 = vadd.f32 0.0, %v7368
        %7370 = vmatmul.f32.gmra.mxu0 %v7265
        %v7371 = vpop.f32.mrf.mxu0
        %v7372 = vadd.f32 0.0, %v7371
        %7373 = vmatmul.f32.gmra.mxu0 %v7267
        %v7374 = vpop.f32.mrf.mxu0
        %v7375 = vadd.f32 0.0, %v7374
        %7376 = vmatmul.f32.gmra.mxu0 %v7269
        %v7377 = vpop.f32.mrf.mxu0
        %v7378 = vadd.f32 0.0, %v7377
        %7379 = vmatmul.f32.gmra.mxu0 %v7271
        %v7380 = vpop.f32.mrf.mxu0
        %v7381 = vadd.f32 0.0, %v7380
        %7382 = vmatmul.f32.gmra.mxu0 %v7273
        %v7383 = vpop.f32.mrf.mxu0
        %v7384 = vadd.f32 0.0, %v7383
        %7385 = vmatmul.f32.gmra.mxu0 %v7275
        %v7386 = vpop.f32.mrf.mxu0
        %v7387 = vadd.f32 0.0, %v7386
        %7388 = vmatmul.f32.gmra.mxu0 %v7277
        %v7389 = vpop.f32.mrf.mxu0
        %v7390 = vadd.f32 0.0, %v7389
        %7391 = vmatmul.f32.gmra.mxu0 %v7279
        %v7392 = vpop.f32.mrf.mxu0
        %v7393 = vadd.f32 0.0, %v7392
        %7394 = vmatmul.f32.gmra.mxu0 %v7281
        %v7395 = vpop.f32.mrf.mxu0
        %v7396 = vadd.f32 0.0, %v7395
        %7397 = vdwg.mxu0
        %v7398 = vsel %vm1700, %v1349, 0
        %v7400 = vsel %vm1700, %v1350, 0
        %v7402 = vsel %vm1700, %v1351, 0
        %v7404 = vsel %vm1700, %v1352, 0
        %v7406 = vsel %vm1700, %v1353, 0
        %v7408 = vsel %vm1700, %v1354, 0
        %v7410 = vsel %vm1700, %v1355, 0
        %v7412 = vsel %vm1700, %v1356, 0
        %v7414 = vsel %vm1700, %v1357, 0
        %v7416 = vsel %vm1700, %v1358, 0
        %v7418 = vsel %vm1700, %v1359, 0
        %v7420 = vsel %vm1700, %v1360, 0
        %v7422 = vsel %vm1700, %v1361, 0
        %v7424 = vsel %vm1700, %v1362, 0
        %v7426 = vsel %vm1700, %v1363, 0
        %v7428 = vsel %vm1700, %v1364, 0
        %v7430 = vsel %vm1700, %v1365, 0
        %v7432 = vsel %vm1700, %v1366, 0
        %v7434 = vsel %vm1700, %v1367, 0
        %v7436 = vsel %vm1700, %v1368, 0
        %v7438 = vsel %vm1700, %v1369, 0
        %v7440 = vsel %vm1700, %v1370, 0
        %v7442 = vsel %vm1700, %v1371, 0
        %v7444 = vsel %vm1700, %v1372, 0
        %v7446 = vsel %vm1700, %v1373, 0
        %v7448 = vsel %vm1700, %v1374, 0
        %v7450 = vsel %vm1700, %v1375, 0
        %v7452 = vsel %vm1700, %v1376, 0
        %v7454 = vsel %vm1700, %v1377, 0
        %v7456 = vsel %vm1700, %v1378, 0
        %v7458 = vsel %vm1700, %v1379, 0
        %v7460 = vsel %vm1700, %v1380, 0
        %v7462 = vsel %vm1781, %v1399, 0
        %7464 = vmatpush.msra.mxu0 0.0
        %7465 = vmatpush.msra.mxu0 0.0
        %7466 = vmatpush.msra.mxu0 0.0
        %7467 = vmatpush.msra.mxu0 0.0
        %7468 = vmatpush.msra.mxu0 0.0
        %7469 = vmatpush.msra.mxu0 0.0
        %7470 = vmatpush.msra.mxu0 0.0
        %7471 = vmatpush.msra.mxu0 0.0
        %7472 = vmatpush.msra.mxu0 0.0
        %7473 = vmatpush.msra.mxu0 0.0
        %7474 = vmatpush.msra.mxu0 0.0
        %7475 = vmatpush.msra.mxu0 0.0
        %7476 = vmatpush.msra.mxu0 0.0
        %7477 = vmatpush.msra.mxu0 0.0
        %7478 = vmatpush.msra.mxu0 0.0
        %7479 = vmatpush.msra.mxu0 %v7462
        %7480 = vmatmul.f32.gmra.mxu0 %v7398
        %v7481 = vpop.f32.mrf.mxu0
        %v7482 = vadd.f32 %v7303, %v7481
        %7483 = vmatmul.f32.gmra.mxu0 %v7400
        %v7484 = vpop.f32.mrf.mxu0
        %v7485 = vadd.f32 %v7306, %v7484
        %7486 = vmatmul.f32.gmra.mxu0 %v7402
        %v7487 = vpop.f32.mrf.mxu0
        %v7488 = vadd.f32 %v7309, %v7487
        %7489 = vmatmul.f32.gmra.mxu0 %v7404
        %v7490 = vpop.f32.mrf.mxu0
        %v7491 = vadd.f32 %v7312, %v7490
        %7492 = vmatmul.f32.gmra.mxu0 %v7406
        %v7493 = vpop.f32.mrf.mxu0
        %v7494 = vadd.f32 %v7315, %v7493
        %7495 = vmatmul.f32.gmra.mxu0 %v7408
        %v7496 = vpop.f32.mrf.mxu0
        %v7497 = vadd.f32 %v7318, %v7496
        %7498 = vmatmul.f32.gmra.mxu0 %v7410
        %v7499 = vpop.f32.mrf.mxu0
        %v7500 = vadd.f32 %v7321, %v7499
        %7501 = vmatmul.f32.gmra.mxu0 %v7412
        %v7502 = vpop.f32.mrf.mxu0
        %v7503 = vadd.f32 %v7324, %v7502
        %7504 = vmatmul.f32.gmra.mxu0 %v7414
        %v7505 = vpop.f32.mrf.mxu0
        %v7506 = vadd.f32 %v7327, %v7505
        %7507 = vmatmul.f32.gmra.mxu0 %v7416
        %v7508 = vpop.f32.mrf.mxu0
        %v7509 = vadd.f32 %v7330, %v7508
        %7510 = vmatmul.f32.gmra.mxu0 %v7418
        %v7511 = vpop.f32.mrf.mxu0
        %v7512 = vadd.f32 %v7333, %v7511
        %7513 = vmatmul.f32.gmra.mxu0 %v7420
        %v7514 = vpop.f32.mrf.mxu0
        %v7515 = vadd.f32 %v7336, %v7514
        %7516 = vmatmul.f32.gmra.mxu0 %v7422
        %v7517 = vpop.f32.mrf.mxu0
        %v7518 = vadd.f32 %v7339, %v7517
        %7519 = vmatmul.f32.gmra.mxu0 %v7424
        %v7520 = vpop.f32.mrf.mxu0
        %v7521 = vadd.f32 %v7342, %v7520
        %7522 = vmatmul.f32.gmra.mxu0 %v7426
        %v7523 = vpop.f32.mrf.mxu0
        %v7524 = vadd.f32 %v7345, %v7523
        %7525 = vmatmul.f32.gmra.mxu0 %v7428
        %v7526 = vpop.f32.mrf.mxu0
        %v7527 = vadd.f32 %v7348, %v7526
        %7528 = vmatmul.f32.gmra.mxu0 %v7430
        %v7529 = vpop.f32.mrf.mxu0
        %v7530 = vadd.f32 %v7351, %v7529
        %7531 = vmatmul.f32.gmra.mxu0 %v7432
        %v7532 = vpop.f32.mrf.mxu0
        %v7533 = vadd.f32 %v7354, %v7532
        %7534 = vmatmul.f32.gmra.mxu0 %v7434
        %v7535 = vpop.f32.mrf.mxu0
        %v7536 = vadd.f32 %v7357, %v7535
        %7537 = vmatmul.f32.gmra.mxu0 %v7436
        %v7538 = vpop.f32.mrf.mxu0
        %v7539 = vadd.f32 %v7360, %v7538
        %7540 = vmatmul.f32.gmra.mxu0 %v7438
        %v7541 = vpop.f32.mrf.mxu0
        %v7542 = vadd.f32 %v7363, %v7541
        %7543 = vmatmul.f32.gmra.mxu0 %v7440
        %v7544 = vpop.f32.mrf.mxu0
        %v7545 = vadd.f32 %v7366, %v7544
        %7546 = vmatmul.f32.gmra.mxu0 %v7442
        %v7547 = vpop.f32.mrf.mxu0
        %v7548 = vadd.f32 %v7369, %v7547
        %7549 = vmatmul.f32.gmra.mxu0 %v7444
        %v7550 = vpop.f32.mrf.mxu0
        %v7551 = vadd.f32 %v7372, %v7550
        %7552 = vmatmul.f32.gmra.mxu0 %v7446
        %v7553 = vpop.f32.mrf.mxu0
        %v7554 = vadd.f32 %v7375, %v7553
        %7555 = vmatmul.f32.gmra.mxu0 %v7448
        %v7556 = vpop.f32.mrf.mxu0
        %v7557 = vadd.f32 %v7378, %v7556
        %7558 = vmatmul.f32.gmra.mxu0 %v7450
        %v7559 = vpop.f32.mrf.mxu0
        %v7560 = vadd.f32 %v7381, %v7559
        %7561 = vmatmul.f32.gmra.mxu0 %v7452
        %v7562 = vpop.f32.mrf.mxu0
        %v7563 = vadd.f32 %v7384, %v7562
        %7564 = vmatmul.f32.gmra.mxu0 %v7454
        %v7565 = vpop.f32.mrf.mxu0
        %v7566 = vadd.f32 %v7387, %v7565
        %7567 = vmatmul.f32.gmra.mxu0 %v7456
        %v7568 = vpop.f32.mrf.mxu0
        %v7569 = vadd.f32 %v7390, %v7568
        %7570 = vmatmul.f32.gmra.mxu0 %v7458
        %v7571 = vpop.f32.mrf.mxu0
        %v7572 = vadd.f32 %v7393, %v7571
        %7573 = vmatmul.f32.gmra.mxu0 %v7460
        %v7574 = vpop.f32.mrf.mxu0
        %v7575 = vadd.f32 %v7396, %v7574
        %7576 = vdwg.mxu0
        %v7577 = vld [vmem:[%s10] sm:$0x1]
        %v7579 = vperm.slane %v7577, 0
        %v7581 = vadd.f32 %v7482, %v7579
        %v7582 = vadd.f32 %v7485, %v7579
        %v7583 = vadd.f32 %v7488, %v7579
        %v7584 = vadd.f32 %v7491, %v7579
        %v7585 = vadd.f32 %v7494, %v7579
        %v7586 = vadd.f32 %v7497, %v7579
        %v7587 = vadd.f32 %v7500, %v7579
        %v7588 = vadd.f32 %v7503, %v7579
        %v7589 = vadd.f32 %v7506, %v7579
        %v7590 = vadd.f32 %v7509, %v7579
        %v7591 = vadd.f32 %v7512, %v7579
        %v7592 = vadd.f32 %v7515, %v7579
        %v7593 = vadd.f32 %v7518, %v7579
        %v7594 = vadd.f32 %v7521, %v7579
        %v7595 = vadd.f32 %v7524, %v7579
        %v7596 = vadd.f32 %v7527, %v7579
        %v7597 = vadd.f32 %v7530, %v7579
        %v7598 = vadd.f32 %v7533, %v7579
        %v7599 = vadd.f32 %v7536, %v7579
        %v7600 = vadd.f32 %v7539, %v7579
        %v7601 = vadd.f32 %v7542, %v7579
        %v7602 = vadd.f32 %v7545, %v7579
        %v7603 = vadd.f32 %v7548, %v7579
        %v7604 = vadd.f32 %v7551, %v7579
        %v7605 = vadd.f32 %v7554, %v7579
        %v7606 = vadd.f32 %v7557, %v7579
        %v7607 = vadd.f32 %v7560, %v7579
        %v7608 = vadd.f32 %v7563, %v7579
        %v7609 = vadd.f32 %v7566, %v7579
        %v7610 = vadd.f32 %v7569, %v7579
        %v7611 = vadd.f32 %v7572, %v7579
        %v7612 = vadd.f32 %v7575, %v7579
        %v7613 = vadd.f32 %v7185, %v7581
        %v7614 = vadd.f32 %v7186, %v7582
        %v7615 = vadd.f32 %v7187, %v7583
        %v7616 = vadd.f32 %v7188, %v7584
        %v7617 = vadd.f32 %v7189, %v7585
        %v7618 = vadd.f32 %v7190, %v7586
        %v7619 = vadd.f32 %v7191, %v7587
        %v7620 = vadd.f32 %v7192, %v7588
        %v7621 = vadd.f32 %v7193, %v7589
        %v7622 = vadd.f32 %v7194, %v7590
        %v7623 = vadd.f32 %v7195, %v7591
        %v7624 = vadd.f32 %v7196, %v7592
        %v7625 = vadd.f32 %v7197, %v7593
        %v7626 = vadd.f32 %v7198, %v7594
        %v7627 = vadd.f32 %v7199, %v7595
        %v7628 = vadd.f32 %v7200, %v7596
        %v7629 = vadd.f32 %v7201, %v7597
        %v7630 = vadd.f32 %v7202, %v7598
        %v7631 = vadd.f32 %v7203, %v7599
        %v7632 = vadd.f32 %v7204, %v7600
        %v7633 = vadd.f32 %v7205, %v7601
        %v7634 = vadd.f32 %v7206, %v7602
        %v7635 = vadd.f32 %v7207, %v7603
        %v7636 = vadd.f32 %v7208, %v7604
        %v7637 = vadd.f32 %v7209, %v7605
        %v7638 = vadd.f32 %v7210, %v7606
        %v7639 = vadd.f32 %v7211, %v7607
        %v7640 = vadd.f32 %v7212, %v7608
        %v7641 = vadd.f32 %v7213, %v7609
        %v7642 = vadd.f32 %v7214, %v7610
        %v7643 = vadd.f32 %v7215, %v7611
        %v7644 = vadd.f32 %v7216, %v7612
        %7645 = vxpose.xlu0.b32.start [1/16] %v7613, 128
        %7646 = vxpose.xlu0.b32.cont [2/16] %v7614, 128
        %7647 = vxpose.xlu0.b32.cont [3/16] %v7615, 128
        %7648 = vxpose.xlu0.b32.cont [4/16] %v7616, 128
        %7649 = vxpose.xlu0.b32.cont [5/16] %v7617, 128
        %7650 = vxpose.xlu0.b32.cont [6/16] %v7618, 128
        %7651 = vxpose.xlu0.b32.cont [7/16] %v7619, 128
        %7652 = vxpose.xlu0.b32.cont [8/16] %v7620, 128
        %7653 = vxpose.xlu0.b32.cont [9/16] %v7621, 128
        %7654 = vxpose.xlu0.b32.cont [10/16] %v7622, 128
        %7655 = vxpose.xlu0.b32.cont [11/16] %v7623, 128
        %7656 = vxpose.xlu0.b32.cont [12/16] %v7624, 128
        %7657 = vxpose.xlu0.b32.cont [13/16] %v7625, 128
        %7658 = vxpose.xlu0.b32.cont [14/16] %v7626, 128
        %7659 = vxpose.xlu0.b32.cont [15/16] %v7627, 128
        %7660 = vxpose.xlu0.b32.end [16/16] %v7628, 128
        %v7661 = vpop.trf.xlu0
        %v7662 = vpop.trf.xlu0
        %v7663 = vpop.trf.xlu0
        %v7664 = vpop.trf.xlu0
        %v7665 = vpop.trf.xlu0
        %v7666 = vpop.trf.xlu0
        %v7667 = vpop.trf.xlu0
        %v7668 = vpop.trf.xlu0
        %v7669 = vpop.trf.xlu0
        %v7670 = vpop.trf.xlu0
        %v7671 = vpop.trf.xlu0
        %v7672 = vpop.trf.xlu0
        %v7673 = vpop.trf.xlu0
        %v7674 = vpop.trf.xlu0
        %v7675 = vpop.trf.xlu0
        %v7676 = vpop.trf.xlu0
        %7677 = vxpose.xlu0.b32.start [1/16] %v7629, 128
        %7678 = vxpose.xlu0.b32.cont [2/16] %v7630, 128
        %7679 = vxpose.xlu0.b32.cont [3/16] %v7631, 128
        %7680 = vxpose.xlu0.b32.cont [4/16] %v7632, 128
        %7681 = vxpose.xlu0.b32.cont [5/16] %v7633, 128
        %7682 = vxpose.xlu0.b32.cont [6/16] %v7634, 128
        %7683 = vxpose.xlu0.b32.cont [7/16] %v7635, 128
        %7684 = vxpose.xlu0.b32.cont [8/16] %v7636, 128
        %7685 = vxpose.xlu0.b32.cont [9/16] %v7637, 128
        %7686 = vxpose.xlu0.b32.cont [10/16] %v7638, 128
        %7687 = vxpose.xlu0.b32.cont [11/16] %v7639, 128
        %7688 = vxpose.xlu0.b32.cont [12/16] %v7640, 128
        %7689 = vxpose.xlu0.b32.cont [13/16] %v7641, 128
        %7690 = vxpose.xlu0.b32.cont [14/16] %v7642, 128
        %7691 = vxpose.xlu0.b32.cont [15/16] %v7643, 128
        %7692 = vxpose.xlu0.b32.end [16/16] %v7644, 128
        %v7693 = vpop.trf.xlu0
        %v7694 = vpop.trf.xlu0
        %v7695 = vpop.trf.xlu0
        %v7696 = vpop.trf.xlu0
        %v7697 = vpop.trf.xlu0
        %v7698 = vpop.trf.xlu0
        %v7699 = vpop.trf.xlu0
        %v7700 = vpop.trf.xlu0
        %v7701 = vpop.trf.xlu0
        %v7702 = vpop.trf.xlu0
        %v7703 = vpop.trf.xlu0
        %v7704 = vpop.trf.xlu0
        %v7705 = vpop.trf.xlu0
        %v7706 = vpop.trf.xlu0
        %v7707 = vpop.trf.xlu0
        %v7708 = vpop.trf.xlu0
        %v7711 = vrot.slane %v7693, 4
        %v7712 = vsel %vm1781, %v7661, %v7711
        %7714 = vst [vmem:[%s394] sm:$0xff] %v7712
        %s7715 = sand.u32 %s274, 1
        %s7716 = scalar_lea.sflag [#allocation3], %s7715
        %s7717 = sand.u32 %s274, 1
        %s7718 = smul.addr %s7717, 8
        %s7719 = scalar_lea.vmem [#allocation2], %s7718
        // Predicated region
        $region65: #{tpu_custom_call.1} parent=63 // pred_check
          %p7720 = pneg %p284
        $region66: #{tpu_custom_call.1} parent=63 // pred_check_branch
          %7722 = sbr.rel (%p7720) target = $region68
        $region67: #{tpu_custom_call.1} parent=63 // pred_region
          %7724 = vsyncadd %s7716, 0
          %s7725 = smul.addr %s25, 2
          %s7726 = smul.addr %s7725, 4
          %s7727 = scalar_lea.hbm %s11, %s7726
          %s7729 = sshll.u32 %s7719, 4
          %s7730 = int_to_ptr.vmem [resolvable:$true] %s7729
          %s7731 = sshll.u32 %s7727, 4
          %s7732 = int_to_ptr.hbm [resolvable:$true] %s7731
          %7734 = dma.vmem_to_hbm [thread:$0]  %s7730, 128, %s7732, %s7716
        $region68: #{tpu_custom_call.1} parent=63 // pred_fallthru
          _
      $region64: #{tpu_custom_call.1} parent=5 // pred_fallthru
        _
      %p7735 = scmp.le.s32.totalorder 2, %s20
      // Predicated region
      $region69: #{tpu_custom_call.1} parent=5 // pred_check
        %p7736 = pneg %p7735
      $region70: #{tpu_custom_call.1} parent=5 // pred_check_branch
        %7738 = sbr.rel (%p7736) target = $region72
      $region71: #{tpu_custom_call.1} parent=5 // pred_region
        %s7739 = ssub.s32 %s20, 2
        // Predicated region
        $region73: #{tpu_custom_call.1} parent=71 // pred_check
          %p7740 = pneg %p290
        $region74: #{tpu_custom_call.1} parent=71 // pred_check_branch
          %7742 = sbr.rel (%p7740) target = $region76
        $region75: #{tpu_custom_call.1} parent=71 // pred_region
          %s7743 = sand.u32 %s275, 1
          %s7744 = scalar_lea.sflag [#allocation3], %s7743
          %s7745 = sand.u32 %s275, 1
          %s7746 = smul.addr %s7745, 8
          %s7747 = scalar_lea.vmem [#allocation2], %s7746
          %7749 = dma.done %s7744, 128
        $region76: #{tpu_custom_call.1} parent=71 // pred_fallthru
          _
      $region72: #{tpu_custom_call.1} parent=5 // pred_fallthru
        _
    $region6: #{tpu_custom_call.1} parent=1 // loop_footer
      %s24 = sadd.s32 1, %s20
    $region7: #{tpu_custom_call.1} parent=1 // loop_footer_branch
      %19 = sbr.rel target = $region3
    $region8: #{tpu_custom_call.1} parent=1 // loop_exit
      _
    %7750 = vsyncpa [#allocation3], 1
    %s7751 = scalar_lea.sflag [#allocation3], 1
    %7752 = vsyncpa %s7751, 1

</llo_original>
